<compile_context>
chip_gen: v6e
topology: v6e:2x2x1
jax: 0.10.0
libtpu: 0.0.40
codegen_flags: <defaults>
</compile_context>

<pallas_src>
import numpy as np
import jax
import jax.numpy as jnp
from jax.experimental import pallas as pl
from jax.experimental.pallas import tpu as pltpu

OUT_CH, KH, KW = 4, 4, 4
H_IN = W_IN = 28
H_OUT = W_OUT = H_IN - KH + 1            # 25 (VALID conv, stride 1)
IN_FLAT = H_IN * W_IN                    # 784 pixels per image
FLAT = OUT_CH * H_OUT * W_OUT            # 4 * 25 * 25 = 2500
FLAT_PAD = 2560                          # 20 * 128: lane-aligned K for fc3
HID = 128
NCLS = 10
NCLS_PAD = 128                           # lane-dense logits store; sliced to 10 outside


def _fused_forward_kernel(x_ref, wband_ref, b1_ref, w3_ref, b3_ref, w4_ref, b4_ref,
                          o_ref, flat_ref):
    # x_ref:     (TILE_B, 784) f32   flattened images (row-major NCHW order)
    # wband_ref: (784, 2560) bf16    banded conv weight (conv + flatten as one matmul)
    # b1_ref:    (1, 2560) f32       conv bias broadcast per output-channel column band
    # w3_ref:    (2560, 128) bf16    fc3 weight (pre-transposed, zero K-pad rows)
    # b3_ref:    (1, 128) f32
    # w4_ref:    (128, 128) bf16     fc4 weight (pre-transposed, zero N-pad cols)
    # b4_ref:    (1, 128) f32
    # o_ref:     (TILE_B, 128) f32   padded logits (unmasked, lane-dense store)
    # flat_ref:  (TILE_B, 2560) bf16 scratch: flattened conv+ReLU activations

    # Conv(1->4, 4x4, VALID) + bias + ReLU + flatten == one bf16 MXU matmul with f32
    # accumulation against the banded weight.  Pad columns (2500..2559) of Wband and
    # b1_row are zero, so they come out as exact zeros after ReLU (and w3's pad rows
    # are zero too), i.e. no separate memset of the scratch tail is needed.
    x = x_ref[...].astype(jnp.bfloat16)
    conv = jnp.dot(x, wband_ref[...], preferred_element_type=jnp.float32) + b1_ref[...]
    flat_ref[...] = jnp.maximum(conv, 0.0).astype(jnp.bfloat16)

    # fc3: (TILE_B, 2560) @ (2560, 128), bf16 x bf16 -> f32.  The PyTorch module has
    # no activation after fc3, so none here either.
    hid = jnp.dot(flat_ref[...], w3_ref[...], preferred_element_type=jnp.float32) + b3_ref[...]

    # fc4: (TILE_B, 128) @ (128, 128), also bf16 on the MXU; padded columns are zero.
    o_ref[...] = (jnp.dot(hid.astype(jnp.bfloat16), w4_ref[...],
                          preferred_element_type=jnp.float32) + b4_ref[...])


def _round_up(x, m):
    return (x + m - 1) // m * m


def _build_band_weight(w1):
    """(4,4,4) conv weight -> (784, 2560) banded matrix Wband such that
    (x_flat @ Wband)[b, c*625 + h*25 + w] == Conv2d(x, w1)[b, c, h, w]."""
    hh, ww = np.meshgrid(np.arange(H_OUT), np.arange(W_OUT), indexing="ij")
    rows, cols, taps = [], [], []
    for c in range(OUT_CH):
        for u in range(KH):
            for v in range(KW):
                rows.append(((hh + u) * W_IN + (ww + v)).ravel())
                cols.append((c * H_OUT * W_OUT + hh * W_OUT + ww).ravel())
                taps.append(np.full(H_OUT * W_OUT, c * KH * KW + u * KW + v))
    rows = np.concatenate(rows)
    cols = np.concatenate(cols)
    taps = np.concatenate(taps)
    vals = jnp.asarray(w1, jnp.float32).reshape(-1)[taps]
    wband = jnp.zeros((IN_FLAT, FLAT_PAD), jnp.float32).at[rows, cols].set(vals)
    return wband.astype(jnp.bfloat16)


def conv2dnn_forward(x_nchw, params, *, tile_b=None):
    """Forward pass of Conv2DNN. x_nchw: (B, 1, 28, 28) f32 -> logits (B, 10) f32."""
    w1, b1, w3, b3, w4, b4 = params
    B = x_nchw.shape[0]

    if tile_b is None:
        # ~22 MB of VMEM/step including double buffering: fits every generation's
        # scoped limit.  For B in (tile_b, 2*tile_b] the grid already has >= 2 steps,
        # so v7x's two TensorCores both get work via the "parallel" batch axis.
        tile_b = 512
    tile_b = _round_up(max(8, min(tile_b, _round_up(B, 8))), 8)
    b_pad = _round_up(B, tile_b)

    # Free row-major reshape (no transpose / relayout copy); pad batch only if needed.
    x_flat = x_nchw.reshape(B, -1).astype(jnp.float32)          # (B, 784)
    if b_pad != B:
        x_flat = jnp.pad(x_flat, ((0, b_pad - B), (0, 0)))

    wband = _build_band_weight(w1)                               # (784, 2560) bf16
    b1row = jnp.concatenate(
        [jnp.repeat(b1.astype(jnp.float32), H_OUT * W_OUT),
         jnp.zeros((FLAT_PAD - FLAT,), jnp.float32)]).reshape(1, FLAT_PAD)
    w3p = jnp.pad(w3, ((0, FLAT_PAD - FLAT), (0, 0))).astype(jnp.bfloat16)  # zero K-pad rows
    b3r = b3.reshape(1, HID).astype(jnp.float32)
    w4p = jnp.pad(w4, ((0, 0), (0, NCLS_PAD - NCLS))).astype(jnp.bfloat16)  # zero N-pad cols
    b4p = jnp.pad(b4, (0, NCLS_PAD - NCLS)).reshape(1, NCLS_PAD).astype(jnp.float32)

    out_pad = pl.pallas_call(
        _fused_forward_kernel,
        out_shape=jax.ShapeDtypeStruct((b_pad, NCLS_PAD), jnp.float32),
        grid=(b_pad // tile_b,),
        in_specs=[
            pl.BlockSpec((tile_b, IN_FLAT), lambda i: (i, 0)),     # images (lane-dense)
            pl.BlockSpec((IN_FLAT, FLAT_PAD), lambda i: (0, 0)),   # Wband (VMEM-resident)
            pl.BlockSpec((1, FLAT_PAD), lambda i: (0, 0)),         # conv bias row
            pl.BlockSpec((FLAT_PAD, HID), lambda i: (0, 0)),       # w3 (VMEM-resident)
            pl.BlockSpec((1, HID), lambda i: (0, 0)),              # b3
            pl.BlockSpec((HID, NCLS_PAD), lambda i: (0, 0)),       # w4 (VMEM-resident)
            pl.BlockSpec((1, NCLS_PAD), lambda i: (0, 0)),         # b4
        ],
        out_specs=pl.BlockSpec((tile_b, NCLS_PAD), lambda i: (i, 0)),
        scratch_shapes=[pltpu.VMEM((tile_b, FLAT_PAD), jnp.bfloat16)],
        compiler_params=pltpu.CompilerParams(
            dimension_semantics=("parallel",),
            vmem_limit_bytes=48 * 1024 * 1024,
        ),
    )(x_flat, wband, b1row, w3p, b3r, w4p, b4p)

    return out_pad[:B, :NCLS]


def init_params(key):
    # Deterministic, PyTorch-style uniform(-1/sqrt(fan_in), 1/sqrt(fan_in)) init.
    k1, k2, k3, k4, k5, k6 = jax.random.split(key, 6)
    b1_bound = 1.0 / (1 * KH * KW) ** 0.5
    w1 = jax.random.uniform(k1, (OUT_CH, KH, KW), jnp.float32, -b1_bound, b1_bound)
    b1 = jax.random.uniform(k2, (OUT_CH,), jnp.float32, -b1_bound, b1_bound)
    b3_bound = 1.0 / FLAT ** 0.5
    w3 = jax.random.uniform(k3, (FLAT, HID), jnp.float32, -b3_bound, b3_bound)
    b3 = jax.random.uniform(k4, (HID,), jnp.float32, -b3_bound, b3_bound)
    b4_bound = 1.0 / HID ** 0.5
    w4 = jax.random.uniform(k5, (HID, NCLS), jnp.float32, -b4_bound, b4_bound)
    b4 = jax.random.uniform(k6, (NCLS,), jnp.float32, -b4_bound, b4_bound)
    return (w1, b1, w3, b3, w4, b4)


def reference_forward(x, params):
    # Pure-JAX f32 reference mirroring the PyTorch forward (correctness check).
    w1, b1, w3, b3, w4, b4 = params
    y = jax.lax.conv_general_dilated(
        x, w1.reshape(OUT_CH, 1, KH, KW), window_strides=(1, 1), padding="VALID",
        dimension_numbers=("NCHW", "OIHW", "NCHW"),
        precision=jax.lax.Precision.HIGHEST)
    y = jnp.maximum(y + b1.reshape(1, OUT_CH, 1, 1), 0.0)
    y = y.reshape(x.shape[0], -1)
    h = jnp.dot(y, w3, precision=jax.lax.Precision.HIGHEST) + b3
    return jnp.dot(h, w4, precision=jax.lax.Precision.HIGHEST) + b4


if __name__ == "__main__":
    key = jax.random.PRNGKey(0)
    kx, kp = jax.random.split(key)
    # Spatial size is fixed by the module itself: fc3 expects 4*25*25, so H = W = 28.
    x = jax.random.normal(kx, (2, 1, 28, 28), dtype=jnp.float32)
    params = init_params(kp)

    out = conv2dnn_forward(x, params)
    out = jax.block_until_ready(out)
    assert out.shape == (2, NCLS), out.shape

    ref = reference_forward(x, params)
    max_err = float(jnp.max(jnp.abs(out - ref)))
    # Conv (banded matmul), fc3 and fc4 all run bf16 on the MXU with f32 accumulation;
    # expected error is a few 1e-3 while any layout/band-construction bug is O(0.1).
    assert jnp.allclose(out, ref, atol=2e-2, rtol=2e-2), f"max abs err = {max_err}"

    print("KERNEL_OK")
</pallas_src>

<mosaic_0001>
module attributes {stable_mosaic.version = 11 : i64} {
  func.func @_fused_forward_kernel(%arg0: i32, %arg1: memref<8x784xf32, #tpu.memory_space<vmem>>, %arg2: memref<784x2560xbf16, #tpu.memory_space<vmem>>, %arg3: memref<1x2560xf32, #tpu.memory_space<vmem>>, %arg4: memref<2560x128xbf16, #tpu.memory_space<vmem>>, %arg5: memref<1x128xf32, #tpu.memory_space<vmem>>, %arg6: memref<128x128xbf16, #tpu.memory_space<vmem>>, %arg7: memref<1x128xf32, #tpu.memory_space<vmem>>, %arg8: memref<8x128xf32, #tpu.memory_space<vmem>>, %arg9: memref<8x2560xbf16, #tpu.memory_space<vmem>>) attributes {dimension_semantics = [#tpu.dimension_semantics<parallel>], iteration_bounds = array<i64: 1>, scalar_prefetch = 0 : i64, scratch_operands = 1 : i64, tpu.core_type = #tpu.core_type<tc>, window_params = [{transform_indices = @transform_0, window_bounds = array<i64: 8, 784>}, {pipeline_mode = #tpu.pipeline_mode<synchronous>, transform_indices = @transform_1, window_bounds = array<i64: 784, 2560>}, {pipeline_mode = #tpu.pipeline_mode<synchronous>, transform_indices = @transform_2, window_bounds = array<i64: 1, 2560>}, {pipeline_mode = #tpu.pipeline_mode<synchronous>, transform_indices = @transform_3, window_bounds = array<i64: 2560, 128>}, {pipeline_mode = #tpu.pipeline_mode<synchronous>, transform_indices = @transform_4, window_bounds = array<i64: 1, 128>}, {pipeline_mode = #tpu.pipeline_mode<synchronous>, transform_indices = @transform_5, window_bounds = array<i64: 128, 128>}, {pipeline_mode = #tpu.pipeline_mode<synchronous>, transform_indices = @transform_6, window_bounds = array<i64: 1, 128>}, {transform_indices = @transform_7, window_bounds = array<i64: 8, 128>}]} {
    %c0 = arith.constant 0 : index
    %c0_0 = arith.constant 0 : index
    %0 = vector.load %arg1[%c0, %c0_0] : memref<8x784xf32, #tpu.memory_space<vmem>>, vector<8x784xf32>
    %1 = arith.truncf %0 : vector<8x784xf32> to vector<8x784xbf16>
    %c0_1 = arith.constant 0 : index
    %c0_2 = arith.constant 0 : index
    %2 = vector.load %arg2[%c0_1, %c0_2] : memref<784x2560xbf16, #tpu.memory_space<vmem>>, vector<784x2560xbf16>
    %cst = arith.constant dense<0.000000e+00> : vector<8x2560xf32>
    %3 = tpu.matmul %1, %2, %cst {dimension_numbers = #tpu.dot_dimension_numbers<[1], [0], [0], [1], [0, 0, 1, 1], [], []>} : vector<8x784xbf16>, vector<784x2560xbf16>, vector<8x2560xf32> -> vector<8x2560xf32>
    %c0_3 = arith.constant 0 : index
    %c0_4 = arith.constant 0 : index
    %4 = vector.load %arg3[%c0_3, %c0_4] : memref<1x2560xf32, #tpu.memory_space<vmem>>, vector<1x2560xf32>
    %5 = vector.broadcast %4 : vector<1x2560xf32> to vector<8x2560xf32>
    %6 = arith.addf %3, %5 : vector<8x2560xf32>
    %cst_5 = arith.constant 0.000000e+00 : f32
    %7 = vector.broadcast %cst_5 : f32 to vector<8x2560xf32>
    %8 = arith.maximumf %6, %7 : vector<8x2560xf32>
    %9 = arith.truncf %8 : vector<8x2560xf32> to vector<8x2560xbf16>
    %c0_6 = arith.constant 0 : index
    %c0_7 = arith.constant 0 : index
    %10 = vector.load %arg9[%c0_6, %c0_7] : memref<8x2560xbf16, #tpu.memory_space<vmem>>, vector<8x2560xbf16>
    tpu.vector_store %arg9[%c0_6, %c0_7], %9 {strides = array<i32>} : memref<8x2560xbf16, #tpu.memory_space<vmem>>, vector<8x2560xbf16>,
    %c0_8 = arith.constant 0 : index
    %c0_9 = arith.constant 0 : index
    %11 = vector.load %arg9[%c0_8, %c0_9] : memref<8x2560xbf16, #tpu.memory_space<vmem>>, vector<8x2560xbf16>
    %c0_10 = arith.constant 0 : index
    %c0_11 = arith.constant 0 : index
    %12 = vector.load %arg4[%c0_10, %c0_11] : memref<2560x128xbf16, #tpu.memory_space<vmem>>, vector<2560x128xbf16>
    %cst_12 = arith.constant dense<0.000000e+00> : vector<8x128xf32>
    %13 = tpu.matmul %11, %12, %cst_12 {dimension_numbers = #tpu.dot_dimension_numbers<[1], [0], [0], [1], [0, 0, 1, 1], [], []>} : vector<8x2560xbf16>, vector<2560x128xbf16>, vector<8x128xf32> -> vector<8x128xf32>
    %c0_13 = arith.constant 0 : index
    %c0_14 = arith.constant 0 : index
    %14 = vector.load %arg5[%c0_13, %c0_14] : memref<1x128xf32, #tpu.memory_space<vmem>>, vector<1x128xf32>
    %15 = vector.broadcast %14 : vector<1x128xf32> to vector<8x128xf32>
    %16 = arith.addf %13, %15 : vector<8x128xf32>
    %17 = arith.truncf %16 : vector<8x128xf32> to vector<8x128xbf16>
    %c0_15 = arith.constant 0 : index
    %c0_16 = arith.constant 0 : index
    %18 = vector.load %arg6[%c0_15, %c0_16] : memref<128x128xbf16, #tpu.memory_space<vmem>>, vector<128x128xbf16>
    %cst_17 = arith.constant dense<0.000000e+00> : vector<8x128xf32>
    %19 = tpu.matmul %17, %18, %cst_17 {dimension_numbers = #tpu.dot_dimension_numbers<[1], [0], [0], [1], [0, 0, 1, 1], [], []>} : vector<8x128xbf16>, vector<128x128xbf16>, vector<8x128xf32> -> vector<8x128xf32>
    %c0_18 = arith.constant 0 : index
    %c0_19 = arith.constant 0 : index
    %20 = vector.load %arg7[%c0_18, %c0_19] : memref<1x128xf32, #tpu.memory_space<vmem>>, vector<1x128xf32>
    %21 = vector.broadcast %20 : vector<1x128xf32> to vector<8x128xf32>
    %22 = arith.addf %19, %21 : vector<8x128xf32>
    %c0_20 = arith.constant 0 : index
    %c0_21 = arith.constant 0 : index
    %23 = vector.load %arg8[%c0_20, %c0_21] : memref<8x128xf32, #tpu.memory_space<vmem>>, vector<8x128xf32>
    tpu.vector_store %arg8[%c0_20, %c0_21], %22 {strides = array<i32>} : memref<8x128xf32, #tpu.memory_space<vmem>>, vector<8x128xf32>,
    return
  }
  func.func @transform_0(%arg0: i32) -> (i32, i32) {
    %c0_i32 = arith.constant 0 : i32
    %c0_i32_0 = arith.constant 0 : i32
    return %arg0, %c0_i32 : i32, i32
  }
  func.func @transform_1(%arg0: i32) -> (i32, i32) {
    %c0_i32 = arith.constant 0 : i32
    %c0_i32_0 = arith.constant 0 : i32
    %c0_i32_1 = arith.constant 0 : i32
    return %c0_i32, %c0_i32_0 : i32, i32
  }
  func.func @transform_2(%arg0: i32) -> (i32, i32) {
    %c0_i32 = arith.constant 0 : i32
    %c0_i32_0 = arith.constant 0 : i32
    %c0_i32_1 = arith.constant 0 : i32
    return %c0_i32, %c0_i32_0 : i32, i32
  }
  func.func @transform_3(%arg0: i32) -> (i32, i32) {
    %c0_i32 = arith.constant 0 : i32
    %c0_i32_0 = arith.constant 0 : i32
    %c0_i32_1 = arith.constant 0 : i32
    return %c0_i32, %c0_i32_0 : i32, i32
  }
  func.func @transform_4(%arg0: i32) -> (i32, i32) {
    %c0_i32 = arith.constant 0 : i32
    %c0_i32_0 = arith.constant 0 : i32
    %c0_i32_1 = arith.constant 0 : i32
    return %c0_i32, %c0_i32_0 : i32, i32
  }
  func.func @transform_5(%arg0: i32) -> (i32, i32) {
    %c0_i32 = arith.constant 0 : i32
    %c0_i32_0 = arith.constant 0 : i32
    %c0_i32_1 = arith.constant 0 : i32
    return %c0_i32, %c0_i32_0 : i32, i32
  }
  func.func @transform_6(%arg0: i32) -> (i32, i32) {
    %c0_i32 = arith.constant 0 : i32
    %c0_i32_0 = arith.constant 0 : i32
    %c0_i32_1 = arith.constant 0 : i32
    return %c0_i32, %c0_i32_0 : i32, i32
  }
  func.func @transform_7(%arg0: i32) -> (i32, i32) {
    %c0_i32 = arith.constant 0 : i32
    %c0_i32_0 = arith.constant 0 : i32
    return %arg0, %c0_i32 : i32, i32
  }
}

</mosaic_0001>

<llo_original>
// kernel: tpu_custom_call.1
$region0: #{tpu_custom_call.1}
  #allocation0 [shape = 'u32[]', space=smem, size = 0x4, offset = 0x4, fixed_abs, tag = 'smem constant byte address 0x4 - core index']
  #allocation1 [shape = 'u32[144,128]{1,0:T(1,128)}', space=vmem, size = 0x12000, scoped, tag = 'internal scratch']
  #allocation2 [shape = 'bf16[8,2560]{1,0:T(8,128)(2,1)}', space=vmem, size = 0xa000, scoped, tag = 'scratch operand']
  %s0 = inlined_call_operand.hbm [shape: f32[8,784], index: 0, kind: input, shape index: {}]
  %s1 = inlined_call_operand.hbm [shape: bf16[784,2560], index: 1, kind: input, shape index: {}]
  %s2 = inlined_call_operand.hbm [shape: f32[1,2560], index: 2, kind: input, shape index: {}]
  %s3 = inlined_call_operand.hbm [shape: bf16[2560,128], index: 3, kind: input, shape index: {}]
  %s4 = inlined_call_operand.hbm [shape: f32[1,128], index: 4, kind: input, shape index: {}]
  %s5 = inlined_call_operand.hbm [shape: bf16[128,128], index: 5, kind: input, shape index: {}]
  %s6 = inlined_call_operand.hbm [shape: f32[1,128], index: 6, kind: input, shape index: {}]
  %s7 = inlined_call_operand.hbm [shape: f32[8,128], index: 7, kind: output, shape index: {}]
  %s8 = sld [smem:[#allocation0]]
  $region66: #{tpu_custom_call.1} parent=0
    _
  %s10 = ssub.s32 1, %s8
  %s11 = scalar_select 0, %s10, %s8
  $region1: #{tpu_custom_call.1} parent=0
    #allocation3 [shape = 'u8[28672]{0}', space=vmem, size = 0x7000, scoped, tag = 'input window, operand 0, single buffered']
    #allocation4 [shape = 's32[1]{0}', space=sflag, size = 0x4, scoped, tag = 'scoped memory for tpu_custom_call.1']
    #allocation5 [shape = 's32[1]{0}', space=sflag, size = 0x4, scoped, tag = 'scoped memory for tpu_custom_call.1']
    #allocation6 [shape = 'u8[4014080]{0}', space=vmem, size = 0x3d4000, scoped, tag = 'input window, operand 1, single buffered']
    #allocation7 [shape = 's32[1]{0}', space=sflag, size = 0x4, scoped, tag = 'scoped memory for tpu_custom_call.1']
    #allocation8 [shape = 'u8[10240]{0}', space=vmem, size = 0x2800, scoped, tag = 'input window, operand 2, single buffered']
    #allocation9 [shape = 'u8[655360]{0}', space=vmem, size = 0xa0000, scoped, tag = 'input window, operand 3, single buffered']
    #allocation10 [shape = 's32[1]{0}', space=sflag, size = 0x4, scoped, tag = 'scoped memory for tpu_custom_call.1']
    #allocation11 [shape = 'u8[512]{0}', space=vmem, size = 0x400, scoped, tag = 'input window, operand 4, single buffered']
    #allocation12 [shape = 'u8[32768]{0}', space=vmem, size = 0x8000, scoped, tag = 'input window, operand 5, single buffered']
    #allocation13 [shape = 's32[1]{0}', space=sflag, size = 0x4, scoped, tag = 'scoped memory for tpu_custom_call.1']
    #allocation14 [shape = 'u8[512]{0}', space=vmem, size = 0x400, scoped, tag = 'input window, operand 6, single buffered']
    #allocation15 [shape = 'u8[4096]{0}', space=vmem, size = 0x1000, scoped, tag = 'output window, operand 0, single buffered']
    %12 = vsyncpa [#allocation4], 0
    %13 = vsyncpa [#allocation7], 0
    %14 = vsyncpa [#allocation10], 0
    %15 = vsyncpa [#allocation13], 0
    %16 = vsyncpa [#allocation5], 0
    // Predicated region
    $region2: #{tpu_custom_call.1} parent=1 // pred_check
      _
    $region3: #{tpu_custom_call.1} parent=1 // pred_check_branch
      %18 = sbr.rel (0) target = $region5
    $region4: #{tpu_custom_call.1} parent=1 // pred_region
      %s20 = ssub.s32 896, 896
      %21 = vsyncadd [#allocation4], %s20
      %s23 = sshll.u32 [#allocation3], 4
      %s24 = int_to_ptr.vmem [resolvable:$true] %s23
      %26 = dma.hbm_to_vmem [thread:$0]  %s0, 896, %s24, [#allocation4]
    $region5: #{tpu_custom_call.1} parent=1 // pred_fallthru
      _
    // Predicated region
    $region6: #{tpu_custom_call.1} parent=1 // pred_check
      _
    $region7: #{tpu_custom_call.1} parent=1 // pred_check_branch
      %28 = sbr.rel (0) target = $region9
    $region8: #{tpu_custom_call.1} parent=1 // pred_region
      %s30 = ssub.s32 125440, 125440
      %31 = vsyncadd [#allocation7], %s30
      %s32 = sshll.u32 [#allocation6], 4
      %s33 = int_to_ptr.vmem [resolvable:$true] %s32
      %38 = dma.hbm_to_vmem [thread:$0]  %s1, 125440, %s33, [#allocation7], 1280, 1280, 80
    $region9: #{tpu_custom_call.1} parent=1 // pred_fallthru
      _
    // Predicated region
    $region10: #{tpu_custom_call.1} parent=1 // pred_check
      _
    $region11: #{tpu_custom_call.1} parent=1 // pred_check_branch
      %40 = sbr.rel (0) target = $region13
    $region12: #{tpu_custom_call.1} parent=1 // pred_region
      %s42 = ssub.s32 320, 320
      %43 = vsyncadd [#allocation7], %s42
      %s45 = sshll.u32 [#allocation8], 4
      %s46 = int_to_ptr.vmem [resolvable:$true] %s45
      %48 = dma.hbm_to_vmem [thread:$0]  %s2, 320, %s46, [#allocation7]
    $region13: #{tpu_custom_call.1} parent=1 // pred_fallthru
      _
    // Predicated region
    $region14: #{tpu_custom_call.1} parent=1 // pred_check
      _
    $region15: #{tpu_custom_call.1} parent=1 // pred_check_branch
      %50 = sbr.rel (0) target = $region17
    $region16: #{tpu_custom_call.1} parent=1 // pred_region
      %s52 = ssub.s32 20480, 20480
      %53 = vsyncadd [#allocation10], %s52
      %s54 = sshll.u32 [#allocation9], 4
      %s55 = int_to_ptr.vmem [resolvable:$true] %s54
      %60 = dma.hbm_to_vmem [thread:$0]  %s3, 20480, %s55, [#allocation10], 64, 64, 4
    $region17: #{tpu_custom_call.1} parent=1 // pred_fallthru
      _
    // Predicated region
    $region18: #{tpu_custom_call.1} parent=1 // pred_check
      _
    $region19: #{tpu_custom_call.1} parent=1 // pred_check_branch
      %62 = sbr.rel (0) target = $region21
    $region20: #{tpu_custom_call.1} parent=1 // pred_region
      %s64 = ssub.s32 16, 16
      %65 = vsyncadd [#allocation10], %s64
      %s67 = sshll.u32 [#allocation11], 4
      %s68 = int_to_ptr.vmem [resolvable:$true] %s67
      %70 = dma.hbm_to_vmem [thread:$0]  %s4, 16, %s68, [#allocation10]
    $region21: #{tpu_custom_call.1} parent=1 // pred_fallthru
      _
    // Predicated region
    $region22: #{tpu_custom_call.1} parent=1 // pred_check
      _
    $region23: #{tpu_custom_call.1} parent=1 // pred_check_branch
      %72 = sbr.rel (0) target = $region25
    $region24: #{tpu_custom_call.1} parent=1 // pred_region
      %s74 = ssub.s32 1024, 1024
      %75 = vsyncadd [#allocation13], %s74
      %s76 = sshll.u32 [#allocation12], 4
      %s77 = int_to_ptr.vmem [resolvable:$true] %s76
      %82 = dma.hbm_to_vmem [thread:$0]  %s5, 1024, %s77, [#allocation13], 64, 64, 4
    $region25: #{tpu_custom_call.1} parent=1 // pred_fallthru
      _
    // Predicated region
    $region26: #{tpu_custom_call.1} parent=1 // pred_check
      _
    $region27: #{tpu_custom_call.1} parent=1 // pred_check_branch
      %84 = sbr.rel (0) target = $region29
    $region28: #{tpu_custom_call.1} parent=1 // pred_region
      %s86 = ssub.s32 16, 16
      %87 = vsyncadd [#allocation13], %s86
      %s89 = sshll.u32 [#allocation14], 4
      %s90 = int_to_ptr.vmem [resolvable:$true] %s89
      %92 = dma.hbm_to_vmem [thread:$0]  %s6, 16, %s90, [#allocation13]
    $region29: #{tpu_custom_call.1} parent=1 // pred_fallthru
      _
    // Predicated region
    $region30: #{tpu_custom_call.1} parent=1 // pred_check
      _
    $region31: #{tpu_custom_call.1} parent=1 // pred_check_branch
      %94 = sbr.rel (0) target = $region33
    $region32: #{tpu_custom_call.1} parent=1 // pred_region
      %95 = dma.done [#allocation4], 896
    $region33: #{tpu_custom_call.1} parent=1 // pred_fallthru
      _
    // Predicated region
    $region34: #{tpu_custom_call.1} parent=1 // pred_check
      _
    $region35: #{tpu_custom_call.1} parent=1 // pred_check_branch
      %97 = sbr.rel (0) target = $region37
    $region36: #{tpu_custom_call.1} parent=1 // pred_region
      %98 = dma.done [#allocation7], 125440
    $region37: #{tpu_custom_call.1} parent=1 // pred_fallthru
      _
    // Predicated region
    $region38: #{tpu_custom_call.1} parent=1 // pred_check
      _
    $region39: #{tpu_custom_call.1} parent=1 // pred_check_branch
      %100 = sbr.rel (0) target = $region41
    $region40: #{tpu_custom_call.1} parent=1 // pred_region
      %101 = dma.done [#allocation7], 320
    $region41: #{tpu_custom_call.1} parent=1 // pred_fallthru
      _
    // Predicated region
    $region42: #{tpu_custom_call.1} parent=1 // pred_check
      _
    $region43: #{tpu_custom_call.1} parent=1 // pred_check_branch
      %103 = sbr.rel (0) target = $region45
    $region44: #{tpu_custom_call.1} parent=1 // pred_region
      %104 = dma.done [#allocation10], 20480
    $region45: #{tpu_custom_call.1} parent=1 // pred_fallthru
      _
    // Predicated region
    $region46: #{tpu_custom_call.1} parent=1 // pred_check
      _
    $region47: #{tpu_custom_call.1} parent=1 // pred_check_branch
      %106 = sbr.rel (0) target = $region49
    $region48: #{tpu_custom_call.1} parent=1 // pred_region
      %107 = dma.done [#allocation10], 16
    $region49: #{tpu_custom_call.1} parent=1 // pred_fallthru
      _
    // Predicated region
    $region50: #{tpu_custom_call.1} parent=1 // pred_check
      _
    $region51: #{tpu_custom_call.1} parent=1 // pred_check_branch
      %109 = sbr.rel (0) target = $region53
    $region52: #{tpu_custom_call.1} parent=1 // pred_region
      %110 = dma.done [#allocation13], 1024
    $region53: #{tpu_custom_call.1} parent=1 // pred_fallthru
      _
    // Predicated region
    $region54: #{tpu_custom_call.1} parent=1 // pred_check
      _
    $region55: #{tpu_custom_call.1} parent=1 // pred_check_branch
      %112 = sbr.rel (0) target = $region57
    $region56: #{tpu_custom_call.1} parent=1 // pred_region
      %113 = dma.done [#allocation13], 16
    $region57: #{tpu_custom_call.1} parent=1 // pred_fallthru
      _
    %v115 = vld [vmem:[#allocation3] sm:$0xff]
    %v116 = vld [vmem:[#allocation3 + $0x8] sm:$0xff]
    %v117 = vld [vmem:[#allocation3 + $0x10] sm:$0xff]
    %v118 = vld [vmem:[#allocation3 + $0x18] sm:$0xff]
    %v119 = vld [vmem:[#allocation3 + $0x20] sm:$0xff]
    %v120 = vld [vmem:[#allocation3 + $0x28] sm:$0xff]
    %v121 = vld [vmem:[#allocation3 + $0x30] sm:$0xff]
    %v122 = vpack.c.bf16 %v115, %v115
    %v123 = vpack.c.bf16 %v116, %v116
    %v124 = vpack.c.bf16 %v117, %v117
    %v125 = vpack.c.bf16 %v118, %v118
    %v126 = vpack.c.bf16 %v119, %v119
    %v127 = vpack.c.bf16 %v120, %v120
    %v128 = vpack.c.bf16 %v121, %v121
    %v129 = vld [vmem:[#allocation6] sm:$0xff]
    %v130 = vld [vmem:[#allocation6 + $0x8] sm:$0xff]
    %v131 = vld [vmem:[#allocation6 + $0x10] sm:$0xff]
    %v132 = vld [vmem:[#allocation6 + $0x18] sm:$0xff]
    %v133 = vld [vmem:[#allocation6 + $0x20] sm:$0xff]
    %v134 = vld [vmem:[#allocation6 + $0x28] sm:$0xff]
    %v135 = vld [vmem:[#allocation6 + $0x30] sm:$0xff]
    %v136 = vld [vmem:[#allocation6 + $0x38] sm:$0xff]
    %v137 = vld [vmem:[#allocation6 + $0x40] sm:$0xff]
    %v138 = vld [vmem:[#allocation6 + $0x48] sm:$0xff]
    %v139 = vld [vmem:[#allocation6 + $0x50] sm:$0xff]
    %v140 = vld [vmem:[#allocation6 + $0x58] sm:$0xff]
    %v141 = vld [vmem:[#allocation6 + $0x60] sm:$0xff]
    %v142 = vld [vmem:[#allocation6 + $0x68] sm:$0xff]
    %v143 = vld [vmem:[#allocation6 + $0x70] sm:$0xff]
    %v144 = vld [vmem:[#allocation6 + $0x78] sm:$0xff]
    %v145 = vld [vmem:[#allocation6 + $0x80] sm:$0xff]
    %v146 = vld [vmem:[#allocation6 + $0x88] sm:$0xff]
    %v147 = vld [vmem:[#allocation6 + $0x90] sm:$0xff]
    %v148 = vld [vmem:[#allocation6 + $0x98] sm:$0xff]
    %v149 = vld [vmem:[#allocation6 + $0xa0] sm:$0xff]
    %v150 = vld [vmem:[#allocation6 + $0xa8] sm:$0xff]
    %v151 = vld [vmem:[#allocation6 + $0xb0] sm:$0xff]
    %v152 = vld [vmem:[#allocation6 + $0xb8] sm:$0xff]
    %v153 = vld [vmem:[#allocation6 + $0xc0] sm:$0xff]
    %v154 = vld [vmem:[#allocation6 + $0xc8] sm:$0xff]
    %v155 = vld [vmem:[#allocation6 + $0xd0] sm:$0xff]
    %v156 = vld [vmem:[#allocation6 + $0xd8] sm:$0xff]
    %v157 = vld [vmem:[#allocation6 + $0xe0] sm:$0xff]
    %v158 = vld [vmem:[#allocation6 + $0xe8] sm:$0xff]
    %v159 = vld [vmem:[#allocation6 + $0xf0] sm:$0xff]
    %v160 = vld [vmem:[#allocation6 + $0xf8] sm:$0xff]
    %v161 = vld [vmem:[#allocation6 + $0x100] sm:$0xff]
    %v162 = vld [vmem:[#allocation6 + $0x108] sm:$0xff]
    %v163 = vld [vmem:[#allocation6 + $0x110] sm:$0xff]
    %v164 = vld [vmem:[#allocation6 + $0x118] sm:$0xff]
    %v165 = vld [vmem:[#allocation6 + $0x120] sm:$0xff]
    %v166 = vld [vmem:[#allocation6 + $0x128] sm:$0xff]
    %v167 = vld [vmem:[#allocation6 + $0x130] sm:$0xff]
    %v168 = vld [vmem:[#allocation6 + $0x138] sm:$0xff]
    %v169 = vld [vmem:[#allocation6 + $0x140] sm:$0xff]
    %v170 = vld [vmem:[#allocation6 + $0x148] sm:$0xff]
    %v171 = vld [vmem:[#allocation6 + $0x150] sm:$0xff]
    %v172 = vld [vmem:[#allocation6 + $0x158] sm:$0xff]
    %v173 = vld [vmem:[#allocation6 + $0x160] sm:$0xff]
    %v174 = vld [vmem:[#allocation6 + $0x168] sm:$0xff]
    %v175 = vld [vmem:[#allocation6 + $0x170] sm:$0xff]
    %v176 = vld [vmem:[#allocation6 + $0x178] sm:$0xff]
    %v177 = vld [vmem:[#allocation6 + $0x180] sm:$0xff]
    %v178 = vld [vmem:[#allocation6 + $0x188] sm:$0xff]
    %v179 = vld [vmem:[#allocation6 + $0x190] sm:$0xff]
    %v180 = vld [vmem:[#allocation6 + $0x198] sm:$0xff]
    %v181 = vld [vmem:[#allocation6 + $0x1a0] sm:$0xff]
    %v182 = vld [vmem:[#allocation6 + $0x1a8] sm:$0xff]
    %v183 = vld [vmem:[#allocation6 + $0x1b0] sm:$0xff]
    %v184 = vld [vmem:[#allocation6 + $0x1b8] sm:$0xff]
    %v185 = vld [vmem:[#allocation6 + $0x1c0] sm:$0xff]
    %v186 = vld [vmem:[#allocation6 + $0x1c8] sm:$0xff]
    %v187 = vld [vmem:[#allocation6 + $0x1d0] sm:$0xff]
    %v188 = vld [vmem:[#allocation6 + $0x1d8] sm:$0xff]
    %v189 = vld [vmem:[#allocation6 + $0x1e0] sm:$0xff]
    %v190 = vld [vmem:[#allocation6 + $0x1e8] sm:$0xff]
    %v191 = vld [vmem:[#allocation6 + $0x1f0] sm:$0xff]
    %v192 = vld [vmem:[#allocation6 + $0x1f8] sm:$0xff]
    %v193 = vld [vmem:[#allocation6 + $0x200] sm:$0xff]
    %v194 = vld [vmem:[#allocation6 + $0x208] sm:$0xff]
    %v195 = vld [vmem:[#allocation6 + $0x210] sm:$0xff]
    %v196 = vld [vmem:[#allocation6 + $0x218] sm:$0xff]
    %v197 = vld [vmem:[#allocation6 + $0x220] sm:$0xff]
    %v198 = vld [vmem:[#allocation6 + $0x228] sm:$0xff]
    %v199 = vld [vmem:[#allocation6 + $0x230] sm:$0xff]
    %v200 = vld [vmem:[#allocation6 + $0x238] sm:$0xff]
    %v201 = vld [vmem:[#allocation6 + $0x240] sm:$0xff]
    %v202 = vld [vmem:[#allocation6 + $0x248] sm:$0xff]
    %v203 = vld [vmem:[#allocation6 + $0x250] sm:$0xff]
    %v204 = vld [vmem:[#allocation6 + $0x258] sm:$0xff]
    %v205 = vld [vmem:[#allocation6 + $0x260] sm:$0xff]
    %v206 = vld [vmem:[#allocation6 + $0x268] sm:$0xff]
    %v207 = vld [vmem:[#allocation6 + $0x270] sm:$0xff]
    %v208 = vld [vmem:[#allocation6 + $0x278] sm:$0xff]
    %v209 = vld [vmem:[#allocation6 + $0x280] sm:$0xff]
    %v210 = vld [vmem:[#allocation6 + $0x288] sm:$0xff]
    %v211 = vld [vmem:[#allocation6 + $0x290] sm:$0xff]
    %v212 = vld [vmem:[#allocation6 + $0x298] sm:$0xff]
    %v213 = vld [vmem:[#allocation6 + $0x2a0] sm:$0xff]
    %v214 = vld [vmem:[#allocation6 + $0x2a8] sm:$0xff]
    %v215 = vld [vmem:[#allocation6 + $0x2b0] sm:$0xff]
    %v216 = vld [vmem:[#allocation6 + $0x2b8] sm:$0xff]
    %v217 = vld [vmem:[#allocation6 + $0x2c0] sm:$0xff]
    %v218 = vld [vmem:[#allocation6 + $0x2c8] sm:$0xff]
    %v219 = vld [vmem:[#allocation6 + $0x2d0] sm:$0xff]
    %v220 = vld [vmem:[#allocation6 + $0x2d8] sm:$0xff]
    %v221 = vld [vmem:[#allocation6 + $0x2e0] sm:$0xff]
    %v222 = vld [vmem:[#allocation6 + $0x2e8] sm:$0xff]
    %v223 = vld [vmem:[#allocation6 + $0x2f0] sm:$0xff]
    %v224 = vld [vmem:[#allocation6 + $0x2f8] sm:$0xff]
    %v225 = vld [vmem:[#allocation6 + $0x300] sm:$0xff]
    %v226 = vld [vmem:[#allocation6 + $0x308] sm:$0xff]
    %v227 = vld [vmem:[#allocation6 + $0x310] sm:$0xff]
    %v228 = vld [vmem:[#allocation6 + $0x318] sm:$0xff]
    %v229 = vld [vmem:[#allocation6 + $0x320] sm:$0xff]
    %v230 = vld [vmem:[#allocation6 + $0x328] sm:$0xff]
    %v231 = vld [vmem:[#allocation6 + $0x330] sm:$0xff]
    %v232 = vld [vmem:[#allocation6 + $0x338] sm:$0xff]
    %v233 = vld [vmem:[#allocation6 + $0x340] sm:$0xff]
    %v234 = vld [vmem:[#allocation6 + $0x348] sm:$0xff]
    %v235 = vld [vmem:[#allocation6 + $0x350] sm:$0xff]
    %v236 = vld [vmem:[#allocation6 + $0x358] sm:$0xff]
    %v237 = vld [vmem:[#allocation6 + $0x360] sm:$0xff]
    %v238 = vld [vmem:[#allocation6 + $0x368] sm:$0xff]
    %v239 = vld [vmem:[#allocation6 + $0x370] sm:$0xff]
    %v240 = vld [vmem:[#allocation6 + $0x378] sm:$0xff]
    %v241 = vld [vmem:[#allocation6 + $0x380] sm:$0xff]
    %v242 = vld [vmem:[#allocation6 + $0x388] sm:$0xff]
    %v243 = vld [vmem:[#allocation6 + $0x390] sm:$0xff]
    %v244 = vld [vmem:[#allocation6 + $0x398] sm:$0xff]
    %v245 = vld [vmem:[#allocation6 + $0x3a0] sm:$0xff]
    %v246 = vld [vmem:[#allocation6 + $0x3a8] sm:$0xff]
    %v247 = vld [vmem:[#allocation6 + $0x3b0] sm:$0xff]
    %v248 = vld [vmem:[#allocation6 + $0x3b8] sm:$0xff]
    %v249 = vld [vmem:[#allocation6 + $0x3c0] sm:$0xff]
    %v250 = vld [vmem:[#allocation6 + $0x3c8] sm:$0xff]
    %v251 = vld [vmem:[#allocation6 + $0x3d0] sm:$0xff]
    %v252 = vld [vmem:[#allocation6 + $0x3d8] sm:$0xff]
    %v253 = vld [vmem:[#allocation6 + $0x3e0] sm:$0xff]
    %v254 = vld [vmem:[#allocation6 + $0x3e8] sm:$0xff]
    %v255 = vld [vmem:[#allocation6 + $0x3f0] sm:$0xff]
    %v256 = vld [vmem:[#allocation6 + $0x3f8] sm:$0xff]
    %v257 = vld [vmem:[#allocation6 + $0x400] sm:$0xff]
    %v258 = vld [vmem:[#allocation6 + $0x408] sm:$0xff]
    %v259 = vld [vmem:[#allocation6 + $0x410] sm:$0xff]
    %v260 = vld [vmem:[#allocation6 + $0x418] sm:$0xff]
    %v261 = vld [vmem:[#allocation6 + $0x420] sm:$0xff]
    %v262 = vld [vmem:[#allocation6 + $0x428] sm:$0xff]
    %v263 = vld [vmem:[#allocation6 + $0x430] sm:$0xff]
    %v264 = vld [vmem:[#allocation6 + $0x438] sm:$0xff]
    %v265 = vld [vmem:[#allocation6 + $0x440] sm:$0xff]
    %v266 = vld [vmem:[#allocation6 + $0x448] sm:$0xff]
    %v267 = vld [vmem:[#allocation6 + $0x450] sm:$0xff]
    %v268 = vld [vmem:[#allocation6 + $0x458] sm:$0xff]
    %v269 = vld [vmem:[#allocation6 + $0x460] sm:$0xff]
    %v270 = vld [vmem:[#allocation6 + $0x468] sm:$0xff]
    %v271 = vld [vmem:[#allocation6 + $0x470] sm:$0xff]
    %v272 = vld [vmem:[#allocation6 + $0x478] sm:$0xff]
    %v273 = vld [vmem:[#allocation6 + $0x480] sm:$0xff]
    %v274 = vld [vmem:[#allocation6 + $0x488] sm:$0xff]
    %v275 = vld [vmem:[#allocation6 + $0x490] sm:$0xff]
    %v276 = vld [vmem:[#allocation6 + $0x498] sm:$0xff]
    %v277 = vld [vmem:[#allocation6 + $0x4a0] sm:$0xff]
    %v278 = vld [vmem:[#allocation6 + $0x4a8] sm:$0xff]
    %v279 = vld [vmem:[#allocation6 + $0x4b0] sm:$0xff]
    %v280 = vld [vmem:[#allocation6 + $0x4b8] sm:$0xff]
    %v281 = vld [vmem:[#allocation6 + $0x4c0] sm:$0xff]
    %v282 = vld [vmem:[#allocation6 + $0x4c8] sm:$0xff]
    %v283 = vld [vmem:[#allocation6 + $0x4d0] sm:$0xff]
    %v284 = vld [vmem:[#allocation6 + $0x4d8] sm:$0xff]
    %v285 = vld [vmem:[#allocation6 + $0x4e0] sm:$0xff]
    %v286 = vld [vmem:[#allocation6 + $0x4e8] sm:$0xff]
    %v287 = vld [vmem:[#allocation6 + $0x4f0] sm:$0xff]
    %v288 = vld [vmem:[#allocation6 + $0x4f8] sm:$0xff]
    %v289 = vld [vmem:[#allocation6 + $0x500] sm:$0xff]
    %v290 = vld [vmem:[#allocation6 + $0x508] sm:$0xff]
    %v291 = vld [vmem:[#allocation6 + $0x510] sm:$0xff]
    %v292 = vld [vmem:[#allocation6 + $0x518] sm:$0xff]
    %v293 = vld [vmem:[#allocation6 + $0x520] sm:$0xff]
    %v294 = vld [vmem:[#allocation6 + $0x528] sm:$0xff]
    %v295 = vld [vmem:[#allocation6 + $0x530] sm:$0xff]
    %v296 = vld [vmem:[#allocation6 + $0x538] sm:$0xff]
    %v297 = vld [vmem:[#allocation6 + $0x540] sm:$0xff]
    %v298 = vld [vmem:[#allocation6 + $0x548] sm:$0xff]
    %v299 = vld [vmem:[#allocation6 + $0x550] sm:$0xff]
    %v300 = vld [vmem:[#allocation6 + $0x558] sm:$0xff]
    %v301 = vld [vmem:[#allocation6 + $0x560] sm:$0xff]
    %v302 = vld [vmem:[#allocation6 + $0x568] sm:$0xff]
    %v303 = vld [vmem:[#allocation6 + $0x570] sm:$0xff]
    %v304 = vld [vmem:[#allocation6 + $0x578] sm:$0xff]
    %v305 = vld [vmem:[#allocation6 + $0x580] sm:$0xff]
    %v306 = vld [vmem:[#allocation6 + $0x588] sm:$0xff]
    %v307 = vld [vmem:[#allocation6 + $0x590] sm:$0xff]
    %v308 = vld [vmem:[#allocation6 + $0x598] sm:$0xff]
    %v309 = vld [vmem:[#allocation6 + $0x5a0] sm:$0xff]
    %v310 = vld [vmem:[#allocation6 + $0x5a8] sm:$0xff]
    %v311 = vld [vmem:[#allocation6 + $0x5b0] sm:$0xff]
    %v312 = vld [vmem:[#allocation6 + $0x5b8] sm:$0xff]
    %v313 = vld [vmem:[#allocation6 + $0x5c0] sm:$0xff]
    %v314 = vld [vmem:[#allocation6 + $0x5c8] sm:$0xff]
    %v315 = vld [vmem:[#allocation6 + $0x5d0] sm:$0xff]
    %v316 = vld [vmem:[#allocation6 + $0x5d8] sm:$0xff]
    %v317 = vld [vmem:[#allocation6 + $0x5e0] sm:$0xff]
    %v318 = vld [vmem:[#allocation6 + $0x5e8] sm:$0xff]
    %v319 = vld [vmem:[#allocation6 + $0x5f0] sm:$0xff]
    %v320 = vld [vmem:[#allocation6 + $0x5f8] sm:$0xff]
    %v321 = vld [vmem:[#allocation6 + $0x600] sm:$0xff]
    %v322 = vld [vmem:[#allocation6 + $0x608] sm:$0xff]
    %v323 = vld [vmem:[#allocation6 + $0x610] sm:$0xff]
    %v324 = vld [vmem:[#allocation6 + $0x618] sm:$0xff]
    %v325 = vld [vmem:[#allocation6 + $0x620] sm:$0xff]
    %v326 = vld [vmem:[#allocation6 + $0x628] sm:$0xff]
    %v327 = vld [vmem:[#allocation6 + $0x630] sm:$0xff]
    %v328 = vld [vmem:[#allocation6 + $0x638] sm:$0xff]
    %v329 = vld [vmem:[#allocation6 + $0x640] sm:$0xff]
    %v330 = vld [vmem:[#allocation6 + $0x648] sm:$0xff]
    %v331 = vld [vmem:[#allocation6 + $0x650] sm:$0xff]
    %v332 = vld [vmem:[#allocation6 + $0x658] sm:$0xff]
    %v333 = vld [vmem:[#allocation6 + $0x660] sm:$0xff]
    %v334 = vld [vmem:[#allocation6 + $0x668] sm:$0xff]
    %v335 = vld [vmem:[#allocation6 + $0x670] sm:$0xff]
    %v336 = vld [vmem:[#allocation6 + $0x678] sm:$0xff]
    %v337 = vld [vmem:[#allocation6 + $0x680] sm:$0xff]
    %v338 = vld [vmem:[#allocation6 + $0x688] sm:$0xff]
    %v339 = vld [vmem:[#allocation6 + $0x690] sm:$0xff]
    %v340 = vld [vmem:[#allocation6 + $0x698] sm:$0xff]
    %v341 = vld [vmem:[#allocation6 + $0x6a0] sm:$0xff]
    %v342 = vld [vmem:[#allocation6 + $0x6a8] sm:$0xff]
    %v343 = vld [vmem:[#allocation6 + $0x6b0] sm:$0xff]
    %v344 = vld [vmem:[#allocation6 + $0x6b8] sm:$0xff]
    %v345 = vld [vmem:[#allocation6 + $0x6c0] sm:$0xff]
    %v346 = vld [vmem:[#allocation6 + $0x6c8] sm:$0xff]
    %v347 = vld [vmem:[#allocation6 + $0x6d0] sm:$0xff]
    %v348 = vld [vmem:[#allocation6 + $0x6d8] sm:$0xff]
    %v349 = vld [vmem:[#allocation6 + $0x6e0] sm:$0xff]
    %v350 = vld [vmem:[#allocation6 + $0x6e8] sm:$0xff]
    %v351 = vld [vmem:[#allocation6 + $0x6f0] sm:$0xff]
    %v352 = vld [vmem:[#allocation6 + $0x6f8] sm:$0xff]
    %v353 = vld [vmem:[#allocation6 + $0x700] sm:$0xff]
    %v354 = vld [vmem:[#allocation6 + $0x708] sm:$0xff]
    %v355 = vld [vmem:[#allocation6 + $0x710] sm:$0xff]
    %v356 = vld [vmem:[#allocation6 + $0x718] sm:$0xff]
    %v357 = vld [vmem:[#allocation6 + $0x720] sm:$0xff]
    %v358 = vld [vmem:[#allocation6 + $0x728] sm:$0xff]
    %v359 = vld [vmem:[#allocation6 + $0x730] sm:$0xff]
    %v360 = vld [vmem:[#allocation6 + $0x738] sm:$0xff]
    %v361 = vld [vmem:[#allocation6 + $0x740] sm:$0xff]
    %v362 = vld [vmem:[#allocation6 + $0x748] sm:$0xff]
    %v363 = vld [vmem:[#allocation6 + $0x750] sm:$0xff]
    %v364 = vld [vmem:[#allocation6 + $0x758] sm:$0xff]
    %v365 = vld [vmem:[#allocation6 + $0x760] sm:$0xff]
    %v366 = vld [vmem:[#allocation6 + $0x768] sm:$0xff]
    %v367 = vld [vmem:[#allocation6 + $0x770] sm:$0xff]
    %v368 = vld [vmem:[#allocation6 + $0x778] sm:$0xff]
    %v369 = vld [vmem:[#allocation6 + $0x780] sm:$0xff]
    %v370 = vld [vmem:[#allocation6 + $0x788] sm:$0xff]
    %v371 = vld [vmem:[#allocation6 + $0x790] sm:$0xff]
    %v372 = vld [vmem:[#allocation6 + $0x798] sm:$0xff]
    %v373 = vld [vmem:[#allocation6 + $0x7a0] sm:$0xff]
    %v374 = vld [vmem:[#allocation6 + $0x7a8] sm:$0xff]
    %v375 = vld [vmem:[#allocation6 + $0x7b0] sm:$0xff]
    %v376 = vld [vmem:[#allocation6 + $0x7b8] sm:$0xff]
    %v377 = vld [vmem:[#allocation6 + $0x7c0] sm:$0xff]
    %v378 = vld [vmem:[#allocation6 + $0x7c8] sm:$0xff]
    %v379 = vld [vmem:[#allocation6 + $0x7d0] sm:$0xff]
    %v380 = vld [vmem:[#allocation6 + $0x7d8] sm:$0xff]
    %v381 = vld [vmem:[#allocation6 + $0x7e0] sm:$0xff]
    %v382 = vld [vmem:[#allocation6 + $0x7e8] sm:$0xff]
    %v383 = vld [vmem:[#allocation6 + $0x7f0] sm:$0xff]
    %v384 = vld [vmem:[#allocation6 + $0x7f8] sm:$0xff]
    %v385 = vld [vmem:[#allocation6 + $0x800] sm:$0xff]
    %v386 = vld [vmem:[#allocation6 + $0x808] sm:$0xff]
    %v387 = vld [vmem:[#allocation6 + $0x810] sm:$0xff]
    %v388 = vld [vmem:[#allocation6 + $0x818] sm:$0xff]
    %v389 = vld [vmem:[#allocation6 + $0x820] sm:$0xff]
    %v390 = vld [vmem:[#allocation6 + $0x828] sm:$0xff]
    %v391 = vld [vmem:[#allocation6 + $0x830] sm:$0xff]
    %v392 = vld [vmem:[#allocation6 + $0x838] sm:$0xff]
    %v393 = vld [vmem:[#allocation6 + $0x840] sm:$0xff]
    %v394 = vld [vmem:[#allocation6 + $0x848] sm:$0xff]
    %v395 = vld [vmem:[#allocation6 + $0x850] sm:$0xff]
    %v396 = vld [vmem:[#allocation6 + $0x858] sm:$0xff]
    %v397 = vld [vmem:[#allocation6 + $0x860] sm:$0xff]
    %v398 = vld [vmem:[#allocation6 + $0x868] sm:$0xff]
    %v399 = vld [vmem:[#allocation6 + $0x870] sm:$0xff]
    %v400 = vld [vmem:[#allocation6 + $0x878] sm:$0xff]
    %v401 = vld [vmem:[#allocation6 + $0x880] sm:$0xff]
    %v402 = vld [vmem:[#allocation6 + $0x888] sm:$0xff]
    %v403 = vld [vmem:[#allocation6 + $0x890] sm:$0xff]
    %v404 = vld [vmem:[#allocation6 + $0x898] sm:$0xff]
    %v405 = vld [vmem:[#allocation6 + $0x8a0] sm:$0xff]
    %v406 = vld [vmem:[#allocation6 + $0x8a8] sm:$0xff]
    %v407 = vld [vmem:[#allocation6 + $0x8b0] sm:$0xff]
    %v408 = vld [vmem:[#allocation6 + $0x8b8] sm:$0xff]
    %v409 = vld [vmem:[#allocation6 + $0x8c0] sm:$0xff]
    %v410 = vld [vmem:[#allocation6 + $0x8c8] sm:$0xff]
    %v411 = vld [vmem:[#allocation6 + $0x8d0] sm:$0xff]
    %v412 = vld [vmem:[#allocation6 + $0x8d8] sm:$0xff]
    %v413 = vld [vmem:[#allocation6 + $0x8e0] sm:$0xff]
    %v414 = vld [vmem:[#allocation6 + $0x8e8] sm:$0xff]
    %v415 = vld [vmem:[#allocation6 + $0x8f0] sm:$0xff]
    %v416 = vld [vmem:[#allocation6 + $0x8f8] sm:$0xff]
    %v417 = vld [vmem:[#allocation6 + $0x900] sm:$0xff]
    %v418 = vld [vmem:[#allocation6 + $0x908] sm:$0xff]
    %v419 = vld [vmem:[#allocation6 + $0x910] sm:$0xff]
    %v420 = vld [vmem:[#allocation6 + $0x918] sm:$0xff]
    %v421 = vld [vmem:[#allocation6 + $0x920] sm:$0xff]
    %v422 = vld [vmem:[#allocation6 + $0x928] sm:$0xff]
    %v423 = vld [vmem:[#allocation6 + $0x930] sm:$0xff]
    %v424 = vld [vmem:[#allocation6 + $0x938] sm:$0xff]
    %v425 = vld [vmem:[#allocation6 + $0x940] sm:$0xff]
    %v426 = vld [vmem:[#allocation6 + $0x948] sm:$0xff]
    %v427 = vld [vmem:[#allocation6 + $0x950] sm:$0xff]
    %v428 = vld [vmem:[#allocation6 + $0x958] sm:$0xff]
    %v429 = vld [vmem:[#allocation6 + $0x960] sm:$0xff]
    %v430 = vld [vmem:[#allocation6 + $0x968] sm:$0xff]
    %v431 = vld [vmem:[#allocation6 + $0x970] sm:$0xff]
    %v432 = vld [vmem:[#allocation6 + $0x978] sm:$0xff]
    %v433 = vld [vmem:[#allocation6 + $0x980] sm:$0xff]
    %v434 = vld [vmem:[#allocation6 + $0x988] sm:$0xff]
    %v435 = vld [vmem:[#allocation6 + $0x990] sm:$0xff]
    %v436 = vld [vmem:[#allocation6 + $0x998] sm:$0xff]
    %v437 = vld [vmem:[#allocation6 + $0x9a0] sm:$0xff]
    %v438 = vld [vmem:[#allocation6 + $0x9a8] sm:$0xff]
    %v439 = vld [vmem:[#allocation6 + $0x9b0] sm:$0xff]
    %v440 = vld [vmem:[#allocation6 + $0x9b8] sm:$0xff]
    %v441 = vld [vmem:[#allocation6 + $0x9c0] sm:$0xff]
    %v442 = vld [vmem:[#allocation6 + $0x9c8] sm:$0xff]
    %v443 = vld [vmem:[#allocation6 + $0x9d0] sm:$0xff]
    %v444 = vld [vmem:[#allocation6 + $0x9d8] sm:$0xff]
    %v445 = vld [vmem:[#allocation6 + $0x9e0] sm:$0xff]
    %v446 = vld [vmem:[#allocation6 + $0x9e8] sm:$0xff]
    %v447 = vld [vmem:[#allocation6 + $0x9f0] sm:$0xff]
    %v448 = vld [vmem:[#allocation6 + $0x9f8] sm:$0xff]
    %v449 = vld [vmem:[#allocation6 + $0xa00] sm:$0xff]
    %v450 = vld [vmem:[#allocation6 + $0xa08] sm:$0xff]
    %v451 = vld [vmem:[#allocation6 + $0xa10] sm:$0xff]
    %v452 = vld [vmem:[#allocation6 + $0xa18] sm:$0xff]
    %v453 = vld [vmem:[#allocation6 + $0xa20] sm:$0xff]
    %v454 = vld [vmem:[#allocation6 + $0xa28] sm:$0xff]
    %v455 = vld [vmem:[#allocation6 + $0xa30] sm:$0xff]
    %v456 = vld [vmem:[#allocation6 + $0xa38] sm:$0xff]
    %v457 = vld [vmem:[#allocation6 + $0xa40] sm:$0xff]
    %v458 = vld [vmem:[#allocation6 + $0xa48] sm:$0xff]
    %v459 = vld [vmem:[#allocation6 + $0xa50] sm:$0xff]
    %v460 = vld [vmem:[#allocation6 + $0xa58] sm:$0xff]
    %v461 = vld [vmem:[#allocation6 + $0xa60] sm:$0xff]
    %v462 = vld [vmem:[#allocation6 + $0xa68] sm:$0xff]
    %v463 = vld [vmem:[#allocation6 + $0xa70] sm:$0xff]
    %v464 = vld [vmem:[#allocation6 + $0xa78] sm:$0xff]
    %v465 = vld [vmem:[#allocation6 + $0xa80] sm:$0xff]
    %v466 = vld [vmem:[#allocation6 + $0xa88] sm:$0xff]
    %v467 = vld [vmem:[#allocation6 + $0xa90] sm:$0xff]
    %v468 = vld [vmem:[#allocation6 + $0xa98] sm:$0xff]
    %v469 = vld [vmem:[#allocation6 + $0xaa0] sm:$0xff]
    %v470 = vld [vmem:[#allocation6 + $0xaa8] sm:$0xff]
    %v471 = vld [vmem:[#allocation6 + $0xab0] sm:$0xff]
    %v472 = vld [vmem:[#allocation6 + $0xab8] sm:$0xff]
    %v473 = vld [vmem:[#allocation6 + $0xac0] sm:$0xff]
    %v474 = vld [vmem:[#allocation6 + $0xac8] sm:$0xff]
    %v475 = vld [vmem:[#allocation6 + $0xad0] sm:$0xff]
    %v476 = vld [vmem:[#allocation6 + $0xad8] sm:$0xff]
    %v477 = vld [vmem:[#allocation6 + $0xae0] sm:$0xff]
    %v478 = vld [vmem:[#allocation6 + $0xae8] sm:$0xff]
    %v479 = vld [vmem:[#allocation6 + $0xaf0] sm:$0xff]
    %v480 = vld [vmem:[#allocation6 + $0xaf8] sm:$0xff]
    %v481 = vld [vmem:[#allocation6 + $0xb00] sm:$0xff]
    %v482 = vld [vmem:[#allocation6 + $0xb08] sm:$0xff]
    %v483 = vld [vmem:[#allocation6 + $0xb10] sm:$0xff]
    %v484 = vld [vmem:[#allocation6 + $0xb18] sm:$0xff]
    %v485 = vld [vmem:[#allocation6 + $0xb20] sm:$0xff]
    %v486 = vld [vmem:[#allocation6 + $0xb28] sm:$0xff]
    %v487 = vld [vmem:[#allocation6 + $0xb30] sm:$0xff]
    %v488 = vld [vmem:[#allocation6 + $0xb38] sm:$0xff]
    %v489 = vld [vmem:[#allocation6 + $0xb40] sm:$0xff]
    %v490 = vld [vmem:[#allocation6 + $0xb48] sm:$0xff]
    %v491 = vld [vmem:[#allocation6 + $0xb50] sm:$0xff]
    %v492 = vld [vmem:[#allocation6 + $0xb58] sm:$0xff]
    %v493 = vld [vmem:[#allocation6 + $0xb60] sm:$0xff]
    %v494 = vld [vmem:[#allocation6 + $0xb68] sm:$0xff]
    %v495 = vld [vmem:[#allocation6 + $0xb70] sm:$0xff]
    %v496 = vld [vmem:[#allocation6 + $0xb78] sm:$0xff]
    %v497 = vld [vmem:[#allocation6 + $0xb80] sm:$0xff]
    %v498 = vld [vmem:[#allocation6 + $0xb88] sm:$0xff]
    %v499 = vld [vmem:[#allocation6 + $0xb90] sm:$0xff]
    %v500 = vld [vmem:[#allocation6 + $0xb98] sm:$0xff]
    %v501 = vld [vmem:[#allocation6 + $0xba0] sm:$0xff]
    %v502 = vld [vmem:[#allocation6 + $0xba8] sm:$0xff]
    %v503 = vld [vmem:[#allocation6 + $0xbb0] sm:$0xff]
    %v504 = vld [vmem:[#allocation6 + $0xbb8] sm:$0xff]
    %v505 = vld [vmem:[#allocation6 + $0xbc0] sm:$0xff]
    %v506 = vld [vmem:[#allocation6 + $0xbc8] sm:$0xff]
    %v507 = vld [vmem:[#allocation6 + $0xbd0] sm:$0xff]
    %v508 = vld [vmem:[#allocation6 + $0xbd8] sm:$0xff]
    %v509 = vld [vmem:[#allocation6 + $0xbe0] sm:$0xff]
    %v510 = vld [vmem:[#allocation6 + $0xbe8] sm:$0xff]
    %v511 = vld [vmem:[#allocation6 + $0xbf0] sm:$0xff]
    %v512 = vld [vmem:[#allocation6 + $0xbf8] sm:$0xff]
    %v513 = vld [vmem:[#allocation6 + $0xc00] sm:$0xff]
    %v514 = vld [vmem:[#allocation6 + $0xc08] sm:$0xff]
    %v515 = vld [vmem:[#allocation6 + $0xc10] sm:$0xff]
    %v516 = vld [vmem:[#allocation6 + $0xc18] sm:$0xff]
    %v517 = vld [vmem:[#allocation6 + $0xc20] sm:$0xff]
    %v518 = vld [vmem:[#allocation6 + $0xc28] sm:$0xff]
    %v519 = vld [vmem:[#allocation6 + $0xc30] sm:$0xff]
    %v520 = vld [vmem:[#allocation6 + $0xc38] sm:$0xff]
    %v521 = vld [vmem:[#allocation6 + $0xc40] sm:$0xff]
    %v522 = vld [vmem:[#allocation6 + $0xc48] sm:$0xff]
    %v523 = vld [vmem:[#allocation6 + $0xc50] sm:$0xff]
    %v524 = vld [vmem:[#allocation6 + $0xc58] sm:$0xff]
    %v525 = vld [vmem:[#allocation6 + $0xc60] sm:$0xff]
    %v526 = vld [vmem:[#allocation6 + $0xc68] sm:$0xff]
    %v527 = vld [vmem:[#allocation6 + $0xc70] sm:$0xff]
    %v528 = vld [vmem:[#allocation6 + $0xc78] sm:$0xff]
    %v529 = vld [vmem:[#allocation6 + $0xc80] sm:$0xff]
    %v530 = vld [vmem:[#allocation6 + $0xc88] sm:$0xff]
    %v531 = vld [vmem:[#allocation6 + $0xc90] sm:$0xff]
    %v532 = vld [vmem:[#allocation6 + $0xc98] sm:$0xff]
    %v533 = vld [vmem:[#allocation6 + $0xca0] sm:$0xff]
    %v534 = vld [vmem:[#allocation6 + $0xca8] sm:$0xff]
    %v535 = vld [vmem:[#allocation6 + $0xcb0] sm:$0xff]
    %v536 = vld [vmem:[#allocation6 + $0xcb8] sm:$0xff]
    %v537 = vld [vmem:[#allocation6 + $0xcc0] sm:$0xff]
    %v538 = vld [vmem:[#allocation6 + $0xcc8] sm:$0xff]
    %v539 = vld [vmem:[#allocation6 + $0xcd0] sm:$0xff]
    %v540 = vld [vmem:[#allocation6 + $0xcd8] sm:$0xff]
    %v541 = vld [vmem:[#allocation6 + $0xce0] sm:$0xff]
    %v542 = vld [vmem:[#allocation6 + $0xce8] sm:$0xff]
    %v543 = vld [vmem:[#allocation6 + $0xcf0] sm:$0xff]
    %v544 = vld [vmem:[#allocation6 + $0xcf8] sm:$0xff]
    %v545 = vld [vmem:[#allocation6 + $0xd00] sm:$0xff]
    %v546 = vld [vmem:[#allocation6 + $0xd08] sm:$0xff]
    %v547 = vld [vmem:[#allocation6 + $0xd10] sm:$0xff]
    %v548 = vld [vmem:[#allocation6 + $0xd18] sm:$0xff]
    %v549 = vld [vmem:[#allocation6 + $0xd20] sm:$0xff]
    %v550 = vld [vmem:[#allocation6 + $0xd28] sm:$0xff]
    %v551 = vld [vmem:[#allocation6 + $0xd30] sm:$0xff]
    %v552 = vld [vmem:[#allocation6 + $0xd38] sm:$0xff]
    %v553 = vld [vmem:[#allocation6 + $0xd40] sm:$0xff]
    %v554 = vld [vmem:[#allocation6 + $0xd48] sm:$0xff]
    %v555 = vld [vmem:[#allocation6 + $0xd50] sm:$0xff]
    %v556 = vld [vmem:[#allocation6 + $0xd58] sm:$0xff]
    %v557 = vld [vmem:[#allocation6 + $0xd60] sm:$0xff]
    %v558 = vld [vmem:[#allocation6 + $0xd68] sm:$0xff]
    %v559 = vld [vmem:[#allocation6 + $0xd70] sm:$0xff]
    %v560 = vld [vmem:[#allocation6 + $0xd78] sm:$0xff]
    %v561 = vld [vmem:[#allocation6 + $0xd80] sm:$0xff]
    %v562 = vld [vmem:[#allocation6 + $0xd88] sm:$0xff]
    %v563 = vld [vmem:[#allocation6 + $0xd90] sm:$0xff]
    %v564 = vld [vmem:[#allocation6 + $0xd98] sm:$0xff]
    %v565 = vld [vmem:[#allocation6 + $0xda0] sm:$0xff]
    %v566 = vld [vmem:[#allocation6 + $0xda8] sm:$0xff]
    %v567 = vld [vmem:[#allocation6 + $0xdb0] sm:$0xff]
    %v568 = vld [vmem:[#allocation6 + $0xdb8] sm:$0xff]
    %v569 = vld [vmem:[#allocation6 + $0xdc0] sm:$0xff]
    %v570 = vld [vmem:[#allocation6 + $0xdc8] sm:$0xff]
    %v571 = vld [vmem:[#allocation6 + $0xdd0] sm:$0xff]
    %v572 = vld [vmem:[#allocation6 + $0xdd8] sm:$0xff]
    %v573 = vld [vmem:[#allocation6 + $0xde0] sm:$0xff]
    %v574 = vld [vmem:[#allocation6 + $0xde8] sm:$0xff]
    %v575 = vld [vmem:[#allocation6 + $0xdf0] sm:$0xff]
    %v576 = vld [vmem:[#allocation6 + $0xdf8] sm:$0xff]
    %v577 = vld [vmem:[#allocation6 + $0xe00] sm:$0xff]
    %v578 = vld [vmem:[#allocation6 + $0xe08] sm:$0xff]
    %v579 = vld [vmem:[#allocation6 + $0xe10] sm:$0xff]
    %v580 = vld [vmem:[#allocation6 + $0xe18] sm:$0xff]
    %v581 = vld [vmem:[#allocation6 + $0xe20] sm:$0xff]
    %v582 = vld [vmem:[#allocation6 + $0xe28] sm:$0xff]
    %v583 = vld [vmem:[#allocation6 + $0xe30] sm:$0xff]
    %v584 = vld [vmem:[#allocation6 + $0xe38] sm:$0xff]
    %v585 = vld [vmem:[#allocation6 + $0xe40] sm:$0xff]
    %v586 = vld [vmem:[#allocation6 + $0xe48] sm:$0xff]
    %v587 = vld [vmem:[#allocation6 + $0xe50] sm:$0xff]
    %v588 = vld [vmem:[#allocation6 + $0xe58] sm:$0xff]
    %v589 = vld [vmem:[#allocation6 + $0xe60] sm:$0xff]
    %v590 = vld [vmem:[#allocation6 + $0xe68] sm:$0xff]
    %v591 = vld [vmem:[#allocation6 + $0xe70] sm:$0xff]
    %v592 = vld [vmem:[#allocation6 + $0xe78] sm:$0xff]
    %v593 = vld [vmem:[#allocation6 + $0xe80] sm:$0xff]
    %v594 = vld [vmem:[#allocation6 + $0xe88] sm:$0xff]
    %v595 = vld [vmem:[#allocation6 + $0xe90] sm:$0xff]
    %v596 = vld [vmem:[#allocation6 + $0xe98] sm:$0xff]
    %v597 = vld [vmem:[#allocation6 + $0xea0] sm:$0xff]
    %v598 = vld [vmem:[#allocation6 + $0xea8] sm:$0xff]
    %v599 = vld [vmem:[#allocation6 + $0xeb0] sm:$0xff]
    %v600 = vld [vmem:[#allocation6 + $0xeb8] sm:$0xff]
    %v601 = vld [vmem:[#allocation6 + $0xec0] sm:$0xff]
    %v602 = vld [vmem:[#allocation6 + $0xec8] sm:$0xff]
    %v603 = vld [vmem:[#allocation6 + $0xed0] sm:$0xff]
    %v604 = vld [vmem:[#allocation6 + $0xed8] sm:$0xff]
    %v605 = vld [vmem:[#allocation6 + $0xee0] sm:$0xff]
    %v606 = vld [vmem:[#allocation6 + $0xee8] sm:$0xff]
    %v607 = vld [vmem:[#allocation6 + $0xef0] sm:$0xff]
    %v608 = vld [vmem:[#allocation6 + $0xef8] sm:$0xff]
    %v609 = vld [vmem:[#allocation6 + $0xf00] sm:$0xff]
    %v610 = vld [vmem:[#allocation6 + $0xf08] sm:$0xff]
    %v611 = vld [vmem:[#allocation6 + $0xf10] sm:$0xff]
    %v612 = vld [vmem:[#allocation6 + $0xf18] sm:$0xff]
    %v613 = vld [vmem:[#allocation6 + $0xf20] sm:$0xff]
    %v614 = vld [vmem:[#allocation6 + $0xf28] sm:$0xff]
    %v615 = vld [vmem:[#allocation6 + $0xf30] sm:$0xff]
    %v616 = vld [vmem:[#allocation6 + $0xf38] sm:$0xff]
    %v617 = vld [vmem:[#allocation6 + $0xf40] sm:$0xff]
    %v618 = vld [vmem:[#allocation6 + $0xf48] sm:$0xff]
    %v619 = vld [vmem:[#allocation6 + $0xf50] sm:$0xff]
    %v620 = vld [vmem:[#allocation6 + $0xf58] sm:$0xff]
    %v621 = vld [vmem:[#allocation6 + $0xf60] sm:$0xff]
    %v622 = vld [vmem:[#allocation6 + $0xf68] sm:$0xff]
    %v623 = vld [vmem:[#allocation6 + $0xf70] sm:$0xff]
    %v624 = vld [vmem:[#allocation6 + $0xf78] sm:$0xff]
    %v625 = vld [vmem:[#allocation6 + $0xf80] sm:$0xff]
    %v626 = vld [vmem:[#allocation6 + $0xf88] sm:$0xff]
    %v627 = vld [vmem:[#allocation6 + $0xf90] sm:$0xff]
    %v628 = vld [vmem:[#allocation6 + $0xf98] sm:$0xff]
    %v629 = vld [vmem:[#allocation6 + $0xfa0] sm:$0xff]
    %v630 = vld [vmem:[#allocation6 + $0xfa8] sm:$0xff]
    %v631 = vld [vmem:[#allocation6 + $0xfb0] sm:$0xff]
    %v632 = vld [vmem:[#allocation6 + $0xfb8] sm:$0xff]
    %v633 = vld [vmem:[#allocation6 + $0xfc0] sm:$0xff]
    %v634 = vld [vmem:[#allocation6 + $0xfc8] sm:$0xff]
    %v635 = vld [vmem:[#allocation6 + $0xfd0] sm:$0xff]
    %v636 = vld [vmem:[#allocation6 + $0xfd8] sm:$0xff]
    %v637 = vld [vmem:[#allocation6 + $0xfe0] sm:$0xff]
    %v638 = vld [vmem:[#allocation6 + $0xfe8] sm:$0xff]
    %v639 = vld [vmem:[#allocation6 + $0xff0] sm:$0xff]
    %v640 = vld [vmem:[#allocation6 + $0xff8] sm:$0xff]
    %v641 = vld [vmem:[#allocation6 + $0x1000] sm:$0xff]
    %v642 = vld [vmem:[#allocation6 + $0x1008] sm:$0xff]
    %v643 = vld [vmem:[#allocation6 + $0x1010] sm:$0xff]
    %v644 = vld [vmem:[#allocation6 + $0x1018] sm:$0xff]
    %v645 = vld [vmem:[#allocation6 + $0x1020] sm:$0xff]
    %v646 = vld [vmem:[#allocation6 + $0x1028] sm:$0xff]
    %v647 = vld [vmem:[#allocation6 + $0x1030] sm:$0xff]
    %v648 = vld [vmem:[#allocation6 + $0x1038] sm:$0xff]
    %v649 = vld [vmem:[#allocation6 + $0x1040] sm:$0xff]
    %v650 = vld [vmem:[#allocation6 + $0x1048] sm:$0xff]
    %v651 = vld [vmem:[#allocation6 + $0x1050] sm:$0xff]
    %v652 = vld [vmem:[#allocation6 + $0x1058] sm:$0xff]
    %v653 = vld [vmem:[#allocation6 + $0x1060] sm:$0xff]
    %v654 = vld [vmem:[#allocation6 + $0x1068] sm:$0xff]
    %v655 = vld [vmem:[#allocation6 + $0x1070] sm:$0xff]
    %v656 = vld [vmem:[#allocation6 + $0x1078] sm:$0xff]
    %v657 = vld [vmem:[#allocation6 + $0x1080] sm:$0xff]
    %v658 = vld [vmem:[#allocation6 + $0x1088] sm:$0xff]
    %v659 = vld [vmem:[#allocation6 + $0x1090] sm:$0xff]
    %v660 = vld [vmem:[#allocation6 + $0x1098] sm:$0xff]
    %v661 = vld [vmem:[#allocation6 + $0x10a0] sm:$0xff]
    %v662 = vld [vmem:[#allocation6 + $0x10a8] sm:$0xff]
    %v663 = vld [vmem:[#allocation6 + $0x10b0] sm:$0xff]
    %v664 = vld [vmem:[#allocation6 + $0x10b8] sm:$0xff]
    %v665 = vld [vmem:[#allocation6 + $0x10c0] sm:$0xff]
    %v666 = vld [vmem:[#allocation6 + $0x10c8] sm:$0xff]
    %v667 = vld [vmem:[#allocation6 + $0x10d0] sm:$0xff]
    %v668 = vld [vmem:[#allocation6 + $0x10d8] sm:$0xff]
    %v669 = vld [vmem:[#allocation6 + $0x10e0] sm:$0xff]
    %v670 = vld [vmem:[#allocation6 + $0x10e8] sm:$0xff]
    %v671 = vld [vmem:[#allocation6 + $0x10f0] sm:$0xff]
    %v672 = vld [vmem:[#allocation6 + $0x10f8] sm:$0xff]
    %v673 = vld [vmem:[#allocation6 + $0x1100] sm:$0xff]
    %v674 = vld [vmem:[#allocation6 + $0x1108] sm:$0xff]
    %v675 = vld [vmem:[#allocation6 + $0x1110] sm:$0xff]
    %v676 = vld [vmem:[#allocation6 + $0x1118] sm:$0xff]
    %v677 = vld [vmem:[#allocation6 + $0x1120] sm:$0xff]
    %v678 = vld [vmem:[#allocation6 + $0x1128] sm:$0xff]
    %v679 = vld [vmem:[#allocation6 + $0x1130] sm:$0xff]
    %v680 = vld [vmem:[#allocation6 + $0x1138] sm:$0xff]
    %v681 = vld [vmem:[#allocation6 + $0x1140] sm:$0xff]
    %v682 = vld [vmem:[#allocation6 + $0x1148] sm:$0xff]
    %v683 = vld [vmem:[#allocation6 + $0x1150] sm:$0xff]
    %v684 = vld [vmem:[#allocation6 + $0x1158] sm:$0xff]
    %v685 = vld [vmem:[#allocation6 + $0x1160] sm:$0xff]
    %v686 = vld [vmem:[#allocation6 + $0x1168] sm:$0xff]
    %v687 = vld [vmem:[#allocation6 + $0x1170] sm:$0xff]
    %v688 = vld [vmem:[#allocation6 + $0x1178] sm:$0xff]
    %v689 = vld [vmem:[#allocation6 + $0x1180] sm:$0xff]
    %v690 = vld [vmem:[#allocation6 + $0x1188] sm:$0xff]
    %v691 = vld [vmem:[#allocation6 + $0x1190] sm:$0xff]
    %v692 = vld [vmem:[#allocation6 + $0x1198] sm:$0xff]
    %v693 = vld [vmem:[#allocation6 + $0x11a0] sm:$0xff]
    %v694 = vld [vmem:[#allocation6 + $0x11a8] sm:$0xff]
    %v695 = vld [vmem:[#allocation6 + $0x11b0] sm:$0xff]
    %v696 = vld [vmem:[#allocation6 + $0x11b8] sm:$0xff]
    %v697 = vld [vmem:[#allocation6 + $0x11c0] sm:$0xff]
    %v698 = vld [vmem:[#allocation6 + $0x11c8] sm:$0xff]
    %v699 = vld [vmem:[#allocation6 + $0x11d0] sm:$0xff]
    %v700 = vld [vmem:[#allocation6 + $0x11d8] sm:$0xff]
    %v701 = vld [vmem:[#allocation6 + $0x11e0] sm:$0xff]
    %v702 = vld [vmem:[#allocation6 + $0x11e8] sm:$0xff]
    %v703 = vld [vmem:[#allocation6 + $0x11f0] sm:$0xff]
    %v704 = vld [vmem:[#allocation6 + $0x11f8] sm:$0xff]
    %v705 = vld [vmem:[#allocation6 + $0x1200] sm:$0xff]
    %v706 = vld [vmem:[#allocation6 + $0x1208] sm:$0xff]
    %v707 = vld [vmem:[#allocation6 + $0x1210] sm:$0xff]
    %v708 = vld [vmem:[#allocation6 + $0x1218] sm:$0xff]
    %v709 = vld [vmem:[#allocation6 + $0x1220] sm:$0xff]
    %v710 = vld [vmem:[#allocation6 + $0x1228] sm:$0xff]
    %v711 = vld [vmem:[#allocation6 + $0x1230] sm:$0xff]
    %v712 = vld [vmem:[#allocation6 + $0x1238] sm:$0xff]
    %v713 = vld [vmem:[#allocation6 + $0x1240] sm:$0xff]
    %v714 = vld [vmem:[#allocation6 + $0x1248] sm:$0xff]
    %v715 = vld [vmem:[#allocation6 + $0x1250] sm:$0xff]
    %v716 = vld [vmem:[#allocation6 + $0x1258] sm:$0xff]
    %v717 = vld [vmem:[#allocation6 + $0x1260] sm:$0xff]
    %v718 = vld [vmem:[#allocation6 + $0x1268] sm:$0xff]
    %v719 = vld [vmem:[#allocation6 + $0x1270] sm:$0xff]
    %v720 = vld [vmem:[#allocation6 + $0x1278] sm:$0xff]
    %v721 = vld [vmem:[#allocation6 + $0x1280] sm:$0xff]
    %v722 = vld [vmem:[#allocation6 + $0x1288] sm:$0xff]
    %v723 = vld [vmem:[#allocation6 + $0x1290] sm:$0xff]
    %v724 = vld [vmem:[#allocation6 + $0x1298] sm:$0xff]
    %v725 = vld [vmem:[#allocation6 + $0x12a0] sm:$0xff]
    %v726 = vld [vmem:[#allocation6 + $0x12a8] sm:$0xff]
    %v727 = vld [vmem:[#allocation6 + $0x12b0] sm:$0xff]
    %v728 = vld [vmem:[#allocation6 + $0x12b8] sm:$0xff]
    %v729 = vld [vmem:[#allocation6 + $0x12c0] sm:$0xff]
    %v730 = vld [vmem:[#allocation6 + $0x12c8] sm:$0xff]
    %v731 = vld [vmem:[#allocation6 + $0x12d0] sm:$0xff]
    %v732 = vld [vmem:[#allocation6 + $0x12d8] sm:$0xff]
    %v733 = vld [vmem:[#allocation6 + $0x12e0] sm:$0xff]
    %v734 = vld [vmem:[#allocation6 + $0x12e8] sm:$0xff]
    %v735 = vld [vmem:[#allocation6 + $0x12f0] sm:$0xff]
    %v736 = vld [vmem:[#allocation6 + $0x12f8] sm:$0xff]
    %v737 = vld [vmem:[#allocation6 + $0x1300] sm:$0xff]
    %v738 = vld [vmem:[#allocation6 + $0x1308] sm:$0xff]
    %v739 = vld [vmem:[#allocation6 + $0x1310] sm:$0xff]
    %v740 = vld [vmem:[#allocation6 + $0x1318] sm:$0xff]
    %v741 = vld [vmem:[#allocation6 + $0x1320] sm:$0xff]
    %v742 = vld [vmem:[#allocation6 + $0x1328] sm:$0xff]
    %v743 = vld [vmem:[#allocation6 + $0x1330] sm:$0xff]
    %v744 = vld [vmem:[#allocation6 + $0x1338] sm:$0xff]
    %v745 = vld [vmem:[#allocation6 + $0x1340] sm:$0xff]
    %v746 = vld [vmem:[#allocation6 + $0x1348] sm:$0xff]
    %v747 = vld [vmem:[#allocation6 + $0x1350] sm:$0xff]
    %v748 = vld [vmem:[#allocation6 + $0x1358] sm:$0xff]
    %v749 = vld [vmem:[#allocation6 + $0x1360] sm:$0xff]
    %v750 = vld [vmem:[#allocation6 + $0x1368] sm:$0xff]
    %v751 = vld [vmem:[#allocation6 + $0x1370] sm:$0xff]
    %v752 = vld [vmem:[#allocation6 + $0x1378] sm:$0xff]
    %v753 = vld [vmem:[#allocation6 + $0x1380] sm:$0xff]
    %v754 = vld [vmem:[#allocation6 + $0x1388] sm:$0xff]
    %v755 = vld [vmem:[#allocation6 + $0x1390] sm:$0xff]
    %v756 = vld [vmem:[#allocation6 + $0x1398] sm:$0xff]
    %v757 = vld [vmem:[#allocation6 + $0x13a0] sm:$0xff]
    %v758 = vld [vmem:[#allocation6 + $0x13a8] sm:$0xff]
    %v759 = vld [vmem:[#allocation6 + $0x13b0] sm:$0xff]
    %v760 = vld [vmem:[#allocation6 + $0x13b8] sm:$0xff]
    %v761 = vld [vmem:[#allocation6 + $0x13c0] sm:$0xff]
    %v762 = vld [vmem:[#allocation6 + $0x13c8] sm:$0xff]
    %v763 = vld [vmem:[#allocation6 + $0x13d0] sm:$0xff]
    %v764 = vld [vmem:[#allocation6 + $0x13d8] sm:$0xff]
    %v765 = vld [vmem:[#allocation6 + $0x13e0] sm:$0xff]
    %v766 = vld [vmem:[#allocation6 + $0x13e8] sm:$0xff]
    %v767 = vld [vmem:[#allocation6 + $0x13f0] sm:$0xff]
    %v768 = vld [vmem:[#allocation6 + $0x13f8] sm:$0xff]
    %v769 = vld [vmem:[#allocation6 + $0x1400] sm:$0xff]
    %v770 = vld [vmem:[#allocation6 + $0x1408] sm:$0xff]
    %v771 = vld [vmem:[#allocation6 + $0x1410] sm:$0xff]
    %v772 = vld [vmem:[#allocation6 + $0x1418] sm:$0xff]
    %v773 = vld [vmem:[#allocation6 + $0x1420] sm:$0xff]
    %v774 = vld [vmem:[#allocation6 + $0x1428] sm:$0xff]
    %v775 = vld [vmem:[#allocation6 + $0x1430] sm:$0xff]
    %v776 = vld [vmem:[#allocation6 + $0x1438] sm:$0xff]
    %v777 = vld [vmem:[#allocation6 + $0x1440] sm:$0xff]
    %v778 = vld [vmem:[#allocation6 + $0x1448] sm:$0xff]
    %v779 = vld [vmem:[#allocation6 + $0x1450] sm:$0xff]
    %v780 = vld [vmem:[#allocation6 + $0x1458] sm:$0xff]
    %v781 = vld [vmem:[#allocation6 + $0x1460] sm:$0xff]
    %v782 = vld [vmem:[#allocation6 + $0x1468] sm:$0xff]
    %v783 = vld [vmem:[#allocation6 + $0x1470] sm:$0xff]
    %v784 = vld [vmem:[#allocation6 + $0x1478] sm:$0xff]
    %v785 = vld [vmem:[#allocation6 + $0x1480] sm:$0xff]
    %v786 = vld [vmem:[#allocation6 + $0x1488] sm:$0xff]
    %v787 = vld [vmem:[#allocation6 + $0x1490] sm:$0xff]
    %v788 = vld [vmem:[#allocation6 + $0x1498] sm:$0xff]
    %v789 = vld [vmem:[#allocation6 + $0x14a0] sm:$0xff]
    %v790 = vld [vmem:[#allocation6 + $0x14a8] sm:$0xff]
    %v791 = vld [vmem:[#allocation6 + $0x14b0] sm:$0xff]
    %v792 = vld [vmem:[#allocation6 + $0x14b8] sm:$0xff]
    %v793 = vld [vmem:[#allocation6 + $0x14c0] sm:$0xff]
    %v794 = vld [vmem:[#allocation6 + $0x14c8] sm:$0xff]
    %v795 = vld [vmem:[#allocation6 + $0x14d0] sm:$0xff]
    %v796 = vld [vmem:[#allocation6 + $0x14d8] sm:$0xff]
    %v797 = vld [vmem:[#allocation6 + $0x14e0] sm:$0xff]
    %v798 = vld [vmem:[#allocation6 + $0x14e8] sm:$0xff]
    %v799 = vld [vmem:[#allocation6 + $0x14f0] sm:$0xff]
    %v800 = vld [vmem:[#allocation6 + $0x14f8] sm:$0xff]
    %v801 = vld [vmem:[#allocation6 + $0x1500] sm:$0xff]
    %v802 = vld [vmem:[#allocation6 + $0x1508] sm:$0xff]
    %v803 = vld [vmem:[#allocation6 + $0x1510] sm:$0xff]
    %v804 = vld [vmem:[#allocation6 + $0x1518] sm:$0xff]
    %v805 = vld [vmem:[#allocation6 + $0x1520] sm:$0xff]
    %v806 = vld [vmem:[#allocation6 + $0x1528] sm:$0xff]
    %v807 = vld [vmem:[#allocation6 + $0x1530] sm:$0xff]
    %v808 = vld [vmem:[#allocation6 + $0x1538] sm:$0xff]
    %v809 = vld [vmem:[#allocation6 + $0x1540] sm:$0xff]
    %v810 = vld [vmem:[#allocation6 + $0x1548] sm:$0xff]
    %v811 = vld [vmem:[#allocation6 + $0x1550] sm:$0xff]
    %v812 = vld [vmem:[#allocation6 + $0x1558] sm:$0xff]
    %v813 = vld [vmem:[#allocation6 + $0x1560] sm:$0xff]
    %v814 = vld [vmem:[#allocation6 + $0x1568] sm:$0xff]
    %v815 = vld [vmem:[#allocation6 + $0x1570] sm:$0xff]
    %v816 = vld [vmem:[#allocation6 + $0x1578] sm:$0xff]
    %v817 = vld [vmem:[#allocation6 + $0x1580] sm:$0xff]
    %v818 = vld [vmem:[#allocation6 + $0x1588] sm:$0xff]
    %v819 = vld [vmem:[#allocation6 + $0x1590] sm:$0xff]
    %v820 = vld [vmem:[#allocation6 + $0x1598] sm:$0xff]
    %v821 = vld [vmem:[#allocation6 + $0x15a0] sm:$0xff]
    %v822 = vld [vmem:[#allocation6 + $0x15a8] sm:$0xff]
    %v823 = vld [vmem:[#allocation6 + $0x15b0] sm:$0xff]
    %v824 = vld [vmem:[#allocation6 + $0x15b8] sm:$0xff]
    %v825 = vld [vmem:[#allocation6 + $0x15c0] sm:$0xff]
    %v826 = vld [vmem:[#allocation6 + $0x15c8] sm:$0xff]
    %v827 = vld [vmem:[#allocation6 + $0x15d0] sm:$0xff]
    %v828 = vld [vmem:[#allocation6 + $0x15d8] sm:$0xff]
    %v829 = vld [vmem:[#allocation6 + $0x15e0] sm:$0xff]
    %v830 = vld [vmem:[#allocation6 + $0x15e8] sm:$0xff]
    %v831 = vld [vmem:[#allocation6 + $0x15f0] sm:$0xff]
    %v832 = vld [vmem:[#allocation6 + $0x15f8] sm:$0xff]
    %v833 = vld [vmem:[#allocation6 + $0x1600] sm:$0xff]
    %v834 = vld [vmem:[#allocation6 + $0x1608] sm:$0xff]
    %v835 = vld [vmem:[#allocation6 + $0x1610] sm:$0xff]
    %v836 = vld [vmem:[#allocation6 + $0x1618] sm:$0xff]
    %v837 = vld [vmem:[#allocation6 + $0x1620] sm:$0xff]
    %v838 = vld [vmem:[#allocation6 + $0x1628] sm:$0xff]
    %v839 = vld [vmem:[#allocation6 + $0x1630] sm:$0xff]
    %v840 = vld [vmem:[#allocation6 + $0x1638] sm:$0xff]
    %v841 = vld [vmem:[#allocation6 + $0x1640] sm:$0xff]
    %v842 = vld [vmem:[#allocation6 + $0x1648] sm:$0xff]
    %v843 = vld [vmem:[#allocation6 + $0x1650] sm:$0xff]
    %v844 = vld [vmem:[#allocation6 + $0x1658] sm:$0xff]
    %v845 = vld [vmem:[#allocation6 + $0x1660] sm:$0xff]
    %v846 = vld [vmem:[#allocation6 + $0x1668] sm:$0xff]
    %v847 = vld [vmem:[#allocation6 + $0x1670] sm:$0xff]
    %v848 = vld [vmem:[#allocation6 + $0x1678] sm:$0xff]
    %v849 = vld [vmem:[#allocation6 + $0x1680] sm:$0xff]
    %v850 = vld [vmem:[#allocation6 + $0x1688] sm:$0xff]
    %v851 = vld [vmem:[#allocation6 + $0x1690] sm:$0xff]
    %v852 = vld [vmem:[#allocation6 + $0x1698] sm:$0xff]
    %v853 = vld [vmem:[#allocation6 + $0x16a0] sm:$0xff]
    %v854 = vld [vmem:[#allocation6 + $0x16a8] sm:$0xff]
    %v855 = vld [vmem:[#allocation6 + $0x16b0] sm:$0xff]
    %v856 = vld [vmem:[#allocation6 + $0x16b8] sm:$0xff]
    %v857 = vld [vmem:[#allocation6 + $0x16c0] sm:$0xff]
    %v858 = vld [vmem:[#allocation6 + $0x16c8] sm:$0xff]
    %v859 = vld [vmem:[#allocation6 + $0x16d0] sm:$0xff]
    %v860 = vld [vmem:[#allocation6 + $0x16d8] sm:$0xff]
    %v861 = vld [vmem:[#allocation6 + $0x16e0] sm:$0xff]
    %v862 = vld [vmem:[#allocation6 + $0x16e8] sm:$0xff]
    %v863 = vld [vmem:[#allocation6 + $0x16f0] sm:$0xff]
    %v864 = vld [vmem:[#allocation6 + $0x16f8] sm:$0xff]
    %v865 = vld [vmem:[#allocation6 + $0x1700] sm:$0xff]
    %v866 = vld [vmem:[#allocation6 + $0x1708] sm:$0xff]
    %v867 = vld [vmem:[#allocation6 + $0x1710] sm:$0xff]
    %v868 = vld [vmem:[#allocation6 + $0x1718] sm:$0xff]
    %v869 = vld [vmem:[#allocation6 + $0x1720] sm:$0xff]
    %v870 = vld [vmem:[#allocation6 + $0x1728] sm:$0xff]
    %v871 = vld [vmem:[#allocation6 + $0x1730] sm:$0xff]
    %v872 = vld [vmem:[#allocation6 + $0x1738] sm:$0xff]
    %v873 = vld [vmem:[#allocation6 + $0x1740] sm:$0xff]
    %v874 = vld [vmem:[#allocation6 + $0x1748] sm:$0xff]
    %v875 = vld [vmem:[#allocation6 + $0x1750] sm:$0xff]
    %v876 = vld [vmem:[#allocation6 + $0x1758] sm:$0xff]
    %v877 = vld [vmem:[#allocation6 + $0x1760] sm:$0xff]
    %v878 = vld [vmem:[#allocation6 + $0x1768] sm:$0xff]
    %v879 = vld [vmem:[#allocation6 + $0x1770] sm:$0xff]
    %v880 = vld [vmem:[#allocation6 + $0x1778] sm:$0xff]
    %v881 = vld [vmem:[#allocation6 + $0x1780] sm:$0xff]
    %v882 = vld [vmem:[#allocation6 + $0x1788] sm:$0xff]
    %v883 = vld [vmem:[#allocation6 + $0x1790] sm:$0xff]
    %v884 = vld [vmem:[#allocation6 + $0x1798] sm:$0xff]
    %v885 = vld [vmem:[#allocation6 + $0x17a0] sm:$0xff]
    %v886 = vld [vmem:[#allocation6 + $0x17a8] sm:$0xff]
    %v887 = vld [vmem:[#allocation6 + $0x17b0] sm:$0xff]
    %v888 = vld [vmem:[#allocation6 + $0x17b8] sm:$0xff]
    %v889 = vld [vmem:[#allocation6 + $0x17c0] sm:$0xff]
    %v890 = vld [vmem:[#allocation6 + $0x17c8] sm:$0xff]
    %v891 = vld [vmem:[#allocation6 + $0x17d0] sm:$0xff]
    %v892 = vld [vmem:[#allocation6 + $0x17d8] sm:$0xff]
    %v893 = vld [vmem:[#allocation6 + $0x17e0] sm:$0xff]
    %v894 = vld [vmem:[#allocation6 + $0x17e8] sm:$0xff]
    %v895 = vld [vmem:[#allocation6 + $0x17f0] sm:$0xff]
    %v896 = vld [vmem:[#allocation6 + $0x17f8] sm:$0xff]
    %v897 = vld [vmem:[#allocation6 + $0x1800] sm:$0xff]
    %v898 = vld [vmem:[#allocation6 + $0x1808] sm:$0xff]
    %v899 = vld [vmem:[#allocation6 + $0x1810] sm:$0xff]
    %v900 = vld [vmem:[#allocation6 + $0x1818] sm:$0xff]
    %v901 = vld [vmem:[#allocation6 + $0x1820] sm:$0xff]
    %v902 = vld [vmem:[#allocation6 + $0x1828] sm:$0xff]
    %v903 = vld [vmem:[#allocation6 + $0x1830] sm:$0xff]
    %v904 = vld [vmem:[#allocation6 + $0x1838] sm:$0xff]
    %v905 = vld [vmem:[#allocation6 + $0x1840] sm:$0xff]
    %v906 = vld [vmem:[#allocation6 + $0x1848] sm:$0xff]
    %v907 = vld [vmem:[#allocation6 + $0x1850] sm:$0xff]
    %v908 = vld [vmem:[#allocation6 + $0x1858] sm:$0xff]
    %v909 = vld [vmem:[#allocation6 + $0x1860] sm:$0xff]
    %v910 = vld [vmem:[#allocation6 + $0x1868] sm:$0xff]
    %v911 = vld [vmem:[#allocation6 + $0x1870] sm:$0xff]
    %v912 = vld [vmem:[#allocation6 + $0x1878] sm:$0xff]
    %v913 = vld [vmem:[#allocation6 + $0x1880] sm:$0xff]
    %v914 = vld [vmem:[#allocation6 + $0x1888] sm:$0xff]
    %v915 = vld [vmem:[#allocation6 + $0x1890] sm:$0xff]
    %v916 = vld [vmem:[#allocation6 + $0x1898] sm:$0xff]
    %v917 = vld [vmem:[#allocation6 + $0x18a0] sm:$0xff]
    %v918 = vld [vmem:[#allocation6 + $0x18a8] sm:$0xff]
    %v919 = vld [vmem:[#allocation6 + $0x18b0] sm:$0xff]
    %v920 = vld [vmem:[#allocation6 + $0x18b8] sm:$0xff]
    %v921 = vld [vmem:[#allocation6 + $0x18c0] sm:$0xff]
    %v922 = vld [vmem:[#allocation6 + $0x18c8] sm:$0xff]
    %v923 = vld [vmem:[#allocation6 + $0x18d0] sm:$0xff]
    %v924 = vld [vmem:[#allocation6 + $0x18d8] sm:$0xff]
    %v925 = vld [vmem:[#allocation6 + $0x18e0] sm:$0xff]
    %v926 = vld [vmem:[#allocation6 + $0x18e8] sm:$0xff]
    %v927 = vld [vmem:[#allocation6 + $0x18f0] sm:$0xff]
    %v928 = vld [vmem:[#allocation6 + $0x18f8] sm:$0xff]
    %v929 = vld [vmem:[#allocation6 + $0x1900] sm:$0xff]
    %v930 = vld [vmem:[#allocation6 + $0x1908] sm:$0xff]
    %v931 = vld [vmem:[#allocation6 + $0x1910] sm:$0xff]
    %v932 = vld [vmem:[#allocation6 + $0x1918] sm:$0xff]
    %v933 = vld [vmem:[#allocation6 + $0x1920] sm:$0xff]
    %v934 = vld [vmem:[#allocation6 + $0x1928] sm:$0xff]
    %v935 = vld [vmem:[#allocation6 + $0x1930] sm:$0xff]
    %v936 = vld [vmem:[#allocation6 + $0x1938] sm:$0xff]
    %v937 = vld [vmem:[#allocation6 + $0x1940] sm:$0xff]
    %v938 = vld [vmem:[#allocation6 + $0x1948] sm:$0xff]
    %v939 = vld [vmem:[#allocation6 + $0x1950] sm:$0xff]
    %v940 = vld [vmem:[#allocation6 + $0x1958] sm:$0xff]
    %v941 = vld [vmem:[#allocation6 + $0x1960] sm:$0xff]
    %v942 = vld [vmem:[#allocation6 + $0x1968] sm:$0xff]
    %v943 = vld [vmem:[#allocation6 + $0x1970] sm:$0xff]
    %v944 = vld [vmem:[#allocation6 + $0x1978] sm:$0xff]
    %v945 = vld [vmem:[#allocation6 + $0x1980] sm:$0xff]
    %v946 = vld [vmem:[#allocation6 + $0x1988] sm:$0xff]
    %v947 = vld [vmem:[#allocation6 + $0x1990] sm:$0xff]
    %v948 = vld [vmem:[#allocation6 + $0x1998] sm:$0xff]
    %v949 = vld [vmem:[#allocation6 + $0x19a0] sm:$0xff]
    %v950 = vld [vmem:[#allocation6 + $0x19a8] sm:$0xff]
    %v951 = vld [vmem:[#allocation6 + $0x19b0] sm:$0xff]
    %v952 = vld [vmem:[#allocation6 + $0x19b8] sm:$0xff]
    %v953 = vld [vmem:[#allocation6 + $0x19c0] sm:$0xff]
    %v954 = vld [vmem:[#allocation6 + $0x19c8] sm:$0xff]
    %v955 = vld [vmem:[#allocation6 + $0x19d0] sm:$0xff]
    %v956 = vld [vmem:[#allocation6 + $0x19d8] sm:$0xff]
    %v957 = vld [vmem:[#allocation6 + $0x19e0] sm:$0xff]
    %v958 = vld [vmem:[#allocation6 + $0x19e8] sm:$0xff]
    %v959 = vld [vmem:[#allocation6 + $0x19f0] sm:$0xff]
    %v960 = vld [vmem:[#allocation6 + $0x19f8] sm:$0xff]
    %v961 = vld [vmem:[#allocation6 + $0x1a00] sm:$0xff]
    %v962 = vld [vmem:[#allocation6 + $0x1a08] sm:$0xff]
    %v963 = vld [vmem:[#allocation6 + $0x1a10] sm:$0xff]
    %v964 = vld [vmem:[#allocation6 + $0x1a18] sm:$0xff]
    %v965 = vld [vmem:[#allocation6 + $0x1a20] sm:$0xff]
    %v966 = vld [vmem:[#allocation6 + $0x1a28] sm:$0xff]
    %v967 = vld [vmem:[#allocation6 + $0x1a30] sm:$0xff]
    %v968 = vld [vmem:[#allocation6 + $0x1a38] sm:$0xff]
    %v969 = vld [vmem:[#allocation6 + $0x1a40] sm:$0xff]
    %v970 = vld [vmem:[#allocation6 + $0x1a48] sm:$0xff]
    %v971 = vld [vmem:[#allocation6 + $0x1a50] sm:$0xff]
    %v972 = vld [vmem:[#allocation6 + $0x1a58] sm:$0xff]
    %v973 = vld [vmem:[#allocation6 + $0x1a60] sm:$0xff]
    %v974 = vld [vmem:[#allocation6 + $0x1a68] sm:$0xff]
    %v975 = vld [vmem:[#allocation6 + $0x1a70] sm:$0xff]
    %v976 = vld [vmem:[#allocation6 + $0x1a78] sm:$0xff]
    %v977 = vld [vmem:[#allocation6 + $0x1a80] sm:$0xff]
    %v978 = vld [vmem:[#allocation6 + $0x1a88] sm:$0xff]
    %v979 = vld [vmem:[#allocation6 + $0x1a90] sm:$0xff]
    %v980 = vld [vmem:[#allocation6 + $0x1a98] sm:$0xff]
    %v981 = vld [vmem:[#allocation6 + $0x1aa0] sm:$0xff]
    %v982 = vld [vmem:[#allocation6 + $0x1aa8] sm:$0xff]
    %v983 = vld [vmem:[#allocation6 + $0x1ab0] sm:$0xff]
    %v984 = vld [vmem:[#allocation6 + $0x1ab8] sm:$0xff]
    %v985 = vld [vmem:[#allocation6 + $0x1ac0] sm:$0xff]
    %v986 = vld [vmem:[#allocation6 + $0x1ac8] sm:$0xff]
    %v987 = vld [vmem:[#allocation6 + $0x1ad0] sm:$0xff]
    %v988 = vld [vmem:[#allocation6 + $0x1ad8] sm:$0xff]
    %v989 = vld [vmem:[#allocation6 + $0x1ae0] sm:$0xff]
    %v990 = vld [vmem:[#allocation6 + $0x1ae8] sm:$0xff]
    %v991 = vld [vmem:[#allocation6 + $0x1af0] sm:$0xff]
    %v992 = vld [vmem:[#allocation6 + $0x1af8] sm:$0xff]
    %v993 = vld [vmem:[#allocation6 + $0x1b00] sm:$0xff]
    %v994 = vld [vmem:[#allocation6 + $0x1b08] sm:$0xff]
    %v995 = vld [vmem:[#allocation6 + $0x1b10] sm:$0xff]
    %v996 = vld [vmem:[#allocation6 + $0x1b18] sm:$0xff]
    %v997 = vld [vmem:[#allocation6 + $0x1b20] sm:$0xff]
    %v998 = vld [vmem:[#allocation6 + $0x1b28] sm:$0xff]
    %v999 = vld [vmem:[#allocation6 + $0x1b30] sm:$0xff]
    %v1000 = vld [vmem:[#allocation6 + $0x1b38] sm:$0xff]
    %v1001 = vld [vmem:[#allocation6 + $0x1b40] sm:$0xff]
    %v1002 = vld [vmem:[#allocation6 + $0x1b48] sm:$0xff]
    %v1003 = vld [vmem:[#allocation6 + $0x1b50] sm:$0xff]
    %v1004 = vld [vmem:[#allocation6 + $0x1b58] sm:$0xff]
    %v1005 = vld [vmem:[#allocation6 + $0x1b60] sm:$0xff]
    %v1006 = vld [vmem:[#allocation6 + $0x1b68] sm:$0xff]
    %v1007 = vld [vmem:[#allocation6 + $0x1b70] sm:$0xff]
    %v1008 = vld [vmem:[#allocation6 + $0x1b78] sm:$0xff]
    %v1009 = vld [vmem:[#allocation6 + $0x1b80] sm:$0xff]
    %v1010 = vld [vmem:[#allocation6 + $0x1b88] sm:$0xff]
    %v1011 = vld [vmem:[#allocation6 + $0x1b90] sm:$0xff]
    %v1012 = vld [vmem:[#allocation6 + $0x1b98] sm:$0xff]
    %v1013 = vld [vmem:[#allocation6 + $0x1ba0] sm:$0xff]
    %v1014 = vld [vmem:[#allocation6 + $0x1ba8] sm:$0xff]
    %v1015 = vld [vmem:[#allocation6 + $0x1bb0] sm:$0xff]
    %v1016 = vld [vmem:[#allocation6 + $0x1bb8] sm:$0xff]
    %v1017 = vld [vmem:[#allocation6 + $0x1bc0] sm:$0xff]
    %v1018 = vld [vmem:[#allocation6 + $0x1bc8] sm:$0xff]
    %v1019 = vld [vmem:[#allocation6 + $0x1bd0] sm:$0xff]
    %v1020 = vld [vmem:[#allocation6 + $0x1bd8] sm:$0xff]
    %v1021 = vld [vmem:[#allocation6 + $0x1be0] sm:$0xff]
    %v1022 = vld [vmem:[#allocation6 + $0x1be8] sm:$0xff]
    %v1023 = vld [vmem:[#allocation6 + $0x1bf0] sm:$0xff]
    %v1024 = vld [vmem:[#allocation6 + $0x1bf8] sm:$0xff]
    %v1025 = vld [vmem:[#allocation6 + $0x1c00] sm:$0xff]
    %v1026 = vld [vmem:[#allocation6 + $0x1c08] sm:$0xff]
    %v1027 = vld [vmem:[#allocation6 + $0x1c10] sm:$0xff]
    %v1028 = vld [vmem:[#allocation6 + $0x1c18] sm:$0xff]
    %v1029 = vld [vmem:[#allocation6 + $0x1c20] sm:$0xff]
    %v1030 = vld [vmem:[#allocation6 + $0x1c28] sm:$0xff]
    %v1031 = vld [vmem:[#allocation6 + $0x1c30] sm:$0xff]
    %v1032 = vld [vmem:[#allocation6 + $0x1c38] sm:$0xff]
    %v1033 = vld [vmem:[#allocation6 + $0x1c40] sm:$0xff]
    %v1034 = vld [vmem:[#allocation6 + $0x1c48] sm:$0xff]
    %v1035 = vld [vmem:[#allocation6 + $0x1c50] sm:$0xff]
    %v1036 = vld [vmem:[#allocation6 + $0x1c58] sm:$0xff]
    %v1037 = vld [vmem:[#allocation6 + $0x1c60] sm:$0xff]
    %v1038 = vld [vmem:[#allocation6 + $0x1c68] sm:$0xff]
    %v1039 = vld [vmem:[#allocation6 + $0x1c70] sm:$0xff]
    %v1040 = vld [vmem:[#allocation6 + $0x1c78] sm:$0xff]
    %v1041 = vld [vmem:[#allocation6 + $0x1c80] sm:$0xff]
    %v1042 = vld [vmem:[#allocation6 + $0x1c88] sm:$0xff]
    %v1043 = vld [vmem:[#allocation6 + $0x1c90] sm:$0xff]
    %v1044 = vld [vmem:[#allocation6 + $0x1c98] sm:$0xff]
    %v1045 = vld [vmem:[#allocation6 + $0x1ca0] sm:$0xff]
    %v1046 = vld [vmem:[#allocation6 + $0x1ca8] sm:$0xff]
    %v1047 = vld [vmem:[#allocation6 + $0x1cb0] sm:$0xff]
    %v1048 = vld [vmem:[#allocation6 + $0x1cb8] sm:$0xff]
    %v1049 = vld [vmem:[#allocation6 + $0x1cc0] sm:$0xff]
    %v1050 = vld [vmem:[#allocation6 + $0x1cc8] sm:$0xff]
    %v1051 = vld [vmem:[#allocation6 + $0x1cd0] sm:$0xff]
    %v1052 = vld [vmem:[#allocation6 + $0x1cd8] sm:$0xff]
    %v1053 = vld [vmem:[#allocation6 + $0x1ce0] sm:$0xff]
    %v1054 = vld [vmem:[#allocation6 + $0x1ce8] sm:$0xff]
    %v1055 = vld [vmem:[#allocation6 + $0x1cf0] sm:$0xff]
    %v1056 = vld [vmem:[#allocation6 + $0x1cf8] sm:$0xff]
    %v1057 = vld [vmem:[#allocation6 + $0x1d00] sm:$0xff]
    %v1058 = vld [vmem:[#allocation6 + $0x1d08] sm:$0xff]
    %v1059 = vld [vmem:[#allocation6 + $0x1d10] sm:$0xff]
    %v1060 = vld [vmem:[#allocation6 + $0x1d18] sm:$0xff]
    %v1061 = vld [vmem:[#allocation6 + $0x1d20] sm:$0xff]
    %v1062 = vld [vmem:[#allocation6 + $0x1d28] sm:$0xff]
    %v1063 = vld [vmem:[#allocation6 + $0x1d30] sm:$0xff]
    %v1064 = vld [vmem:[#allocation6 + $0x1d38] sm:$0xff]
    %v1065 = vld [vmem:[#allocation6 + $0x1d40] sm:$0xff]
    %v1066 = vld [vmem:[#allocation6 + $0x1d48] sm:$0xff]
    %v1067 = vld [vmem:[#allocation6 + $0x1d50] sm:$0xff]
    %v1068 = vld [vmem:[#allocation6 + $0x1d58] sm:$0xff]
    %v1069 = vld [vmem:[#allocation6 + $0x1d60] sm:$0xff]
    %v1070 = vld [vmem:[#allocation6 + $0x1d68] sm:$0xff]
    %v1071 = vld [vmem:[#allocation6 + $0x1d70] sm:$0xff]
    %v1072 = vld [vmem:[#allocation6 + $0x1d78] sm:$0xff]
    %v1073 = vld [vmem:[#allocation6 + $0x1d80] sm:$0xff]
    %v1074 = vld [vmem:[#allocation6 + $0x1d88] sm:$0xff]
    %v1075 = vld [vmem:[#allocation6 + $0x1d90] sm:$0xff]
    %v1076 = vld [vmem:[#allocation6 + $0x1d98] sm:$0xff]
    %v1077 = vld [vmem:[#allocation6 + $0x1da0] sm:$0xff]
    %v1078 = vld [vmem:[#allocation6 + $0x1da8] sm:$0xff]
    %v1079 = vld [vmem:[#allocation6 + $0x1db0] sm:$0xff]
    %v1080 = vld [vmem:[#allocation6 + $0x1db8] sm:$0xff]
    %v1081 = vld [vmem:[#allocation6 + $0x1dc0] sm:$0xff]
    %v1082 = vld [vmem:[#allocation6 + $0x1dc8] sm:$0xff]
    %v1083 = vld [vmem:[#allocation6 + $0x1dd0] sm:$0xff]
    %v1084 = vld [vmem:[#allocation6 + $0x1dd8] sm:$0xff]
    %v1085 = vld [vmem:[#allocation6 + $0x1de0] sm:$0xff]
    %v1086 = vld [vmem:[#allocation6 + $0x1de8] sm:$0xff]
    %v1087 = vld [vmem:[#allocation6 + $0x1df0] sm:$0xff]
    %v1088 = vld [vmem:[#allocation6 + $0x1df8] sm:$0xff]
    %v1089 = vld [vmem:[#allocation6 + $0x1e00] sm:$0xff]
    %v1090 = vld [vmem:[#allocation6 + $0x1e08] sm:$0xff]
    %v1091 = vld [vmem:[#allocation6 + $0x1e10] sm:$0xff]
    %v1092 = vld [vmem:[#allocation6 + $0x1e18] sm:$0xff]
    %v1093 = vld [vmem:[#allocation6 + $0x1e20] sm:$0xff]
    %v1094 = vld [vmem:[#allocation6 + $0x1e28] sm:$0xff]
    %v1095 = vld [vmem:[#allocation6 + $0x1e30] sm:$0xff]
    %v1096 = vld [vmem:[#allocation6 + $0x1e38] sm:$0xff]
    %v1097 = vld [vmem:[#allocation6 + $0x1e40] sm:$0xff]
    %v1098 = vld [vmem:[#allocation6 + $0x1e48] sm:$0xff]
    %v1099 = vld [vmem:[#allocation6 + $0x1e50] sm:$0xff]
    %v1100 = vld [vmem:[#allocation6 + $0x1e58] sm:$0xff]
    %v1101 = vld [vmem:[#allocation6 + $0x1e60] sm:$0xff]
    %v1102 = vld [vmem:[#allocation6 + $0x1e68] sm:$0xff]
    %v1103 = vld [vmem:[#allocation6 + $0x1e70] sm:$0xff]
    %v1104 = vld [vmem:[#allocation6 + $0x1e78] sm:$0xff]
    %v1105 = vld [vmem:[#allocation6 + $0x1e80] sm:$0xff]
    %v1106 = vld [vmem:[#allocation6 + $0x1e88] sm:$0xff]
    %v1107 = vld [vmem:[#allocation6 + $0x1e90] sm:$0xff]
    %v1108 = vld [vmem:[#allocation6 + $0x1e98] sm:$0xff]
    %v1109 = vld [vmem:[#allocation8] sm:$0xff]
    %v1110 = vld [vmem:[#allocation8 + $0x8] sm:$0xff]
    %v1111 = vld [vmem:[#allocation8 + $0x10] sm:$0xf]
    %v1115 = vlaneseq
    %v1116 = vshrl.u32 %v1115, 7
    %v1117 = vsub.s32 0, %v1116
    %v1118 = vrot.slane %v1109, %v1117
    %v1119 = vlaneseq
    %v1120 = vshrl.u32 %v1119, 7
    %v1121 = vsub.s32 1, %v1120
    %v1122 = vrot.slane %v1109, %v1121
    %v1123 = vlaneseq
    %v1124 = vshrl.u32 %v1123, 7
    %v1125 = vsub.s32 2, %v1124
    %v1126 = vrot.slane %v1109, %v1125
    %v1127 = vlaneseq
    %v1128 = vshrl.u32 %v1127, 7
    %v1129 = vsub.s32 3, %v1128
    %v1130 = vrot.slane %v1109, %v1129
    %v1131 = vlaneseq
    %v1132 = vshrl.u32 %v1131, 7
    %v1133 = vsub.s32 4, %v1132
    %v1134 = vrot.slane %v1109, %v1133
    %v1135 = vlaneseq
    %v1136 = vshrl.u32 %v1135, 7
    %v1137 = vsub.s32 5, %v1136
    %v1138 = vrot.slane %v1109, %v1137
    %v1139 = vlaneseq
    %v1140 = vshrl.u32 %v1139, 7
    %v1141 = vsub.s32 6, %v1140
    %v1142 = vrot.slane %v1109, %v1141
    %v1143 = vlaneseq
    %v1144 = vshrl.u32 %v1143, 7
    %v1145 = vsub.s32 7, %v1144
    %v1146 = vrot.slane %v1109, %v1145
    %v1147 = vlaneseq
    %v1148 = vshrl.u32 %v1147, 7
    %v1149 = vsub.s32 0, %v1148
    %v1150 = vrot.slane %v1110, %v1149
    %v1151 = vlaneseq
    %v1152 = vshrl.u32 %v1151, 7
    %v1153 = vsub.s32 1, %v1152
    %v1154 = vrot.slane %v1110, %v1153
    %v1155 = vlaneseq
    %v1156 = vshrl.u32 %v1155, 7
    %v1157 = vsub.s32 2, %v1156
    %v1158 = vrot.slane %v1110, %v1157
    %v1159 = vlaneseq
    %v1160 = vshrl.u32 %v1159, 7
    %v1161 = vsub.s32 3, %v1160
    %v1162 = vrot.slane %v1110, %v1161
    %v1163 = vlaneseq
    %v1164 = vshrl.u32 %v1163, 7
    %v1165 = vsub.s32 4, %v1164
    %v1166 = vrot.slane %v1110, %v1165
    %v1167 = vlaneseq
    %v1168 = vshrl.u32 %v1167, 7
    %v1169 = vsub.s32 5, %v1168
    %v1170 = vrot.slane %v1110, %v1169
    %v1171 = vlaneseq
    %v1172 = vshrl.u32 %v1171, 7
    %v1173 = vsub.s32 6, %v1172
    %v1174 = vrot.slane %v1110, %v1173
    %v1175 = vlaneseq
    %v1176 = vshrl.u32 %v1175, 7
    %v1177 = vsub.s32 7, %v1176
    %v1178 = vrot.slane %v1110, %v1177
    %v1179 = vlaneseq
    %v1180 = vshrl.u32 %v1179, 7
    %v1181 = vsub.s32 0, %v1180
    %v1182 = vrot.slane %v1111, %v1181
    %v1183 = vlaneseq
    %v1184 = vshrl.u32 %v1183, 7
    %v1185 = vsub.s32 1, %v1184
    %v1186 = vrot.slane %v1111, %v1185
    %v1187 = vlaneseq
    %v1188 = vshrl.u32 %v1187, 7
    %v1189 = vsub.s32 2, %v1188
    %v1190 = vrot.slane %v1111, %v1189
    %v1191 = vlaneseq
    %v1192 = vshrl.u32 %v1191, 7
    %v1193 = vsub.s32 3, %v1192
    %v1194 = vrot.slane %v1111, %v1193
    %v2195 = vunpack.c.l.b16 %v129
    %v2196 = vunpack.c.h.b16 %v129
    %v2197 = vunpack.c.l.b16 %v130
    %v2198 = vunpack.c.h.b16 %v130
    %v2199 = vunpack.c.l.b16 %v131
    %v2200 = vunpack.c.h.b16 %v131
    %v2201 = vunpack.c.l.b16 %v132
    %v2202 = vunpack.c.h.b16 %v132
    %v2203 = vunpack.c.l.b16 %v133
    %v2204 = vunpack.c.h.b16 %v133
    %v2205 = vunpack.c.l.b16 %v134
    %v2206 = vunpack.c.h.b16 %v134
    %v2207 = vunpack.c.l.b16 %v135
    %v2208 = vunpack.c.h.b16 %v135
    %v2209 = vunpack.c.l.b16 %v136
    %v2210 = vunpack.c.h.b16 %v136
    %v2211 = vunpack.c.l.b16 %v137
    %v2212 = vunpack.c.h.b16 %v137
    %v2213 = vunpack.c.l.b16 %v138
    %v2214 = vunpack.c.h.b16 %v138
    %v2215 = vunpack.c.l.b16 %v139
    %v2216 = vunpack.c.h.b16 %v139
    %v2217 = vunpack.c.l.b16 %v140
    %v2218 = vunpack.c.h.b16 %v140
    %v2219 = vunpack.c.l.b16 %v141
    %v2220 = vunpack.c.h.b16 %v141
    %v2221 = vunpack.c.l.b16 %v142
    %v2222 = vunpack.c.h.b16 %v142
    %v2223 = vunpack.c.l.b16 %v143
    %v2224 = vunpack.c.h.b16 %v143
    %v2225 = vunpack.c.l.b16 %v144
    %v2226 = vunpack.c.h.b16 %v144
    %v2227 = vunpack.c.l.b16 %v145
    %v2228 = vunpack.c.h.b16 %v145
    %v2229 = vunpack.c.l.b16 %v146
    %v2230 = vunpack.c.h.b16 %v146
    %v2231 = vunpack.c.l.b16 %v147
    %v2232 = vunpack.c.h.b16 %v147
    %v2233 = vunpack.c.l.b16 %v148
    %v2234 = vunpack.c.h.b16 %v148
    %v2235 = vunpack.c.l.b16 %v149
    %v2236 = vunpack.c.h.b16 %v149
    %v2237 = vunpack.c.l.b16 %v150
    %v2238 = vunpack.c.h.b16 %v150
    %v2239 = vunpack.c.l.b16 %v151
    %v2240 = vunpack.c.h.b16 %v151
    %v2241 = vunpack.c.l.b16 %v152
    %v2242 = vunpack.c.h.b16 %v152
    %v2243 = vunpack.c.l.b16 %v153
    %v2244 = vunpack.c.h.b16 %v153
    %v2245 = vunpack.c.l.b16 %v154
    %v2246 = vunpack.c.h.b16 %v154
    %v2247 = vunpack.c.l.b16 %v155
    %v2248 = vunpack.c.h.b16 %v155
    %v2249 = vunpack.c.l.b16 %v156
    %v2250 = vunpack.c.h.b16 %v156
    %v2251 = vunpack.c.l.b16 %v157
    %v2252 = vunpack.c.h.b16 %v157
    %v2253 = vunpack.c.l.b16 %v158
    %v2254 = vunpack.c.h.b16 %v158
    %v2255 = vunpack.c.l.b16 %v159
    %v2256 = vunpack.c.h.b16 %v159
    %v2257 = vunpack.c.l.b16 %v160
    %v2258 = vunpack.c.h.b16 %v160
    %v2259 = vunpack.c.l.b16 %v161
    %v2260 = vunpack.c.h.b16 %v161
    %v2261 = vunpack.c.l.b16 %v162
    %v2262 = vunpack.c.h.b16 %v162
    %v2263 = vunpack.c.l.b16 %v163
    %v2264 = vunpack.c.h.b16 %v163
    %v2265 = vunpack.c.l.b16 %v164
    %v2266 = vunpack.c.h.b16 %v164
    %v2267 = vunpack.c.l.b16 %v165
    %v2268 = vunpack.c.h.b16 %v165
    %v2269 = vunpack.c.l.b16 %v166
    %v2270 = vunpack.c.h.b16 %v166
    %v2271 = vunpack.c.l.b16 %v167
    %v2272 = vunpack.c.h.b16 %v167
    %v2273 = vunpack.c.l.b16 %v168
    %v2274 = vunpack.c.h.b16 %v168
    %v2275 = vunpack.c.l.b16 %v169
    %v2276 = vunpack.c.h.b16 %v169
    %v2277 = vunpack.c.l.b16 %v170
    %v2278 = vunpack.c.h.b16 %v170
    %v2279 = vunpack.c.l.b16 %v171
    %v2280 = vunpack.c.h.b16 %v171
    %v2281 = vunpack.c.l.b16 %v172
    %v2282 = vunpack.c.h.b16 %v172
    %v2283 = vunpack.c.l.b16 %v173
    %v2284 = vunpack.c.h.b16 %v173
    %v2285 = vunpack.c.l.b16 %v174
    %v2286 = vunpack.c.h.b16 %v174
    %v2287 = vunpack.c.l.b16 %v175
    %v2288 = vunpack.c.h.b16 %v175
    %v2289 = vunpack.c.l.b16 %v176
    %v2290 = vunpack.c.h.b16 %v176
    %v2291 = vunpack.c.l.b16 %v177
    %v2292 = vunpack.c.h.b16 %v177
    %v2293 = vunpack.c.l.b16 %v178
    %v2294 = vunpack.c.h.b16 %v178
    %v2295 = vunpack.c.l.b16 %v179
    %v2296 = vunpack.c.h.b16 %v179
    %v2297 = vunpack.c.l.b16 %v180
    %v2298 = vunpack.c.h.b16 %v180
    %v2299 = vunpack.c.l.b16 %v181
    %v2300 = vunpack.c.h.b16 %v181
    %v2301 = vunpack.c.l.b16 %v182
    %v2302 = vunpack.c.h.b16 %v182
    %v2303 = vunpack.c.l.b16 %v183
    %v2304 = vunpack.c.h.b16 %v183
    %v2305 = vunpack.c.l.b16 %v184
    %v2306 = vunpack.c.h.b16 %v184
    %v2307 = vunpack.c.l.b16 %v185
    %v2308 = vunpack.c.h.b16 %v185
    %v2309 = vunpack.c.l.b16 %v186
    %v2310 = vunpack.c.h.b16 %v186
    %v2311 = vunpack.c.l.b16 %v187
    %v2312 = vunpack.c.h.b16 %v187
    %v2313 = vunpack.c.l.b16 %v188
    %v2314 = vunpack.c.h.b16 %v188
    %v2315 = vunpack.c.l.b16 %v189
    %v2316 = vunpack.c.h.b16 %v189
    %v2317 = vunpack.c.l.b16 %v190
    %v2318 = vunpack.c.h.b16 %v190
    %v2319 = vunpack.c.l.b16 %v191
    %v2320 = vunpack.c.h.b16 %v191
    %v2321 = vunpack.c.l.b16 %v192
    %v2322 = vunpack.c.h.b16 %v192
    %v2323 = vunpack.c.l.b16 %v193
    %v2324 = vunpack.c.h.b16 %v193
    %v2325 = vunpack.c.l.b16 %v194
    %v2326 = vunpack.c.h.b16 %v194
    %v2327 = vunpack.c.l.b16 %v195
    %v2328 = vunpack.c.h.b16 %v195
    %v2329 = vunpack.c.l.b16 %v196
    %v2330 = vunpack.c.h.b16 %v196
    %v2331 = vunpack.c.l.b16 %v197
    %v2332 = vunpack.c.h.b16 %v197
    %v2333 = vunpack.c.l.b16 %v198
    %v2334 = vunpack.c.h.b16 %v198
    %v2335 = vunpack.c.l.b16 %v199
    %v2336 = vunpack.c.h.b16 %v199
    %v2337 = vunpack.c.l.b16 %v200
    %v2338 = vunpack.c.h.b16 %v200
    %v2339 = vunpack.c.l.b16 %v201
    %v2340 = vunpack.c.h.b16 %v201
    %v2341 = vunpack.c.l.b16 %v202
    %v2342 = vunpack.c.h.b16 %v202
    %v2343 = vunpack.c.l.b16 %v203
    %v2344 = vunpack.c.h.b16 %v203
    %v2345 = vunpack.c.l.b16 %v204
    %v2346 = vunpack.c.h.b16 %v204
    %v2347 = vunpack.c.l.b16 %v205
    %v2348 = vunpack.c.h.b16 %v205
    %v2349 = vunpack.c.l.b16 %v206
    %v2350 = vunpack.c.h.b16 %v206
    %v2351 = vunpack.c.l.b16 %v207
    %v2352 = vunpack.c.h.b16 %v207
    %v2353 = vunpack.c.l.b16 %v208
    %v2354 = vunpack.c.h.b16 %v208
    %v2355 = vunpack.c.l.b16 %v209
    %v2356 = vunpack.c.h.b16 %v209
    %v2357 = vunpack.c.l.b16 %v210
    %v2358 = vunpack.c.h.b16 %v210
    %v2359 = vunpack.c.l.b16 %v211
    %v2360 = vunpack.c.h.b16 %v211
    %v2361 = vunpack.c.l.b16 %v212
    %v2362 = vunpack.c.h.b16 %v212
    %v2363 = vunpack.c.l.b16 %v213
    %v2364 = vunpack.c.h.b16 %v213
    %v2365 = vunpack.c.l.b16 %v214
    %v2366 = vunpack.c.h.b16 %v214
    %v2367 = vunpack.c.l.b16 %v215
    %v2368 = vunpack.c.h.b16 %v215
    %v2369 = vunpack.c.l.b16 %v216
    %v2370 = vunpack.c.h.b16 %v216
    %v2371 = vunpack.c.l.b16 %v217
    %v2372 = vunpack.c.h.b16 %v217
    %v2373 = vunpack.c.l.b16 %v218
    %v2374 = vunpack.c.h.b16 %v218
    %v2375 = vunpack.c.l.b16 %v219
    %v2376 = vunpack.c.h.b16 %v219
    %v2377 = vunpack.c.l.b16 %v220
    %v2378 = vunpack.c.h.b16 %v220
    %v2379 = vunpack.c.l.b16 %v221
    %v2380 = vunpack.c.h.b16 %v221
    %v2381 = vunpack.c.l.b16 %v222
    %v2382 = vunpack.c.h.b16 %v222
    %v2383 = vunpack.c.l.b16 %v223
    %v2384 = vunpack.c.h.b16 %v223
    %v2385 = vunpack.c.l.b16 %v224
    %v2386 = vunpack.c.h.b16 %v224
    %v2387 = vunpack.c.l.b16 %v225
    %v2388 = vunpack.c.h.b16 %v225
    %v2389 = vunpack.c.l.b16 %v226
    %v2390 = vunpack.c.h.b16 %v226
    %v2391 = vunpack.c.l.b16 %v227
    %v2392 = vunpack.c.h.b16 %v227
    %v2393 = vunpack.c.l.b16 %v228
    %v2394 = vunpack.c.h.b16 %v228
    %v2395 = vunpack.c.l.b16 %v229
    %v2396 = vunpack.c.h.b16 %v229
    %v2397 = vunpack.c.l.b16 %v230
    %v2398 = vunpack.c.h.b16 %v230
    %v2399 = vunpack.c.l.b16 %v231
    %v2400 = vunpack.c.h.b16 %v231
    %v2401 = vunpack.c.l.b16 %v232
    %v2402 = vunpack.c.h.b16 %v232
    %v2403 = vunpack.c.l.b16 %v233
    %v2404 = vunpack.c.h.b16 %v233
    %v2405 = vunpack.c.l.b16 %v234
    %v2406 = vunpack.c.h.b16 %v234
    %v2407 = vunpack.c.l.b16 %v235
    %v2408 = vunpack.c.h.b16 %v235
    %v2409 = vunpack.c.l.b16 %v236
    %v2410 = vunpack.c.h.b16 %v236
    %v2411 = vunpack.c.l.b16 %v237
    %v2412 = vunpack.c.h.b16 %v237
    %v2413 = vunpack.c.l.b16 %v238
    %v2414 = vunpack.c.h.b16 %v238
    %v2415 = vunpack.c.l.b16 %v239
    %v2416 = vunpack.c.h.b16 %v239
    %v2417 = vunpack.c.l.b16 %v240
    %v2418 = vunpack.c.h.b16 %v240
    %v2419 = vunpack.c.l.b16 %v241
    %v2420 = vunpack.c.h.b16 %v241
    %v2421 = vunpack.c.l.b16 %v242
    %v2422 = vunpack.c.h.b16 %v242
    %v2423 = vunpack.c.l.b16 %v243
    %v2424 = vunpack.c.h.b16 %v243
    %v2425 = vunpack.c.l.b16 %v244
    %v2426 = vunpack.c.h.b16 %v244
    %v2427 = vunpack.c.l.b16 %v245
    %v2428 = vunpack.c.h.b16 %v245
    %v2429 = vunpack.c.l.b16 %v246
    %v2430 = vunpack.c.h.b16 %v246
    %v2431 = vunpack.c.l.b16 %v247
    %v2432 = vunpack.c.h.b16 %v247
    %v2433 = vunpack.c.l.b16 %v248
    %v2434 = vunpack.c.h.b16 %v248
    %v2435 = vunpack.c.l.b16 %v249
    %v2436 = vunpack.c.h.b16 %v249
    %v2437 = vunpack.c.l.b16 %v250
    %v2438 = vunpack.c.h.b16 %v250
    %v2439 = vunpack.c.l.b16 %v251
    %v2440 = vunpack.c.h.b16 %v251
    %v2441 = vunpack.c.l.b16 %v252
    %v2442 = vunpack.c.h.b16 %v252
    %v2443 = vunpack.c.l.b16 %v253
    %v2444 = vunpack.c.h.b16 %v253
    %v2445 = vunpack.c.l.b16 %v254
    %v2446 = vunpack.c.h.b16 %v254
    %v2447 = vunpack.c.l.b16 %v255
    %v2448 = vunpack.c.h.b16 %v255
    %v2449 = vunpack.c.l.b16 %v256
    %v2450 = vunpack.c.h.b16 %v256
    %v2451 = vunpack.c.l.b16 %v257
    %v2452 = vunpack.c.h.b16 %v257
    %v2453 = vunpack.c.l.b16 %v258
    %v2454 = vunpack.c.h.b16 %v258
    %v2455 = vunpack.c.l.b16 %v259
    %v2456 = vunpack.c.h.b16 %v259
    %v2457 = vunpack.c.l.b16 %v260
    %v2458 = vunpack.c.h.b16 %v260
    %v2459 = vunpack.c.l.b16 %v261
    %v2460 = vunpack.c.h.b16 %v261
    %v2461 = vunpack.c.l.b16 %v262
    %v2462 = vunpack.c.h.b16 %v262
    %v2463 = vunpack.c.l.b16 %v263
    %v2464 = vunpack.c.h.b16 %v263
    %v2465 = vunpack.c.l.b16 %v264
    %v2466 = vunpack.c.h.b16 %v264
    %v2467 = vunpack.c.l.b16 %v265
    %v2468 = vunpack.c.h.b16 %v265
    %v2469 = vunpack.c.l.b16 %v266
    %v2470 = vunpack.c.h.b16 %v266
    %v2471 = vunpack.c.l.b16 %v267
    %v2472 = vunpack.c.h.b16 %v267
    %v2473 = vunpack.c.l.b16 %v268
    %v2474 = vunpack.c.h.b16 %v268
    %v2475 = vunpack.c.l.b16 %v269
    %v2476 = vunpack.c.h.b16 %v269
    %v2477 = vunpack.c.l.b16 %v270
    %v2478 = vunpack.c.h.b16 %v270
    %v2479 = vunpack.c.l.b16 %v271
    %v2480 = vunpack.c.h.b16 %v271
    %v2481 = vunpack.c.l.b16 %v272
    %v2482 = vunpack.c.h.b16 %v272
    %v2483 = vunpack.c.l.b16 %v273
    %v2484 = vunpack.c.h.b16 %v273
    %v2485 = vunpack.c.l.b16 %v274
    %v2486 = vunpack.c.h.b16 %v274
    %v2487 = vunpack.c.l.b16 %v275
    %v2488 = vunpack.c.h.b16 %v275
    %v2489 = vunpack.c.l.b16 %v276
    %v2490 = vunpack.c.h.b16 %v276
    %v2491 = vunpack.c.l.b16 %v277
    %v2492 = vunpack.c.h.b16 %v277
    %v2493 = vunpack.c.l.b16 %v278
    %v2494 = vunpack.c.h.b16 %v278
    %v2495 = vunpack.c.l.b16 %v279
    %v2496 = vunpack.c.h.b16 %v279
    %v2497 = vunpack.c.l.b16 %v280
    %v2498 = vunpack.c.h.b16 %v280
    %v2499 = vunpack.c.l.b16 %v281
    %v2500 = vunpack.c.h.b16 %v281
    %v2501 = vunpack.c.l.b16 %v282
    %v2502 = vunpack.c.h.b16 %v282
    %v2503 = vunpack.c.l.b16 %v283
    %v2504 = vunpack.c.h.b16 %v283
    %v2505 = vunpack.c.l.b16 %v284
    %v2506 = vunpack.c.h.b16 %v284
    %v2507 = vunpack.c.l.b16 %v285
    %v2508 = vunpack.c.h.b16 %v285
    %v2509 = vunpack.c.l.b16 %v286
    %v2510 = vunpack.c.h.b16 %v286
    %v2511 = vunpack.c.l.b16 %v287
    %v2512 = vunpack.c.h.b16 %v287
    %v2513 = vunpack.c.l.b16 %v288
    %v2514 = vunpack.c.h.b16 %v288
    %v2515 = vunpack.c.l.b16 %v289
    %v2516 = vunpack.c.h.b16 %v289
    %v2517 = vunpack.c.l.b16 %v290
    %v2518 = vunpack.c.h.b16 %v290
    %v2519 = vunpack.c.l.b16 %v291
    %v2520 = vunpack.c.h.b16 %v291
    %v2521 = vunpack.c.l.b16 %v292
    %v2522 = vunpack.c.h.b16 %v292
    %v2523 = vunpack.c.l.b16 %v293
    %v2524 = vunpack.c.h.b16 %v293
    %v2525 = vunpack.c.l.b16 %v294
    %v2526 = vunpack.c.h.b16 %v294
    %v2527 = vunpack.c.l.b16 %v295
    %v2528 = vunpack.c.h.b16 %v295
    %v2529 = vunpack.c.l.b16 %v296
    %v2530 = vunpack.c.h.b16 %v296
    %v2531 = vunpack.c.l.b16 %v297
    %v2532 = vunpack.c.h.b16 %v297
    %v2533 = vunpack.c.l.b16 %v298
    %v2534 = vunpack.c.h.b16 %v298
    %v2535 = vunpack.c.l.b16 %v299
    %v2536 = vunpack.c.h.b16 %v299
    %v2537 = vunpack.c.l.b16 %v300
    %v2538 = vunpack.c.h.b16 %v300
    %v2539 = vunpack.c.l.b16 %v301
    %v2540 = vunpack.c.h.b16 %v301
    %v2541 = vunpack.c.l.b16 %v302
    %v2542 = vunpack.c.h.b16 %v302
    %v2543 = vunpack.c.l.b16 %v303
    %v2544 = vunpack.c.h.b16 %v303
    %v2545 = vunpack.c.l.b16 %v304
    %v2546 = vunpack.c.h.b16 %v304
    %v2547 = vunpack.c.l.b16 %v305
    %v2548 = vunpack.c.h.b16 %v305
    %v2549 = vunpack.c.l.b16 %v306
    %v2550 = vunpack.c.h.b16 %v306
    %v2551 = vunpack.c.l.b16 %v307
    %v2552 = vunpack.c.h.b16 %v307
    %v2553 = vunpack.c.l.b16 %v308
    %v2554 = vunpack.c.h.b16 %v308
    %v2555 = vunpack.c.l.b16 %v309
    %v2556 = vunpack.c.h.b16 %v309
    %v2557 = vunpack.c.l.b16 %v310
    %v2558 = vunpack.c.h.b16 %v310
    %v2559 = vunpack.c.l.b16 %v311
    %v2560 = vunpack.c.h.b16 %v311
    %v2561 = vunpack.c.l.b16 %v312
    %v2562 = vunpack.c.h.b16 %v312
    %v2563 = vunpack.c.l.b16 %v313
    %v2564 = vunpack.c.h.b16 %v313
    %v2565 = vunpack.c.l.b16 %v314
    %v2566 = vunpack.c.h.b16 %v314
    %v2567 = vunpack.c.l.b16 %v315
    %v2568 = vunpack.c.h.b16 %v315
    %v2569 = vunpack.c.l.b16 %v316
    %v2570 = vunpack.c.h.b16 %v316
    %v2571 = vunpack.c.l.b16 %v317
    %v2572 = vunpack.c.h.b16 %v317
    %v2573 = vunpack.c.l.b16 %v318
    %v2574 = vunpack.c.h.b16 %v318
    %v2575 = vunpack.c.l.b16 %v319
    %v2576 = vunpack.c.h.b16 %v319
    %v2577 = vunpack.c.l.b16 %v320
    %v2578 = vunpack.c.h.b16 %v320
    %v2579 = vunpack.c.l.b16 %v321
    %v2580 = vunpack.c.h.b16 %v321
    %v2581 = vunpack.c.l.b16 %v322
    %v2582 = vunpack.c.h.b16 %v322
    %v2583 = vunpack.c.l.b16 %v323
    %v2584 = vunpack.c.h.b16 %v323
    %v2585 = vunpack.c.l.b16 %v324
    %v2586 = vunpack.c.h.b16 %v324
    %v2587 = vunpack.c.l.b16 %v325
    %v2588 = vunpack.c.h.b16 %v325
    %v2589 = vunpack.c.l.b16 %v326
    %v2590 = vunpack.c.h.b16 %v326
    %v2591 = vunpack.c.l.b16 %v327
    %v2592 = vunpack.c.h.b16 %v327
    %v2593 = vunpack.c.l.b16 %v328
    %v2594 = vunpack.c.h.b16 %v328
    %v2595 = vunpack.c.l.b16 %v329
    %v2596 = vunpack.c.h.b16 %v329
    %v2597 = vunpack.c.l.b16 %v330
    %v2598 = vunpack.c.h.b16 %v330
    %v2599 = vunpack.c.l.b16 %v331
    %v2600 = vunpack.c.h.b16 %v331
    %v2601 = vunpack.c.l.b16 %v332
    %v2602 = vunpack.c.h.b16 %v332
    %v2603 = vunpack.c.l.b16 %v333
    %v2604 = vunpack.c.h.b16 %v333
    %v2605 = vunpack.c.l.b16 %v334
    %v2606 = vunpack.c.h.b16 %v334
    %v2607 = vunpack.c.l.b16 %v335
    %v2608 = vunpack.c.h.b16 %v335
    %v2609 = vunpack.c.l.b16 %v336
    %v2610 = vunpack.c.h.b16 %v336
    %v2611 = vunpack.c.l.b16 %v337
    %v2612 = vunpack.c.h.b16 %v337
    %v2613 = vunpack.c.l.b16 %v338
    %v2614 = vunpack.c.h.b16 %v338
    %v2615 = vunpack.c.l.b16 %v339
    %v2616 = vunpack.c.h.b16 %v339
    %v2617 = vunpack.c.l.b16 %v340
    %v2618 = vunpack.c.h.b16 %v340
    %v2619 = vunpack.c.l.b16 %v341
    %v2620 = vunpack.c.h.b16 %v341
    %v2621 = vunpack.c.l.b16 %v342
    %v2622 = vunpack.c.h.b16 %v342
    %v2623 = vunpack.c.l.b16 %v343
    %v2624 = vunpack.c.h.b16 %v343
    %v2625 = vunpack.c.l.b16 %v344
    %v2626 = vunpack.c.h.b16 %v344
    %v2627 = vunpack.c.l.b16 %v345
    %v2628 = vunpack.c.h.b16 %v345
    %v2629 = vunpack.c.l.b16 %v346
    %v2630 = vunpack.c.h.b16 %v346
    %v2631 = vunpack.c.l.b16 %v347
    %v2632 = vunpack.c.h.b16 %v347
    %v2633 = vunpack.c.l.b16 %v348
    %v2634 = vunpack.c.h.b16 %v348
    %v2635 = vunpack.c.l.b16 %v349
    %v2636 = vunpack.c.h.b16 %v349
    %v2637 = vunpack.c.l.b16 %v350
    %v2638 = vunpack.c.h.b16 %v350
    %v2639 = vunpack.c.l.b16 %v351
    %v2640 = vunpack.c.h.b16 %v351
    %v2641 = vunpack.c.l.b16 %v352
    %v2642 = vunpack.c.h.b16 %v352
    %v2643 = vunpack.c.l.b16 %v353
    %v2644 = vunpack.c.h.b16 %v353
    %v2645 = vunpack.c.l.b16 %v354
    %v2646 = vunpack.c.h.b16 %v354
    %v2647 = vunpack.c.l.b16 %v355
    %v2648 = vunpack.c.h.b16 %v355
    %v2649 = vunpack.c.l.b16 %v356
    %v2650 = vunpack.c.h.b16 %v356
    %v2651 = vunpack.c.l.b16 %v357
    %v2652 = vunpack.c.h.b16 %v357
    %v2653 = vunpack.c.l.b16 %v358
    %v2654 = vunpack.c.h.b16 %v358
    %v2655 = vunpack.c.l.b16 %v359
    %v2656 = vunpack.c.h.b16 %v359
    %v2657 = vunpack.c.l.b16 %v360
    %v2658 = vunpack.c.h.b16 %v360
    %v2659 = vunpack.c.l.b16 %v361
    %v2660 = vunpack.c.h.b16 %v361
    %v2661 = vunpack.c.l.b16 %v362
    %v2662 = vunpack.c.h.b16 %v362
    %v2663 = vunpack.c.l.b16 %v363
    %v2664 = vunpack.c.h.b16 %v363
    %v2665 = vunpack.c.l.b16 %v364
    %v2666 = vunpack.c.h.b16 %v364
    %v2667 = vunpack.c.l.b16 %v365
    %v2668 = vunpack.c.h.b16 %v365
    %v2669 = vunpack.c.l.b16 %v366
    %v2670 = vunpack.c.h.b16 %v366
    %v2671 = vunpack.c.l.b16 %v367
    %v2672 = vunpack.c.h.b16 %v367
    %v2673 = vunpack.c.l.b16 %v368
    %v2674 = vunpack.c.h.b16 %v368
    %v2675 = vunpack.c.l.b16 %v369
    %v2676 = vunpack.c.h.b16 %v369
    %v2677 = vunpack.c.l.b16 %v370
    %v2678 = vunpack.c.h.b16 %v370
    %v2679 = vunpack.c.l.b16 %v371
    %v2680 = vunpack.c.h.b16 %v371
    %v2681 = vunpack.c.l.b16 %v372
    %v2682 = vunpack.c.h.b16 %v372
    %v2683 = vunpack.c.l.b16 %v373
    %v2684 = vunpack.c.h.b16 %v373
    %v2685 = vunpack.c.l.b16 %v374
    %v2686 = vunpack.c.h.b16 %v374
    %v2687 = vunpack.c.l.b16 %v375
    %v2688 = vunpack.c.h.b16 %v375
    %v2689 = vunpack.c.l.b16 %v376
    %v2690 = vunpack.c.h.b16 %v376
    %v2691 = vunpack.c.l.b16 %v377
    %v2692 = vunpack.c.h.b16 %v377
    %v2693 = vunpack.c.l.b16 %v378
    %v2694 = vunpack.c.h.b16 %v378
    %v2695 = vunpack.c.l.b16 %v379
    %v2696 = vunpack.c.h.b16 %v379
    %v2697 = vunpack.c.l.b16 %v380
    %v2698 = vunpack.c.h.b16 %v380
    %v2699 = vunpack.c.l.b16 %v381
    %v2700 = vunpack.c.h.b16 %v381
    %v2701 = vunpack.c.l.b16 %v382
    %v2702 = vunpack.c.h.b16 %v382
    %v2703 = vunpack.c.l.b16 %v383
    %v2704 = vunpack.c.h.b16 %v383
    %v2705 = vunpack.c.l.b16 %v384
    %v2706 = vunpack.c.h.b16 %v384
    %v2707 = vunpack.c.l.b16 %v385
    %v2708 = vunpack.c.h.b16 %v385
    %v2709 = vunpack.c.l.b16 %v386
    %v2710 = vunpack.c.h.b16 %v386
    %v2711 = vunpack.c.l.b16 %v387
    %v2712 = vunpack.c.h.b16 %v387
    %v2713 = vunpack.c.l.b16 %v388
    %v2714 = vunpack.c.h.b16 %v388
    %v2715 = vunpack.c.l.b16 %v389
    %v2716 = vunpack.c.h.b16 %v389
    %v2717 = vunpack.c.l.b16 %v390
    %v2718 = vunpack.c.h.b16 %v390
    %v2719 = vunpack.c.l.b16 %v391
    %v2720 = vunpack.c.h.b16 %v391
    %v2721 = vunpack.c.l.b16 %v392
    %v2722 = vunpack.c.h.b16 %v392
    %v2723 = vunpack.c.l.b16 %v393
    %v2724 = vunpack.c.h.b16 %v393
    %v2725 = vunpack.c.l.b16 %v394
    %v2726 = vunpack.c.h.b16 %v394
    %v2727 = vunpack.c.l.b16 %v395
    %v2728 = vunpack.c.h.b16 %v395
    %v2729 = vunpack.c.l.b16 %v396
    %v2730 = vunpack.c.h.b16 %v396
    %v2731 = vunpack.c.l.b16 %v397
    %v2732 = vunpack.c.h.b16 %v397
    %v2733 = vunpack.c.l.b16 %v398
    %v2734 = vunpack.c.h.b16 %v398
    %v2735 = vunpack.c.l.b16 %v399
    %v2736 = vunpack.c.h.b16 %v399
    %v2737 = vunpack.c.l.b16 %v400
    %v2738 = vunpack.c.h.b16 %v400
    %v2739 = vunpack.c.l.b16 %v401
    %v2740 = vunpack.c.h.b16 %v401
    %v2741 = vunpack.c.l.b16 %v402
    %v2742 = vunpack.c.h.b16 %v402
    %v2743 = vunpack.c.l.b16 %v403
    %v2744 = vunpack.c.h.b16 %v403
    %v2745 = vunpack.c.l.b16 %v404
    %v2746 = vunpack.c.h.b16 %v404
    %v2747 = vunpack.c.l.b16 %v405
    %v2748 = vunpack.c.h.b16 %v405
    %v2749 = vunpack.c.l.b16 %v406
    %v2750 = vunpack.c.h.b16 %v406
    %v2751 = vunpack.c.l.b16 %v407
    %v2752 = vunpack.c.h.b16 %v407
    %v2753 = vunpack.c.l.b16 %v408
    %v2754 = vunpack.c.h.b16 %v408
    %v2755 = vunpack.c.l.b16 %v409
    %v2756 = vunpack.c.h.b16 %v409
    %v2757 = vunpack.c.l.b16 %v410
    %v2758 = vunpack.c.h.b16 %v410
    %v2759 = vunpack.c.l.b16 %v411
    %v2760 = vunpack.c.h.b16 %v411
    %v2761 = vunpack.c.l.b16 %v412
    %v2762 = vunpack.c.h.b16 %v412
    %v2763 = vunpack.c.l.b16 %v413
    %v2764 = vunpack.c.h.b16 %v413
    %v2765 = vunpack.c.l.b16 %v414
    %v2766 = vunpack.c.h.b16 %v414
    %v2767 = vunpack.c.l.b16 %v415
    %v2768 = vunpack.c.h.b16 %v415
    %v2769 = vunpack.c.l.b16 %v416
    %v2770 = vunpack.c.h.b16 %v416
    %v2771 = vunpack.c.l.b16 %v417
    %v2772 = vunpack.c.h.b16 %v417
    %v2773 = vunpack.c.l.b16 %v418
    %v2774 = vunpack.c.h.b16 %v418
    %v2775 = vunpack.c.l.b16 %v419
    %v2776 = vunpack.c.h.b16 %v419
    %v2777 = vunpack.c.l.b16 %v420
    %v2778 = vunpack.c.h.b16 %v420
    %v2779 = vunpack.c.l.b16 %v421
    %v2780 = vunpack.c.h.b16 %v421
    %v2781 = vunpack.c.l.b16 %v422
    %v2782 = vunpack.c.h.b16 %v422
    %v2783 = vunpack.c.l.b16 %v423
    %v2784 = vunpack.c.h.b16 %v423
    %v2785 = vunpack.c.l.b16 %v424
    %v2786 = vunpack.c.h.b16 %v424
    %v2787 = vunpack.c.l.b16 %v425
    %v2788 = vunpack.c.h.b16 %v425
    %v2789 = vunpack.c.l.b16 %v426
    %v2790 = vunpack.c.h.b16 %v426
    %v2791 = vunpack.c.l.b16 %v427
    %v2792 = vunpack.c.h.b16 %v427
    %v2793 = vunpack.c.l.b16 %v428
    %v2794 = vunpack.c.h.b16 %v428
    %v2795 = vunpack.c.l.b16 %v429
    %v2796 = vunpack.c.h.b16 %v429
    %v2797 = vunpack.c.l.b16 %v430
    %v2798 = vunpack.c.h.b16 %v430
    %v2799 = vunpack.c.l.b16 %v431
    %v2800 = vunpack.c.h.b16 %v431
    %v2801 = vunpack.c.l.b16 %v432
    %v2802 = vunpack.c.h.b16 %v432
    %v2803 = vunpack.c.l.b16 %v433
    %v2804 = vunpack.c.h.b16 %v433
    %v2805 = vunpack.c.l.b16 %v434
    %v2806 = vunpack.c.h.b16 %v434
    %v2807 = vunpack.c.l.b16 %v435
    %v2808 = vunpack.c.h.b16 %v435
    %v2809 = vunpack.c.l.b16 %v436
    %v2810 = vunpack.c.h.b16 %v436
    %v2811 = vunpack.c.l.b16 %v437
    %v2812 = vunpack.c.h.b16 %v437
    %v2813 = vunpack.c.l.b16 %v438
    %v2814 = vunpack.c.h.b16 %v438
    %v2815 = vunpack.c.l.b16 %v439
    %v2816 = vunpack.c.h.b16 %v439
    %v2817 = vunpack.c.l.b16 %v440
    %v2818 = vunpack.c.h.b16 %v440
    %v2819 = vunpack.c.l.b16 %v441
    %v2820 = vunpack.c.h.b16 %v441
    %v2821 = vunpack.c.l.b16 %v442
    %v2822 = vunpack.c.h.b16 %v442
    %v2823 = vunpack.c.l.b16 %v443
    %v2824 = vunpack.c.h.b16 %v443
    %v2825 = vunpack.c.l.b16 %v444
    %v2826 = vunpack.c.h.b16 %v444
    %v2827 = vunpack.c.l.b16 %v445
    %v2828 = vunpack.c.h.b16 %v445
    %v2829 = vunpack.c.l.b16 %v446
    %v2830 = vunpack.c.h.b16 %v446
    %v2831 = vunpack.c.l.b16 %v447
    %v2832 = vunpack.c.h.b16 %v447
    %v2833 = vunpack.c.l.b16 %v448
    %v2834 = vunpack.c.h.b16 %v448
    %v2835 = vunpack.c.l.b16 %v449
    %v2836 = vunpack.c.h.b16 %v449
    %v2837 = vunpack.c.l.b16 %v450
    %v2838 = vunpack.c.h.b16 %v450
    %v2839 = vunpack.c.l.b16 %v451
    %v2840 = vunpack.c.h.b16 %v451
    %v2841 = vunpack.c.l.b16 %v452
    %v2842 = vunpack.c.h.b16 %v452
    %v2843 = vunpack.c.l.b16 %v453
    %v2844 = vunpack.c.h.b16 %v453
    %v2845 = vunpack.c.l.b16 %v454
    %v2846 = vunpack.c.h.b16 %v454
    %v2847 = vunpack.c.l.b16 %v455
    %v2848 = vunpack.c.h.b16 %v455
    %v2849 = vunpack.c.l.b16 %v456
    %v2850 = vunpack.c.h.b16 %v456
    %v2851 = vunpack.c.l.b16 %v457
    %v2852 = vunpack.c.h.b16 %v457
    %v2853 = vunpack.c.l.b16 %v458
    %v2854 = vunpack.c.h.b16 %v458
    %v2855 = vunpack.c.l.b16 %v459
    %v2856 = vunpack.c.h.b16 %v459
    %v2857 = vunpack.c.l.b16 %v460
    %v2858 = vunpack.c.h.b16 %v460
    %v2859 = vunpack.c.l.b16 %v461
    %v2860 = vunpack.c.h.b16 %v461
    %v2861 = vunpack.c.l.b16 %v462
    %v2862 = vunpack.c.h.b16 %v462
    %v2863 = vunpack.c.l.b16 %v463
    %v2864 = vunpack.c.h.b16 %v463
    %v2865 = vunpack.c.l.b16 %v464
    %v2866 = vunpack.c.h.b16 %v464
    %v2867 = vunpack.c.l.b16 %v465
    %v2868 = vunpack.c.h.b16 %v465
    %v2869 = vunpack.c.l.b16 %v466
    %v2870 = vunpack.c.h.b16 %v466
    %v2871 = vunpack.c.l.b16 %v467
    %v2872 = vunpack.c.h.b16 %v467
    %v2873 = vunpack.c.l.b16 %v468
    %v2874 = vunpack.c.h.b16 %v468
    %v2875 = vunpack.c.l.b16 %v469
    %v2876 = vunpack.c.h.b16 %v469
    %v2877 = vunpack.c.l.b16 %v470
    %v2878 = vunpack.c.h.b16 %v470
    %v2879 = vunpack.c.l.b16 %v471
    %v2880 = vunpack.c.h.b16 %v471
    %v2881 = vunpack.c.l.b16 %v472
    %v2882 = vunpack.c.h.b16 %v472
    %v2883 = vunpack.c.l.b16 %v473
    %v2884 = vunpack.c.h.b16 %v473
    %v2885 = vunpack.c.l.b16 %v474
    %v2886 = vunpack.c.h.b16 %v474
    %v2887 = vunpack.c.l.b16 %v475
    %v2888 = vunpack.c.h.b16 %v475
    %v2889 = vunpack.c.l.b16 %v476
    %v2890 = vunpack.c.h.b16 %v476
    %v2891 = vunpack.c.l.b16 %v477
    %v2892 = vunpack.c.h.b16 %v477
    %v2893 = vunpack.c.l.b16 %v478
    %v2894 = vunpack.c.h.b16 %v478
    %v2895 = vunpack.c.l.b16 %v479
    %v2896 = vunpack.c.h.b16 %v479
    %v2897 = vunpack.c.l.b16 %v480
    %v2898 = vunpack.c.h.b16 %v480
    %v2899 = vunpack.c.l.b16 %v481
    %v2900 = vunpack.c.h.b16 %v481
    %v2901 = vunpack.c.l.b16 %v482
    %v2902 = vunpack.c.h.b16 %v482
    %v2903 = vunpack.c.l.b16 %v483
    %v2904 = vunpack.c.h.b16 %v483
    %v2905 = vunpack.c.l.b16 %v484
    %v2906 = vunpack.c.h.b16 %v484
    %v2907 = vunpack.c.l.b16 %v485
    %v2908 = vunpack.c.h.b16 %v485
    %v2909 = vunpack.c.l.b16 %v486
    %v2910 = vunpack.c.h.b16 %v486
    %v2911 = vunpack.c.l.b16 %v487
    %v2912 = vunpack.c.h.b16 %v487
    %v2913 = vunpack.c.l.b16 %v488
    %v2914 = vunpack.c.h.b16 %v488
    %v2915 = vunpack.c.l.b16 %v489
    %v2916 = vunpack.c.h.b16 %v489
    %v2917 = vunpack.c.l.b16 %v490
    %v2918 = vunpack.c.h.b16 %v490
    %v2919 = vunpack.c.l.b16 %v491
    %v2920 = vunpack.c.h.b16 %v491
    %v2921 = vunpack.c.l.b16 %v492
    %v2922 = vunpack.c.h.b16 %v492
    %v2923 = vunpack.c.l.b16 %v493
    %v2924 = vunpack.c.h.b16 %v493
    %v2925 = vunpack.c.l.b16 %v494
    %v2926 = vunpack.c.h.b16 %v494
    %v2927 = vunpack.c.l.b16 %v495
    %v2928 = vunpack.c.h.b16 %v495
    %v2929 = vunpack.c.l.b16 %v496
    %v2930 = vunpack.c.h.b16 %v496
    %v2931 = vunpack.c.l.b16 %v497
    %v2932 = vunpack.c.h.b16 %v497
    %v2933 = vunpack.c.l.b16 %v498
    %v2934 = vunpack.c.h.b16 %v498
    %v2935 = vunpack.c.l.b16 %v499
    %v2936 = vunpack.c.h.b16 %v499
    %v2937 = vunpack.c.l.b16 %v500
    %v2938 = vunpack.c.h.b16 %v500
    %v2939 = vunpack.c.l.b16 %v501
    %v2940 = vunpack.c.h.b16 %v501
    %v2941 = vunpack.c.l.b16 %v502
    %v2942 = vunpack.c.h.b16 %v502
    %v2943 = vunpack.c.l.b16 %v503
    %v2944 = vunpack.c.h.b16 %v503
    %v2945 = vunpack.c.l.b16 %v504
    %v2946 = vunpack.c.h.b16 %v504
    %v2947 = vunpack.c.l.b16 %v505
    %v2948 = vunpack.c.h.b16 %v505
    %v2949 = vunpack.c.l.b16 %v506
    %v2950 = vunpack.c.h.b16 %v506
    %v2951 = vunpack.c.l.b16 %v507
    %v2952 = vunpack.c.h.b16 %v507
    %v2953 = vunpack.c.l.b16 %v508
    %v2954 = vunpack.c.h.b16 %v508
    %v2955 = vunpack.c.l.b16 %v509
    %v2956 = vunpack.c.h.b16 %v509
    %v2957 = vunpack.c.l.b16 %v510
    %v2958 = vunpack.c.h.b16 %v510
    %v2959 = vunpack.c.l.b16 %v511
    %v2960 = vunpack.c.h.b16 %v511
    %v2961 = vunpack.c.l.b16 %v512
    %v2962 = vunpack.c.h.b16 %v512
    %v2963 = vunpack.c.l.b16 %v513
    %v2964 = vunpack.c.h.b16 %v513
    %v2965 = vunpack.c.l.b16 %v514
    %v2966 = vunpack.c.h.b16 %v514
    %v2967 = vunpack.c.l.b16 %v515
    %v2968 = vunpack.c.h.b16 %v515
    %v2969 = vunpack.c.l.b16 %v516
    %v2970 = vunpack.c.h.b16 %v516
    %v2971 = vunpack.c.l.b16 %v517
    %v2972 = vunpack.c.h.b16 %v517
    %v2973 = vunpack.c.l.b16 %v518
    %v2974 = vunpack.c.h.b16 %v518
    %v2975 = vunpack.c.l.b16 %v519
    %v2976 = vunpack.c.h.b16 %v519
    %v2977 = vunpack.c.l.b16 %v520
    %v2978 = vunpack.c.h.b16 %v520
    %v2979 = vunpack.c.l.b16 %v521
    %v2980 = vunpack.c.h.b16 %v521
    %v2981 = vunpack.c.l.b16 %v522
    %v2982 = vunpack.c.h.b16 %v522
    %v2983 = vunpack.c.l.b16 %v523
    %v2984 = vunpack.c.h.b16 %v523
    %v2985 = vunpack.c.l.b16 %v524
    %v2986 = vunpack.c.h.b16 %v524
    %v2987 = vunpack.c.l.b16 %v525
    %v2988 = vunpack.c.h.b16 %v525
    %v2989 = vunpack.c.l.b16 %v526
    %v2990 = vunpack.c.h.b16 %v526
    %v2991 = vunpack.c.l.b16 %v527
    %v2992 = vunpack.c.h.b16 %v527
    %v2993 = vunpack.c.l.b16 %v528
    %v2994 = vunpack.c.h.b16 %v528
    %v2995 = vunpack.c.l.b16 %v529
    %v2996 = vunpack.c.h.b16 %v529
    %v2997 = vunpack.c.l.b16 %v530
    %v2998 = vunpack.c.h.b16 %v530
    %v2999 = vunpack.c.l.b16 %v531
    %v3000 = vunpack.c.h.b16 %v531
    %v3001 = vunpack.c.l.b16 %v532
    %v3002 = vunpack.c.h.b16 %v532
    %v3003 = vunpack.c.l.b16 %v533
    %v3004 = vunpack.c.h.b16 %v533
    %v3005 = vunpack.c.l.b16 %v534
    %v3006 = vunpack.c.h.b16 %v534
    %v3007 = vunpack.c.l.b16 %v535
    %v3008 = vunpack.c.h.b16 %v535
    %v3009 = vunpack.c.l.b16 %v536
    %v3010 = vunpack.c.h.b16 %v536
    %v3011 = vunpack.c.l.b16 %v537
    %v3012 = vunpack.c.h.b16 %v537
    %v3013 = vunpack.c.l.b16 %v538
    %v3014 = vunpack.c.h.b16 %v538
    %v3015 = vunpack.c.l.b16 %v539
    %v3016 = vunpack.c.h.b16 %v539
    %v3017 = vunpack.c.l.b16 %v540
    %v3018 = vunpack.c.h.b16 %v540
    %v3019 = vunpack.c.l.b16 %v541
    %v3020 = vunpack.c.h.b16 %v541
    %v3021 = vunpack.c.l.b16 %v542
    %v3022 = vunpack.c.h.b16 %v542
    %v3023 = vunpack.c.l.b16 %v543
    %v3024 = vunpack.c.h.b16 %v543
    %v3025 = vunpack.c.l.b16 %v544
    %v3026 = vunpack.c.h.b16 %v544
    %v3027 = vunpack.c.l.b16 %v545
    %v3028 = vunpack.c.h.b16 %v545
    %v3029 = vunpack.c.l.b16 %v546
    %v3030 = vunpack.c.h.b16 %v546
    %v3031 = vunpack.c.l.b16 %v547
    %v3032 = vunpack.c.h.b16 %v547
    %v3033 = vunpack.c.l.b16 %v548
    %v3034 = vunpack.c.h.b16 %v548
    %v3035 = vunpack.c.l.b16 %v549
    %v3036 = vunpack.c.h.b16 %v549
    %v3037 = vunpack.c.l.b16 %v550
    %v3038 = vunpack.c.h.b16 %v550
    %v3039 = vunpack.c.l.b16 %v551
    %v3040 = vunpack.c.h.b16 %v551
    %v3041 = vunpack.c.l.b16 %v552
    %v3042 = vunpack.c.h.b16 %v552
    %v3043 = vunpack.c.l.b16 %v553
    %v3044 = vunpack.c.h.b16 %v553
    %v3045 = vunpack.c.l.b16 %v554
    %v3046 = vunpack.c.h.b16 %v554
    %v3047 = vunpack.c.l.b16 %v555
    %v3048 = vunpack.c.h.b16 %v555
    %v3049 = vunpack.c.l.b16 %v556
    %v3050 = vunpack.c.h.b16 %v556
    %v3051 = vunpack.c.l.b16 %v557
    %v3052 = vunpack.c.h.b16 %v557
    %v3053 = vunpack.c.l.b16 %v558
    %v3054 = vunpack.c.h.b16 %v558
    %v3055 = vunpack.c.l.b16 %v559
    %v3056 = vunpack.c.h.b16 %v559
    %v3057 = vunpack.c.l.b16 %v560
    %v3058 = vunpack.c.h.b16 %v560
    %v3059 = vunpack.c.l.b16 %v561
    %v3060 = vunpack.c.h.b16 %v561
    %v3061 = vunpack.c.l.b16 %v562
    %v3062 = vunpack.c.h.b16 %v562
    %v3063 = vunpack.c.l.b16 %v563
    %v3064 = vunpack.c.h.b16 %v563
    %v3065 = vunpack.c.l.b16 %v564
    %v3066 = vunpack.c.h.b16 %v564
    %v3067 = vunpack.c.l.b16 %v565
    %v3068 = vunpack.c.h.b16 %v565
    %v3069 = vunpack.c.l.b16 %v566
    %v3070 = vunpack.c.h.b16 %v566
    %v3071 = vunpack.c.l.b16 %v567
    %v3072 = vunpack.c.h.b16 %v567
    %v3073 = vunpack.c.l.b16 %v568
    %v3074 = vunpack.c.h.b16 %v568
    %v3075 = vunpack.c.l.b16 %v569
    %v3076 = vunpack.c.h.b16 %v569
    %v3077 = vunpack.c.l.b16 %v570
    %v3078 = vunpack.c.h.b16 %v570
    %v3079 = vunpack.c.l.b16 %v571
    %v3080 = vunpack.c.h.b16 %v571
    %v3081 = vunpack.c.l.b16 %v572
    %v3082 = vunpack.c.h.b16 %v572
    %v3083 = vunpack.c.l.b16 %v573
    %v3084 = vunpack.c.h.b16 %v573
    %v3085 = vunpack.c.l.b16 %v574
    %v3086 = vunpack.c.h.b16 %v574
    %v3087 = vunpack.c.l.b16 %v575
    %v3088 = vunpack.c.h.b16 %v575
    %v3089 = vunpack.c.l.b16 %v576
    %v3090 = vunpack.c.h.b16 %v576
    %v3091 = vunpack.c.l.b16 %v577
    %v3092 = vunpack.c.h.b16 %v577
    %v3093 = vunpack.c.l.b16 %v578
    %v3094 = vunpack.c.h.b16 %v578
    %v3095 = vunpack.c.l.b16 %v579
    %v3096 = vunpack.c.h.b16 %v579
    %v3097 = vunpack.c.l.b16 %v580
    %v3098 = vunpack.c.h.b16 %v580
    %v3099 = vunpack.c.l.b16 %v581
    %v3100 = vunpack.c.h.b16 %v581
    %v3101 = vunpack.c.l.b16 %v582
    %v3102 = vunpack.c.h.b16 %v582
    %v3103 = vunpack.c.l.b16 %v583
    %v3104 = vunpack.c.h.b16 %v583
    %v3105 = vunpack.c.l.b16 %v584
    %v3106 = vunpack.c.h.b16 %v584
    %v3107 = vunpack.c.l.b16 %v585
    %v3108 = vunpack.c.h.b16 %v585
    %v3109 = vunpack.c.l.b16 %v586
    %v3110 = vunpack.c.h.b16 %v586
    %v3111 = vunpack.c.l.b16 %v587
    %v3112 = vunpack.c.h.b16 %v587
    %v3113 = vunpack.c.l.b16 %v588
    %v3114 = vunpack.c.h.b16 %v588
    %v3115 = vunpack.c.l.b16 %v589
    %v3116 = vunpack.c.h.b16 %v589
    %v3117 = vunpack.c.l.b16 %v590
    %v3118 = vunpack.c.h.b16 %v590
    %v3119 = vunpack.c.l.b16 %v591
    %v3120 = vunpack.c.h.b16 %v591
    %v3121 = vunpack.c.l.b16 %v592
    %v3122 = vunpack.c.h.b16 %v592
    %v3123 = vunpack.c.l.b16 %v593
    %v3124 = vunpack.c.h.b16 %v593
    %v3125 = vunpack.c.l.b16 %v594
    %v3126 = vunpack.c.h.b16 %v594
    %v3127 = vunpack.c.l.b16 %v595
    %v3128 = vunpack.c.h.b16 %v595
    %v3129 = vunpack.c.l.b16 %v596
    %v3130 = vunpack.c.h.b16 %v596
    %v3131 = vunpack.c.l.b16 %v597
    %v3132 = vunpack.c.h.b16 %v597
    %v3133 = vunpack.c.l.b16 %v598
    %v3134 = vunpack.c.h.b16 %v598
    %v3135 = vunpack.c.l.b16 %v599
    %v3136 = vunpack.c.h.b16 %v599
    %v3137 = vunpack.c.l.b16 %v600
    %v3138 = vunpack.c.h.b16 %v600
    %v3139 = vunpack.c.l.b16 %v601
    %v3140 = vunpack.c.h.b16 %v601
    %v3141 = vunpack.c.l.b16 %v602
    %v3142 = vunpack.c.h.b16 %v602
    %v3143 = vunpack.c.l.b16 %v603
    %v3144 = vunpack.c.h.b16 %v603
    %v3145 = vunpack.c.l.b16 %v604
    %v3146 = vunpack.c.h.b16 %v604
    %v3147 = vunpack.c.l.b16 %v605
    %v3148 = vunpack.c.h.b16 %v605
    %v3149 = vunpack.c.l.b16 %v606
    %v3150 = vunpack.c.h.b16 %v606
    %v3151 = vunpack.c.l.b16 %v607
    %v3152 = vunpack.c.h.b16 %v607
    %v3153 = vunpack.c.l.b16 %v608
    %v3154 = vunpack.c.h.b16 %v608
    %v3155 = vunpack.c.l.b16 %v609
    %v3156 = vunpack.c.h.b16 %v609
    %v3157 = vunpack.c.l.b16 %v610
    %v3158 = vunpack.c.h.b16 %v610
    %v3159 = vunpack.c.l.b16 %v611
    %v3160 = vunpack.c.h.b16 %v611
    %v3161 = vunpack.c.l.b16 %v612
    %v3162 = vunpack.c.h.b16 %v612
    %v3163 = vunpack.c.l.b16 %v613
    %v3164 = vunpack.c.h.b16 %v613
    %v3165 = vunpack.c.l.b16 %v614
    %v3166 = vunpack.c.h.b16 %v614
    %v3167 = vunpack.c.l.b16 %v615
    %v3168 = vunpack.c.h.b16 %v615
    %v3169 = vunpack.c.l.b16 %v616
    %v3170 = vunpack.c.h.b16 %v616
    %v3171 = vunpack.c.l.b16 %v617
    %v3172 = vunpack.c.h.b16 %v617
    %v3173 = vunpack.c.l.b16 %v618
    %v3174 = vunpack.c.h.b16 %v618
    %v3175 = vunpack.c.l.b16 %v619
    %v3176 = vunpack.c.h.b16 %v619
    %v3177 = vunpack.c.l.b16 %v620
    %v3178 = vunpack.c.h.b16 %v620
    %v3179 = vunpack.c.l.b16 %v621
    %v3180 = vunpack.c.h.b16 %v621
    %v3181 = vunpack.c.l.b16 %v622
    %v3182 = vunpack.c.h.b16 %v622
    %v3183 = vunpack.c.l.b16 %v623
    %v3184 = vunpack.c.h.b16 %v623
    %v3185 = vunpack.c.l.b16 %v624
    %v3186 = vunpack.c.h.b16 %v624
    %v3187 = vunpack.c.l.b16 %v625
    %v3188 = vunpack.c.h.b16 %v625
    %v3189 = vunpack.c.l.b16 %v626
    %v3190 = vunpack.c.h.b16 %v626
    %v3191 = vunpack.c.l.b16 %v627
    %v3192 = vunpack.c.h.b16 %v627
    %v3193 = vunpack.c.l.b16 %v628
    %v3194 = vunpack.c.h.b16 %v628
    %v3195 = vunpack.c.l.b16 %v629
    %v3196 = vunpack.c.h.b16 %v629
    %v3197 = vunpack.c.l.b16 %v630
    %v3198 = vunpack.c.h.b16 %v630
    %v3199 = vunpack.c.l.b16 %v631
    %v3200 = vunpack.c.h.b16 %v631
    %v3201 = vunpack.c.l.b16 %v632
    %v3202 = vunpack.c.h.b16 %v632
    %v3203 = vunpack.c.l.b16 %v633
    %v3204 = vunpack.c.h.b16 %v633
    %v3205 = vunpack.c.l.b16 %v634
    %v3206 = vunpack.c.h.b16 %v634
    %v3207 = vunpack.c.l.b16 %v635
    %v3208 = vunpack.c.h.b16 %v635
    %v3209 = vunpack.c.l.b16 %v636
    %v3210 = vunpack.c.h.b16 %v636
    %v3211 = vunpack.c.l.b16 %v637
    %v3212 = vunpack.c.h.b16 %v637
    %v3213 = vunpack.c.l.b16 %v638
    %v3214 = vunpack.c.h.b16 %v638
    %v3215 = vunpack.c.l.b16 %v639
    %v3216 = vunpack.c.h.b16 %v639
    %v3217 = vunpack.c.l.b16 %v640
    %v3218 = vunpack.c.h.b16 %v640
    %v3219 = vunpack.c.l.b16 %v641
    %v3220 = vunpack.c.h.b16 %v641
    %v3221 = vunpack.c.l.b16 %v642
    %v3222 = vunpack.c.h.b16 %v642
    %v3223 = vunpack.c.l.b16 %v643
    %v3224 = vunpack.c.h.b16 %v643
    %v3225 = vunpack.c.l.b16 %v644
    %v3226 = vunpack.c.h.b16 %v644
    %v3227 = vunpack.c.l.b16 %v645
    %v3228 = vunpack.c.h.b16 %v645
    %v3229 = vunpack.c.l.b16 %v646
    %v3230 = vunpack.c.h.b16 %v646
    %v3231 = vunpack.c.l.b16 %v647
    %v3232 = vunpack.c.h.b16 %v647
    %v3233 = vunpack.c.l.b16 %v648
    %v3234 = vunpack.c.h.b16 %v648
    %v3235 = vunpack.c.l.b16 %v649
    %v3236 = vunpack.c.h.b16 %v649
    %v3237 = vunpack.c.l.b16 %v650
    %v3238 = vunpack.c.h.b16 %v650
    %v3239 = vunpack.c.l.b16 %v651
    %v3240 = vunpack.c.h.b16 %v651
    %v3241 = vunpack.c.l.b16 %v652
    %v3242 = vunpack.c.h.b16 %v652
    %v3243 = vunpack.c.l.b16 %v653
    %v3244 = vunpack.c.h.b16 %v653
    %v3245 = vunpack.c.l.b16 %v654
    %v3246 = vunpack.c.h.b16 %v654
    %v3247 = vunpack.c.l.b16 %v655
    %v3248 = vunpack.c.h.b16 %v655
    %v3249 = vunpack.c.l.b16 %v656
    %v3250 = vunpack.c.h.b16 %v656
    %v3251 = vunpack.c.l.b16 %v657
    %v3252 = vunpack.c.h.b16 %v657
    %v3253 = vunpack.c.l.b16 %v658
    %v3254 = vunpack.c.h.b16 %v658
    %v3255 = vunpack.c.l.b16 %v659
    %v3256 = vunpack.c.h.b16 %v659
    %v3257 = vunpack.c.l.b16 %v660
    %v3258 = vunpack.c.h.b16 %v660
    %v3259 = vunpack.c.l.b16 %v661
    %v3260 = vunpack.c.h.b16 %v661
    %v3261 = vunpack.c.l.b16 %v662
    %v3262 = vunpack.c.h.b16 %v662
    %v3263 = vunpack.c.l.b16 %v663
    %v3264 = vunpack.c.h.b16 %v663
    %v3265 = vunpack.c.l.b16 %v664
    %v3266 = vunpack.c.h.b16 %v664
    %v3267 = vunpack.c.l.b16 %v665
    %v3268 = vunpack.c.h.b16 %v665
    %v3269 = vunpack.c.l.b16 %v666
    %v3270 = vunpack.c.h.b16 %v666
    %v3271 = vunpack.c.l.b16 %v667
    %v3272 = vunpack.c.h.b16 %v667
    %v3273 = vunpack.c.l.b16 %v668
    %v3274 = vunpack.c.h.b16 %v668
    %v3275 = vunpack.c.l.b16 %v669
    %v3276 = vunpack.c.h.b16 %v669
    %v3277 = vunpack.c.l.b16 %v670
    %v3278 = vunpack.c.h.b16 %v670
    %v3279 = vunpack.c.l.b16 %v671
    %v3280 = vunpack.c.h.b16 %v671
    %v3281 = vunpack.c.l.b16 %v672
    %v3282 = vunpack.c.h.b16 %v672
    %v3283 = vunpack.c.l.b16 %v673
    %v3284 = vunpack.c.h.b16 %v673
    %v3285 = vunpack.c.l.b16 %v674
    %v3286 = vunpack.c.h.b16 %v674
    %v3287 = vunpack.c.l.b16 %v675
    %v3288 = vunpack.c.h.b16 %v675
    %v3289 = vunpack.c.l.b16 %v676
    %v3290 = vunpack.c.h.b16 %v676
    %v3291 = vunpack.c.l.b16 %v677
    %v3292 = vunpack.c.h.b16 %v677
    %v3293 = vunpack.c.l.b16 %v678
    %v3294 = vunpack.c.h.b16 %v678
    %v3295 = vunpack.c.l.b16 %v679
    %v3296 = vunpack.c.h.b16 %v679
    %v3297 = vunpack.c.l.b16 %v680
    %v3298 = vunpack.c.h.b16 %v680
    %v3299 = vunpack.c.l.b16 %v681
    %v3300 = vunpack.c.h.b16 %v681
    %v3301 = vunpack.c.l.b16 %v682
    %v3302 = vunpack.c.h.b16 %v682
    %v3303 = vunpack.c.l.b16 %v683
    %v3304 = vunpack.c.h.b16 %v683
    %v3305 = vunpack.c.l.b16 %v684
    %v3306 = vunpack.c.h.b16 %v684
    %v3307 = vunpack.c.l.b16 %v685
    %v3308 = vunpack.c.h.b16 %v685
    %v3309 = vunpack.c.l.b16 %v686
    %v3310 = vunpack.c.h.b16 %v686
    %v3311 = vunpack.c.l.b16 %v687
    %v3312 = vunpack.c.h.b16 %v687
    %v3313 = vunpack.c.l.b16 %v688
    %v3314 = vunpack.c.h.b16 %v688
    %v3315 = vunpack.c.l.b16 %v689
    %v3316 = vunpack.c.h.b16 %v689
    %v3317 = vunpack.c.l.b16 %v690
    %v3318 = vunpack.c.h.b16 %v690
    %v3319 = vunpack.c.l.b16 %v691
    %v3320 = vunpack.c.h.b16 %v691
    %v3321 = vunpack.c.l.b16 %v692
    %v3322 = vunpack.c.h.b16 %v692
    %v3323 = vunpack.c.l.b16 %v693
    %v3324 = vunpack.c.h.b16 %v693
    %v3325 = vunpack.c.l.b16 %v694
    %v3326 = vunpack.c.h.b16 %v694
    %v3327 = vunpack.c.l.b16 %v695
    %v3328 = vunpack.c.h.b16 %v695
    %v3329 = vunpack.c.l.b16 %v696
    %v3330 = vunpack.c.h.b16 %v696
    %v3331 = vunpack.c.l.b16 %v697
    %v3332 = vunpack.c.h.b16 %v697
    %v3333 = vunpack.c.l.b16 %v698
    %v3334 = vunpack.c.h.b16 %v698
    %v3335 = vunpack.c.l.b16 %v699
    %v3336 = vunpack.c.h.b16 %v699
    %v3337 = vunpack.c.l.b16 %v700
    %v3338 = vunpack.c.h.b16 %v700
    %v3339 = vunpack.c.l.b16 %v701
    %v3340 = vunpack.c.h.b16 %v701
    %v3341 = vunpack.c.l.b16 %v702
    %v3342 = vunpack.c.h.b16 %v702
    %v3343 = vunpack.c.l.b16 %v703
    %v3344 = vunpack.c.h.b16 %v703
    %v3345 = vunpack.c.l.b16 %v704
    %v3346 = vunpack.c.h.b16 %v704
    %v3347 = vunpack.c.l.b16 %v705
    %v3348 = vunpack.c.h.b16 %v705
    %v3349 = vunpack.c.l.b16 %v706
    %v3350 = vunpack.c.h.b16 %v706
    %v3351 = vunpack.c.l.b16 %v707
    %v3352 = vunpack.c.h.b16 %v707
    %v3353 = vunpack.c.l.b16 %v708
    %v3354 = vunpack.c.h.b16 %v708
    %v3355 = vunpack.c.l.b16 %v709
    %v3356 = vunpack.c.h.b16 %v709
    %v3357 = vunpack.c.l.b16 %v710
    %v3358 = vunpack.c.h.b16 %v710
    %v3359 = vunpack.c.l.b16 %v711
    %v3360 = vunpack.c.h.b16 %v711
    %v3361 = vunpack.c.l.b16 %v712
    %v3362 = vunpack.c.h.b16 %v712
    %v3363 = vunpack.c.l.b16 %v713
    %v3364 = vunpack.c.h.b16 %v713
    %v3365 = vunpack.c.l.b16 %v714
    %v3366 = vunpack.c.h.b16 %v714
    %v3367 = vunpack.c.l.b16 %v715
    %v3368 = vunpack.c.h.b16 %v715
    %v3369 = vunpack.c.l.b16 %v716
    %v3370 = vunpack.c.h.b16 %v716
    %v3371 = vunpack.c.l.b16 %v717
    %v3372 = vunpack.c.h.b16 %v717
    %v3373 = vunpack.c.l.b16 %v718
    %v3374 = vunpack.c.h.b16 %v718
    %v3375 = vunpack.c.l.b16 %v719
    %v3376 = vunpack.c.h.b16 %v719
    %v3377 = vunpack.c.l.b16 %v720
    %v3378 = vunpack.c.h.b16 %v720
    %v3379 = vunpack.c.l.b16 %v721
    %v3380 = vunpack.c.h.b16 %v721
    %v3381 = vunpack.c.l.b16 %v722
    %v3382 = vunpack.c.h.b16 %v722
    %v3383 = vunpack.c.l.b16 %v723
    %v3384 = vunpack.c.h.b16 %v723
    %v3385 = vunpack.c.l.b16 %v724
    %v3386 = vunpack.c.h.b16 %v724
    %v3387 = vunpack.c.l.b16 %v725
    %v3388 = vunpack.c.h.b16 %v725
    %v3389 = vunpack.c.l.b16 %v726
    %v3390 = vunpack.c.h.b16 %v726
    %v3391 = vunpack.c.l.b16 %v727
    %v3392 = vunpack.c.h.b16 %v727
    %v3393 = vunpack.c.l.b16 %v728
    %v3394 = vunpack.c.h.b16 %v728
    %v3395 = vunpack.c.l.b16 %v729
    %v3396 = vunpack.c.h.b16 %v729
    %v3397 = vunpack.c.l.b16 %v730
    %v3398 = vunpack.c.h.b16 %v730
    %v3399 = vunpack.c.l.b16 %v731
    %v3400 = vunpack.c.h.b16 %v731
    %v3401 = vunpack.c.l.b16 %v732
    %v3402 = vunpack.c.h.b16 %v732
    %v3403 = vunpack.c.l.b16 %v733
    %v3404 = vunpack.c.h.b16 %v733
    %v3405 = vunpack.c.l.b16 %v734
    %v3406 = vunpack.c.h.b16 %v734
    %v3407 = vunpack.c.l.b16 %v735
    %v3408 = vunpack.c.h.b16 %v735
    %v3409 = vunpack.c.l.b16 %v736
    %v3410 = vunpack.c.h.b16 %v736
    %v3411 = vunpack.c.l.b16 %v737
    %v3412 = vunpack.c.h.b16 %v737
    %v3413 = vunpack.c.l.b16 %v738
    %v3414 = vunpack.c.h.b16 %v738
    %v3415 = vunpack.c.l.b16 %v739
    %v3416 = vunpack.c.h.b16 %v739
    %v3417 = vunpack.c.l.b16 %v740
    %v3418 = vunpack.c.h.b16 %v740
    %v3419 = vunpack.c.l.b16 %v741
    %v3420 = vunpack.c.h.b16 %v741
    %v3421 = vunpack.c.l.b16 %v742
    %v3422 = vunpack.c.h.b16 %v742
    %v3423 = vunpack.c.l.b16 %v743
    %v3424 = vunpack.c.h.b16 %v743
    %v3425 = vunpack.c.l.b16 %v744
    %v3426 = vunpack.c.h.b16 %v744
    %v3427 = vunpack.c.l.b16 %v745
    %v3428 = vunpack.c.h.b16 %v745
    %v3429 = vunpack.c.l.b16 %v746
    %v3430 = vunpack.c.h.b16 %v746
    %v3431 = vunpack.c.l.b16 %v747
    %v3432 = vunpack.c.h.b16 %v747
    %v3433 = vunpack.c.l.b16 %v748
    %v3434 = vunpack.c.h.b16 %v748
    %v3435 = vunpack.c.l.b16 %v749
    %v3436 = vunpack.c.h.b16 %v749
    %v3437 = vunpack.c.l.b16 %v750
    %v3438 = vunpack.c.h.b16 %v750
    %v3439 = vunpack.c.l.b16 %v751
    %v3440 = vunpack.c.h.b16 %v751
    %v3441 = vunpack.c.l.b16 %v752
    %v3442 = vunpack.c.h.b16 %v752
    %v3443 = vunpack.c.l.b16 %v753
    %v3444 = vunpack.c.h.b16 %v753
    %v3445 = vunpack.c.l.b16 %v754
    %v3446 = vunpack.c.h.b16 %v754
    %v3447 = vunpack.c.l.b16 %v755
    %v3448 = vunpack.c.h.b16 %v755
    %v3449 = vunpack.c.l.b16 %v756
    %v3450 = vunpack.c.h.b16 %v756
    %v3451 = vunpack.c.l.b16 %v757
    %v3452 = vunpack.c.h.b16 %v757
    %v3453 = vunpack.c.l.b16 %v758
    %v3454 = vunpack.c.h.b16 %v758
    %v3455 = vunpack.c.l.b16 %v759
    %v3456 = vunpack.c.h.b16 %v759
    %v3457 = vunpack.c.l.b16 %v760
    %v3458 = vunpack.c.h.b16 %v760
    %v3459 = vunpack.c.l.b16 %v761
    %v3460 = vunpack.c.h.b16 %v761
    %v3461 = vunpack.c.l.b16 %v762
    %v3462 = vunpack.c.h.b16 %v762
    %v3463 = vunpack.c.l.b16 %v763
    %v3464 = vunpack.c.h.b16 %v763
    %v3465 = vunpack.c.l.b16 %v764
    %v3466 = vunpack.c.h.b16 %v764
    %v3467 = vunpack.c.l.b16 %v765
    %v3468 = vunpack.c.h.b16 %v765
    %v3469 = vunpack.c.l.b16 %v766
    %v3470 = vunpack.c.h.b16 %v766
    %v3471 = vunpack.c.l.b16 %v767
    %v3472 = vunpack.c.h.b16 %v767
    %v3473 = vunpack.c.l.b16 %v768
    %v3474 = vunpack.c.h.b16 %v768
    %v3475 = vunpack.c.l.b16 %v769
    %v3476 = vunpack.c.h.b16 %v769
    %v3477 = vunpack.c.l.b16 %v770
    %v3478 = vunpack.c.h.b16 %v770
    %v3479 = vunpack.c.l.b16 %v771
    %v3480 = vunpack.c.h.b16 %v771
    %v3481 = vunpack.c.l.b16 %v772
    %v3482 = vunpack.c.h.b16 %v772
    %v3483 = vunpack.c.l.b16 %v773
    %v3484 = vunpack.c.h.b16 %v773
    %v3485 = vunpack.c.l.b16 %v774
    %v3486 = vunpack.c.h.b16 %v774
    %v3487 = vunpack.c.l.b16 %v775
    %v3488 = vunpack.c.h.b16 %v775
    %v3489 = vunpack.c.l.b16 %v776
    %v3490 = vunpack.c.h.b16 %v776
    %v3491 = vunpack.c.l.b16 %v777
    %v3492 = vunpack.c.h.b16 %v777
    %v3493 = vunpack.c.l.b16 %v778
    %v3494 = vunpack.c.h.b16 %v778
    %v3495 = vunpack.c.l.b16 %v779
    %v3496 = vunpack.c.h.b16 %v779
    %v3497 = vunpack.c.l.b16 %v780
    %v3498 = vunpack.c.h.b16 %v780
    %v3499 = vunpack.c.l.b16 %v781
    %v3500 = vunpack.c.h.b16 %v781
    %v3501 = vunpack.c.l.b16 %v782
    %v3502 = vunpack.c.h.b16 %v782
    %v3503 = vunpack.c.l.b16 %v783
    %v3504 = vunpack.c.h.b16 %v783
    %v3505 = vunpack.c.l.b16 %v784
    %v3506 = vunpack.c.h.b16 %v784
    %v3507 = vunpack.c.l.b16 %v785
    %v3508 = vunpack.c.h.b16 %v785
    %v3509 = vunpack.c.l.b16 %v786
    %v3510 = vunpack.c.h.b16 %v786
    %v3511 = vunpack.c.l.b16 %v787
    %v3512 = vunpack.c.h.b16 %v787
    %v3513 = vunpack.c.l.b16 %v788
    %v3514 = vunpack.c.h.b16 %v788
    %v3515 = vunpack.c.l.b16 %v789
    %v3516 = vunpack.c.h.b16 %v789
    %v3517 = vunpack.c.l.b16 %v790
    %v3518 = vunpack.c.h.b16 %v790
    %v3519 = vunpack.c.l.b16 %v791
    %v3520 = vunpack.c.h.b16 %v791
    %v3521 = vunpack.c.l.b16 %v792
    %v3522 = vunpack.c.h.b16 %v792
    %v3523 = vunpack.c.l.b16 %v793
    %v3524 = vunpack.c.h.b16 %v793
    %v3525 = vunpack.c.l.b16 %v794
    %v3526 = vunpack.c.h.b16 %v794
    %v3527 = vunpack.c.l.b16 %v795
    %v3528 = vunpack.c.h.b16 %v795
    %v3529 = vunpack.c.l.b16 %v796
    %v3530 = vunpack.c.h.b16 %v796
    %v3531 = vunpack.c.l.b16 %v797
    %v3532 = vunpack.c.h.b16 %v797
    %v3533 = vunpack.c.l.b16 %v798
    %v3534 = vunpack.c.h.b16 %v798
    %v3535 = vunpack.c.l.b16 %v799
    %v3536 = vunpack.c.h.b16 %v799
    %v3537 = vunpack.c.l.b16 %v800
    %v3538 = vunpack.c.h.b16 %v800
    %v3539 = vunpack.c.l.b16 %v801
    %v3540 = vunpack.c.h.b16 %v801
    %v3541 = vunpack.c.l.b16 %v802
    %v3542 = vunpack.c.h.b16 %v802
    %v3543 = vunpack.c.l.b16 %v803
    %v3544 = vunpack.c.h.b16 %v803
    %v3545 = vunpack.c.l.b16 %v804
    %v3546 = vunpack.c.h.b16 %v804
    %v3547 = vunpack.c.l.b16 %v805
    %v3548 = vunpack.c.h.b16 %v805
    %v3549 = vunpack.c.l.b16 %v806
    %v3550 = vunpack.c.h.b16 %v806
    %v3551 = vunpack.c.l.b16 %v807
    %v3552 = vunpack.c.h.b16 %v807
    %v3553 = vunpack.c.l.b16 %v808
    %v3554 = vunpack.c.h.b16 %v808
    %v3555 = vunpack.c.l.b16 %v809
    %v3556 = vunpack.c.h.b16 %v809
    %v3557 = vunpack.c.l.b16 %v810
    %v3558 = vunpack.c.h.b16 %v810
    %v3559 = vunpack.c.l.b16 %v811
    %v3560 = vunpack.c.h.b16 %v811
    %v3561 = vunpack.c.l.b16 %v812
    %v3562 = vunpack.c.h.b16 %v812
    %v3563 = vunpack.c.l.b16 %v813
    %v3564 = vunpack.c.h.b16 %v813
    %v3565 = vunpack.c.l.b16 %v814
    %v3566 = vunpack.c.h.b16 %v814
    %v3567 = vunpack.c.l.b16 %v815
    %v3568 = vunpack.c.h.b16 %v815
    %v3569 = vunpack.c.l.b16 %v816
    %v3570 = vunpack.c.h.b16 %v816
    %v3571 = vunpack.c.l.b16 %v817
    %v3572 = vunpack.c.h.b16 %v817
    %v3573 = vunpack.c.l.b16 %v818
    %v3574 = vunpack.c.h.b16 %v818
    %v3575 = vunpack.c.l.b16 %v819
    %v3576 = vunpack.c.h.b16 %v819
    %v3577 = vunpack.c.l.b16 %v820
    %v3578 = vunpack.c.h.b16 %v820
    %v3579 = vunpack.c.l.b16 %v821
    %v3580 = vunpack.c.h.b16 %v821
    %v3581 = vunpack.c.l.b16 %v822
    %v3582 = vunpack.c.h.b16 %v822
    %v3583 = vunpack.c.l.b16 %v823
    %v3584 = vunpack.c.h.b16 %v823
    %v3585 = vunpack.c.l.b16 %v824
    %v3586 = vunpack.c.h.b16 %v824
    %v3587 = vunpack.c.l.b16 %v825
    %v3588 = vunpack.c.h.b16 %v825
    %v3589 = vunpack.c.l.b16 %v826
    %v3590 = vunpack.c.h.b16 %v826
    %v3591 = vunpack.c.l.b16 %v827
    %v3592 = vunpack.c.h.b16 %v827
    %v3593 = vunpack.c.l.b16 %v828
    %v3594 = vunpack.c.h.b16 %v828
    %v3595 = vunpack.c.l.b16 %v829
    %v3596 = vunpack.c.h.b16 %v829
    %v3597 = vunpack.c.l.b16 %v830
    %v3598 = vunpack.c.h.b16 %v830
    %v3599 = vunpack.c.l.b16 %v831
    %v3600 = vunpack.c.h.b16 %v831
    %v3601 = vunpack.c.l.b16 %v832
    %v3602 = vunpack.c.h.b16 %v832
    %v3603 = vunpack.c.l.b16 %v833
    %v3604 = vunpack.c.h.b16 %v833
    %v3605 = vunpack.c.l.b16 %v834
    %v3606 = vunpack.c.h.b16 %v834
    %v3607 = vunpack.c.l.b16 %v835
    %v3608 = vunpack.c.h.b16 %v835
    %v3609 = vunpack.c.l.b16 %v836
    %v3610 = vunpack.c.h.b16 %v836
    %v3611 = vunpack.c.l.b16 %v837
    %v3612 = vunpack.c.h.b16 %v837
    %v3613 = vunpack.c.l.b16 %v838
    %v3614 = vunpack.c.h.b16 %v838
    %v3615 = vunpack.c.l.b16 %v839
    %v3616 = vunpack.c.h.b16 %v839
    %v3617 = vunpack.c.l.b16 %v840
    %v3618 = vunpack.c.h.b16 %v840
    %v3619 = vunpack.c.l.b16 %v841
    %v3620 = vunpack.c.h.b16 %v841
    %v3621 = vunpack.c.l.b16 %v842
    %v3622 = vunpack.c.h.b16 %v842
    %v3623 = vunpack.c.l.b16 %v843
    %v3624 = vunpack.c.h.b16 %v843
    %v3625 = vunpack.c.l.b16 %v844
    %v3626 = vunpack.c.h.b16 %v844
    %v3627 = vunpack.c.l.b16 %v845
    %v3628 = vunpack.c.h.b16 %v845
    %v3629 = vunpack.c.l.b16 %v846
    %v3630 = vunpack.c.h.b16 %v846
    %v3631 = vunpack.c.l.b16 %v847
    %v3632 = vunpack.c.h.b16 %v847
    %v3633 = vunpack.c.l.b16 %v848
    %v3634 = vunpack.c.h.b16 %v848
    %v3635 = vunpack.c.l.b16 %v849
    %v3636 = vunpack.c.h.b16 %v849
    %v3637 = vunpack.c.l.b16 %v850
    %v3638 = vunpack.c.h.b16 %v850
    %v3639 = vunpack.c.l.b16 %v851
    %v3640 = vunpack.c.h.b16 %v851
    %v3641 = vunpack.c.l.b16 %v852
    %v3642 = vunpack.c.h.b16 %v852
    %v3643 = vunpack.c.l.b16 %v853
    %v3644 = vunpack.c.h.b16 %v853
    %v3645 = vunpack.c.l.b16 %v854
    %v3646 = vunpack.c.h.b16 %v854
    %v3647 = vunpack.c.l.b16 %v855
    %v3648 = vunpack.c.h.b16 %v855
    %v3649 = vunpack.c.l.b16 %v856
    %v3650 = vunpack.c.h.b16 %v856
    %v3651 = vunpack.c.l.b16 %v857
    %v3652 = vunpack.c.h.b16 %v857
    %v3653 = vunpack.c.l.b16 %v858
    %v3654 = vunpack.c.h.b16 %v858
    %v3655 = vunpack.c.l.b16 %v859
    %v3656 = vunpack.c.h.b16 %v859
    %v3657 = vunpack.c.l.b16 %v860
    %v3658 = vunpack.c.h.b16 %v860
    %v3659 = vunpack.c.l.b16 %v861
    %v3660 = vunpack.c.h.b16 %v861
    %v3661 = vunpack.c.l.b16 %v862
    %v3662 = vunpack.c.h.b16 %v862
    %v3663 = vunpack.c.l.b16 %v863
    %v3664 = vunpack.c.h.b16 %v863
    %v3665 = vunpack.c.l.b16 %v864
    %v3666 = vunpack.c.h.b16 %v864
    %v3667 = vunpack.c.l.b16 %v865
    %v3668 = vunpack.c.h.b16 %v865
    %v3669 = vunpack.c.l.b16 %v866
    %v3670 = vunpack.c.h.b16 %v866
    %v3671 = vunpack.c.l.b16 %v867
    %v3672 = vunpack.c.h.b16 %v867
    %v3673 = vunpack.c.l.b16 %v868
    %v3674 = vunpack.c.h.b16 %v868
    %v3675 = vunpack.c.l.b16 %v869
    %v3676 = vunpack.c.h.b16 %v869
    %v3677 = vunpack.c.l.b16 %v870
    %v3678 = vunpack.c.h.b16 %v870
    %v3679 = vunpack.c.l.b16 %v871
    %v3680 = vunpack.c.h.b16 %v871
    %v3681 = vunpack.c.l.b16 %v872
    %v3682 = vunpack.c.h.b16 %v872
    %v3683 = vunpack.c.l.b16 %v873
    %v3684 = vunpack.c.h.b16 %v873
    %v3685 = vunpack.c.l.b16 %v874
    %v3686 = vunpack.c.h.b16 %v874
    %v3687 = vunpack.c.l.b16 %v875
    %v3688 = vunpack.c.h.b16 %v875
    %v3689 = vunpack.c.l.b16 %v876
    %v3690 = vunpack.c.h.b16 %v876
    %v3691 = vunpack.c.l.b16 %v877
    %v3692 = vunpack.c.h.b16 %v877
    %v3693 = vunpack.c.l.b16 %v878
    %v3694 = vunpack.c.h.b16 %v878
    %v3695 = vunpack.c.l.b16 %v879
    %v3696 = vunpack.c.h.b16 %v879
    %v3697 = vunpack.c.l.b16 %v880
    %v3698 = vunpack.c.h.b16 %v880
    %v3699 = vunpack.c.l.b16 %v881
    %v3700 = vunpack.c.h.b16 %v881
    %v3701 = vunpack.c.l.b16 %v882
    %v3702 = vunpack.c.h.b16 %v882
    %v3703 = vunpack.c.l.b16 %v883
    %v3704 = vunpack.c.h.b16 %v883
    %v3705 = vunpack.c.l.b16 %v884
    %v3706 = vunpack.c.h.b16 %v884
    %v3707 = vunpack.c.l.b16 %v885
    %v3708 = vunpack.c.h.b16 %v885
    %v3709 = vunpack.c.l.b16 %v886
    %v3710 = vunpack.c.h.b16 %v886
    %v3711 = vunpack.c.l.b16 %v887
    %v3712 = vunpack.c.h.b16 %v887
    %v3713 = vunpack.c.l.b16 %v888
    %v3714 = vunpack.c.h.b16 %v888
    %v3715 = vunpack.c.l.b16 %v889
    %v3716 = vunpack.c.h.b16 %v889
    %v3717 = vunpack.c.l.b16 %v890
    %v3718 = vunpack.c.h.b16 %v890
    %v3719 = vunpack.c.l.b16 %v891
    %v3720 = vunpack.c.h.b16 %v891
    %v3721 = vunpack.c.l.b16 %v892
    %v3722 = vunpack.c.h.b16 %v892
    %v3723 = vunpack.c.l.b16 %v893
    %v3724 = vunpack.c.h.b16 %v893
    %v3725 = vunpack.c.l.b16 %v894
    %v3726 = vunpack.c.h.b16 %v894
    %v3727 = vunpack.c.l.b16 %v895
    %v3728 = vunpack.c.h.b16 %v895
    %v3729 = vunpack.c.l.b16 %v896
    %v3730 = vunpack.c.h.b16 %v896
    %v3731 = vunpack.c.l.b16 %v897
    %v3732 = vunpack.c.h.b16 %v897
    %v3733 = vunpack.c.l.b16 %v898
    %v3734 = vunpack.c.h.b16 %v898
    %v3735 = vunpack.c.l.b16 %v899
    %v3736 = vunpack.c.h.b16 %v899
    %v3737 = vunpack.c.l.b16 %v900
    %v3738 = vunpack.c.h.b16 %v900
    %v3739 = vunpack.c.l.b16 %v901
    %v3740 = vunpack.c.h.b16 %v901
    %v3741 = vunpack.c.l.b16 %v902
    %v3742 = vunpack.c.h.b16 %v902
    %v3743 = vunpack.c.l.b16 %v903
    %v3744 = vunpack.c.h.b16 %v903
    %v3745 = vunpack.c.l.b16 %v904
    %v3746 = vunpack.c.h.b16 %v904
    %v3747 = vunpack.c.l.b16 %v905
    %v3748 = vunpack.c.h.b16 %v905
    %v3749 = vunpack.c.l.b16 %v906
    %v3750 = vunpack.c.h.b16 %v906
    %v3751 = vunpack.c.l.b16 %v907
    %v3752 = vunpack.c.h.b16 %v907
    %v3753 = vunpack.c.l.b16 %v908
    %v3754 = vunpack.c.h.b16 %v908
    %v3755 = vunpack.c.l.b16 %v909
    %v3756 = vunpack.c.h.b16 %v909
    %v3757 = vunpack.c.l.b16 %v910
    %v3758 = vunpack.c.h.b16 %v910
    %v3759 = vunpack.c.l.b16 %v911
    %v3760 = vunpack.c.h.b16 %v911
    %v3761 = vunpack.c.l.b16 %v912
    %v3762 = vunpack.c.h.b16 %v912
    %v3763 = vunpack.c.l.b16 %v913
    %v3764 = vunpack.c.h.b16 %v913
    %v3765 = vunpack.c.l.b16 %v914
    %v3766 = vunpack.c.h.b16 %v914
    %v3767 = vunpack.c.l.b16 %v915
    %v3768 = vunpack.c.h.b16 %v915
    %v3769 = vunpack.c.l.b16 %v916
    %v3770 = vunpack.c.h.b16 %v916
    %v3771 = vunpack.c.l.b16 %v917
    %v3772 = vunpack.c.h.b16 %v917
    %v3773 = vunpack.c.l.b16 %v918
    %v3774 = vunpack.c.h.b16 %v918
    %v3775 = vunpack.c.l.b16 %v919
    %v3776 = vunpack.c.h.b16 %v919
    %v3777 = vunpack.c.l.b16 %v920
    %v3778 = vunpack.c.h.b16 %v920
    %v3779 = vunpack.c.l.b16 %v921
    %v3780 = vunpack.c.h.b16 %v921
    %v3781 = vunpack.c.l.b16 %v922
    %v3782 = vunpack.c.h.b16 %v922
    %v3783 = vunpack.c.l.b16 %v923
    %v3784 = vunpack.c.h.b16 %v923
    %v3785 = vunpack.c.l.b16 %v924
    %v3786 = vunpack.c.h.b16 %v924
    %v3787 = vunpack.c.l.b16 %v925
    %v3788 = vunpack.c.h.b16 %v925
    %v3789 = vunpack.c.l.b16 %v926
    %v3790 = vunpack.c.h.b16 %v926
    %v3791 = vunpack.c.l.b16 %v927
    %v3792 = vunpack.c.h.b16 %v927
    %v3793 = vunpack.c.l.b16 %v928
    %v3794 = vunpack.c.h.b16 %v928
    %v3795 = vunpack.c.l.b16 %v929
    %v3796 = vunpack.c.h.b16 %v929
    %v3797 = vunpack.c.l.b16 %v930
    %v3798 = vunpack.c.h.b16 %v930
    %v3799 = vunpack.c.l.b16 %v931
    %v3800 = vunpack.c.h.b16 %v931
    %v3801 = vunpack.c.l.b16 %v932
    %v3802 = vunpack.c.h.b16 %v932
    %v3803 = vunpack.c.l.b16 %v933
    %v3804 = vunpack.c.h.b16 %v933
    %v3805 = vunpack.c.l.b16 %v934
    %v3806 = vunpack.c.h.b16 %v934
    %v3807 = vunpack.c.l.b16 %v935
    %v3808 = vunpack.c.h.b16 %v935
    %v3809 = vunpack.c.l.b16 %v936
    %v3810 = vunpack.c.h.b16 %v936
    %v3811 = vunpack.c.l.b16 %v937
    %v3812 = vunpack.c.h.b16 %v937
    %v3813 = vunpack.c.l.b16 %v938
    %v3814 = vunpack.c.h.b16 %v938
    %v3815 = vunpack.c.l.b16 %v939
    %v3816 = vunpack.c.h.b16 %v939
    %v3817 = vunpack.c.l.b16 %v940
    %v3818 = vunpack.c.h.b16 %v940
    %v3819 = vunpack.c.l.b16 %v941
    %v3820 = vunpack.c.h.b16 %v941
    %v3821 = vunpack.c.l.b16 %v942
    %v3822 = vunpack.c.h.b16 %v942
    %v3823 = vunpack.c.l.b16 %v943
    %v3824 = vunpack.c.h.b16 %v943
    %v3825 = vunpack.c.l.b16 %v944
    %v3826 = vunpack.c.h.b16 %v944
    %v3827 = vunpack.c.l.b16 %v945
    %v3828 = vunpack.c.h.b16 %v945
    %v3829 = vunpack.c.l.b16 %v946
    %v3830 = vunpack.c.h.b16 %v946
    %v3831 = vunpack.c.l.b16 %v947
    %v3832 = vunpack.c.h.b16 %v947
    %v3833 = vunpack.c.l.b16 %v948
    %v3834 = vunpack.c.h.b16 %v948
    %v3835 = vunpack.c.l.b16 %v949
    %v3836 = vunpack.c.h.b16 %v949
    %v3837 = vunpack.c.l.b16 %v950
    %v3838 = vunpack.c.h.b16 %v950
    %v3839 = vunpack.c.l.b16 %v951
    %v3840 = vunpack.c.h.b16 %v951
    %v3841 = vunpack.c.l.b16 %v952
    %v3842 = vunpack.c.h.b16 %v952
    %v3843 = vunpack.c.l.b16 %v953
    %v3844 = vunpack.c.h.b16 %v953
    %v3845 = vunpack.c.l.b16 %v954
    %v3846 = vunpack.c.h.b16 %v954
    %v3847 = vunpack.c.l.b16 %v955
    %v3848 = vunpack.c.h.b16 %v955
    %v3849 = vunpack.c.l.b16 %v956
    %v3850 = vunpack.c.h.b16 %v956
    %v3851 = vunpack.c.l.b16 %v957
    %v3852 = vunpack.c.h.b16 %v957
    %v3853 = vunpack.c.l.b16 %v958
    %v3854 = vunpack.c.h.b16 %v958
    %v3855 = vunpack.c.l.b16 %v959
    %v3856 = vunpack.c.h.b16 %v959
    %v3857 = vunpack.c.l.b16 %v960
    %v3858 = vunpack.c.h.b16 %v960
    %v3859 = vunpack.c.l.b16 %v961
    %v3860 = vunpack.c.h.b16 %v961
    %v3861 = vunpack.c.l.b16 %v962
    %v3862 = vunpack.c.h.b16 %v962
    %v3863 = vunpack.c.l.b16 %v963
    %v3864 = vunpack.c.h.b16 %v963
    %v3865 = vunpack.c.l.b16 %v964
    %v3866 = vunpack.c.h.b16 %v964
    %v3867 = vunpack.c.l.b16 %v965
    %v3868 = vunpack.c.h.b16 %v965
    %v3869 = vunpack.c.l.b16 %v966
    %v3870 = vunpack.c.h.b16 %v966
    %v3871 = vunpack.c.l.b16 %v967
    %v3872 = vunpack.c.h.b16 %v967
    %v3873 = vunpack.c.l.b16 %v968
    %v3874 = vunpack.c.h.b16 %v968
    %v3875 = vunpack.c.l.b16 %v969
    %v3876 = vunpack.c.h.b16 %v969
    %v3877 = vunpack.c.l.b16 %v970
    %v3878 = vunpack.c.h.b16 %v970
    %v3879 = vunpack.c.l.b16 %v971
    %v3880 = vunpack.c.h.b16 %v971
    %v3881 = vunpack.c.l.b16 %v972
    %v3882 = vunpack.c.h.b16 %v972
    %v3883 = vunpack.c.l.b16 %v973
    %v3884 = vunpack.c.h.b16 %v973
    %v3885 = vunpack.c.l.b16 %v974
    %v3886 = vunpack.c.h.b16 %v974
    %v3887 = vunpack.c.l.b16 %v975
    %v3888 = vunpack.c.h.b16 %v975
    %v3889 = vunpack.c.l.b16 %v976
    %v3890 = vunpack.c.h.b16 %v976
    %v3891 = vunpack.c.l.b16 %v977
    %v3892 = vunpack.c.h.b16 %v977
    %v3893 = vunpack.c.l.b16 %v978
    %v3894 = vunpack.c.h.b16 %v978
    %v3895 = vunpack.c.l.b16 %v979
    %v3896 = vunpack.c.h.b16 %v979
    %v3897 = vunpack.c.l.b16 %v980
    %v3898 = vunpack.c.h.b16 %v980
    %v3899 = vunpack.c.l.b16 %v981
    %v3900 = vunpack.c.h.b16 %v981
    %v3901 = vunpack.c.l.b16 %v982
    %v3902 = vunpack.c.h.b16 %v982
    %v3903 = vunpack.c.l.b16 %v983
    %v3904 = vunpack.c.h.b16 %v983
    %v3905 = vunpack.c.l.b16 %v984
    %v3906 = vunpack.c.h.b16 %v984
    %v3907 = vunpack.c.l.b16 %v985
    %v3908 = vunpack.c.h.b16 %v985
    %v3909 = vunpack.c.l.b16 %v986
    %v3910 = vunpack.c.h.b16 %v986
    %v3911 = vunpack.c.l.b16 %v987
    %v3912 = vunpack.c.h.b16 %v987
    %v3913 = vunpack.c.l.b16 %v988
    %v3914 = vunpack.c.h.b16 %v988
    %v3915 = vunpack.c.l.b16 %v989
    %v3916 = vunpack.c.h.b16 %v989
    %v3917 = vunpack.c.l.b16 %v990
    %v3918 = vunpack.c.h.b16 %v990
    %v3919 = vunpack.c.l.b16 %v991
    %v3920 = vunpack.c.h.b16 %v991
    %v3921 = vunpack.c.l.b16 %v992
    %v3922 = vunpack.c.h.b16 %v992
    %v3923 = vunpack.c.l.b16 %v993
    %v3924 = vunpack.c.h.b16 %v993
    %v3925 = vunpack.c.l.b16 %v994
    %v3926 = vunpack.c.h.b16 %v994
    %v3927 = vunpack.c.l.b16 %v995
    %v3928 = vunpack.c.h.b16 %v995
    %v3929 = vunpack.c.l.b16 %v996
    %v3930 = vunpack.c.h.b16 %v996
    %v3931 = vunpack.c.l.b16 %v997
    %v3932 = vunpack.c.h.b16 %v997
    %v3933 = vunpack.c.l.b16 %v998
    %v3934 = vunpack.c.h.b16 %v998
    %v3935 = vunpack.c.l.b16 %v999
    %v3936 = vunpack.c.h.b16 %v999
    %v3937 = vunpack.c.l.b16 %v1000
    %v3938 = vunpack.c.h.b16 %v1000
    %v3939 = vunpack.c.l.b16 %v1001
    %v3940 = vunpack.c.h.b16 %v1001
    %v3941 = vunpack.c.l.b16 %v1002
    %v3942 = vunpack.c.h.b16 %v1002
    %v3943 = vunpack.c.l.b16 %v1003
    %v3944 = vunpack.c.h.b16 %v1003
    %v3945 = vunpack.c.l.b16 %v1004
    %v3946 = vunpack.c.h.b16 %v1004
    %v3947 = vunpack.c.l.b16 %v1005
    %v3948 = vunpack.c.h.b16 %v1005
    %v3949 = vunpack.c.l.b16 %v1006
    %v3950 = vunpack.c.h.b16 %v1006
    %v3951 = vunpack.c.l.b16 %v1007
    %v3952 = vunpack.c.h.b16 %v1007
    %v3953 = vunpack.c.l.b16 %v1008
    %v3954 = vunpack.c.h.b16 %v1008
    %v3955 = vunpack.c.l.b16 %v1009
    %v3956 = vunpack.c.h.b16 %v1009
    %v3957 = vunpack.c.l.b16 %v1010
    %v3958 = vunpack.c.h.b16 %v1010
    %v3959 = vunpack.c.l.b16 %v1011
    %v3960 = vunpack.c.h.b16 %v1011
    %v3961 = vunpack.c.l.b16 %v1012
    %v3962 = vunpack.c.h.b16 %v1012
    %v3963 = vunpack.c.l.b16 %v1013
    %v3964 = vunpack.c.h.b16 %v1013
    %v3965 = vunpack.c.l.b16 %v1014
    %v3966 = vunpack.c.h.b16 %v1014
    %v3967 = vunpack.c.l.b16 %v1015
    %v3968 = vunpack.c.h.b16 %v1015
    %v3969 = vunpack.c.l.b16 %v1016
    %v3970 = vunpack.c.h.b16 %v1016
    %v3971 = vunpack.c.l.b16 %v1017
    %v3972 = vunpack.c.h.b16 %v1017
    %v3973 = vunpack.c.l.b16 %v1018
    %v3974 = vunpack.c.h.b16 %v1018
    %v3975 = vunpack.c.l.b16 %v1019
    %v3976 = vunpack.c.h.b16 %v1019
    %v3977 = vunpack.c.l.b16 %v1020
    %v3978 = vunpack.c.h.b16 %v1020
    %v3979 = vunpack.c.l.b16 %v1021
    %v3980 = vunpack.c.h.b16 %v1021
    %v3981 = vunpack.c.l.b16 %v1022
    %v3982 = vunpack.c.h.b16 %v1022
    %v3983 = vunpack.c.l.b16 %v1023
    %v3984 = vunpack.c.h.b16 %v1023
    %v3985 = vunpack.c.l.b16 %v1024
    %v3986 = vunpack.c.h.b16 %v1024
    %v3987 = vunpack.c.l.b16 %v1025
    %v3988 = vunpack.c.h.b16 %v1025
    %v3989 = vunpack.c.l.b16 %v1026
    %v3990 = vunpack.c.h.b16 %v1026
    %v3991 = vunpack.c.l.b16 %v1027
    %v3992 = vunpack.c.h.b16 %v1027
    %v3993 = vunpack.c.l.b16 %v1028
    %v3994 = vunpack.c.h.b16 %v1028
    %v3995 = vunpack.c.l.b16 %v1029
    %v3996 = vunpack.c.h.b16 %v1029
    %v3997 = vunpack.c.l.b16 %v1030
    %v3998 = vunpack.c.h.b16 %v1030
    %v3999 = vunpack.c.l.b16 %v1031
    %v4000 = vunpack.c.h.b16 %v1031
    %v4001 = vunpack.c.l.b16 %v1032
    %v4002 = vunpack.c.h.b16 %v1032
    %v4003 = vunpack.c.l.b16 %v1033
    %v4004 = vunpack.c.h.b16 %v1033
    %v4005 = vunpack.c.l.b16 %v1034
    %v4006 = vunpack.c.h.b16 %v1034
    %v4007 = vunpack.c.l.b16 %v1035
    %v4008 = vunpack.c.h.b16 %v1035
    %v4009 = vunpack.c.l.b16 %v1036
    %v4010 = vunpack.c.h.b16 %v1036
    %v4011 = vunpack.c.l.b16 %v1037
    %v4012 = vunpack.c.h.b16 %v1037
    %v4013 = vunpack.c.l.b16 %v1038
    %v4014 = vunpack.c.h.b16 %v1038
    %v4015 = vunpack.c.l.b16 %v1039
    %v4016 = vunpack.c.h.b16 %v1039
    %v4017 = vunpack.c.l.b16 %v1040
    %v4018 = vunpack.c.h.b16 %v1040
    %v4019 = vunpack.c.l.b16 %v1041
    %v4020 = vunpack.c.h.b16 %v1041
    %v4021 = vunpack.c.l.b16 %v1042
    %v4022 = vunpack.c.h.b16 %v1042
    %v4023 = vunpack.c.l.b16 %v1043
    %v4024 = vunpack.c.h.b16 %v1043
    %v4025 = vunpack.c.l.b16 %v1044
    %v4026 = vunpack.c.h.b16 %v1044
    %v4027 = vunpack.c.l.b16 %v1045
    %v4028 = vunpack.c.h.b16 %v1045
    %v4029 = vunpack.c.l.b16 %v1046
    %v4030 = vunpack.c.h.b16 %v1046
    %v4031 = vunpack.c.l.b16 %v1047
    %v4032 = vunpack.c.h.b16 %v1047
    %v4033 = vunpack.c.l.b16 %v1048
    %v4034 = vunpack.c.h.b16 %v1048
    %v4035 = vunpack.c.l.b16 %v1049
    %v4036 = vunpack.c.h.b16 %v1049
    %v4037 = vunpack.c.l.b16 %v1050
    %v4038 = vunpack.c.h.b16 %v1050
    %v4039 = vunpack.c.l.b16 %v1051
    %v4040 = vunpack.c.h.b16 %v1051
    %v4041 = vunpack.c.l.b16 %v1052
    %v4042 = vunpack.c.h.b16 %v1052
    %v4043 = vunpack.c.l.b16 %v1053
    %v4044 = vunpack.c.h.b16 %v1053
    %v4045 = vunpack.c.l.b16 %v1054
    %v4046 = vunpack.c.h.b16 %v1054
    %v4047 = vunpack.c.l.b16 %v1055
    %v4048 = vunpack.c.h.b16 %v1055
    %v4049 = vunpack.c.l.b16 %v1056
    %v4050 = vunpack.c.h.b16 %v1056
    %v4051 = vunpack.c.l.b16 %v1057
    %v4052 = vunpack.c.h.b16 %v1057
    %v4053 = vunpack.c.l.b16 %v1058
    %v4054 = vunpack.c.h.b16 %v1058
    %v4055 = vunpack.c.l.b16 %v1059
    %v4056 = vunpack.c.h.b16 %v1059
    %v4057 = vunpack.c.l.b16 %v1060
    %v4058 = vunpack.c.h.b16 %v1060
    %v4059 = vunpack.c.l.b16 %v1061
    %v4060 = vunpack.c.h.b16 %v1061
    %v4061 = vunpack.c.l.b16 %v1062
    %v4062 = vunpack.c.h.b16 %v1062
    %v4063 = vunpack.c.l.b16 %v1063
    %v4064 = vunpack.c.h.b16 %v1063
    %v4065 = vunpack.c.l.b16 %v1064
    %v4066 = vunpack.c.h.b16 %v1064
    %v4067 = vunpack.c.l.b16 %v1065
    %v4068 = vunpack.c.h.b16 %v1065
    %v4069 = vunpack.c.l.b16 %v1066
    %v4070 = vunpack.c.h.b16 %v1066
    %v4071 = vunpack.c.l.b16 %v1067
    %v4072 = vunpack.c.h.b16 %v1067
    %v4073 = vunpack.c.l.b16 %v1068
    %v4074 = vunpack.c.h.b16 %v1068
    %v4075 = vunpack.c.l.b16 %v1069
    %v4076 = vunpack.c.h.b16 %v1069
    %v4077 = vunpack.c.l.b16 %v1070
    %v4078 = vunpack.c.h.b16 %v1070
    %v4079 = vunpack.c.l.b16 %v1071
    %v4080 = vunpack.c.h.b16 %v1071
    %v4081 = vunpack.c.l.b16 %v1072
    %v4082 = vunpack.c.h.b16 %v1072
    %v4083 = vunpack.c.l.b16 %v1073
    %v4084 = vunpack.c.h.b16 %v1073
    %v4085 = vunpack.c.l.b16 %v1074
    %v4086 = vunpack.c.h.b16 %v1074
    %v4087 = vunpack.c.l.b16 %v1075
    %v4088 = vunpack.c.h.b16 %v1075
    %v4089 = vunpack.c.l.b16 %v1076
    %v4090 = vunpack.c.h.b16 %v1076
    %v4091 = vunpack.c.l.b16 %v1077
    %v4092 = vunpack.c.h.b16 %v1077
    %v4093 = vunpack.c.l.b16 %v1078
    %v4094 = vunpack.c.h.b16 %v1078
    %v4095 = vunpack.c.l.b16 %v1079
    %v4096 = vunpack.c.h.b16 %v1079
    %v4097 = vunpack.c.l.b16 %v1080
    %v4098 = vunpack.c.h.b16 %v1080
    %v4099 = vunpack.c.l.b16 %v1081
    %v4100 = vunpack.c.h.b16 %v1081
    %v4101 = vunpack.c.l.b16 %v1082
    %v4102 = vunpack.c.h.b16 %v1082
    %v4103 = vunpack.c.l.b16 %v1083
    %v4104 = vunpack.c.h.b16 %v1083
    %v4105 = vunpack.c.l.b16 %v1084
    %v4106 = vunpack.c.h.b16 %v1084
    %v4107 = vunpack.c.l.b16 %v1085
    %v4108 = vunpack.c.h.b16 %v1085
    %v4109 = vunpack.c.l.b16 %v1086
    %v4110 = vunpack.c.h.b16 %v1086
    %v4111 = vunpack.c.l.b16 %v1087
    %v4112 = vunpack.c.h.b16 %v1087
    %v4113 = vunpack.c.l.b16 %v1088
    %v4114 = vunpack.c.h.b16 %v1088
    %v4115 = vunpack.c.l.b16 %v1089
    %v4116 = vunpack.c.h.b16 %v1089
    %v4117 = vunpack.c.l.b16 %v1090
    %v4118 = vunpack.c.h.b16 %v1090
    %v4119 = vunpack.c.l.b16 %v1091
    %v4120 = vunpack.c.h.b16 %v1091
    %v4121 = vunpack.c.l.b16 %v1092
    %v4122 = vunpack.c.h.b16 %v1092
    %v4123 = vunpack.c.l.b16 %v1093
    %v4124 = vunpack.c.h.b16 %v1093
    %v4125 = vunpack.c.l.b16 %v1094
    %v4126 = vunpack.c.h.b16 %v1094
    %v4127 = vunpack.c.l.b16 %v1095
    %v4128 = vunpack.c.h.b16 %v1095
    %v4129 = vunpack.c.l.b16 %v1096
    %v4130 = vunpack.c.h.b16 %v1096
    %v4131 = vunpack.c.l.b16 %v1097
    %v4132 = vunpack.c.h.b16 %v1097
    %v4133 = vunpack.c.l.b16 %v1098
    %v4134 = vunpack.c.h.b16 %v1098
    %v4135 = vunpack.c.l.b16 %v1099
    %v4136 = vunpack.c.h.b16 %v1099
    %v4137 = vunpack.c.l.b16 %v1100
    %v4138 = vunpack.c.h.b16 %v1100
    %v4139 = vunpack.c.l.b16 %v1101
    %v4140 = vunpack.c.h.b16 %v1101
    %v4141 = vunpack.c.l.b16 %v1102
    %v4142 = vunpack.c.h.b16 %v1102
    %v4143 = vunpack.c.l.b16 %v1103
    %v4144 = vunpack.c.h.b16 %v1103
    %v4145 = vunpack.c.l.b16 %v1104
    %v4146 = vunpack.c.h.b16 %v1104
    %v4147 = vunpack.c.l.b16 %v1105
    %v4148 = vunpack.c.h.b16 %v1105
    %v4149 = vunpack.c.l.b16 %v1106
    %v4150 = vunpack.c.h.b16 %v1106
    %v4151 = vunpack.c.l.b16 %v1107
    %v4152 = vunpack.c.h.b16 %v1107
    %v4153 = vunpack.c.l.b16 %v1108
    %v4154 = vunpack.c.h.b16 %v1108
    %v4155 = vpack.c.b16 %v2215, %v2195
    %v4156 = vpack.c.b16 %v2216, %v2196
    %v4157 = vpack.c.b16 %v2217, %v2197
    %v4158 = vpack.c.b16 %v2218, %v2198
    %v4159 = vpack.c.b16 %v2219, %v2199
    %v4160 = vpack.c.b16 %v2220, %v2200
    %v4161 = vpack.c.b16 %v2221, %v2201
    %v4162 = vpack.c.b16 %v2222, %v2202
    %v4163 = vpack.c.b16 %v2223, %v2203
    %v4164 = vpack.c.b16 %v2224, %v2204
    %v4165 = vpack.c.b16 %v2225, %v2205
    %v4166 = vpack.c.b16 %v2226, %v2206
    %v4167 = vpack.c.b16 %v2227, %v2207
    %v4168 = vpack.c.b16 %v2228, %v2208
    %v4169 = vpack.c.b16 %v2229, %v2209
    %v4170 = vpack.c.b16 %v2230, %v2210
    %v4171 = vpack.c.b16 %v2231, %v2211
    %v4172 = vpack.c.b16 %v2232, %v2212
    %v4173 = vpack.c.b16 %v2233, %v2213
    %v4174 = vpack.c.b16 %v2234, %v2214
    %v4175 = vpack.c.b16 %v2255, %v2235
    %v4176 = vpack.c.b16 %v2256, %v2236
    %v4177 = vpack.c.b16 %v2257, %v2237
    %v4178 = vpack.c.b16 %v2258, %v2238
    %v4179 = vpack.c.b16 %v2259, %v2239
    %v4180 = vpack.c.b16 %v2260, %v2240
    %v4181 = vpack.c.b16 %v2261, %v2241
    %v4182 = vpack.c.b16 %v2262, %v2242
    %v4183 = vpack.c.b16 %v2263, %v2243
    %v4184 = vpack.c.b16 %v2264, %v2244
    %v4185 = vpack.c.b16 %v2265, %v2245
    %v4186 = vpack.c.b16 %v2266, %v2246
    %v4187 = vpack.c.b16 %v2267, %v2247
    %v4188 = vpack.c.b16 %v2268, %v2248
    %v4189 = vpack.c.b16 %v2269, %v2249
    %v4190 = vpack.c.b16 %v2270, %v2250
    %v4191 = vpack.c.b16 %v2271, %v2251
    %v4192 = vpack.c.b16 %v2272, %v2252
    %v4193 = vpack.c.b16 %v2273, %v2253
    %v4194 = vpack.c.b16 %v2274, %v2254
    %v4195 = vpack.c.b16 %v2295, %v2275
    %v4196 = vpack.c.b16 %v2296, %v2276
    %v4197 = vpack.c.b16 %v2297, %v2277
    %v4198 = vpack.c.b16 %v2298, %v2278
    %v4199 = vpack.c.b16 %v2299, %v2279
    %v4200 = vpack.c.b16 %v2300, %v2280
    %v4201 = vpack.c.b16 %v2301, %v2281
    %v4202 = vpack.c.b16 %v2302, %v2282
    %v4203 = vpack.c.b16 %v2303, %v2283
    %v4204 = vpack.c.b16 %v2304, %v2284
    %v4205 = vpack.c.b16 %v2305, %v2285
    %v4206 = vpack.c.b16 %v2306, %v2286
    %v4207 = vpack.c.b16 %v2307, %v2287
    %v4208 = vpack.c.b16 %v2308, %v2288
    %v4209 = vpack.c.b16 %v2309, %v2289
    %v4210 = vpack.c.b16 %v2310, %v2290
    %v4211 = vpack.c.b16 %v2311, %v2291
    %v4212 = vpack.c.b16 %v2312, %v2292
    %v4213 = vpack.c.b16 %v2313, %v2293
    %v4214 = vpack.c.b16 %v2314, %v2294
    %v4215 = vpack.c.b16 %v2335, %v2315
    %v4216 = vpack.c.b16 %v2336, %v2316
    %v4217 = vpack.c.b16 %v2337, %v2317
    %v4218 = vpack.c.b16 %v2338, %v2318
    %v4219 = vpack.c.b16 %v2339, %v2319
    %v4220 = vpack.c.b16 %v2340, %v2320
    %v4221 = vpack.c.b16 %v2341, %v2321
    %v4222 = vpack.c.b16 %v2342, %v2322
    %v4223 = vpack.c.b16 %v2343, %v2323
    %v4224 = vpack.c.b16 %v2344, %v2324
    %v4225 = vpack.c.b16 %v2345, %v2325
    %v4226 = vpack.c.b16 %v2346, %v2326
    %v4227 = vpack.c.b16 %v2347, %v2327
    %v4228 = vpack.c.b16 %v2348, %v2328
    %v4229 = vpack.c.b16 %v2349, %v2329
    %v4230 = vpack.c.b16 %v2350, %v2330
    %v4231 = vpack.c.b16 %v2351, %v2331
    %v4232 = vpack.c.b16 %v2352, %v2332
    %v4233 = vpack.c.b16 %v2353, %v2333
    %v4234 = vpack.c.b16 %v2354, %v2334
    %v4235 = vpack.c.b16 %v2375, %v2355
    %v4236 = vpack.c.b16 %v2376, %v2356
    %v4237 = vpack.c.b16 %v2377, %v2357
    %v4238 = vpack.c.b16 %v2378, %v2358
    %v4239 = vpack.c.b16 %v2379, %v2359
    %v4240 = vpack.c.b16 %v2380, %v2360
    %v4241 = vpack.c.b16 %v2381, %v2361
    %v4242 = vpack.c.b16 %v2382, %v2362
    %v4243 = vpack.c.b16 %v2383, %v2363
    %v4244 = vpack.c.b16 %v2384, %v2364
    %v4245 = vpack.c.b16 %v2385, %v2365
    %v4246 = vpack.c.b16 %v2386, %v2366
    %v4247 = vpack.c.b16 %v2387, %v2367
    %v4248 = vpack.c.b16 %v2388, %v2368
    %v4249 = vpack.c.b16 %v2389, %v2369
    %v4250 = vpack.c.b16 %v2390, %v2370
    %v4251 = vpack.c.b16 %v2391, %v2371
    %v4252 = vpack.c.b16 %v2392, %v2372
    %v4253 = vpack.c.b16 %v2393, %v2373
    %v4254 = vpack.c.b16 %v2394, %v2374
    %v4255 = vpack.c.b16 %v2415, %v2395
    %v4256 = vpack.c.b16 %v2416, %v2396
    %v4257 = vpack.c.b16 %v2417, %v2397
    %v4258 = vpack.c.b16 %v2418, %v2398
    %v4259 = vpack.c.b16 %v2419, %v2399
    %v4260 = vpack.c.b16 %v2420, %v2400
    %v4261 = vpack.c.b16 %v2421, %v2401
    %v4262 = vpack.c.b16 %v2422, %v2402
    %v4263 = vpack.c.b16 %v2423, %v2403
    %v4264 = vpack.c.b16 %v2424, %v2404
    %v4265 = vpack.c.b16 %v2425, %v2405
    %v4266 = vpack.c.b16 %v2426, %v2406
    %v4267 = vpack.c.b16 %v2427, %v2407
    %v4268 = vpack.c.b16 %v2428, %v2408
    %v4269 = vpack.c.b16 %v2429, %v2409
    %v4270 = vpack.c.b16 %v2430, %v2410
    %v4271 = vpack.c.b16 %v2431, %v2411
    %v4272 = vpack.c.b16 %v2432, %v2412
    %v4273 = vpack.c.b16 %v2433, %v2413
    %v4274 = vpack.c.b16 %v2434, %v2414
    %v4275 = vpack.c.b16 %v2455, %v2435
    %v4276 = vpack.c.b16 %v2456, %v2436
    %v4277 = vpack.c.b16 %v2457, %v2437
    %v4278 = vpack.c.b16 %v2458, %v2438
    %v4279 = vpack.c.b16 %v2459, %v2439
    %v4280 = vpack.c.b16 %v2460, %v2440
    %v4281 = vpack.c.b16 %v2461, %v2441
    %v4282 = vpack.c.b16 %v2462, %v2442
    %v4283 = vpack.c.b16 %v2463, %v2443
    %v4284 = vpack.c.b16 %v2464, %v2444
    %v4285 = vpack.c.b16 %v2465, %v2445
    %v4286 = vpack.c.b16 %v2466, %v2446
    %v4287 = vpack.c.b16 %v2467, %v2447
    %v4288 = vpack.c.b16 %v2468, %v2448
    %v4289 = vpack.c.b16 %v2469, %v2449
    %v4290 = vpack.c.b16 %v2470, %v2450
    %v4291 = vpack.c.b16 %v2471, %v2451
    %v4292 = vpack.c.b16 %v2472, %v2452
    %v4293 = vpack.c.b16 %v2473, %v2453
    %v4294 = vpack.c.b16 %v2474, %v2454
    %v4295 = vpack.c.b16 %v2495, %v2475
    %v4296 = vpack.c.b16 %v2496, %v2476
    %v4297 = vpack.c.b16 %v2497, %v2477
    %v4298 = vpack.c.b16 %v2498, %v2478
    %v4299 = vpack.c.b16 %v2499, %v2479
    %v4300 = vpack.c.b16 %v2500, %v2480
    %v4301 = vpack.c.b16 %v2501, %v2481
    %v4302 = vpack.c.b16 %v2502, %v2482
    %v4303 = vpack.c.b16 %v2503, %v2483
    %v4304 = vpack.c.b16 %v2504, %v2484
    %v4305 = vpack.c.b16 %v2505, %v2485
    %v4306 = vpack.c.b16 %v2506, %v2486
    %v4307 = vpack.c.b16 %v2507, %v2487
    %v4308 = vpack.c.b16 %v2508, %v2488
    %v4309 = vpack.c.b16 %v2509, %v2489
    %v4310 = vpack.c.b16 %v2510, %v2490
    %v4311 = vpack.c.b16 %v2511, %v2491
    %v4312 = vpack.c.b16 %v2512, %v2492
    %v4313 = vpack.c.b16 %v2513, %v2493
    %v4314 = vpack.c.b16 %v2514, %v2494
    %v4315 = vpack.c.b16 %v2535, %v2515
    %v4316 = vpack.c.b16 %v2536, %v2516
    %v4317 = vpack.c.b16 %v2537, %v2517
    %v4318 = vpack.c.b16 %v2538, %v2518
    %v4319 = vpack.c.b16 %v2539, %v2519
    %v4320 = vpack.c.b16 %v2540, %v2520
    %v4321 = vpack.c.b16 %v2541, %v2521
    %v4322 = vpack.c.b16 %v2542, %v2522
    %v4323 = vpack.c.b16 %v2543, %v2523
    %v4324 = vpack.c.b16 %v2544, %v2524
    %v4325 = vpack.c.b16 %v2545, %v2525
    %v4326 = vpack.c.b16 %v2546, %v2526
    %v4327 = vpack.c.b16 %v2547, %v2527
    %v4328 = vpack.c.b16 %v2548, %v2528
    %v4329 = vpack.c.b16 %v2549, %v2529
    %v4330 = vpack.c.b16 %v2550, %v2530
    %v4331 = vpack.c.b16 %v2551, %v2531
    %v4332 = vpack.c.b16 %v2552, %v2532
    %v4333 = vpack.c.b16 %v2553, %v2533
    %v4334 = vpack.c.b16 %v2554, %v2534
    %v4335 = vpack.c.b16 %v2575, %v2555
    %v4336 = vpack.c.b16 %v2576, %v2556
    %v4337 = vpack.c.b16 %v2577, %v2557
    %v4338 = vpack.c.b16 %v2578, %v2558
    %v4339 = vpack.c.b16 %v2579, %v2559
    %v4340 = vpack.c.b16 %v2580, %v2560
    %v4341 = vpack.c.b16 %v2581, %v2561
    %v4342 = vpack.c.b16 %v2582, %v2562
    %v4343 = vpack.c.b16 %v2583, %v2563
    %v4344 = vpack.c.b16 %v2584, %v2564
    %v4345 = vpack.c.b16 %v2585, %v2565
    %v4346 = vpack.c.b16 %v2586, %v2566
    %v4347 = vpack.c.b16 %v2587, %v2567
    %v4348 = vpack.c.b16 %v2588, %v2568
    %v4349 = vpack.c.b16 %v2589, %v2569
    %v4350 = vpack.c.b16 %v2590, %v2570
    %v4351 = vpack.c.b16 %v2591, %v2571
    %v4352 = vpack.c.b16 %v2592, %v2572
    %v4353 = vpack.c.b16 %v2593, %v2573
    %v4354 = vpack.c.b16 %v2594, %v2574
    %v4355 = vpack.c.b16 %v2615, %v2595
    %v4356 = vpack.c.b16 %v2616, %v2596
    %v4357 = vpack.c.b16 %v2617, %v2597
    %v4358 = vpack.c.b16 %v2618, %v2598
    %v4359 = vpack.c.b16 %v2619, %v2599
    %v4360 = vpack.c.b16 %v2620, %v2600
    %v4361 = vpack.c.b16 %v2621, %v2601
    %v4362 = vpack.c.b16 %v2622, %v2602
    %v4363 = vpack.c.b16 %v2623, %v2603
    %v4364 = vpack.c.b16 %v2624, %v2604
    %v4365 = vpack.c.b16 %v2625, %v2605
    %v4366 = vpack.c.b16 %v2626, %v2606
    %v4367 = vpack.c.b16 %v2627, %v2607
    %v4368 = vpack.c.b16 %v2628, %v2608
    %v4369 = vpack.c.b16 %v2629, %v2609
    %v4370 = vpack.c.b16 %v2630, %v2610
    %v4371 = vpack.c.b16 %v2631, %v2611
    %v4372 = vpack.c.b16 %v2632, %v2612
    %v4373 = vpack.c.b16 %v2633, %v2613
    %v4374 = vpack.c.b16 %v2634, %v2614
    %v4375 = vpack.c.b16 %v2655, %v2635
    %v4376 = vpack.c.b16 %v2656, %v2636
    %v4377 = vpack.c.b16 %v2657, %v2637
    %v4378 = vpack.c.b16 %v2658, %v2638
    %v4379 = vpack.c.b16 %v2659, %v2639
    %v4380 = vpack.c.b16 %v2660, %v2640
    %v4381 = vpack.c.b16 %v2661, %v2641
    %v4382 = vpack.c.b16 %v2662, %v2642
    %v4383 = vpack.c.b16 %v2663, %v2643
    %v4384 = vpack.c.b16 %v2664, %v2644
    %v4385 = vpack.c.b16 %v2665, %v2645
    %v4386 = vpack.c.b16 %v2666, %v2646
    %v4387 = vpack.c.b16 %v2667, %v2647
    %v4388 = vpack.c.b16 %v2668, %v2648
    %v4389 = vpack.c.b16 %v2669, %v2649
    %v4390 = vpack.c.b16 %v2670, %v2650
    %v4391 = vpack.c.b16 %v2671, %v2651
    %v4392 = vpack.c.b16 %v2672, %v2652
    %v4393 = vpack.c.b16 %v2673, %v2653
    %v4394 = vpack.c.b16 %v2674, %v2654
    %v4395 = vpack.c.b16 %v2695, %v2675
    %v4396 = vpack.c.b16 %v2696, %v2676
    %v4397 = vpack.c.b16 %v2697, %v2677
    %v4398 = vpack.c.b16 %v2698, %v2678
    %v4399 = vpack.c.b16 %v2699, %v2679
    %v4400 = vpack.c.b16 %v2700, %v2680
    %v4401 = vpack.c.b16 %v2701, %v2681
    %v4402 = vpack.c.b16 %v2702, %v2682
    %v4403 = vpack.c.b16 %v2703, %v2683
    %v4404 = vpack.c.b16 %v2704, %v2684
    %v4405 = vpack.c.b16 %v2705, %v2685
    %v4406 = vpack.c.b16 %v2706, %v2686
    %v4407 = vpack.c.b16 %v2707, %v2687
    %v4408 = vpack.c.b16 %v2708, %v2688
    %v4409 = vpack.c.b16 %v2709, %v2689
    %v4410 = vpack.c.b16 %v2710, %v2690
    %v4411 = vpack.c.b16 %v2711, %v2691
    %v4412 = vpack.c.b16 %v2712, %v2692
    %v4413 = vpack.c.b16 %v2713, %v2693
    %v4414 = vpack.c.b16 %v2714, %v2694
    %v4415 = vpack.c.b16 %v2735, %v2715
    %v4416 = vpack.c.b16 %v2736, %v2716
    %v4417 = vpack.c.b16 %v2737, %v2717
    %v4418 = vpack.c.b16 %v2738, %v2718
    %v4419 = vpack.c.b16 %v2739, %v2719
    %v4420 = vpack.c.b16 %v2740, %v2720
    %v4421 = vpack.c.b16 %v2741, %v2721
    %v4422 = vpack.c.b16 %v2742, %v2722
    %v4423 = vpack.c.b16 %v2743, %v2723
    %v4424 = vpack.c.b16 %v2744, %v2724
    %v4425 = vpack.c.b16 %v2745, %v2725
    %v4426 = vpack.c.b16 %v2746, %v2726
    %v4427 = vpack.c.b16 %v2747, %v2727
    %v4428 = vpack.c.b16 %v2748, %v2728
    %v4429 = vpack.c.b16 %v2749, %v2729
    %v4430 = vpack.c.b16 %v2750, %v2730
    %v4431 = vpack.c.b16 %v2751, %v2731
    %v4432 = vpack.c.b16 %v2752, %v2732
    %v4433 = vpack.c.b16 %v2753, %v2733
    %v4434 = vpack.c.b16 %v2754, %v2734
    %v4435 = vpack.c.b16 %v2775, %v2755
    %v4436 = vpack.c.b16 %v2776, %v2756
    %v4437 = vpack.c.b16 %v2777, %v2757
    %v4438 = vpack.c.b16 %v2778, %v2758
    %v4439 = vpack.c.b16 %v2779, %v2759
    %v4440 = vpack.c.b16 %v2780, %v2760
    %v4441 = vpack.c.b16 %v2781, %v2761
    %v4442 = vpack.c.b16 %v2782, %v2762
    %v4443 = vpack.c.b16 %v2783, %v2763
    %v4444 = vpack.c.b16 %v2784, %v2764
    %v4445 = vpack.c.b16 %v2785, %v2765
    %v4446 = vpack.c.b16 %v2786, %v2766
    %v4447 = vpack.c.b16 %v2787, %v2767
    %v4448 = vpack.c.b16 %v2788, %v2768
    %v4449 = vpack.c.b16 %v2789, %v2769
    %v4450 = vpack.c.b16 %v2790, %v2770
    %v4451 = vpack.c.b16 %v2791, %v2771
    %v4452 = vpack.c.b16 %v2792, %v2772
    %v4453 = vpack.c.b16 %v2793, %v2773
    %v4454 = vpack.c.b16 %v2794, %v2774
    %v4455 = vpack.c.b16 %v2815, %v2795
    %v4456 = vpack.c.b16 %v2816, %v2796
    %v4457 = vpack.c.b16 %v2817, %v2797
    %v4458 = vpack.c.b16 %v2818, %v2798
    %v4459 = vpack.c.b16 %v2819, %v2799
    %v4460 = vpack.c.b16 %v2820, %v2800
    %v4461 = vpack.c.b16 %v2821, %v2801
    %v4462 = vpack.c.b16 %v2822, %v2802
    %v4463 = vpack.c.b16 %v2823, %v2803
    %v4464 = vpack.c.b16 %v2824, %v2804
    %v4465 = vpack.c.b16 %v2825, %v2805
    %v4466 = vpack.c.b16 %v2826, %v2806
    %v4467 = vpack.c.b16 %v2827, %v2807
    %v4468 = vpack.c.b16 %v2828, %v2808
    %v4469 = vpack.c.b16 %v2829, %v2809
    %v4470 = vpack.c.b16 %v2830, %v2810
    %v4471 = vpack.c.b16 %v2831, %v2811
    %v4472 = vpack.c.b16 %v2832, %v2812
    %v4473 = vpack.c.b16 %v2833, %v2813
    %v4474 = vpack.c.b16 %v2834, %v2814
    %v4475 = vpack.c.b16 %v2855, %v2835
    %v4476 = vpack.c.b16 %v2856, %v2836
    %v4477 = vpack.c.b16 %v2857, %v2837
    %v4478 = vpack.c.b16 %v2858, %v2838
    %v4479 = vpack.c.b16 %v2859, %v2839
    %v4480 = vpack.c.b16 %v2860, %v2840
    %v4481 = vpack.c.b16 %v2861, %v2841
    %v4482 = vpack.c.b16 %v2862, %v2842
    %v4483 = vpack.c.b16 %v2863, %v2843
    %v4484 = vpack.c.b16 %v2864, %v2844
    %v4485 = vpack.c.b16 %v2865, %v2845
    %v4486 = vpack.c.b16 %v2866, %v2846
    %v4487 = vpack.c.b16 %v2867, %v2847
    %v4488 = vpack.c.b16 %v2868, %v2848
    %v4489 = vpack.c.b16 %v2869, %v2849
    %v4490 = vpack.c.b16 %v2870, %v2850
    %v4491 = vpack.c.b16 %v2871, %v2851
    %v4492 = vpack.c.b16 %v2872, %v2852
    %v4493 = vpack.c.b16 %v2873, %v2853
    %v4494 = vpack.c.b16 %v2874, %v2854
    %v4495 = vpack.c.b16 %v2895, %v2875
    %v4496 = vpack.c.b16 %v2896, %v2876
    %v4497 = vpack.c.b16 %v2897, %v2877
    %v4498 = vpack.c.b16 %v2898, %v2878
    %v4499 = vpack.c.b16 %v2899, %v2879
    %v4500 = vpack.c.b16 %v2900, %v2880
    %v4501 = vpack.c.b16 %v2901, %v2881
    %v4502 = vpack.c.b16 %v2902, %v2882
    %v4503 = vpack.c.b16 %v2903, %v2883
    %v4504 = vpack.c.b16 %v2904, %v2884
    %v4505 = vpack.c.b16 %v2905, %v2885
    %v4506 = vpack.c.b16 %v2906, %v2886
    %v4507 = vpack.c.b16 %v2907, %v2887
    %v4508 = vpack.c.b16 %v2908, %v2888
    %v4509 = vpack.c.b16 %v2909, %v2889
    %v4510 = vpack.c.b16 %v2910, %v2890
    %v4511 = vpack.c.b16 %v2911, %v2891
    %v4512 = vpack.c.b16 %v2912, %v2892
    %v4513 = vpack.c.b16 %v2913, %v2893
    %v4514 = vpack.c.b16 %v2914, %v2894
    %v4515 = vpack.c.b16 %v2935, %v2915
    %v4516 = vpack.c.b16 %v2936, %v2916
    %v4517 = vpack.c.b16 %v2937, %v2917
    %v4518 = vpack.c.b16 %v2938, %v2918
    %v4519 = vpack.c.b16 %v2939, %v2919
    %v4520 = vpack.c.b16 %v2940, %v2920
    %v4521 = vpack.c.b16 %v2941, %v2921
    %v4522 = vpack.c.b16 %v2942, %v2922
    %v4523 = vpack.c.b16 %v2943, %v2923
    %v4524 = vpack.c.b16 %v2944, %v2924
    %v4525 = vpack.c.b16 %v2945, %v2925
    %v4526 = vpack.c.b16 %v2946, %v2926
    %v4527 = vpack.c.b16 %v2947, %v2927
    %v4528 = vpack.c.b16 %v2948, %v2928
    %v4529 = vpack.c.b16 %v2949, %v2929
    %v4530 = vpack.c.b16 %v2950, %v2930
    %v4531 = vpack.c.b16 %v2951, %v2931
    %v4532 = vpack.c.b16 %v2952, %v2932
    %v4533 = vpack.c.b16 %v2953, %v2933
    %v4534 = vpack.c.b16 %v2954, %v2934
    %v4535 = vpack.c.b16 %v2975, %v2955
    %v4536 = vpack.c.b16 %v2976, %v2956
    %v4537 = vpack.c.b16 %v2977, %v2957
    %v4538 = vpack.c.b16 %v2978, %v2958
    %v4539 = vpack.c.b16 %v2979, %v2959
    %v4540 = vpack.c.b16 %v2980, %v2960
    %v4541 = vpack.c.b16 %v2981, %v2961
    %v4542 = vpack.c.b16 %v2982, %v2962
    %v4543 = vpack.c.b16 %v2983, %v2963
    %v4544 = vpack.c.b16 %v2984, %v2964
    %v4545 = vpack.c.b16 %v2985, %v2965
    %v4546 = vpack.c.b16 %v2986, %v2966
    %v4547 = vpack.c.b16 %v2987, %v2967
    %v4548 = vpack.c.b16 %v2988, %v2968
    %v4549 = vpack.c.b16 %v2989, %v2969
    %v4550 = vpack.c.b16 %v2990, %v2970
    %v4551 = vpack.c.b16 %v2991, %v2971
    %v4552 = vpack.c.b16 %v2992, %v2972
    %v4553 = vpack.c.b16 %v2993, %v2973
    %v4554 = vpack.c.b16 %v2994, %v2974
    %v4555 = vpack.c.b16 %v3015, %v2995
    %v4556 = vpack.c.b16 %v3016, %v2996
    %v4557 = vpack.c.b16 %v3017, %v2997
    %v4558 = vpack.c.b16 %v3018, %v2998
    %v4559 = vpack.c.b16 %v3019, %v2999
    %v4560 = vpack.c.b16 %v3020, %v3000
    %v4561 = vpack.c.b16 %v3021, %v3001
    %v4562 = vpack.c.b16 %v3022, %v3002
    %v4563 = vpack.c.b16 %v3023, %v3003
    %v4564 = vpack.c.b16 %v3024, %v3004
    %v4565 = vpack.c.b16 %v3025, %v3005
    %v4566 = vpack.c.b16 %v3026, %v3006
    %v4567 = vpack.c.b16 %v3027, %v3007
    %v4568 = vpack.c.b16 %v3028, %v3008
    %v4569 = vpack.c.b16 %v3029, %v3009
    %v4570 = vpack.c.b16 %v3030, %v3010
    %v4571 = vpack.c.b16 %v3031, %v3011
    %v4572 = vpack.c.b16 %v3032, %v3012
    %v4573 = vpack.c.b16 %v3033, %v3013
    %v4574 = vpack.c.b16 %v3034, %v3014
    %v4575 = vpack.c.b16 %v3055, %v3035
    %v4576 = vpack.c.b16 %v3056, %v3036
    %v4577 = vpack.c.b16 %v3057, %v3037
    %v4578 = vpack.c.b16 %v3058, %v3038
    %v4579 = vpack.c.b16 %v3059, %v3039
    %v4580 = vpack.c.b16 %v3060, %v3040
    %v4581 = vpack.c.b16 %v3061, %v3041
    %v4582 = vpack.c.b16 %v3062, %v3042
    %v4583 = vpack.c.b16 %v3063, %v3043
    %v4584 = vpack.c.b16 %v3064, %v3044
    %v4585 = vpack.c.b16 %v3065, %v3045
    %v4586 = vpack.c.b16 %v3066, %v3046
    %v4587 = vpack.c.b16 %v3067, %v3047
    %v4588 = vpack.c.b16 %v3068, %v3048
    %v4589 = vpack.c.b16 %v3069, %v3049
    %v4590 = vpack.c.b16 %v3070, %v3050
    %v4591 = vpack.c.b16 %v3071, %v3051
    %v4592 = vpack.c.b16 %v3072, %v3052
    %v4593 = vpack.c.b16 %v3073, %v3053
    %v4594 = vpack.c.b16 %v3074, %v3054
    %v4595 = vpack.c.b16 %v3095, %v3075
    %v4596 = vpack.c.b16 %v3096, %v3076
    %v4597 = vpack.c.b16 %v3097, %v3077
    %v4598 = vpack.c.b16 %v3098, %v3078
    %v4599 = vpack.c.b16 %v3099, %v3079
    %v4600 = vpack.c.b16 %v3100, %v3080
    %v4601 = vpack.c.b16 %v3101, %v3081
    %v4602 = vpack.c.b16 %v3102, %v3082
    %v4603 = vpack.c.b16 %v3103, %v3083
    %v4604 = vpack.c.b16 %v3104, %v3084
    %v4605 = vpack.c.b16 %v3105, %v3085
    %v4606 = vpack.c.b16 %v3106, %v3086
    %v4607 = vpack.c.b16 %v3107, %v3087
    %v4608 = vpack.c.b16 %v3108, %v3088
    %v4609 = vpack.c.b16 %v3109, %v3089
    %v4610 = vpack.c.b16 %v3110, %v3090
    %v4611 = vpack.c.b16 %v3111, %v3091
    %v4612 = vpack.c.b16 %v3112, %v3092
    %v4613 = vpack.c.b16 %v3113, %v3093
    %v4614 = vpack.c.b16 %v3114, %v3094
    %v4615 = vpack.c.b16 %v3135, %v3115
    %v4616 = vpack.c.b16 %v3136, %v3116
    %v4617 = vpack.c.b16 %v3137, %v3117
    %v4618 = vpack.c.b16 %v3138, %v3118
    %v4619 = vpack.c.b16 %v3139, %v3119
    %v4620 = vpack.c.b16 %v3140, %v3120
    %v4621 = vpack.c.b16 %v3141, %v3121
    %v4622 = vpack.c.b16 %v3142, %v3122
    %v4623 = vpack.c.b16 %v3143, %v3123
    %v4624 = vpack.c.b16 %v3144, %v3124
    %v4625 = vpack.c.b16 %v3145, %v3125
    %v4626 = vpack.c.b16 %v3146, %v3126
    %v4627 = vpack.c.b16 %v3147, %v3127
    %v4628 = vpack.c.b16 %v3148, %v3128
    %v4629 = vpack.c.b16 %v3149, %v3129
    %v4630 = vpack.c.b16 %v3150, %v3130
    %v4631 = vpack.c.b16 %v3151, %v3131
    %v4632 = vpack.c.b16 %v3152, %v3132
    %v4633 = vpack.c.b16 %v3153, %v3133
    %v4634 = vpack.c.b16 %v3154, %v3134
    %v4635 = vpack.c.b16 %v3175, %v3155
    %v4636 = vpack.c.b16 %v3176, %v3156
    %v4637 = vpack.c.b16 %v3177, %v3157
    %v4638 = vpack.c.b16 %v3178, %v3158
    %v4639 = vpack.c.b16 %v3179, %v3159
    %v4640 = vpack.c.b16 %v3180, %v3160
    %v4641 = vpack.c.b16 %v3181, %v3161
    %v4642 = vpack.c.b16 %v3182, %v3162
    %v4643 = vpack.c.b16 %v3183, %v3163
    %v4644 = vpack.c.b16 %v3184, %v3164
    %v4645 = vpack.c.b16 %v3185, %v3165
    %v4646 = vpack.c.b16 %v3186, %v3166
    %v4647 = vpack.c.b16 %v3187, %v3167
    %v4648 = vpack.c.b16 %v3188, %v3168
    %v4649 = vpack.c.b16 %v3189, %v3169
    %v4650 = vpack.c.b16 %v3190, %v3170
    %v4651 = vpack.c.b16 %v3191, %v3171
    %v4652 = vpack.c.b16 %v3192, %v3172
    %v4653 = vpack.c.b16 %v3193, %v3173
    %v4654 = vpack.c.b16 %v3194, %v3174
    %v4655 = vpack.c.b16 %v3215, %v3195
    %v4656 = vpack.c.b16 %v3216, %v3196
    %v4657 = vpack.c.b16 %v3217, %v3197
    %v4658 = vpack.c.b16 %v3218, %v3198
    %v4659 = vpack.c.b16 %v3219, %v3199
    %v4660 = vpack.c.b16 %v3220, %v3200
    %v4661 = vpack.c.b16 %v3221, %v3201
    %v4662 = vpack.c.b16 %v3222, %v3202
    %v4663 = vpack.c.b16 %v3223, %v3203
    %v4664 = vpack.c.b16 %v3224, %v3204
    %v4665 = vpack.c.b16 %v3225, %v3205
    %v4666 = vpack.c.b16 %v3226, %v3206
    %v4667 = vpack.c.b16 %v3227, %v3207
    %v4668 = vpack.c.b16 %v3228, %v3208
    %v4669 = vpack.c.b16 %v3229, %v3209
    %v4670 = vpack.c.b16 %v3230, %v3210
    %v4671 = vpack.c.b16 %v3231, %v3211
    %v4672 = vpack.c.b16 %v3232, %v3212
    %v4673 = vpack.c.b16 %v3233, %v3213
    %v4674 = vpack.c.b16 %v3234, %v3214
    %v4675 = vpack.c.b16 %v3255, %v3235
    %v4676 = vpack.c.b16 %v3256, %v3236
    %v4677 = vpack.c.b16 %v3257, %v3237
    %v4678 = vpack.c.b16 %v3258, %v3238
    %v4679 = vpack.c.b16 %v3259, %v3239
    %v4680 = vpack.c.b16 %v3260, %v3240
    %v4681 = vpack.c.b16 %v3261, %v3241
    %v4682 = vpack.c.b16 %v3262, %v3242
    %v4683 = vpack.c.b16 %v3263, %v3243
    %v4684 = vpack.c.b16 %v3264, %v3244
    %v4685 = vpack.c.b16 %v3265, %v3245
    %v4686 = vpack.c.b16 %v3266, %v3246
    %v4687 = vpack.c.b16 %v3267, %v3247
    %v4688 = vpack.c.b16 %v3268, %v3248
    %v4689 = vpack.c.b16 %v3269, %v3249
    %v4690 = vpack.c.b16 %v3270, %v3250
    %v4691 = vpack.c.b16 %v3271, %v3251
    %v4692 = vpack.c.b16 %v3272, %v3252
    %v4693 = vpack.c.b16 %v3273, %v3253
    %v4694 = vpack.c.b16 %v3274, %v3254
    %v4695 = vpack.c.b16 %v3295, %v3275
    %v4696 = vpack.c.b16 %v3296, %v3276
    %v4697 = vpack.c.b16 %v3297, %v3277
    %v4698 = vpack.c.b16 %v3298, %v3278
    %v4699 = vpack.c.b16 %v3299, %v3279
    %v4700 = vpack.c.b16 %v3300, %v3280
    %v4701 = vpack.c.b16 %v3301, %v3281
    %v4702 = vpack.c.b16 %v3302, %v3282
    %v4703 = vpack.c.b16 %v3303, %v3283
    %v4704 = vpack.c.b16 %v3304, %v3284
    %v4705 = vpack.c.b16 %v3305, %v3285
    %v4706 = vpack.c.b16 %v3306, %v3286
    %v4707 = vpack.c.b16 %v3307, %v3287
    %v4708 = vpack.c.b16 %v3308, %v3288
    %v4709 = vpack.c.b16 %v3309, %v3289
    %v4710 = vpack.c.b16 %v3310, %v3290
    %v4711 = vpack.c.b16 %v3311, %v3291
    %v4712 = vpack.c.b16 %v3312, %v3292
    %v4713 = vpack.c.b16 %v3313, %v3293
    %v4714 = vpack.c.b16 %v3314, %v3294
    %v4715 = vpack.c.b16 %v3335, %v3315
    %v4716 = vpack.c.b16 %v3336, %v3316
    %v4717 = vpack.c.b16 %v3337, %v3317
    %v4718 = vpack.c.b16 %v3338, %v3318
    %v4719 = vpack.c.b16 %v3339, %v3319
    %v4720 = vpack.c.b16 %v3340, %v3320
    %v4721 = vpack.c.b16 %v3341, %v3321
    %v4722 = vpack.c.b16 %v3342, %v3322
    %v4723 = vpack.c.b16 %v3343, %v3323
    %v4724 = vpack.c.b16 %v3344, %v3324
    %v4725 = vpack.c.b16 %v3345, %v3325
    %v4726 = vpack.c.b16 %v3346, %v3326
    %v4727 = vpack.c.b16 %v3347, %v3327
    %v4728 = vpack.c.b16 %v3348, %v3328
    %v4729 = vpack.c.b16 %v3349, %v3329
    %v4730 = vpack.c.b16 %v3350, %v3330
    %v4731 = vpack.c.b16 %v3351, %v3331
    %v4732 = vpack.c.b16 %v3352, %v3332
    %v4733 = vpack.c.b16 %v3353, %v3333
    %v4734 = vpack.c.b16 %v3354, %v3334
    %v4735 = vpack.c.b16 %v3375, %v3355
    %v4736 = vpack.c.b16 %v3376, %v3356
    %v4737 = vpack.c.b16 %v3377, %v3357
    %v4738 = vpack.c.b16 %v3378, %v3358
    %v4739 = vpack.c.b16 %v3379, %v3359
    %v4740 = vpack.c.b16 %v3380, %v3360
    %v4741 = vpack.c.b16 %v3381, %v3361
    %v4742 = vpack.c.b16 %v3382, %v3362
    %v4743 = vpack.c.b16 %v3383, %v3363
    %v4744 = vpack.c.b16 %v3384, %v3364
    %v4745 = vpack.c.b16 %v3385, %v3365
    %v4746 = vpack.c.b16 %v3386, %v3366
    %v4747 = vpack.c.b16 %v3387, %v3367
    %v4748 = vpack.c.b16 %v3388, %v3368
    %v4749 = vpack.c.b16 %v3389, %v3369
    %v4750 = vpack.c.b16 %v3390, %v3370
    %v4751 = vpack.c.b16 %v3391, %v3371
    %v4752 = vpack.c.b16 %v3392, %v3372
    %v4753 = vpack.c.b16 %v3393, %v3373
    %v4754 = vpack.c.b16 %v3394, %v3374
    %v4755 = vpack.c.b16 %v3415, %v3395
    %v4756 = vpack.c.b16 %v3416, %v3396
    %v4757 = vpack.c.b16 %v3417, %v3397
    %v4758 = vpack.c.b16 %v3418, %v3398
    %v4759 = vpack.c.b16 %v3419, %v3399
    %v4760 = vpack.c.b16 %v3420, %v3400
    %v4761 = vpack.c.b16 %v3421, %v3401
    %v4762 = vpack.c.b16 %v3422, %v3402
    %v4763 = vpack.c.b16 %v3423, %v3403
    %v4764 = vpack.c.b16 %v3424, %v3404
    %v4765 = vpack.c.b16 %v3425, %v3405
    %v4766 = vpack.c.b16 %v3426, %v3406
    %v4767 = vpack.c.b16 %v3427, %v3407
    %v4768 = vpack.c.b16 %v3428, %v3408
    %v4769 = vpack.c.b16 %v3429, %v3409
    %v4770 = vpack.c.b16 %v3430, %v3410
    %v4771 = vpack.c.b16 %v3431, %v3411
    %v4772 = vpack.c.b16 %v3432, %v3412
    %v4773 = vpack.c.b16 %v3433, %v3413
    %v4774 = vpack.c.b16 %v3434, %v3414
    %v4775 = vpack.c.b16 %v3455, %v3435
    %v4776 = vpack.c.b16 %v3456, %v3436
    %v4777 = vpack.c.b16 %v3457, %v3437
    %v4778 = vpack.c.b16 %v3458, %v3438
    %v4779 = vpack.c.b16 %v3459, %v3439
    %v4780 = vpack.c.b16 %v3460, %v3440
    %v4781 = vpack.c.b16 %v3461, %v3441
    %v4782 = vpack.c.b16 %v3462, %v3442
    %v4783 = vpack.c.b16 %v3463, %v3443
    %v4784 = vpack.c.b16 %v3464, %v3444
    %v4785 = vpack.c.b16 %v3465, %v3445
    %v4786 = vpack.c.b16 %v3466, %v3446
    %v4787 = vpack.c.b16 %v3467, %v3447
    %v4788 = vpack.c.b16 %v3468, %v3448
    %v4789 = vpack.c.b16 %v3469, %v3449
    %v4790 = vpack.c.b16 %v3470, %v3450
    %v4791 = vpack.c.b16 %v3471, %v3451
    %v4792 = vpack.c.b16 %v3472, %v3452
    %v4793 = vpack.c.b16 %v3473, %v3453
    %v4794 = vpack.c.b16 %v3474, %v3454
    %v4795 = vpack.c.b16 %v3495, %v3475
    %v4796 = vpack.c.b16 %v3496, %v3476
    %v4797 = vpack.c.b16 %v3497, %v3477
    %v4798 = vpack.c.b16 %v3498, %v3478
    %v4799 = vpack.c.b16 %v3499, %v3479
    %v4800 = vpack.c.b16 %v3500, %v3480
    %v4801 = vpack.c.b16 %v3501, %v3481
    %v4802 = vpack.c.b16 %v3502, %v3482
    %v4803 = vpack.c.b16 %v3503, %v3483
    %v4804 = vpack.c.b16 %v3504, %v3484
    %v4805 = vpack.c.b16 %v3505, %v3485
    %v4806 = vpack.c.b16 %v3506, %v3486
    %v4807 = vpack.c.b16 %v3507, %v3487
    %v4808 = vpack.c.b16 %v3508, %v3488
    %v4809 = vpack.c.b16 %v3509, %v3489
    %v4810 = vpack.c.b16 %v3510, %v3490
    %v4811 = vpack.c.b16 %v3511, %v3491
    %v4812 = vpack.c.b16 %v3512, %v3492
    %v4813 = vpack.c.b16 %v3513, %v3493
    %v4814 = vpack.c.b16 %v3514, %v3494
    %v4815 = vpack.c.b16 %v3535, %v3515
    %v4816 = vpack.c.b16 %v3536, %v3516
    %v4817 = vpack.c.b16 %v3537, %v3517
    %v4818 = vpack.c.b16 %v3538, %v3518
    %v4819 = vpack.c.b16 %v3539, %v3519
    %v4820 = vpack.c.b16 %v3540, %v3520
    %v4821 = vpack.c.b16 %v3541, %v3521
    %v4822 = vpack.c.b16 %v3542, %v3522
    %v4823 = vpack.c.b16 %v3543, %v3523
    %v4824 = vpack.c.b16 %v3544, %v3524
    %v4825 = vpack.c.b16 %v3545, %v3525
    %v4826 = vpack.c.b16 %v3546, %v3526
    %v4827 = vpack.c.b16 %v3547, %v3527
    %v4828 = vpack.c.b16 %v3548, %v3528
    %v4829 = vpack.c.b16 %v3549, %v3529
    %v4830 = vpack.c.b16 %v3550, %v3530
    %v4831 = vpack.c.b16 %v3551, %v3531
    %v4832 = vpack.c.b16 %v3552, %v3532
    %v4833 = vpack.c.b16 %v3553, %v3533
    %v4834 = vpack.c.b16 %v3554, %v3534
    %v4835 = vpack.c.b16 %v3575, %v3555
    %v4836 = vpack.c.b16 %v3576, %v3556
    %v4837 = vpack.c.b16 %v3577, %v3557
    %v4838 = vpack.c.b16 %v3578, %v3558
    %v4839 = vpack.c.b16 %v3579, %v3559
    %v4840 = vpack.c.b16 %v3580, %v3560
    %v4841 = vpack.c.b16 %v3581, %v3561
    %v4842 = vpack.c.b16 %v3582, %v3562
    %v4843 = vpack.c.b16 %v3583, %v3563
    %v4844 = vpack.c.b16 %v3584, %v3564
    %v4845 = vpack.c.b16 %v3585, %v3565
    %v4846 = vpack.c.b16 %v3586, %v3566
    %v4847 = vpack.c.b16 %v3587, %v3567
    %v4848 = vpack.c.b16 %v3588, %v3568
    %v4849 = vpack.c.b16 %v3589, %v3569
    %v4850 = vpack.c.b16 %v3590, %v3570
    %v4851 = vpack.c.b16 %v3591, %v3571
    %v4852 = vpack.c.b16 %v3592, %v3572
    %v4853 = vpack.c.b16 %v3593, %v3573
    %v4854 = vpack.c.b16 %v3594, %v3574
    %v4855 = vpack.c.b16 %v3615, %v3595
    %v4856 = vpack.c.b16 %v3616, %v3596
    %v4857 = vpack.c.b16 %v3617, %v3597
    %v4858 = vpack.c.b16 %v3618, %v3598
    %v4859 = vpack.c.b16 %v3619, %v3599
    %v4860 = vpack.c.b16 %v3620, %v3600
    %v4861 = vpack.c.b16 %v3621, %v3601
    %v4862 = vpack.c.b16 %v3622, %v3602
    %v4863 = vpack.c.b16 %v3623, %v3603
    %v4864 = vpack.c.b16 %v3624, %v3604
    %v4865 = vpack.c.b16 %v3625, %v3605
    %v4866 = vpack.c.b16 %v3626, %v3606
    %v4867 = vpack.c.b16 %v3627, %v3607
    %v4868 = vpack.c.b16 %v3628, %v3608
    %v4869 = vpack.c.b16 %v3629, %v3609
    %v4870 = vpack.c.b16 %v3630, %v3610
    %v4871 = vpack.c.b16 %v3631, %v3611
    %v4872 = vpack.c.b16 %v3632, %v3612
    %v4873 = vpack.c.b16 %v3633, %v3613
    %v4874 = vpack.c.b16 %v3634, %v3614
    %v4875 = vpack.c.b16 %v3655, %v3635
    %v4876 = vpack.c.b16 %v3656, %v3636
    %v4877 = vpack.c.b16 %v3657, %v3637
    %v4878 = vpack.c.b16 %v3658, %v3638
    %v4879 = vpack.c.b16 %v3659, %v3639
    %v4880 = vpack.c.b16 %v3660, %v3640
    %v4881 = vpack.c.b16 %v3661, %v3641
    %v4882 = vpack.c.b16 %v3662, %v3642
    %v4883 = vpack.c.b16 %v3663, %v3643
    %v4884 = vpack.c.b16 %v3664, %v3644
    %v4885 = vpack.c.b16 %v3665, %v3645
    %v4886 = vpack.c.b16 %v3666, %v3646
    %v4887 = vpack.c.b16 %v3667, %v3647
    %v4888 = vpack.c.b16 %v3668, %v3648
    %v4889 = vpack.c.b16 %v3669, %v3649
    %v4890 = vpack.c.b16 %v3670, %v3650
    %v4891 = vpack.c.b16 %v3671, %v3651
    %v4892 = vpack.c.b16 %v3672, %v3652
    %v4893 = vpack.c.b16 %v3673, %v3653
    %v4894 = vpack.c.b16 %v3674, %v3654
    %v4895 = vpack.c.b16 %v3695, %v3675
    %v4896 = vpack.c.b16 %v3696, %v3676
    %v4897 = vpack.c.b16 %v3697, %v3677
    %v4898 = vpack.c.b16 %v3698, %v3678
    %v4899 = vpack.c.b16 %v3699, %v3679
    %v4900 = vpack.c.b16 %v3700, %v3680
    %v4901 = vpack.c.b16 %v3701, %v3681
    %v4902 = vpack.c.b16 %v3702, %v3682
    %v4903 = vpack.c.b16 %v3703, %v3683
    %v4904 = vpack.c.b16 %v3704, %v3684
    %v4905 = vpack.c.b16 %v3705, %v3685
    %v4906 = vpack.c.b16 %v3706, %v3686
    %v4907 = vpack.c.b16 %v3707, %v3687
    %v4908 = vpack.c.b16 %v3708, %v3688
    %v4909 = vpack.c.b16 %v3709, %v3689
    %v4910 = vpack.c.b16 %v3710, %v3690
    %v4911 = vpack.c.b16 %v3711, %v3691
    %v4912 = vpack.c.b16 %v3712, %v3692
    %v4913 = vpack.c.b16 %v3713, %v3693
    %v4914 = vpack.c.b16 %v3714, %v3694
    %v4915 = vpack.c.b16 %v3735, %v3715
    %v4916 = vpack.c.b16 %v3736, %v3716
    %v4917 = vpack.c.b16 %v3737, %v3717
    %v4918 = vpack.c.b16 %v3738, %v3718
    %v4919 = vpack.c.b16 %v3739, %v3719
    %v4920 = vpack.c.b16 %v3740, %v3720
    %v4921 = vpack.c.b16 %v3741, %v3721
    %v4922 = vpack.c.b16 %v3742, %v3722
    %v4923 = vpack.c.b16 %v3743, %v3723
    %v4924 = vpack.c.b16 %v3744, %v3724
    %v4925 = vpack.c.b16 %v3745, %v3725
    %v4926 = vpack.c.b16 %v3746, %v3726
    %v4927 = vpack.c.b16 %v3747, %v3727
    %v4928 = vpack.c.b16 %v3748, %v3728
    %v4929 = vpack.c.b16 %v3749, %v3729
    %v4930 = vpack.c.b16 %v3750, %v3730
    %v4931 = vpack.c.b16 %v3751, %v3731
    %v4932 = vpack.c.b16 %v3752, %v3732
    %v4933 = vpack.c.b16 %v3753, %v3733
    %v4934 = vpack.c.b16 %v3754, %v3734
    %v4935 = vpack.c.b16 %v3775, %v3755
    %v4936 = vpack.c.b16 %v3776, %v3756
    %v4937 = vpack.c.b16 %v3777, %v3757
    %v4938 = vpack.c.b16 %v3778, %v3758
    %v4939 = vpack.c.b16 %v3779, %v3759
    %v4940 = vpack.c.b16 %v3780, %v3760
    %v4941 = vpack.c.b16 %v3781, %v3761
    %v4942 = vpack.c.b16 %v3782, %v3762
    %v4943 = vpack.c.b16 %v3783, %v3763
    %v4944 = vpack.c.b16 %v3784, %v3764
    %v4945 = vpack.c.b16 %v3785, %v3765
    %v4946 = vpack.c.b16 %v3786, %v3766
    %v4947 = vpack.c.b16 %v3787, %v3767
    %v4948 = vpack.c.b16 %v3788, %v3768
    %v4949 = vpack.c.b16 %v3789, %v3769
    %v4950 = vpack.c.b16 %v3790, %v3770
    %v4951 = vpack.c.b16 %v3791, %v3771
    %v4952 = vpack.c.b16 %v3792, %v3772
    %v4953 = vpack.c.b16 %v3793, %v3773
    %v4954 = vpack.c.b16 %v3794, %v3774
    %v4955 = vpack.c.b16 %v3815, %v3795
    %v4956 = vpack.c.b16 %v3816, %v3796
    %v4957 = vpack.c.b16 %v3817, %v3797
    %v4958 = vpack.c.b16 %v3818, %v3798
    %v4959 = vpack.c.b16 %v3819, %v3799
    %v4960 = vpack.c.b16 %v3820, %v3800
    %v4961 = vpack.c.b16 %v3821, %v3801
    %v4962 = vpack.c.b16 %v3822, %v3802
    %v4963 = vpack.c.b16 %v3823, %v3803
    %v4964 = vpack.c.b16 %v3824, %v3804
    %v4965 = vpack.c.b16 %v3825, %v3805
    %v4966 = vpack.c.b16 %v3826, %v3806
    %v4967 = vpack.c.b16 %v3827, %v3807
    %v4968 = vpack.c.b16 %v3828, %v3808
    %v4969 = vpack.c.b16 %v3829, %v3809
    %v4970 = vpack.c.b16 %v3830, %v3810
    %v4971 = vpack.c.b16 %v3831, %v3811
    %v4972 = vpack.c.b16 %v3832, %v3812
    %v4973 = vpack.c.b16 %v3833, %v3813
    %v4974 = vpack.c.b16 %v3834, %v3814
    %v4975 = vpack.c.b16 %v3855, %v3835
    %v4976 = vpack.c.b16 %v3856, %v3836
    %v4977 = vpack.c.b16 %v3857, %v3837
    %v4978 = vpack.c.b16 %v3858, %v3838
    %v4979 = vpack.c.b16 %v3859, %v3839
    %v4980 = vpack.c.b16 %v3860, %v3840
    %v4981 = vpack.c.b16 %v3861, %v3841
    %v4982 = vpack.c.b16 %v3862, %v3842
    %v4983 = vpack.c.b16 %v3863, %v3843
    %v4984 = vpack.c.b16 %v3864, %v3844
    %v4985 = vpack.c.b16 %v3865, %v3845
    %v4986 = vpack.c.b16 %v3866, %v3846
    %v4987 = vpack.c.b16 %v3867, %v3847
    %v4988 = vpack.c.b16 %v3868, %v3848
    %v4989 = vpack.c.b16 %v3869, %v3849
    %v4990 = vpack.c.b16 %v3870, %v3850
    %v4991 = vpack.c.b16 %v3871, %v3851
    %v4992 = vpack.c.b16 %v3872, %v3852
    %v4993 = vpack.c.b16 %v3873, %v3853
    %v4994 = vpack.c.b16 %v3874, %v3854
    %v4995 = vpack.c.b16 %v3895, %v3875
    %v4996 = vpack.c.b16 %v3896, %v3876
    %v4997 = vpack.c.b16 %v3897, %v3877
    %v4998 = vpack.c.b16 %v3898, %v3878
    %v4999 = vpack.c.b16 %v3899, %v3879
    %v5000 = vpack.c.b16 %v3900, %v3880
    %v5001 = vpack.c.b16 %v3901, %v3881
    %v5002 = vpack.c.b16 %v3902, %v3882
    %v5003 = vpack.c.b16 %v3903, %v3883
    %v5004 = vpack.c.b16 %v3904, %v3884
    %v5005 = vpack.c.b16 %v3905, %v3885
    %v5006 = vpack.c.b16 %v3906, %v3886
    %v5007 = vpack.c.b16 %v3907, %v3887
    %v5008 = vpack.c.b16 %v3908, %v3888
    %v5009 = vpack.c.b16 %v3909, %v3889
    %v5010 = vpack.c.b16 %v3910, %v3890
    %v5011 = vpack.c.b16 %v3911, %v3891
    %v5012 = vpack.c.b16 %v3912, %v3892
    %v5013 = vpack.c.b16 %v3913, %v3893
    %v5014 = vpack.c.b16 %v3914, %v3894
    %v5015 = vpack.c.b16 %v3935, %v3915
    %v5016 = vpack.c.b16 %v3936, %v3916
    %v5017 = vpack.c.b16 %v3937, %v3917
    %v5018 = vpack.c.b16 %v3938, %v3918
    %v5019 = vpack.c.b16 %v3939, %v3919
    %v5020 = vpack.c.b16 %v3940, %v3920
    %v5021 = vpack.c.b16 %v3941, %v3921
    %v5022 = vpack.c.b16 %v3942, %v3922
    %v5023 = vpack.c.b16 %v3943, %v3923
    %v5024 = vpack.c.b16 %v3944, %v3924
    %v5025 = vpack.c.b16 %v3945, %v3925
    %v5026 = vpack.c.b16 %v3946, %v3926
    %v5027 = vpack.c.b16 %v3947, %v3927
    %v5028 = vpack.c.b16 %v3948, %v3928
    %v5029 = vpack.c.b16 %v3949, %v3929
    %v5030 = vpack.c.b16 %v3950, %v3930
    %v5031 = vpack.c.b16 %v3951, %v3931
    %v5032 = vpack.c.b16 %v3952, %v3932
    %v5033 = vpack.c.b16 %v3953, %v3933
    %v5034 = vpack.c.b16 %v3954, %v3934
    %v5035 = vpack.c.b16 %v3975, %v3955
    %v5036 = vpack.c.b16 %v3976, %v3956
    %v5037 = vpack.c.b16 %v3977, %v3957
    %v5038 = vpack.c.b16 %v3978, %v3958
    %v5039 = vpack.c.b16 %v3979, %v3959
    %v5040 = vpack.c.b16 %v3980, %v3960
    %v5041 = vpack.c.b16 %v3981, %v3961
    %v5042 = vpack.c.b16 %v3982, %v3962
    %v5043 = vpack.c.b16 %v3983, %v3963
    %v5044 = vpack.c.b16 %v3984, %v3964
    %v5045 = vpack.c.b16 %v3985, %v3965
    %v5046 = vpack.c.b16 %v3986, %v3966
    %v5047 = vpack.c.b16 %v3987, %v3967
    %v5048 = vpack.c.b16 %v3988, %v3968
    %v5049 = vpack.c.b16 %v3989, %v3969
    %v5050 = vpack.c.b16 %v3990, %v3970
    %v5051 = vpack.c.b16 %v3991, %v3971
    %v5052 = vpack.c.b16 %v3992, %v3972
    %v5053 = vpack.c.b16 %v3993, %v3973
    %v5054 = vpack.c.b16 %v3994, %v3974
    %v5055 = vpack.c.b16 %v4015, %v3995
    %v5056 = vpack.c.b16 %v4016, %v3996
    %v5057 = vpack.c.b16 %v4017, %v3997
    %v5058 = vpack.c.b16 %v4018, %v3998
    %v5059 = vpack.c.b16 %v4019, %v3999
    %v5060 = vpack.c.b16 %v4020, %v4000
    %v5061 = vpack.c.b16 %v4021, %v4001
    %v5062 = vpack.c.b16 %v4022, %v4002
    %v5063 = vpack.c.b16 %v4023, %v4003
    %v5064 = vpack.c.b16 %v4024, %v4004
    %v5065 = vpack.c.b16 %v4025, %v4005
    %v5066 = vpack.c.b16 %v4026, %v4006
    %v5067 = vpack.c.b16 %v4027, %v4007
    %v5068 = vpack.c.b16 %v4028, %v4008
    %v5069 = vpack.c.b16 %v4029, %v4009
    %v5070 = vpack.c.b16 %v4030, %v4010
    %v5071 = vpack.c.b16 %v4031, %v4011
    %v5072 = vpack.c.b16 %v4032, %v4012
    %v5073 = vpack.c.b16 %v4033, %v4013
    %v5074 = vpack.c.b16 %v4034, %v4014
    %v5075 = vpack.c.b16 %v4055, %v4035
    %v5076 = vpack.c.b16 %v4056, %v4036
    %v5077 = vpack.c.b16 %v4057, %v4037
    %v5078 = vpack.c.b16 %v4058, %v4038
    %v5079 = vpack.c.b16 %v4059, %v4039
    %v5080 = vpack.c.b16 %v4060, %v4040
    %v5081 = vpack.c.b16 %v4061, %v4041
    %v5082 = vpack.c.b16 %v4062, %v4042
    %v5083 = vpack.c.b16 %v4063, %v4043
    %v5084 = vpack.c.b16 %v4064, %v4044
    %v5085 = vpack.c.b16 %v4065, %v4045
    %v5086 = vpack.c.b16 %v4066, %v4046
    %v5087 = vpack.c.b16 %v4067, %v4047
    %v5088 = vpack.c.b16 %v4068, %v4048
    %v5089 = vpack.c.b16 %v4069, %v4049
    %v5090 = vpack.c.b16 %v4070, %v4050
    %v5091 = vpack.c.b16 %v4071, %v4051
    %v5092 = vpack.c.b16 %v4072, %v4052
    %v5093 = vpack.c.b16 %v4073, %v4053
    %v5094 = vpack.c.b16 %v4074, %v4054
    %v5095 = vpack.c.b16 %v4095, %v4075
    %v5096 = vpack.c.b16 %v4096, %v4076
    %v5097 = vpack.c.b16 %v4097, %v4077
    %v5098 = vpack.c.b16 %v4098, %v4078
    %v5099 = vpack.c.b16 %v4099, %v4079
    %v5100 = vpack.c.b16 %v4100, %v4080
    %v5101 = vpack.c.b16 %v4101, %v4081
    %v5102 = vpack.c.b16 %v4102, %v4082
    %v5103 = vpack.c.b16 %v4103, %v4083
    %v5104 = vpack.c.b16 %v4104, %v4084
    %v5105 = vpack.c.b16 %v4105, %v4085
    %v5106 = vpack.c.b16 %v4106, %v4086
    %v5107 = vpack.c.b16 %v4107, %v4087
    %v5108 = vpack.c.b16 %v4108, %v4088
    %v5109 = vpack.c.b16 %v4109, %v4089
    %v5110 = vpack.c.b16 %v4110, %v4090
    %v5111 = vpack.c.b16 %v4111, %v4091
    %v5112 = vpack.c.b16 %v4112, %v4092
    %v5113 = vpack.c.b16 %v4113, %v4093
    %v5114 = vpack.c.b16 %v4114, %v4094
    %v5115 = vpack.c.b16 %v4135, %v4115
    %v5116 = vpack.c.b16 %v4136, %v4116
    %v5117 = vpack.c.b16 %v4137, %v4117
    %v5118 = vpack.c.b16 %v4138, %v4118
    %v5119 = vpack.c.b16 %v4139, %v4119
    %v5120 = vpack.c.b16 %v4140, %v4120
    %v5121 = vpack.c.b16 %v4141, %v4121
    %v5122 = vpack.c.b16 %v4142, %v4122
    %v5123 = vpack.c.b16 %v4143, %v4123
    %v5124 = vpack.c.b16 %v4144, %v4124
    %v5125 = vpack.c.b16 %v4145, %v4125
    %v5126 = vpack.c.b16 %v4146, %v4126
    %v5127 = vpack.c.b16 %v4147, %v4127
    %v5128 = vpack.c.b16 %v4148, %v4128
    %v5129 = vpack.c.b16 %v4149, %v4129
    %v5130 = vpack.c.b16 %v4150, %v4130
    %v5131 = vpack.c.b16 %v4151, %v4131
    %v5132 = vpack.c.b16 %v4152, %v4132
    %v5133 = vpack.c.b16 %v4153, %v4133
    %v5134 = vpack.c.b16 %v4154, %v4134
    %vm6115 = vcmask 130048
    %v6117 = vsel %vm6115, %v128, 0
    %6119 = vmatprep.subr.bf16.mxu0 %v4296
    %6120 = vmatpush1.bf16.msra.mxu0 %v4295
    %6121 = vmatprep.subr.bf16.mxu0 %v4276
    %6122 = vmatpush1.bf16.msra.mxu0 %v4275
    %6123 = vmatprep.subr.bf16.mxu0 %v4256
    %6124 = vmatpush1.bf16.msra.mxu0 %v4255
    %6125 = vmatprep.subr.bf16.mxu0 %v4236
    %6126 = vmatpush1.bf16.msra.mxu0 %v4235
    %6127 = vmatprep.subr.bf16.mxu0 %v4216
    %6128 = vmatpush1.bf16.msra.mxu0 %v4215
    %6129 = vmatprep.subr.bf16.mxu0 %v4196
    %6130 = vmatpush1.bf16.msra.mxu0 %v4195
    %6131 = vmatprep.subr.bf16.mxu0 %v4176
    %6132 = vmatpush1.bf16.msra.mxu0 %v4175
    %6133 = vmatprep.subr.bf16.mxu0 %v4156
    %6134 = vmatpush1.bf16.msra.mxu0 %v4155
    %6135 = vmatprep.subr.bf16.mxu0 %v4456
    %6136 = vmatpush2.bf16.msra.mxu0 %v4455
    %6137 = vmatprep.subr.bf16.mxu0 %v4436
    %6138 = vmatpush2.bf16.msra.mxu0 %v4435
    %6139 = vmatprep.subr.bf16.mxu0 %v4416
    %6140 = vmatpush2.bf16.msra.mxu0 %v4415
    %6141 = vmatprep.subr.bf16.mxu0 %v4396
    %6142 = vmatpush2.bf16.msra.mxu0 %v4395
    %6143 = vmatprep.subr.bf16.mxu0 %v4376
    %6144 = vmatpush2.bf16.msra.mxu0 %v4375
    %6145 = vmatprep.subr.bf16.mxu0 %v4356
    %6146 = vmatpush2.bf16.msra.mxu0 %v4355
    %6147 = vmatprep.subr.bf16.mxu0 %v4336
    %6148 = vmatpush2.bf16.msra.mxu0 %v4335
    %6149 = vmatprep.subr.bf16.mxu0 %v4316
    %6150 = vmatpush2.bf16.msra.mxu0 %v4315
    %6151 = vmatprep.mubr.bf16.mxu0 %v123
    %6152 = vmatmul.mubr.bf16.gmra.mxu0 %v122
    %v6153 = vpop.f32.mrf.mxu0
    %v6154 = vadd.f32 %v1118, %v6153
    %v6155 = vpop.f32.mrf.mxu0
    %v6156 = vadd.f32 %v1122, %v6155
    %v6157 = vpop.f32.mrf.mxu0
    %v6158 = vpop.f32.mrf.mxu0
    %6159 = vdwg.mxu0
    %6160 = vmatprep.subr.bf16.mxu0 %v4616
    %6161 = vmatpush1.bf16.msra.mxu0 %v4615
    %6162 = vmatprep.subr.bf16.mxu0 %v4596
    %6163 = vmatpush1.bf16.msra.mxu0 %v4595
    %6164 = vmatprep.subr.bf16.mxu0 %v4576
    %6165 = vmatpush1.bf16.msra.mxu0 %v4575
    %6166 = vmatprep.subr.bf16.mxu0 %v4556
    %6167 = vmatpush1.bf16.msra.mxu0 %v4555
    %6168 = vmatprep.subr.bf16.mxu0 %v4536
    %6169 = vmatpush1.bf16.msra.mxu0 %v4535
    %6170 = vmatprep.subr.bf16.mxu0 %v4516
    %6171 = vmatpush1.bf16.msra.mxu0 %v4515
    %6172 = vmatprep.subr.bf16.mxu0 %v4496
    %6173 = vmatpush1.bf16.msra.mxu0 %v4495
    %6174 = vmatprep.subr.bf16.mxu0 %v4476
    %6175 = vmatpush1.bf16.msra.mxu0 %v4475
    %6176 = vmatprep.subr.bf16.mxu0 %v4776
    %6177 = vmatpush2.bf16.msra.mxu0 %v4775
    %6178 = vmatprep.subr.bf16.mxu0 %v4756
    %6179 = vmatpush2.bf16.msra.mxu0 %v4755
    %6180 = vmatprep.subr.bf16.mxu0 %v4736
    %6181 = vmatpush2.bf16.msra.mxu0 %v4735
    %6182 = vmatprep.subr.bf16.mxu0 %v4716
    %6183 = vmatpush2.bf16.msra.mxu0 %v4715
    %6184 = vmatprep.subr.bf16.mxu0 %v4696
    %6185 = vmatpush2.bf16.msra.mxu0 %v4695
    %6186 = vmatprep.subr.bf16.mxu0 %v4676
    %6187 = vmatpush2.bf16.msra.mxu0 %v4675
    %6188 = vmatprep.subr.bf16.mxu0 %v4656
    %6189 = vmatpush2.bf16.msra.mxu0 %v4655
    %6190 = vmatprep.subr.bf16.mxu0 %v4636
    %6191 = vmatpush2.bf16.msra.mxu0 %v4635
    %6192 = vmatprep.mubr.bf16.mxu0 %v125
    %6193 = vmatmul.mubr.bf16.gmra.mxu0 %v124
    %v6194 = vpop.f32.mrf.mxu0
    %v6195 = vadd.f32 %v6154, %v6194
    %v6196 = vpop.f32.mrf.mxu0
    %v6197 = vadd.f32 %v6156, %v6196
    %v6198 = vpop.f32.mrf.mxu0
    %v6199 = vpop.f32.mrf.mxu0
    %6200 = vdwg.mxu0
    %6201 = vmatprep.subr.bf16.mxu0 %v4936
    %6202 = vmatpush1.bf16.msra.mxu0 %v4935
    %6203 = vmatprep.subr.bf16.mxu0 %v4916
    %6204 = vmatpush1.bf16.msra.mxu0 %v4915
    %6205 = vmatprep.subr.bf16.mxu0 %v4896
    %6206 = vmatpush1.bf16.msra.mxu0 %v4895
    %6207 = vmatprep.subr.bf16.mxu0 %v4876
    %6208 = vmatpush1.bf16.msra.mxu0 %v4875
    %6209 = vmatprep.subr.bf16.mxu0 %v4856
    %6210 = vmatpush1.bf16.msra.mxu0 %v4855
    %6211 = vmatprep.subr.bf16.mxu0 %v4836
    %6212 = vmatpush1.bf16.msra.mxu0 %v4835
    %6213 = vmatprep.subr.bf16.mxu0 %v4816
    %6214 = vmatpush1.bf16.msra.mxu0 %v4815
    %6215 = vmatprep.subr.bf16.mxu0 %v4796
    %6216 = vmatpush1.bf16.msra.mxu0 %v4795
    %6217 = vmatprep.subr.bf16.mxu0 %v5096
    %6218 = vmatpush2.bf16.msra.mxu0 %v5095
    %6219 = vmatprep.subr.bf16.mxu0 %v5076
    %6220 = vmatpush2.bf16.msra.mxu0 %v5075
    %6221 = vmatprep.subr.bf16.mxu0 %v5056
    %6222 = vmatpush2.bf16.msra.mxu0 %v5055
    %6223 = vmatprep.subr.bf16.mxu0 %v5036
    %6224 = vmatpush2.bf16.msra.mxu0 %v5035
    %6225 = vmatprep.subr.bf16.mxu0 %v5016
    %6226 = vmatpush2.bf16.msra.mxu0 %v5015
    %6227 = vmatprep.subr.bf16.mxu0 %v4996
    %6228 = vmatpush2.bf16.msra.mxu0 %v4995
    %6229 = vmatprep.subr.bf16.mxu0 %v4976
    %6230 = vmatpush2.bf16.msra.mxu0 %v4975
    %6231 = vmatprep.subr.bf16.mxu0 %v4956
    %6232 = vmatpush2.bf16.msra.mxu0 %v4955
    %6233 = vmatprep.mubr.bf16.mxu0 %v127
    %6234 = vmatmul.mubr.bf16.gmra.mxu0 %v126
    %v6235 = vpop.f32.mrf.mxu0
    %v6236 = vadd.f32 %v6195, %v6235
    %v6237 = vpop.f32.mrf.mxu0
    %v6238 = vadd.f32 %v6197, %v6237
    %v6239 = vpop.f32.mrf.mxu0
    %v6240 = vpop.f32.mrf.mxu0
    %6241 = vdwg.mxu0
    %6242 = vmatprep.subr.bf16.mxu0 0
    %6243 = vmatpush1.bf16.msra.mxu0 0
    %6244 = vmatprep.subr.bf16.mxu0 0
    %6245 = vmatpush1.bf16.msra.mxu0 0
    %6246 = vmatprep.subr.bf16.mxu0 0
    %6247 = vmatpush1.bf16.msra.mxu0 0
    %6248 = vmatprep.subr.bf16.mxu0 0
    %6249 = vmatpush1.bf16.msra.mxu0 0
    %6250 = vmatprep.subr.bf16.mxu0 0
    %6251 = vmatpush1.bf16.msra.mxu0 0
    %6252 = vmatprep.subr.bf16.mxu0 0
    %6253 = vmatpush1.bf16.msra.mxu0 0
    %6254 = vmatprep.subr.bf16.mxu0 0
    %6255 = vmatpush1.bf16.msra.mxu0 0
    %6256 = vmatprep.subr.bf16.mxu0 %v5116
    %6257 = vmatpush1.bf16.msra.mxu0 %v5115
    %6258 = vmatprep.subr.bf16.mxu0 0
    %6259 = vmatpush2.bf16.msra.mxu0 0
    %6260 = vmatprep.subr.bf16.mxu0 0
    %6261 = vmatpush2.bf16.msra.mxu0 0
    %6262 = vmatprep.subr.bf16.mxu0 0
    %6263 = vmatpush2.bf16.msra.mxu0 0
    %6264 = vmatprep.subr.bf16.mxu0 0
    %6265 = vmatpush2.bf16.msra.mxu0 0
    %6266 = vmatprep.subr.bf16.mxu0 0
    %6267 = vmatpush2.bf16.msra.mxu0 0
    %6268 = vmatprep.subr.bf16.mxu0 0
    %6269 = vmatpush2.bf16.msra.mxu0 0
    %6270 = vmatprep.subr.bf16.mxu0 0
    %6271 = vmatpush2.bf16.msra.mxu0 0
    %6272 = vmatprep.subr.bf16.mxu0 0
    %6273 = vmatpush2.bf16.msra.mxu0 0
    %6274 = vmatprep.mubr.bf16.mxu0 0
    %6275 = vmatmul.mubr.bf16.gmra.mxu0 %v6117
    %v6276 = vpop.f32.mrf.mxu0
    %v6277 = vadd.f32 %v6236, %v6276
    %v6278 = vpop.f32.mrf.mxu0
    %v6279 = vadd.f32 %v6238, %v6278
    %v6280 = vpop.f32.mrf.mxu0
    %v6281 = vpop.f32.mrf.mxu0
    %6282 = vdwg.mxu0
    %6283 = vmatprep.subr.bf16.mxu0 %v4298
    %6284 = vmatpush1.bf16.msra.mxu0 %v4297
    %6285 = vmatprep.subr.bf16.mxu0 %v4278
    %6286 = vmatpush1.bf16.msra.mxu0 %v4277
    %6287 = vmatprep.subr.bf16.mxu0 %v4258
    %6288 = vmatpush1.bf16.msra.mxu0 %v4257
    %6289 = vmatprep.subr.bf16.mxu0 %v4238
    %6290 = vmatpush1.bf16.msra.mxu0 %v4237
    %6291 = vmatprep.subr.bf16.mxu0 %v4218
    %6292 = vmatpush1.bf16.msra.mxu0 %v4217
    %6293 = vmatprep.subr.bf16.mxu0 %v4198
    %6294 = vmatpush1.bf16.msra.mxu0 %v4197
    %6295 = vmatprep.subr.bf16.mxu0 %v4178
    %6296 = vmatpush1.bf16.msra.mxu0 %v4177
    %6297 = vmatprep.subr.bf16.mxu0 %v4158
    %6298 = vmatpush1.bf16.msra.mxu0 %v4157
    %6299 = vmatprep.subr.bf16.mxu0 %v4458
    %6300 = vmatpush2.bf16.msra.mxu0 %v4457
    %6301 = vmatprep.subr.bf16.mxu0 %v4438
    %6302 = vmatpush2.bf16.msra.mxu0 %v4437
    %6303 = vmatprep.subr.bf16.mxu0 %v4418
    %6304 = vmatpush2.bf16.msra.mxu0 %v4417
    %6305 = vmatprep.subr.bf16.mxu0 %v4398
    %6306 = vmatpush2.bf16.msra.mxu0 %v4397
    %6307 = vmatprep.subr.bf16.mxu0 %v4378
    %6308 = vmatpush2.bf16.msra.mxu0 %v4377
    %6309 = vmatprep.subr.bf16.mxu0 %v4358
    %6310 = vmatpush2.bf16.msra.mxu0 %v4357
    %6311 = vmatprep.subr.bf16.mxu0 %v4338
    %6312 = vmatpush2.bf16.msra.mxu0 %v4337
    %6313 = vmatprep.subr.bf16.mxu0 %v4318
    %6314 = vmatpush2.bf16.msra.mxu0 %v4317
    %6315 = vmatprep.mubr.bf16.mxu0 %v123
    %6316 = vmatmul.mubr.bf16.gmra.mxu0 %v122
    %v6317 = vpop.f32.mrf.mxu0
    %v6318 = vadd.f32 %v1126, %v6317
    %v6319 = vpop.f32.mrf.mxu0
    %v6320 = vadd.f32 %v1130, %v6319
    %v6321 = vpop.f32.mrf.mxu0
    %v6322 = vpop.f32.mrf.mxu0
    %6323 = vdwg.mxu0
    %6324 = vmatprep.subr.bf16.mxu0 %v4618
    %6325 = vmatpush1.bf16.msra.mxu0 %v4617
    %6326 = vmatprep.subr.bf16.mxu0 %v4598
    %6327 = vmatpush1.bf16.msra.mxu0 %v4597
    %6328 = vmatprep.subr.bf16.mxu0 %v4578
    %6329 = vmatpush1.bf16.msra.mxu0 %v4577
    %6330 = vmatprep.subr.bf16.mxu0 %v4558
    %6331 = vmatpush1.bf16.msra.mxu0 %v4557
    %6332 = vmatprep.subr.bf16.mxu0 %v4538
    %6333 = vmatpush1.bf16.msra.mxu0 %v4537
    %6334 = vmatprep.subr.bf16.mxu0 %v4518
    %6335 = vmatpush1.bf16.msra.mxu0 %v4517
    %6336 = vmatprep.subr.bf16.mxu0 %v4498
    %6337 = vmatpush1.bf16.msra.mxu0 %v4497
    %6338 = vmatprep.subr.bf16.mxu0 %v4478
    %6339 = vmatpush1.bf16.msra.mxu0 %v4477
    %6340 = vmatprep.subr.bf16.mxu0 %v4778
    %6341 = vmatpush2.bf16.msra.mxu0 %v4777
    %6342 = vmatprep.subr.bf16.mxu0 %v4758
    %6343 = vmatpush2.bf16.msra.mxu0 %v4757
    %6344 = vmatprep.subr.bf16.mxu0 %v4738
    %6345 = vmatpush2.bf16.msra.mxu0 %v4737
    %6346 = vmatprep.subr.bf16.mxu0 %v4718
    %6347 = vmatpush2.bf16.msra.mxu0 %v4717
    %6348 = vmatprep.subr.bf16.mxu0 %v4698
    %6349 = vmatpush2.bf16.msra.mxu0 %v4697
    %6350 = vmatprep.subr.bf16.mxu0 %v4678
    %6351 = vmatpush2.bf16.msra.mxu0 %v4677
    %6352 = vmatprep.subr.bf16.mxu0 %v4658
    %6353 = vmatpush2.bf16.msra.mxu0 %v4657
    %6354 = vmatprep.subr.bf16.mxu0 %v4638
    %6355 = vmatpush2.bf16.msra.mxu0 %v4637
    %6356 = vmatprep.mubr.bf16.mxu0 %v125
    %6357 = vmatmul.mubr.bf16.gmra.mxu0 %v124
    %v6358 = vpop.f32.mrf.mxu0
    %v6359 = vadd.f32 %v6318, %v6358
    %v6360 = vpop.f32.mrf.mxu0
    %v6361 = vadd.f32 %v6320, %v6360
    %v6362 = vpop.f32.mrf.mxu0
    %v6363 = vpop.f32.mrf.mxu0
    %6364 = vdwg.mxu0
    %6365 = vmatprep.subr.bf16.mxu0 %v4938
    %6366 = vmatpush1.bf16.msra.mxu0 %v4937
    %6367 = vmatprep.subr.bf16.mxu0 %v4918
    %6368 = vmatpush1.bf16.msra.mxu0 %v4917
    %6369 = vmatprep.subr.bf16.mxu0 %v4898
    %6370 = vmatpush1.bf16.msra.mxu0 %v4897
    %6371 = vmatprep.subr.bf16.mxu0 %v4878
    %6372 = vmatpush1.bf16.msra.mxu0 %v4877
    %6373 = vmatprep.subr.bf16.mxu0 %v4858
    %6374 = vmatpush1.bf16.msra.mxu0 %v4857
    %6375 = vmatprep.subr.bf16.mxu0 %v4838
    %6376 = vmatpush1.bf16.msra.mxu0 %v4837
    %6377 = vmatprep.subr.bf16.mxu0 %v4818
    %6378 = vmatpush1.bf16.msra.mxu0 %v4817
    %6379 = vmatprep.subr.bf16.mxu0 %v4798
    %6380 = vmatpush1.bf16.msra.mxu0 %v4797
    %6381 = vmatprep.subr.bf16.mxu0 %v5098
    %6382 = vmatpush2.bf16.msra.mxu0 %v5097
    %6383 = vmatprep.subr.bf16.mxu0 %v5078
    %6384 = vmatpush2.bf16.msra.mxu0 %v5077
    %6385 = vmatprep.subr.bf16.mxu0 %v5058
    %6386 = vmatpush2.bf16.msra.mxu0 %v5057
    %6387 = vmatprep.subr.bf16.mxu0 %v5038
    %6388 = vmatpush2.bf16.msra.mxu0 %v5037
    %6389 = vmatprep.subr.bf16.mxu0 %v5018
    %6390 = vmatpush2.bf16.msra.mxu0 %v5017
    %6391 = vmatprep.subr.bf16.mxu0 %v4998
    %6392 = vmatpush2.bf16.msra.mxu0 %v4997
    %6393 = vmatprep.subr.bf16.mxu0 %v4978
    %6394 = vmatpush2.bf16.msra.mxu0 %v4977
    %6395 = vmatprep.subr.bf16.mxu0 %v4958
    %6396 = vmatpush2.bf16.msra.mxu0 %v4957
    %6397 = vmatprep.mubr.bf16.mxu0 %v127
    %6398 = vmatmul.mubr.bf16.gmra.mxu0 %v126
    %v6399 = vpop.f32.mrf.mxu0
    %v6400 = vadd.f32 %v6359, %v6399
    %v6401 = vpop.f32.mrf.mxu0
    %v6402 = vadd.f32 %v6361, %v6401
    %v6403 = vpop.f32.mrf.mxu0
    %v6404 = vpop.f32.mrf.mxu0
    %6405 = vdwg.mxu0
    %6406 = vmatprep.subr.bf16.mxu0 0
    %6407 = vmatpush1.bf16.msra.mxu0 0
    %6408 = vmatprep.subr.bf16.mxu0 0
    %6409 = vmatpush1.bf16.msra.mxu0 0
    %6410 = vmatprep.subr.bf16.mxu0 0
    %6411 = vmatpush1.bf16.msra.mxu0 0
    %6412 = vmatprep.subr.bf16.mxu0 0
    %6413 = vmatpush1.bf16.msra.mxu0 0
    %6414 = vmatprep.subr.bf16.mxu0 0
    %6415 = vmatpush1.bf16.msra.mxu0 0
    %6416 = vmatprep.subr.bf16.mxu0 0
    %6417 = vmatpush1.bf16.msra.mxu0 0
    %6418 = vmatprep.subr.bf16.mxu0 0
    %6419 = vmatpush1.bf16.msra.mxu0 0
    %6420 = vmatprep.subr.bf16.mxu0 %v5118
    %6421 = vmatpush1.bf16.msra.mxu0 %v5117
    %6422 = vmatprep.subr.bf16.mxu0 0
    %6423 = vmatpush2.bf16.msra.mxu0 0
    %6424 = vmatprep.subr.bf16.mxu0 0
    %6425 = vmatpush2.bf16.msra.mxu0 0
    %6426 = vmatprep.subr.bf16.mxu0 0
    %6427 = vmatpush2.bf16.msra.mxu0 0
    %6428 = vmatprep.subr.bf16.mxu0 0
    %6429 = vmatpush2.bf16.msra.mxu0 0
    %6430 = vmatprep.subr.bf16.mxu0 0
    %6431 = vmatpush2.bf16.msra.mxu0 0
    %6432 = vmatprep.subr.bf16.mxu0 0
    %6433 = vmatpush2.bf16.msra.mxu0 0
    %6434 = vmatprep.subr.bf16.mxu0 0
    %6435 = vmatpush2.bf16.msra.mxu0 0
    %6436 = vmatprep.subr.bf16.mxu0 0
    %6437 = vmatpush2.bf16.msra.mxu0 0
    %6438 = vmatprep.mubr.bf16.mxu0 0
    %6439 = vmatmul.mubr.bf16.gmra.mxu0 %v6117
    %v6440 = vpop.f32.mrf.mxu0
    %v6441 = vadd.f32 %v6400, %v6440
    %v6442 = vpop.f32.mrf.mxu0
    %v6443 = vadd.f32 %v6402, %v6442
    %v6444 = vpop.f32.mrf.mxu0
    %v6445 = vpop.f32.mrf.mxu0
    %6446 = vdwg.mxu0
    %6447 = vmatprep.subr.bf16.mxu0 %v4300
    %6448 = vmatpush1.bf16.msra.mxu0 %v4299
    %6449 = vmatprep.subr.bf16.mxu0 %v4280
    %6450 = vmatpush1.bf16.msra.mxu0 %v4279
    %6451 = vmatprep.subr.bf16.mxu0 %v4260
    %6452 = vmatpush1.bf16.msra.mxu0 %v4259
    %6453 = vmatprep.subr.bf16.mxu0 %v4240
    %6454 = vmatpush1.bf16.msra.mxu0 %v4239
    %6455 = vmatprep.subr.bf16.mxu0 %v4220
    %6456 = vmatpush1.bf16.msra.mxu0 %v4219
    %6457 = vmatprep.subr.bf16.mxu0 %v4200
    %6458 = vmatpush1.bf16.msra.mxu0 %v4199
    %6459 = vmatprep.subr.bf16.mxu0 %v4180
    %6460 = vmatpush1.bf16.msra.mxu0 %v4179
    %6461 = vmatprep.subr.bf16.mxu0 %v4160
    %6462 = vmatpush1.bf16.msra.mxu0 %v4159
    %6463 = vmatprep.subr.bf16.mxu0 %v4460
    %6464 = vmatpush2.bf16.msra.mxu0 %v4459
    %6465 = vmatprep.subr.bf16.mxu0 %v4440
    %6466 = vmatpush2.bf16.msra.mxu0 %v4439
    %6467 = vmatprep.subr.bf16.mxu0 %v4420
    %6468 = vmatpush2.bf16.msra.mxu0 %v4419
    %6469 = vmatprep.subr.bf16.mxu0 %v4400
    %6470 = vmatpush2.bf16.msra.mxu0 %v4399
    %6471 = vmatprep.subr.bf16.mxu0 %v4380
    %6472 = vmatpush2.bf16.msra.mxu0 %v4379
    %6473 = vmatprep.subr.bf16.mxu0 %v4360
    %6474 = vmatpush2.bf16.msra.mxu0 %v4359
    %6475 = vmatprep.subr.bf16.mxu0 %v4340
    %6476 = vmatpush2.bf16.msra.mxu0 %v4339
    %6477 = vmatprep.subr.bf16.mxu0 %v4320
    %6478 = vmatpush2.bf16.msra.mxu0 %v4319
    %6479 = vmatprep.mubr.bf16.mxu0 %v123
    %6480 = vmatmul.mubr.bf16.gmra.mxu0 %v122
    %v6481 = vpop.f32.mrf.mxu0
    %v6482 = vadd.f32 %v1134, %v6481
    %v6483 = vpop.f32.mrf.mxu0
    %v6484 = vadd.f32 %v1138, %v6483
    %v6485 = vpop.f32.mrf.mxu0
    %v6486 = vpop.f32.mrf.mxu0
    %6487 = vdwg.mxu0
    %6488 = vmatprep.subr.bf16.mxu0 %v4620
    %6489 = vmatpush1.bf16.msra.mxu0 %v4619
    %6490 = vmatprep.subr.bf16.mxu0 %v4600
    %6491 = vmatpush1.bf16.msra.mxu0 %v4599
    %6492 = vmatprep.subr.bf16.mxu0 %v4580
    %6493 = vmatpush1.bf16.msra.mxu0 %v4579
    %6494 = vmatprep.subr.bf16.mxu0 %v4560
    %6495 = vmatpush1.bf16.msra.mxu0 %v4559
    %6496 = vmatprep.subr.bf16.mxu0 %v4540
    %6497 = vmatpush1.bf16.msra.mxu0 %v4539
    %6498 = vmatprep.subr.bf16.mxu0 %v4520
    %6499 = vmatpush1.bf16.msra.mxu0 %v4519
    %6500 = vmatprep.subr.bf16.mxu0 %v4500
    %6501 = vmatpush1.bf16.msra.mxu0 %v4499
    %6502 = vmatprep.subr.bf16.mxu0 %v4480
    %6503 = vmatpush1.bf16.msra.mxu0 %v4479
    %6504 = vmatprep.subr.bf16.mxu0 %v4780
    %6505 = vmatpush2.bf16.msra.mxu0 %v4779
    %6506 = vmatprep.subr.bf16.mxu0 %v4760
    %6507 = vmatpush2.bf16.msra.mxu0 %v4759
    %6508 = vmatprep.subr.bf16.mxu0 %v4740
    %6509 = vmatpush2.bf16.msra.mxu0 %v4739
    %6510 = vmatprep.subr.bf16.mxu0 %v4720
    %6511 = vmatpush2.bf16.msra.mxu0 %v4719
    %6512 = vmatprep.subr.bf16.mxu0 %v4700
    %6513 = vmatpush2.bf16.msra.mxu0 %v4699
    %6514 = vmatprep.subr.bf16.mxu0 %v4680
    %6515 = vmatpush2.bf16.msra.mxu0 %v4679
    %6516 = vmatprep.subr.bf16.mxu0 %v4660
    %6517 = vmatpush2.bf16.msra.mxu0 %v4659
    %6518 = vmatprep.subr.bf16.mxu0 %v4640
    %6519 = vmatpush2.bf16.msra.mxu0 %v4639
    %6520 = vmatprep.mubr.bf16.mxu0 %v125
    %6521 = vmatmul.mubr.bf16.gmra.mxu0 %v124
    %v6522 = vpop.f32.mrf.mxu0
    %v6523 = vadd.f32 %v6482, %v6522
    %v6524 = vpop.f32.mrf.mxu0
    %v6525 = vadd.f32 %v6484, %v6524
    %v6526 = vpop.f32.mrf.mxu0
    %v6527 = vpop.f32.mrf.mxu0
    %6528 = vdwg.mxu0
    %6529 = vmatprep.subr.bf16.mxu0 %v4940
    %6530 = vmatpush1.bf16.msra.mxu0 %v4939
    %6531 = vmatprep.subr.bf16.mxu0 %v4920
    %6532 = vmatpush1.bf16.msra.mxu0 %v4919
    %6533 = vmatprep.subr.bf16.mxu0 %v4900
    %6534 = vmatpush1.bf16.msra.mxu0 %v4899
    %6535 = vmatprep.subr.bf16.mxu0 %v4880
    %6536 = vmatpush1.bf16.msra.mxu0 %v4879
    %6537 = vmatprep.subr.bf16.mxu0 %v4860
    %6538 = vmatpush1.bf16.msra.mxu0 %v4859
    %6539 = vmatprep.subr.bf16.mxu0 %v4840
    %6540 = vmatpush1.bf16.msra.mxu0 %v4839
    %6541 = vmatprep.subr.bf16.mxu0 %v4820
    %6542 = vmatpush1.bf16.msra.mxu0 %v4819
    %6543 = vmatprep.subr.bf16.mxu0 %v4800
    %6544 = vmatpush1.bf16.msra.mxu0 %v4799
    %6545 = vmatprep.subr.bf16.mxu0 %v5100
    %6546 = vmatpush2.bf16.msra.mxu0 %v5099
    %6547 = vmatprep.subr.bf16.mxu0 %v5080
    %6548 = vmatpush2.bf16.msra.mxu0 %v5079
    %6549 = vmatprep.subr.bf16.mxu0 %v5060
    %6550 = vmatpush2.bf16.msra.mxu0 %v5059
    %6551 = vmatprep.subr.bf16.mxu0 %v5040
    %6552 = vmatpush2.bf16.msra.mxu0 %v5039
    %6553 = vmatprep.subr.bf16.mxu0 %v5020
    %6554 = vmatpush2.bf16.msra.mxu0 %v5019
    %6555 = vmatprep.subr.bf16.mxu0 %v5000
    %6556 = vmatpush2.bf16.msra.mxu0 %v4999
    %6557 = vmatprep.subr.bf16.mxu0 %v4980
    %6558 = vmatpush2.bf16.msra.mxu0 %v4979
    %6559 = vmatprep.subr.bf16.mxu0 %v4960
    %6560 = vmatpush2.bf16.msra.mxu0 %v4959
    %6561 = vmatprep.mubr.bf16.mxu0 %v127
    %6562 = vmatmul.mubr.bf16.gmra.mxu0 %v126
    %v6563 = vpop.f32.mrf.mxu0
    %v6564 = vadd.f32 %v6523, %v6563
    %v6565 = vpop.f32.mrf.mxu0
    %v6566 = vadd.f32 %v6525, %v6565
    %v6567 = vpop.f32.mrf.mxu0
    %v6568 = vpop.f32.mrf.mxu0
    %6569 = vdwg.mxu0
    %6570 = vmatprep.subr.bf16.mxu0 0
    %6571 = vmatpush1.bf16.msra.mxu0 0
    %6572 = vmatprep.subr.bf16.mxu0 0
    %6573 = vmatpush1.bf16.msra.mxu0 0
    %6574 = vmatprep.subr.bf16.mxu0 0
    %6575 = vmatpush1.bf16.msra.mxu0 0
    %6576 = vmatprep.subr.bf16.mxu0 0
    %6577 = vmatpush1.bf16.msra.mxu0 0
    %6578 = vmatprep.subr.bf16.mxu0 0
    %6579 = vmatpush1.bf16.msra.mxu0 0
    %6580 = vmatprep.subr.bf16.mxu0 0
    %6581 = vmatpush1.bf16.msra.mxu0 0
    %6582 = vmatprep.subr.bf16.mxu0 0
    %6583 = vmatpush1.bf16.msra.mxu0 0
    %6584 = vmatprep.subr.bf16.mxu0 %v5120
    %6585 = vmatpush1.bf16.msra.mxu0 %v5119
    %6586 = vmatprep.subr.bf16.mxu0 0
    %6587 = vmatpush2.bf16.msra.mxu0 0
    %6588 = vmatprep.subr.bf16.mxu0 0
    %6589 = vmatpush2.bf16.msra.mxu0 0
    %6590 = vmatprep.subr.bf16.mxu0 0
    %6591 = vmatpush2.bf16.msra.mxu0 0
    %6592 = vmatprep.subr.bf16.mxu0 0
    %6593 = vmatpush2.bf16.msra.mxu0 0
    %6594 = vmatprep.subr.bf16.mxu0 0
    %6595 = vmatpush2.bf16.msra.mxu0 0
    %6596 = vmatprep.subr.bf16.mxu0 0
    %6597 = vmatpush2.bf16.msra.mxu0 0
    %6598 = vmatprep.subr.bf16.mxu0 0
    %6599 = vmatpush2.bf16.msra.mxu0 0
    %6600 = vmatprep.subr.bf16.mxu0 0
    %6601 = vmatpush2.bf16.msra.mxu0 0
    %6602 = vmatprep.mubr.bf16.mxu0 0
    %6603 = vmatmul.mubr.bf16.gmra.mxu0 %v6117
    %v6604 = vpop.f32.mrf.mxu0
    %v6605 = vadd.f32 %v6564, %v6604
    %v6606 = vpop.f32.mrf.mxu0
    %v6607 = vadd.f32 %v6566, %v6606
    %v6608 = vpop.f32.mrf.mxu0
    %v6609 = vpop.f32.mrf.mxu0
    %6610 = vdwg.mxu0
    %6611 = vmatprep.subr.bf16.mxu0 %v4302
    %6612 = vmatpush1.bf16.msra.mxu0 %v4301
    %6613 = vmatprep.subr.bf16.mxu0 %v4282
    %6614 = vmatpush1.bf16.msra.mxu0 %v4281
    %6615 = vmatprep.subr.bf16.mxu0 %v4262
    %6616 = vmatpush1.bf16.msra.mxu0 %v4261
    %6617 = vmatprep.subr.bf16.mxu0 %v4242
    %6618 = vmatpush1.bf16.msra.mxu0 %v4241
    %6619 = vmatprep.subr.bf16.mxu0 %v4222
    %6620 = vmatpush1.bf16.msra.mxu0 %v4221
    %6621 = vmatprep.subr.bf16.mxu0 %v4202
    %6622 = vmatpush1.bf16.msra.mxu0 %v4201
    %6623 = vmatprep.subr.bf16.mxu0 %v4182
    %6624 = vmatpush1.bf16.msra.mxu0 %v4181
    %6625 = vmatprep.subr.bf16.mxu0 %v4162
    %6626 = vmatpush1.bf16.msra.mxu0 %v4161
    %6627 = vmatprep.subr.bf16.mxu0 %v4462
    %6628 = vmatpush2.bf16.msra.mxu0 %v4461
    %6629 = vmatprep.subr.bf16.mxu0 %v4442
    %6630 = vmatpush2.bf16.msra.mxu0 %v4441
    %6631 = vmatprep.subr.bf16.mxu0 %v4422
    %6632 = vmatpush2.bf16.msra.mxu0 %v4421
    %6633 = vmatprep.subr.bf16.mxu0 %v4402
    %6634 = vmatpush2.bf16.msra.mxu0 %v4401
    %6635 = vmatprep.subr.bf16.mxu0 %v4382
    %6636 = vmatpush2.bf16.msra.mxu0 %v4381
    %6637 = vmatprep.subr.bf16.mxu0 %v4362
    %6638 = vmatpush2.bf16.msra.mxu0 %v4361
    %6639 = vmatprep.subr.bf16.mxu0 %v4342
    %6640 = vmatpush2.bf16.msra.mxu0 %v4341
    %6641 = vmatprep.subr.bf16.mxu0 %v4322
    %6642 = vmatpush2.bf16.msra.mxu0 %v4321
    %6643 = vmatprep.mubr.bf16.mxu0 %v123
    %6644 = vmatmul.mubr.bf16.gmra.mxu0 %v122
    %v6645 = vpop.f32.mrf.mxu0
    %v6646 = vadd.f32 %v1142, %v6645
    %v6647 = vpop.f32.mrf.mxu0
    %v6648 = vadd.f32 %v1146, %v6647
    %v6649 = vpop.f32.mrf.mxu0
    %v6650 = vpop.f32.mrf.mxu0
    %6651 = vdwg.mxu0
    %6652 = vmatprep.subr.bf16.mxu0 %v4622
    %6653 = vmatpush1.bf16.msra.mxu0 %v4621
    %6654 = vmatprep.subr.bf16.mxu0 %v4602
    %6655 = vmatpush1.bf16.msra.mxu0 %v4601
    %6656 = vmatprep.subr.bf16.mxu0 %v4582
    %6657 = vmatpush1.bf16.msra.mxu0 %v4581
    %6658 = vmatprep.subr.bf16.mxu0 %v4562
    %6659 = vmatpush1.bf16.msra.mxu0 %v4561
    %6660 = vmatprep.subr.bf16.mxu0 %v4542
    %6661 = vmatpush1.bf16.msra.mxu0 %v4541
    %6662 = vmatprep.subr.bf16.mxu0 %v4522
    %6663 = vmatpush1.bf16.msra.mxu0 %v4521
    %6664 = vmatprep.subr.bf16.mxu0 %v4502
    %6665 = vmatpush1.bf16.msra.mxu0 %v4501
    %6666 = vmatprep.subr.bf16.mxu0 %v4482
    %6667 = vmatpush1.bf16.msra.mxu0 %v4481
    %6668 = vmatprep.subr.bf16.mxu0 %v4782
    %6669 = vmatpush2.bf16.msra.mxu0 %v4781
    %6670 = vmatprep.subr.bf16.mxu0 %v4762
    %6671 = vmatpush2.bf16.msra.mxu0 %v4761
    %6672 = vmatprep.subr.bf16.mxu0 %v4742
    %6673 = vmatpush2.bf16.msra.mxu0 %v4741
    %6674 = vmatprep.subr.bf16.mxu0 %v4722
    %6675 = vmatpush2.bf16.msra.mxu0 %v4721
    %6676 = vmatprep.subr.bf16.mxu0 %v4702
    %6677 = vmatpush2.bf16.msra.mxu0 %v4701
    %6678 = vmatprep.subr.bf16.mxu0 %v4682
    %6679 = vmatpush2.bf16.msra.mxu0 %v4681
    %6680 = vmatprep.subr.bf16.mxu0 %v4662
    %6681 = vmatpush2.bf16.msra.mxu0 %v4661
    %6682 = vmatprep.subr.bf16.mxu0 %v4642
    %6683 = vmatpush2.bf16.msra.mxu0 %v4641
    %6684 = vmatprep.mubr.bf16.mxu0 %v125
    %6685 = vmatmul.mubr.bf16.gmra.mxu0 %v124
    %v6686 = vpop.f32.mrf.mxu0
    %v6687 = vadd.f32 %v6646, %v6686
    %v6688 = vpop.f32.mrf.mxu0
    %v6689 = vadd.f32 %v6648, %v6688
    %v6690 = vpop.f32.mrf.mxu0
    %v6691 = vpop.f32.mrf.mxu0
    %6692 = vdwg.mxu0
    %6693 = vmatprep.subr.bf16.mxu0 %v4942
    %6694 = vmatpush1.bf16.msra.mxu0 %v4941
    %6695 = vmatprep.subr.bf16.mxu0 %v4922
    %6696 = vmatpush1.bf16.msra.mxu0 %v4921
    %6697 = vmatprep.subr.bf16.mxu0 %v4902
    %6698 = vmatpush1.bf16.msra.mxu0 %v4901
    %6699 = vmatprep.subr.bf16.mxu0 %v4882
    %6700 = vmatpush1.bf16.msra.mxu0 %v4881
    %6701 = vmatprep.subr.bf16.mxu0 %v4862
    %6702 = vmatpush1.bf16.msra.mxu0 %v4861
    %6703 = vmatprep.subr.bf16.mxu0 %v4842
    %6704 = vmatpush1.bf16.msra.mxu0 %v4841
    %6705 = vmatprep.subr.bf16.mxu0 %v4822
    %6706 = vmatpush1.bf16.msra.mxu0 %v4821
    %6707 = vmatprep.subr.bf16.mxu0 %v4802
    %6708 = vmatpush1.bf16.msra.mxu0 %v4801
    %6709 = vmatprep.subr.bf16.mxu0 %v5102
    %6710 = vmatpush2.bf16.msra.mxu0 %v5101
    %6711 = vmatprep.subr.bf16.mxu0 %v5082
    %6712 = vmatpush2.bf16.msra.mxu0 %v5081
    %6713 = vmatprep.subr.bf16.mxu0 %v5062
    %6714 = vmatpush2.bf16.msra.mxu0 %v5061
    %6715 = vmatprep.subr.bf16.mxu0 %v5042
    %6716 = vmatpush2.bf16.msra.mxu0 %v5041
    %6717 = vmatprep.subr.bf16.mxu0 %v5022
    %6718 = vmatpush2.bf16.msra.mxu0 %v5021
    %6719 = vmatprep.subr.bf16.mxu0 %v5002
    %6720 = vmatpush2.bf16.msra.mxu0 %v5001
    %6721 = vmatprep.subr.bf16.mxu0 %v4982
    %6722 = vmatpush2.bf16.msra.mxu0 %v4981
    %6723 = vmatprep.subr.bf16.mxu0 %v4962
    %6724 = vmatpush2.bf16.msra.mxu0 %v4961
    %6725 = vmatprep.mubr.bf16.mxu0 %v127
    %6726 = vmatmul.mubr.bf16.gmra.mxu0 %v126
    %v6727 = vpop.f32.mrf.mxu0
    %v6728 = vadd.f32 %v6687, %v6727
    %v6729 = vpop.f32.mrf.mxu0
    %v6730 = vadd.f32 %v6689, %v6729
    %v6731 = vpop.f32.mrf.mxu0
    %v6732 = vpop.f32.mrf.mxu0
    %6733 = vdwg.mxu0
    %6734 = vmatprep.subr.bf16.mxu0 0
    %6735 = vmatpush1.bf16.msra.mxu0 0
    %6736 = vmatprep.subr.bf16.mxu0 0
    %6737 = vmatpush1.bf16.msra.mxu0 0
    %6738 = vmatprep.subr.bf16.mxu0 0
    %6739 = vmatpush1.bf16.msra.mxu0 0
    %6740 = vmatprep.subr.bf16.mxu0 0
    %6741 = vmatpush1.bf16.msra.mxu0 0
    %6742 = vmatprep.subr.bf16.mxu0 0
    %6743 = vmatpush1.bf16.msra.mxu0 0
    %6744 = vmatprep.subr.bf16.mxu0 0
    %6745 = vmatpush1.bf16.msra.mxu0 0
    %6746 = vmatprep.subr.bf16.mxu0 0
    %6747 = vmatpush1.bf16.msra.mxu0 0
    %6748 = vmatprep.subr.bf16.mxu0 %v5122
    %6749 = vmatpush1.bf16.msra.mxu0 %v5121
    %6750 = vmatprep.subr.bf16.mxu0 0
    %6751 = vmatpush2.bf16.msra.mxu0 0
    %6752 = vmatprep.subr.bf16.mxu0 0
    %6753 = vmatpush2.bf16.msra.mxu0 0
    %6754 = vmatprep.subr.bf16.mxu0 0
    %6755 = vmatpush2.bf16.msra.mxu0 0
    %6756 = vmatprep.subr.bf16.mxu0 0
    %6757 = vmatpush2.bf16.msra.mxu0 0
    %6758 = vmatprep.subr.bf16.mxu0 0
    %6759 = vmatpush2.bf16.msra.mxu0 0
    %6760 = vmatprep.subr.bf16.mxu0 0
    %6761 = vmatpush2.bf16.msra.mxu0 0
    %6762 = vmatprep.subr.bf16.mxu0 0
    %6763 = vmatpush2.bf16.msra.mxu0 0
    %6764 = vmatprep.subr.bf16.mxu0 0
    %6765 = vmatpush2.bf16.msra.mxu0 0
    %6766 = vmatprep.mubr.bf16.mxu0 0
    %6767 = vmatmul.mubr.bf16.gmra.mxu0 %v6117
    %v6768 = vpop.f32.mrf.mxu0
    %v6769 = vadd.f32 %v6728, %v6768
    %v6770 = vpop.f32.mrf.mxu0
    %v6771 = vadd.f32 %v6730, %v6770
    %v6772 = vpop.f32.mrf.mxu0
    %v6773 = vpop.f32.mrf.mxu0
    %6774 = vdwg.mxu0
    %6775 = vmatprep.subr.bf16.mxu0 %v4304
    %6776 = vmatpush1.bf16.msra.mxu0 %v4303
    %6777 = vmatprep.subr.bf16.mxu0 %v4284
    %6778 = vmatpush1.bf16.msra.mxu0 %v4283
    %6779 = vmatprep.subr.bf16.mxu0 %v4264
    %6780 = vmatpush1.bf16.msra.mxu0 %v4263
    %6781 = vmatprep.subr.bf16.mxu0 %v4244
    %6782 = vmatpush1.bf16.msra.mxu0 %v4243
    %6783 = vmatprep.subr.bf16.mxu0 %v4224
    %6784 = vmatpush1.bf16.msra.mxu0 %v4223
    %6785 = vmatprep.subr.bf16.mxu0 %v4204
    %6786 = vmatpush1.bf16.msra.mxu0 %v4203
    %6787 = vmatprep.subr.bf16.mxu0 %v4184
    %6788 = vmatpush1.bf16.msra.mxu0 %v4183
    %6789 = vmatprep.subr.bf16.mxu0 %v4164
    %6790 = vmatpush1.bf16.msra.mxu0 %v4163
    %6791 = vmatprep.subr.bf16.mxu0 %v4464
    %6792 = vmatpush2.bf16.msra.mxu0 %v4463
    %6793 = vmatprep.subr.bf16.mxu0 %v4444
    %6794 = vmatpush2.bf16.msra.mxu0 %v4443
    %6795 = vmatprep.subr.bf16.mxu0 %v4424
    %6796 = vmatpush2.bf16.msra.mxu0 %v4423
    %6797 = vmatprep.subr.bf16.mxu0 %v4404
    %6798 = vmatpush2.bf16.msra.mxu0 %v4403
    %6799 = vmatprep.subr.bf16.mxu0 %v4384
    %6800 = vmatpush2.bf16.msra.mxu0 %v4383
    %6801 = vmatprep.subr.bf16.mxu0 %v4364
    %6802 = vmatpush2.bf16.msra.mxu0 %v4363
    %6803 = vmatprep.subr.bf16.mxu0 %v4344
    %6804 = vmatpush2.bf16.msra.mxu0 %v4343
    %6805 = vmatprep.subr.bf16.mxu0 %v4324
    %6806 = vmatpush2.bf16.msra.mxu0 %v4323
    %6807 = vmatprep.mubr.bf16.mxu0 %v123
    %6808 = vmatmul.mubr.bf16.gmra.mxu0 %v122
    %v6809 = vpop.f32.mrf.mxu0
    %v6810 = vadd.f32 %v1150, %v6809
    %v6811 = vpop.f32.mrf.mxu0
    %v6812 = vadd.f32 %v1154, %v6811
    %v6813 = vpop.f32.mrf.mxu0
    %v6814 = vpop.f32.mrf.mxu0
    %6815 = vdwg.mxu0
    %6816 = vmatprep.subr.bf16.mxu0 %v4624
    %6817 = vmatpush1.bf16.msra.mxu0 %v4623
    %6818 = vmatprep.subr.bf16.mxu0 %v4604
    %6819 = vmatpush1.bf16.msra.mxu0 %v4603
    %6820 = vmatprep.subr.bf16.mxu0 %v4584
    %6821 = vmatpush1.bf16.msra.mxu0 %v4583
    %6822 = vmatprep.subr.bf16.mxu0 %v4564
    %6823 = vmatpush1.bf16.msra.mxu0 %v4563
    %6824 = vmatprep.subr.bf16.mxu0 %v4544
    %6825 = vmatpush1.bf16.msra.mxu0 %v4543
    %6826 = vmatprep.subr.bf16.mxu0 %v4524
    %6827 = vmatpush1.bf16.msra.mxu0 %v4523
    %6828 = vmatprep.subr.bf16.mxu0 %v4504
    %6829 = vmatpush1.bf16.msra.mxu0 %v4503
    %6830 = vmatprep.subr.bf16.mxu0 %v4484
    %6831 = vmatpush1.bf16.msra.mxu0 %v4483
    %6832 = vmatprep.subr.bf16.mxu0 %v4784
    %6833 = vmatpush2.bf16.msra.mxu0 %v4783
    %6834 = vmatprep.subr.bf16.mxu0 %v4764
    %6835 = vmatpush2.bf16.msra.mxu0 %v4763
    %6836 = vmatprep.subr.bf16.mxu0 %v4744
    %6837 = vmatpush2.bf16.msra.mxu0 %v4743
    %6838 = vmatprep.subr.bf16.mxu0 %v4724
    %6839 = vmatpush2.bf16.msra.mxu0 %v4723
    %6840 = vmatprep.subr.bf16.mxu0 %v4704
    %6841 = vmatpush2.bf16.msra.mxu0 %v4703
    %6842 = vmatprep.subr.bf16.mxu0 %v4684
    %6843 = vmatpush2.bf16.msra.mxu0 %v4683
    %6844 = vmatprep.subr.bf16.mxu0 %v4664
    %6845 = vmatpush2.bf16.msra.mxu0 %v4663
    %6846 = vmatprep.subr.bf16.mxu0 %v4644
    %6847 = vmatpush2.bf16.msra.mxu0 %v4643
    %6848 = vmatprep.mubr.bf16.mxu0 %v125
    %6849 = vmatmul.mubr.bf16.gmra.mxu0 %v124
    %v6850 = vpop.f32.mrf.mxu0
    %v6851 = vadd.f32 %v6810, %v6850
    %v6852 = vpop.f32.mrf.mxu0
    %v6853 = vadd.f32 %v6812, %v6852
    %v6854 = vpop.f32.mrf.mxu0
    %v6855 = vpop.f32.mrf.mxu0
    %6856 = vdwg.mxu0
    %6857 = vmatprep.subr.bf16.mxu0 %v4944
    %6858 = vmatpush1.bf16.msra.mxu0 %v4943
    %6859 = vmatprep.subr.bf16.mxu0 %v4924
    %6860 = vmatpush1.bf16.msra.mxu0 %v4923
    %6861 = vmatprep.subr.bf16.mxu0 %v4904
    %6862 = vmatpush1.bf16.msra.mxu0 %v4903
    %6863 = vmatprep.subr.bf16.mxu0 %v4884
    %6864 = vmatpush1.bf16.msra.mxu0 %v4883
    %6865 = vmatprep.subr.bf16.mxu0 %v4864
    %6866 = vmatpush1.bf16.msra.mxu0 %v4863
    %6867 = vmatprep.subr.bf16.mxu0 %v4844
    %6868 = vmatpush1.bf16.msra.mxu0 %v4843
    %6869 = vmatprep.subr.bf16.mxu0 %v4824
    %6870 = vmatpush1.bf16.msra.mxu0 %v4823
    %6871 = vmatprep.subr.bf16.mxu0 %v4804
    %6872 = vmatpush1.bf16.msra.mxu0 %v4803
    %6873 = vmatprep.subr.bf16.mxu0 %v5104
    %6874 = vmatpush2.bf16.msra.mxu0 %v5103
    %6875 = vmatprep.subr.bf16.mxu0 %v5084
    %6876 = vmatpush2.bf16.msra.mxu0 %v5083
    %6877 = vmatprep.subr.bf16.mxu0 %v5064
    %6878 = vmatpush2.bf16.msra.mxu0 %v5063
    %6879 = vmatprep.subr.bf16.mxu0 %v5044
    %6880 = vmatpush2.bf16.msra.mxu0 %v5043
    %6881 = vmatprep.subr.bf16.mxu0 %v5024
    %6882 = vmatpush2.bf16.msra.mxu0 %v5023
    %6883 = vmatprep.subr.bf16.mxu0 %v5004
    %6884 = vmatpush2.bf16.msra.mxu0 %v5003
    %6885 = vmatprep.subr.bf16.mxu0 %v4984
    %6886 = vmatpush2.bf16.msra.mxu0 %v4983
    %6887 = vmatprep.subr.bf16.mxu0 %v4964
    %6888 = vmatpush2.bf16.msra.mxu0 %v4963
    %6889 = vmatprep.mubr.bf16.mxu0 %v127
    %6890 = vmatmul.mubr.bf16.gmra.mxu0 %v126
    %v6891 = vpop.f32.mrf.mxu0
    %v6892 = vadd.f32 %v6851, %v6891
    %v6893 = vpop.f32.mrf.mxu0
    %v6894 = vadd.f32 %v6853, %v6893
    %v6895 = vpop.f32.mrf.mxu0
    %v6896 = vpop.f32.mrf.mxu0
    %6897 = vdwg.mxu0
    %6898 = vmatprep.subr.bf16.mxu0 0
    %6899 = vmatpush1.bf16.msra.mxu0 0
    %6900 = vmatprep.subr.bf16.mxu0 0
    %6901 = vmatpush1.bf16.msra.mxu0 0
    %6902 = vmatprep.subr.bf16.mxu0 0
    %6903 = vmatpush1.bf16.msra.mxu0 0
    %6904 = vmatprep.subr.bf16.mxu0 0
    %6905 = vmatpush1.bf16.msra.mxu0 0
    %6906 = vmatprep.subr.bf16.mxu0 0
    %6907 = vmatpush1.bf16.msra.mxu0 0
    %6908 = vmatprep.subr.bf16.mxu0 0
    %6909 = vmatpush1.bf16.msra.mxu0 0
    %6910 = vmatprep.subr.bf16.mxu0 0
    %6911 = vmatpush1.bf16.msra.mxu0 0
    %6912 = vmatprep.subr.bf16.mxu0 %v5124
    %6913 = vmatpush1.bf16.msra.mxu0 %v5123
    %6914 = vmatprep.subr.bf16.mxu0 0
    %6915 = vmatpush2.bf16.msra.mxu0 0
    %6916 = vmatprep.subr.bf16.mxu0 0
    %6917 = vmatpush2.bf16.msra.mxu0 0
    %6918 = vmatprep.subr.bf16.mxu0 0
    %6919 = vmatpush2.bf16.msra.mxu0 0
    %6920 = vmatprep.subr.bf16.mxu0 0
    %6921 = vmatpush2.bf16.msra.mxu0 0
    %6922 = vmatprep.subr.bf16.mxu0 0
    %6923 = vmatpush2.bf16.msra.mxu0 0
    %6924 = vmatprep.subr.bf16.mxu0 0
    %6925 = vmatpush2.bf16.msra.mxu0 0
    %6926 = vmatprep.subr.bf16.mxu0 0
    %6927 = vmatpush2.bf16.msra.mxu0 0
    %6928 = vmatprep.subr.bf16.mxu0 0
    %6929 = vmatpush2.bf16.msra.mxu0 0
    %6930 = vmatprep.mubr.bf16.mxu0 0
    %6931 = vmatmul.mubr.bf16.gmra.mxu0 %v6117
    %v6932 = vpop.f32.mrf.mxu0
    %v6933 = vadd.f32 %v6892, %v6932
    %v6934 = vpop.f32.mrf.mxu0
    %v6935 = vadd.f32 %v6894, %v6934
    %v6936 = vpop.f32.mrf.mxu0
    %v6937 = vpop.f32.mrf.mxu0
    %6938 = vdwg.mxu0
    %6939 = vmatprep.subr.bf16.mxu0 %v4306
    %6940 = vmatpush1.bf16.msra.mxu0 %v4305
    %6941 = vmatprep.subr.bf16.mxu0 %v4286
    %6942 = vmatpush1.bf16.msra.mxu0 %v4285
    %6943 = vmatprep.subr.bf16.mxu0 %v4266
    %6944 = vmatpush1.bf16.msra.mxu0 %v4265
    %6945 = vmatprep.subr.bf16.mxu0 %v4246
    %6946 = vmatpush1.bf16.msra.mxu0 %v4245
    %6947 = vmatprep.subr.bf16.mxu0 %v4226
    %6948 = vmatpush1.bf16.msra.mxu0 %v4225
    %6949 = vmatprep.subr.bf16.mxu0 %v4206
    %6950 = vmatpush1.bf16.msra.mxu0 %v4205
    %6951 = vmatprep.subr.bf16.mxu0 %v4186
    %6952 = vmatpush1.bf16.msra.mxu0 %v4185
    %6953 = vmatprep.subr.bf16.mxu0 %v4166
    %6954 = vmatpush1.bf16.msra.mxu0 %v4165
    %6955 = vmatprep.subr.bf16.mxu0 %v4466
    %6956 = vmatpush2.bf16.msra.mxu0 %v4465
    %6957 = vmatprep.subr.bf16.mxu0 %v4446
    %6958 = vmatpush2.bf16.msra.mxu0 %v4445
    %6959 = vmatprep.subr.bf16.mxu0 %v4426
    %6960 = vmatpush2.bf16.msra.mxu0 %v4425
    %6961 = vmatprep.subr.bf16.mxu0 %v4406
    %6962 = vmatpush2.bf16.msra.mxu0 %v4405
    %6963 = vmatprep.subr.bf16.mxu0 %v4386
    %6964 = vmatpush2.bf16.msra.mxu0 %v4385
    %6965 = vmatprep.subr.bf16.mxu0 %v4366
    %6966 = vmatpush2.bf16.msra.mxu0 %v4365
    %6967 = vmatprep.subr.bf16.mxu0 %v4346
    %6968 = vmatpush2.bf16.msra.mxu0 %v4345
    %6969 = vmatprep.subr.bf16.mxu0 %v4326
    %6970 = vmatpush2.bf16.msra.mxu0 %v4325
    %6971 = vmatprep.mubr.bf16.mxu0 %v123
    %6972 = vmatmul.mubr.bf16.gmra.mxu0 %v122
    %v6973 = vpop.f32.mrf.mxu0
    %v6974 = vadd.f32 %v1158, %v6973
    %v6975 = vpop.f32.mrf.mxu0
    %v6976 = vadd.f32 %v1162, %v6975
    %v6977 = vpop.f32.mrf.mxu0
    %v6978 = vpop.f32.mrf.mxu0
    %6979 = vdwg.mxu0
    %6980 = vmatprep.subr.bf16.mxu0 %v4626
    %6981 = vmatpush1.bf16.msra.mxu0 %v4625
    %6982 = vmatprep.subr.bf16.mxu0 %v4606
    %6983 = vmatpush1.bf16.msra.mxu0 %v4605
    %6984 = vmatprep.subr.bf16.mxu0 %v4586
    %6985 = vmatpush1.bf16.msra.mxu0 %v4585
    %6986 = vmatprep.subr.bf16.mxu0 %v4566
    %6987 = vmatpush1.bf16.msra.mxu0 %v4565
    %6988 = vmatprep.subr.bf16.mxu0 %v4546
    %6989 = vmatpush1.bf16.msra.mxu0 %v4545
    %6990 = vmatprep.subr.bf16.mxu0 %v4526
    %6991 = vmatpush1.bf16.msra.mxu0 %v4525
    %6992 = vmatprep.subr.bf16.mxu0 %v4506
    %6993 = vmatpush1.bf16.msra.mxu0 %v4505
    %6994 = vmatprep.subr.bf16.mxu0 %v4486
    %6995 = vmatpush1.bf16.msra.mxu0 %v4485
    %6996 = vmatprep.subr.bf16.mxu0 %v4786
    %6997 = vmatpush2.bf16.msra.mxu0 %v4785
    %6998 = vmatprep.subr.bf16.mxu0 %v4766
    %6999 = vmatpush2.bf16.msra.mxu0 %v4765
    %7000 = vmatprep.subr.bf16.mxu0 %v4746
    %7001 = vmatpush2.bf16.msra.mxu0 %v4745
    %7002 = vmatprep.subr.bf16.mxu0 %v4726
    %7003 = vmatpush2.bf16.msra.mxu0 %v4725
    %7004 = vmatprep.subr.bf16.mxu0 %v4706
    %7005 = vmatpush2.bf16.msra.mxu0 %v4705
    %7006 = vmatprep.subr.bf16.mxu0 %v4686
    %7007 = vmatpush2.bf16.msra.mxu0 %v4685
    %7008 = vmatprep.subr.bf16.mxu0 %v4666
    %7009 = vmatpush2.bf16.msra.mxu0 %v4665
    %7010 = vmatprep.subr.bf16.mxu0 %v4646
    %7011 = vmatpush2.bf16.msra.mxu0 %v4645
    %7012 = vmatprep.mubr.bf16.mxu0 %v125
    %7013 = vmatmul.mubr.bf16.gmra.mxu0 %v124
    %v7014 = vpop.f32.mrf.mxu0
    %v7015 = vadd.f32 %v6974, %v7014
    %v7016 = vpop.f32.mrf.mxu0
    %v7017 = vadd.f32 %v6976, %v7016
    %v7018 = vpop.f32.mrf.mxu0
    %v7019 = vpop.f32.mrf.mxu0
    %7020 = vdwg.mxu0
    %7021 = vmatprep.subr.bf16.mxu0 %v4946
    %7022 = vmatpush1.bf16.msra.mxu0 %v4945
    %7023 = vmatprep.subr.bf16.mxu0 %v4926
    %7024 = vmatpush1.bf16.msra.mxu0 %v4925
    %7025 = vmatprep.subr.bf16.mxu0 %v4906
    %7026 = vmatpush1.bf16.msra.mxu0 %v4905
    %7027 = vmatprep.subr.bf16.mxu0 %v4886
    %7028 = vmatpush1.bf16.msra.mxu0 %v4885
    %7029 = vmatprep.subr.bf16.mxu0 %v4866
    %7030 = vmatpush1.bf16.msra.mxu0 %v4865
    %7031 = vmatprep.subr.bf16.mxu0 %v4846
    %7032 = vmatpush1.bf16.msra.mxu0 %v4845
    %7033 = vmatprep.subr.bf16.mxu0 %v4826
    %7034 = vmatpush1.bf16.msra.mxu0 %v4825
    %7035 = vmatprep.subr.bf16.mxu0 %v4806
    %7036 = vmatpush1.bf16.msra.mxu0 %v4805
    %7037 = vmatprep.subr.bf16.mxu0 %v5106
    %7038 = vmatpush2.bf16.msra.mxu0 %v5105
    %7039 = vmatprep.subr.bf16.mxu0 %v5086
    %7040 = vmatpush2.bf16.msra.mxu0 %v5085
    %7041 = vmatprep.subr.bf16.mxu0 %v5066
    %7042 = vmatpush2.bf16.msra.mxu0 %v5065
    %7043 = vmatprep.subr.bf16.mxu0 %v5046
    %7044 = vmatpush2.bf16.msra.mxu0 %v5045
    %7045 = vmatprep.subr.bf16.mxu0 %v5026
    %7046 = vmatpush2.bf16.msra.mxu0 %v5025
    %7047 = vmatprep.subr.bf16.mxu0 %v5006
    %7048 = vmatpush2.bf16.msra.mxu0 %v5005
    %7049 = vmatprep.subr.bf16.mxu0 %v4986
    %7050 = vmatpush2.bf16.msra.mxu0 %v4985
    %7051 = vmatprep.subr.bf16.mxu0 %v4966
    %7052 = vmatpush2.bf16.msra.mxu0 %v4965
    %7053 = vmatprep.mubr.bf16.mxu0 %v127
    %7054 = vmatmul.mubr.bf16.gmra.mxu0 %v126
    %v7055 = vpop.f32.mrf.mxu0
    %v7056 = vadd.f32 %v7015, %v7055
    %v7057 = vpop.f32.mrf.mxu0
    %v7058 = vadd.f32 %v7017, %v7057
    %v7059 = vpop.f32.mrf.mxu0
    %v7060 = vpop.f32.mrf.mxu0
    %7061 = vdwg.mxu0
    %7062 = vmatprep.subr.bf16.mxu0 0
    %7063 = vmatpush1.bf16.msra.mxu0 0
    %7064 = vmatprep.subr.bf16.mxu0 0
    %7065 = vmatpush1.bf16.msra.mxu0 0
    %7066 = vmatprep.subr.bf16.mxu0 0
    %7067 = vmatpush1.bf16.msra.mxu0 0
    %7068 = vmatprep.subr.bf16.mxu0 0
    %7069 = vmatpush1.bf16.msra.mxu0 0
    %7070 = vmatprep.subr.bf16.mxu0 0
    %7071 = vmatpush1.bf16.msra.mxu0 0
    %7072 = vmatprep.subr.bf16.mxu0 0
    %7073 = vmatpush1.bf16.msra.mxu0 0
    %7074 = vmatprep.subr.bf16.mxu0 0
    %7075 = vmatpush1.bf16.msra.mxu0 0
    %7076 = vmatprep.subr.bf16.mxu0 %v5126
    %7077 = vmatpush1.bf16.msra.mxu0 %v5125
    %7078 = vmatprep.subr.bf16.mxu0 0
    %7079 = vmatpush2.bf16.msra.mxu0 0
    %7080 = vmatprep.subr.bf16.mxu0 0
    %7081 = vmatpush2.bf16.msra.mxu0 0
    %7082 = vmatprep.subr.bf16.mxu0 0
    %7083 = vmatpush2.bf16.msra.mxu0 0
    %7084 = vmatprep.subr.bf16.mxu0 0
    %7085 = vmatpush2.bf16.msra.mxu0 0
    %7086 = vmatprep.subr.bf16.mxu0 0
    %7087 = vmatpush2.bf16.msra.mxu0 0
    %7088 = vmatprep.subr.bf16.mxu0 0
    %7089 = vmatpush2.bf16.msra.mxu0 0
    %7090 = vmatprep.subr.bf16.mxu0 0
    %7091 = vmatpush2.bf16.msra.mxu0 0
    %7092 = vmatprep.subr.bf16.mxu0 0
    %7093 = vmatpush2.bf16.msra.mxu0 0
    %7094 = vmatprep.mubr.bf16.mxu0 0
    %7095 = vmatmul.mubr.bf16.gmra.mxu0 %v6117
    %v7096 = vpop.f32.mrf.mxu0
    %v7097 = vadd.f32 %v7056, %v7096
    %v7098 = vpop.f32.mrf.mxu0
    %v7099 = vadd.f32 %v7058, %v7098
    %v7100 = vpop.f32.mrf.mxu0
    %v7101 = vpop.f32.mrf.mxu0
    %7102 = vdwg.mxu0
    %7103 = vmatprep.subr.bf16.mxu0 %v4308
    %7104 = vmatpush1.bf16.msra.mxu0 %v4307
    %7105 = vmatprep.subr.bf16.mxu0 %v4288
    %7106 = vmatpush1.bf16.msra.mxu0 %v4287
    %7107 = vmatprep.subr.bf16.mxu0 %v4268
    %7108 = vmatpush1.bf16.msra.mxu0 %v4267
    %7109 = vmatprep.subr.bf16.mxu0 %v4248
    %7110 = vmatpush1.bf16.msra.mxu0 %v4247
    %7111 = vmatprep.subr.bf16.mxu0 %v4228
    %7112 = vmatpush1.bf16.msra.mxu0 %v4227
    %7113 = vmatprep.subr.bf16.mxu0 %v4208
    %7114 = vmatpush1.bf16.msra.mxu0 %v4207
    %7115 = vmatprep.subr.bf16.mxu0 %v4188
    %7116 = vmatpush1.bf16.msra.mxu0 %v4187
    %7117 = vmatprep.subr.bf16.mxu0 %v4168
    %7118 = vmatpush1.bf16.msra.mxu0 %v4167
    %7119 = vmatprep.subr.bf16.mxu0 %v4468
    %7120 = vmatpush2.bf16.msra.mxu0 %v4467
    %7121 = vmatprep.subr.bf16.mxu0 %v4448
    %7122 = vmatpush2.bf16.msra.mxu0 %v4447
    %7123 = vmatprep.subr.bf16.mxu0 %v4428
    %7124 = vmatpush2.bf16.msra.mxu0 %v4427
    %7125 = vmatprep.subr.bf16.mxu0 %v4408
    %7126 = vmatpush2.bf16.msra.mxu0 %v4407
    %7127 = vmatprep.subr.bf16.mxu0 %v4388
    %7128 = vmatpush2.bf16.msra.mxu0 %v4387
    %7129 = vmatprep.subr.bf16.mxu0 %v4368
    %7130 = vmatpush2.bf16.msra.mxu0 %v4367
    %7131 = vmatprep.subr.bf16.mxu0 %v4348
    %7132 = vmatpush2.bf16.msra.mxu0 %v4347
    %7133 = vmatprep.subr.bf16.mxu0 %v4328
    %7134 = vmatpush2.bf16.msra.mxu0 %v4327
    %7135 = vmatprep.mubr.bf16.mxu0 %v123
    %7136 = vmatmul.mubr.bf16.gmra.mxu0 %v122
    %v7137 = vpop.f32.mrf.mxu0
    %v7138 = vadd.f32 %v1166, %v7137
    %v7139 = vpop.f32.mrf.mxu0
    %v7140 = vadd.f32 %v1170, %v7139
    %v7141 = vpop.f32.mrf.mxu0
    %v7142 = vpop.f32.mrf.mxu0
    %7143 = vdwg.mxu0
    %7144 = vmatprep.subr.bf16.mxu0 %v4628
    %7145 = vmatpush1.bf16.msra.mxu0 %v4627
    %7146 = vmatprep.subr.bf16.mxu0 %v4608
    %7147 = vmatpush1.bf16.msra.mxu0 %v4607
    %7148 = vmatprep.subr.bf16.mxu0 %v4588
    %7149 = vmatpush1.bf16.msra.mxu0 %v4587
    %7150 = vmatprep.subr.bf16.mxu0 %v4568
    %7151 = vmatpush1.bf16.msra.mxu0 %v4567
    %7152 = vmatprep.subr.bf16.mxu0 %v4548
    %7153 = vmatpush1.bf16.msra.mxu0 %v4547
    %7154 = vmatprep.subr.bf16.mxu0 %v4528
    %7155 = vmatpush1.bf16.msra.mxu0 %v4527
    %7156 = vmatprep.subr.bf16.mxu0 %v4508
    %7157 = vmatpush1.bf16.msra.mxu0 %v4507
    %7158 = vmatprep.subr.bf16.mxu0 %v4488
    %7159 = vmatpush1.bf16.msra.mxu0 %v4487
    %7160 = vmatprep.subr.bf16.mxu0 %v4788
    %7161 = vmatpush2.bf16.msra.mxu0 %v4787
    %7162 = vmatprep.subr.bf16.mxu0 %v4768
    %7163 = vmatpush2.bf16.msra.mxu0 %v4767
    %7164 = vmatprep.subr.bf16.mxu0 %v4748
    %7165 = vmatpush2.bf16.msra.mxu0 %v4747
    %7166 = vmatprep.subr.bf16.mxu0 %v4728
    %7167 = vmatpush2.bf16.msra.mxu0 %v4727
    %7168 = vmatprep.subr.bf16.mxu0 %v4708
    %7169 = vmatpush2.bf16.msra.mxu0 %v4707
    %7170 = vmatprep.subr.bf16.mxu0 %v4688
    %7171 = vmatpush2.bf16.msra.mxu0 %v4687
    %7172 = vmatprep.subr.bf16.mxu0 %v4668
    %7173 = vmatpush2.bf16.msra.mxu0 %v4667
    %7174 = vmatprep.subr.bf16.mxu0 %v4648
    %7175 = vmatpush2.bf16.msra.mxu0 %v4647
    %7176 = vmatprep.mubr.bf16.mxu0 %v125
    %7177 = vmatmul.mubr.bf16.gmra.mxu0 %v124
    %v7178 = vpop.f32.mrf.mxu0
    %v7179 = vadd.f32 %v7138, %v7178
    %v7180 = vpop.f32.mrf.mxu0
    %v7181 = vadd.f32 %v7140, %v7180
    %v7182 = vpop.f32.mrf.mxu0
    %v7183 = vpop.f32.mrf.mxu0
    %7184 = vdwg.mxu0
    %7185 = vmatprep.subr.bf16.mxu0 %v4948
    %7186 = vmatpush1.bf16.msra.mxu0 %v4947
    %7187 = vmatprep.subr.bf16.mxu0 %v4928
    %7188 = vmatpush1.bf16.msra.mxu0 %v4927
    %7189 = vmatprep.subr.bf16.mxu0 %v4908
    %7190 = vmatpush1.bf16.msra.mxu0 %v4907
    %7191 = vmatprep.subr.bf16.mxu0 %v4888
    %7192 = vmatpush1.bf16.msra.mxu0 %v4887
    %7193 = vmatprep.subr.bf16.mxu0 %v4868
    %7194 = vmatpush1.bf16.msra.mxu0 %v4867
    %7195 = vmatprep.subr.bf16.mxu0 %v4848
    %7196 = vmatpush1.bf16.msra.mxu0 %v4847
    %7197 = vmatprep.subr.bf16.mxu0 %v4828
    %7198 = vmatpush1.bf16.msra.mxu0 %v4827
    %7199 = vmatprep.subr.bf16.mxu0 %v4808
    %7200 = vmatpush1.bf16.msra.mxu0 %v4807
    %7201 = vmatprep.subr.bf16.mxu0 %v5108
    %7202 = vmatpush2.bf16.msra.mxu0 %v5107
    %7203 = vmatprep.subr.bf16.mxu0 %v5088
    %7204 = vmatpush2.bf16.msra.mxu0 %v5087
    %7205 = vmatprep.subr.bf16.mxu0 %v5068
    %7206 = vmatpush2.bf16.msra.mxu0 %v5067
    %7207 = vmatprep.subr.bf16.mxu0 %v5048
    %7208 = vmatpush2.bf16.msra.mxu0 %v5047
    %7209 = vmatprep.subr.bf16.mxu0 %v5028
    %7210 = vmatpush2.bf16.msra.mxu0 %v5027
    %7211 = vmatprep.subr.bf16.mxu0 %v5008
    %7212 = vmatpush2.bf16.msra.mxu0 %v5007
    %7213 = vmatprep.subr.bf16.mxu0 %v4988
    %7214 = vmatpush2.bf16.msra.mxu0 %v4987
    %7215 = vmatprep.subr.bf16.mxu0 %v4968
    %7216 = vmatpush2.bf16.msra.mxu0 %v4967
    %7217 = vmatprep.mubr.bf16.mxu0 %v127
    %7218 = vmatmul.mubr.bf16.gmra.mxu0 %v126
    %v7219 = vpop.f32.mrf.mxu0
    %v7220 = vadd.f32 %v7179, %v7219
    %v7221 = vpop.f32.mrf.mxu0
    %v7222 = vadd.f32 %v7181, %v7221
    %v7223 = vpop.f32.mrf.mxu0
    %v7224 = vpop.f32.mrf.mxu0
    %7225 = vdwg.mxu0
    %7226 = vmatprep.subr.bf16.mxu0 0
    %7227 = vmatpush1.bf16.msra.mxu0 0
    %7228 = vmatprep.subr.bf16.mxu0 0
    %7229 = vmatpush1.bf16.msra.mxu0 0
    %7230 = vmatprep.subr.bf16.mxu0 0
    %7231 = vmatpush1.bf16.msra.mxu0 0
    %7232 = vmatprep.subr.bf16.mxu0 0
    %7233 = vmatpush1.bf16.msra.mxu0 0
    %7234 = vmatprep.subr.bf16.mxu0 0
    %7235 = vmatpush1.bf16.msra.mxu0 0
    %7236 = vmatprep.subr.bf16.mxu0 0
    %7237 = vmatpush1.bf16.msra.mxu0 0
    %7238 = vmatprep.subr.bf16.mxu0 0
    %7239 = vmatpush1.bf16.msra.mxu0 0
    %7240 = vmatprep.subr.bf16.mxu0 %v5128
    %7241 = vmatpush1.bf16.msra.mxu0 %v5127
    %7242 = vmatprep.subr.bf16.mxu0 0
    %7243 = vmatpush2.bf16.msra.mxu0 0
    %7244 = vmatprep.subr.bf16.mxu0 0
    %7245 = vmatpush2.bf16.msra.mxu0 0
    %7246 = vmatprep.subr.bf16.mxu0 0
    %7247 = vmatpush2.bf16.msra.mxu0 0
    %7248 = vmatprep.subr.bf16.mxu0 0
    %7249 = vmatpush2.bf16.msra.mxu0 0
    %7250 = vmatprep.subr.bf16.mxu0 0
    %7251 = vmatpush2.bf16.msra.mxu0 0
    %7252 = vmatprep.subr.bf16.mxu0 0
    %7253 = vmatpush2.bf16.msra.mxu0 0
    %7254 = vmatprep.subr.bf16.mxu0 0
    %7255 = vmatpush2.bf16.msra.mxu0 0
    %7256 = vmatprep.subr.bf16.mxu0 0
    %7257 = vmatpush2.bf16.msra.mxu0 0
    %7258 = vmatprep.mubr.bf16.mxu0 0
    %7259 = vmatmul.mubr.bf16.gmra.mxu0 %v6117
    %v7260 = vpop.f32.mrf.mxu0
    %v7261 = vadd.f32 %v7220, %v7260
    %v7262 = vpop.f32.mrf.mxu0
    %v7263 = vadd.f32 %v7222, %v7262
    %v7264 = vpop.f32.mrf.mxu0
    %v7265 = vpop.f32.mrf.mxu0
    %7266 = vdwg.mxu0
    %7267 = vmatprep.subr.bf16.mxu0 %v4310
    %7268 = vmatpush1.bf16.msra.mxu0 %v4309
    %7269 = vmatprep.subr.bf16.mxu0 %v4290
    %7270 = vmatpush1.bf16.msra.mxu0 %v4289
    %7271 = vmatprep.subr.bf16.mxu0 %v4270
    %7272 = vmatpush1.bf16.msra.mxu0 %v4269
    %7273 = vmatprep.subr.bf16.mxu0 %v4250
    %7274 = vmatpush1.bf16.msra.mxu0 %v4249
    %7275 = vmatprep.subr.bf16.mxu0 %v4230
    %7276 = vmatpush1.bf16.msra.mxu0 %v4229
    %7277 = vmatprep.subr.bf16.mxu0 %v4210
    %7278 = vmatpush1.bf16.msra.mxu0 %v4209
    %7279 = vmatprep.subr.bf16.mxu0 %v4190
    %7280 = vmatpush1.bf16.msra.mxu0 %v4189
    %7281 = vmatprep.subr.bf16.mxu0 %v4170
    %7282 = vmatpush1.bf16.msra.mxu0 %v4169
    %7283 = vmatprep.subr.bf16.mxu0 %v4470
    %7284 = vmatpush2.bf16.msra.mxu0 %v4469
    %7285 = vmatprep.subr.bf16.mxu0 %v4450
    %7286 = vmatpush2.bf16.msra.mxu0 %v4449
    %7287 = vmatprep.subr.bf16.mxu0 %v4430
    %7288 = vmatpush2.bf16.msra.mxu0 %v4429
    %7289 = vmatprep.subr.bf16.mxu0 %v4410
    %7290 = vmatpush2.bf16.msra.mxu0 %v4409
    %7291 = vmatprep.subr.bf16.mxu0 %v4390
    %7292 = vmatpush2.bf16.msra.mxu0 %v4389
    %7293 = vmatprep.subr.bf16.mxu0 %v4370
    %7294 = vmatpush2.bf16.msra.mxu0 %v4369
    %7295 = vmatprep.subr.bf16.mxu0 %v4350
    %7296 = vmatpush2.bf16.msra.mxu0 %v4349
    %7297 = vmatprep.subr.bf16.mxu0 %v4330
    %7298 = vmatpush2.bf16.msra.mxu0 %v4329
    %7299 = vmatprep.mubr.bf16.mxu0 %v123
    %7300 = vmatmul.mubr.bf16.gmra.mxu0 %v122
    %v7301 = vpop.f32.mrf.mxu0
    %v7302 = vadd.f32 %v1174, %v7301
    %v7303 = vpop.f32.mrf.mxu0
    %v7304 = vadd.f32 %v1178, %v7303
    %v7305 = vpop.f32.mrf.mxu0
    %v7306 = vpop.f32.mrf.mxu0
    %7307 = vdwg.mxu0
    %7308 = vmatprep.subr.bf16.mxu0 %v4630
    %7309 = vmatpush1.bf16.msra.mxu0 %v4629
    %7310 = vmatprep.subr.bf16.mxu0 %v4610
    %7311 = vmatpush1.bf16.msra.mxu0 %v4609
    %7312 = vmatprep.subr.bf16.mxu0 %v4590
    %7313 = vmatpush1.bf16.msra.mxu0 %v4589
    %7314 = vmatprep.subr.bf16.mxu0 %v4570
    %7315 = vmatpush1.bf16.msra.mxu0 %v4569
    %7316 = vmatprep.subr.bf16.mxu0 %v4550
    %7317 = vmatpush1.bf16.msra.mxu0 %v4549
    %7318 = vmatprep.subr.bf16.mxu0 %v4530
    %7319 = vmatpush1.bf16.msra.mxu0 %v4529
    %7320 = vmatprep.subr.bf16.mxu0 %v4510
    %7321 = vmatpush1.bf16.msra.mxu0 %v4509
    %7322 = vmatprep.subr.bf16.mxu0 %v4490
    %7323 = vmatpush1.bf16.msra.mxu0 %v4489
    %7324 = vmatprep.subr.bf16.mxu0 %v4790
    %7325 = vmatpush2.bf16.msra.mxu0 %v4789
    %7326 = vmatprep.subr.bf16.mxu0 %v4770
    %7327 = vmatpush2.bf16.msra.mxu0 %v4769
    %7328 = vmatprep.subr.bf16.mxu0 %v4750
    %7329 = vmatpush2.bf16.msra.mxu0 %v4749
    %7330 = vmatprep.subr.bf16.mxu0 %v4730
    %7331 = vmatpush2.bf16.msra.mxu0 %v4729
    %7332 = vmatprep.subr.bf16.mxu0 %v4710
    %7333 = vmatpush2.bf16.msra.mxu0 %v4709
    %7334 = vmatprep.subr.bf16.mxu0 %v4690
    %7335 = vmatpush2.bf16.msra.mxu0 %v4689
    %7336 = vmatprep.subr.bf16.mxu0 %v4670
    %7337 = vmatpush2.bf16.msra.mxu0 %v4669
    %7338 = vmatprep.subr.bf16.mxu0 %v4650
    %7339 = vmatpush2.bf16.msra.mxu0 %v4649
    %7340 = vmatprep.mubr.bf16.mxu0 %v125
    %7341 = vmatmul.mubr.bf16.gmra.mxu0 %v124
    %v7342 = vpop.f32.mrf.mxu0
    %v7343 = vadd.f32 %v7302, %v7342
    %v7344 = vpop.f32.mrf.mxu0
    %v7345 = vadd.f32 %v7304, %v7344
    %v7346 = vpop.f32.mrf.mxu0
    %v7347 = vpop.f32.mrf.mxu0
    %7348 = vdwg.mxu0
    %7349 = vmatprep.subr.bf16.mxu0 %v4950
    %7350 = vmatpush1.bf16.msra.mxu0 %v4949
    %7351 = vmatprep.subr.bf16.mxu0 %v4930
    %7352 = vmatpush1.bf16.msra.mxu0 %v4929
    %7353 = vmatprep.subr.bf16.mxu0 %v4910
    %7354 = vmatpush1.bf16.msra.mxu0 %v4909
    %7355 = vmatprep.subr.bf16.mxu0 %v4890
    %7356 = vmatpush1.bf16.msra.mxu0 %v4889
    %7357 = vmatprep.subr.bf16.mxu0 %v4870
    %7358 = vmatpush1.bf16.msra.mxu0 %v4869
    %7359 = vmatprep.subr.bf16.mxu0 %v4850
    %7360 = vmatpush1.bf16.msra.mxu0 %v4849
    %7361 = vmatprep.subr.bf16.mxu0 %v4830
    %7362 = vmatpush1.bf16.msra.mxu0 %v4829
    %7363 = vmatprep.subr.bf16.mxu0 %v4810
    %7364 = vmatpush1.bf16.msra.mxu0 %v4809
    %7365 = vmatprep.subr.bf16.mxu0 %v5110
    %7366 = vmatpush2.bf16.msra.mxu0 %v5109
    %7367 = vmatprep.subr.bf16.mxu0 %v5090
    %7368 = vmatpush2.bf16.msra.mxu0 %v5089
    %7369 = vmatprep.subr.bf16.mxu0 %v5070
    %7370 = vmatpush2.bf16.msra.mxu0 %v5069
    %7371 = vmatprep.subr.bf16.mxu0 %v5050
    %7372 = vmatpush2.bf16.msra.mxu0 %v5049
    %7373 = vmatprep.subr.bf16.mxu0 %v5030
    %7374 = vmatpush2.bf16.msra.mxu0 %v5029
    %7375 = vmatprep.subr.bf16.mxu0 %v5010
    %7376 = vmatpush2.bf16.msra.mxu0 %v5009
    %7377 = vmatprep.subr.bf16.mxu0 %v4990
    %7378 = vmatpush2.bf16.msra.mxu0 %v4989
    %7379 = vmatprep.subr.bf16.mxu0 %v4970
    %7380 = vmatpush2.bf16.msra.mxu0 %v4969
    %7381 = vmatprep.mubr.bf16.mxu0 %v127
    %7382 = vmatmul.mubr.bf16.gmra.mxu0 %v126
    %v7383 = vpop.f32.mrf.mxu0
    %v7384 = vadd.f32 %v7343, %v7383
    %v7385 = vpop.f32.mrf.mxu0
    %v7386 = vadd.f32 %v7345, %v7385
    %v7387 = vpop.f32.mrf.mxu0
    %v7388 = vpop.f32.mrf.mxu0
    %7389 = vdwg.mxu0
    %7390 = vmatprep.subr.bf16.mxu0 0
    %7391 = vmatpush1.bf16.msra.mxu0 0
    %7392 = vmatprep.subr.bf16.mxu0 0
    %7393 = vmatpush1.bf16.msra.mxu0 0
    %7394 = vmatprep.subr.bf16.mxu0 0
    %7395 = vmatpush1.bf16.msra.mxu0 0
    %7396 = vmatprep.subr.bf16.mxu0 0
    %7397 = vmatpush1.bf16.msra.mxu0 0
    %7398 = vmatprep.subr.bf16.mxu0 0
    %7399 = vmatpush1.bf16.msra.mxu0 0
    %7400 = vmatprep.subr.bf16.mxu0 0
    %7401 = vmatpush1.bf16.msra.mxu0 0
    %7402 = vmatprep.subr.bf16.mxu0 0
    %7403 = vmatpush1.bf16.msra.mxu0 0
    %7404 = vmatprep.subr.bf16.mxu0 %v5130
    %7405 = vmatpush1.bf16.msra.mxu0 %v5129
    %7406 = vmatprep.subr.bf16.mxu0 0
    %7407 = vmatpush2.bf16.msra.mxu0 0
    %7408 = vmatprep.subr.bf16.mxu0 0
    %7409 = vmatpush2.bf16.msra.mxu0 0
    %7410 = vmatprep.subr.bf16.mxu0 0
    %7411 = vmatpush2.bf16.msra.mxu0 0
    %7412 = vmatprep.subr.bf16.mxu0 0
    %7413 = vmatpush2.bf16.msra.mxu0 0
    %7414 = vmatprep.subr.bf16.mxu0 0
    %7415 = vmatpush2.bf16.msra.mxu0 0
    %7416 = vmatprep.subr.bf16.mxu0 0
    %7417 = vmatpush2.bf16.msra.mxu0 0
    %7418 = vmatprep.subr.bf16.mxu0 0
    %7419 = vmatpush2.bf16.msra.mxu0 0
    %7420 = vmatprep.subr.bf16.mxu0 0
    %7421 = vmatpush2.bf16.msra.mxu0 0
    %7422 = vmatprep.mubr.bf16.mxu0 0
    %7423 = vmatmul.mubr.bf16.gmra.mxu0 %v6117
    %v7424 = vpop.f32.mrf.mxu0
    %v7425 = vadd.f32 %v7384, %v7424
    %v7426 = vpop.f32.mrf.mxu0
    %v7427 = vadd.f32 %v7386, %v7426
    %v7428 = vpop.f32.mrf.mxu0
    %v7429 = vpop.f32.mrf.mxu0
    %7430 = vdwg.mxu0
    %7431 = vmatprep.subr.bf16.mxu0 %v4312
    %7432 = vmatpush1.bf16.msra.mxu0 %v4311
    %7433 = vmatprep.subr.bf16.mxu0 %v4292
    %7434 = vmatpush1.bf16.msra.mxu0 %v4291
    %7435 = vmatprep.subr.bf16.mxu0 %v4272
    %7436 = vmatpush1.bf16.msra.mxu0 %v4271
    %7437 = vmatprep.subr.bf16.mxu0 %v4252
    %7438 = vmatpush1.bf16.msra.mxu0 %v4251
    %7439 = vmatprep.subr.bf16.mxu0 %v4232
    %7440 = vmatpush1.bf16.msra.mxu0 %v4231
    %7441 = vmatprep.subr.bf16.mxu0 %v4212
    %7442 = vmatpush1.bf16.msra.mxu0 %v4211
    %7443 = vmatprep.subr.bf16.mxu0 %v4192
    %7444 = vmatpush1.bf16.msra.mxu0 %v4191
    %7445 = vmatprep.subr.bf16.mxu0 %v4172
    %7446 = vmatpush1.bf16.msra.mxu0 %v4171
    %7447 = vmatprep.subr.bf16.mxu0 %v4472
    %7448 = vmatpush2.bf16.msra.mxu0 %v4471
    %7449 = vmatprep.subr.bf16.mxu0 %v4452
    %7450 = vmatpush2.bf16.msra.mxu0 %v4451
    %7451 = vmatprep.subr.bf16.mxu0 %v4432
    %7452 = vmatpush2.bf16.msra.mxu0 %v4431
    %7453 = vmatprep.subr.bf16.mxu0 %v4412
    %7454 = vmatpush2.bf16.msra.mxu0 %v4411
    %7455 = vmatprep.subr.bf16.mxu0 %v4392
    %7456 = vmatpush2.bf16.msra.mxu0 %v4391
    %7457 = vmatprep.subr.bf16.mxu0 %v4372
    %7458 = vmatpush2.bf16.msra.mxu0 %v4371
    %7459 = vmatprep.subr.bf16.mxu0 %v4352
    %7460 = vmatpush2.bf16.msra.mxu0 %v4351
    %7461 = vmatprep.subr.bf16.mxu0 %v4332
    %7462 = vmatpush2.bf16.msra.mxu0 %v4331
    %7463 = vmatprep.mubr.bf16.mxu0 %v123
    %7464 = vmatmul.mubr.bf16.gmra.mxu0 %v122
    %v7465 = vpop.f32.mrf.mxu0
    %v7466 = vadd.f32 %v1182, %v7465
    %v7467 = vpop.f32.mrf.mxu0
    %v7468 = vadd.f32 %v1186, %v7467
    %v7469 = vpop.f32.mrf.mxu0
    %v7470 = vpop.f32.mrf.mxu0
    %7471 = vdwg.mxu0
    %7472 = vmatprep.subr.bf16.mxu0 %v4632
    %7473 = vmatpush1.bf16.msra.mxu0 %v4631
    %7474 = vmatprep.subr.bf16.mxu0 %v4612
    %7475 = vmatpush1.bf16.msra.mxu0 %v4611
    %7476 = vmatprep.subr.bf16.mxu0 %v4592
    %7477 = vmatpush1.bf16.msra.mxu0 %v4591
    %7478 = vmatprep.subr.bf16.mxu0 %v4572
    %7479 = vmatpush1.bf16.msra.mxu0 %v4571
    %7480 = vmatprep.subr.bf16.mxu0 %v4552
    %7481 = vmatpush1.bf16.msra.mxu0 %v4551
    %7482 = vmatprep.subr.bf16.mxu0 %v4532
    %7483 = vmatpush1.bf16.msra.mxu0 %v4531
    %7484 = vmatprep.subr.bf16.mxu0 %v4512
    %7485 = vmatpush1.bf16.msra.mxu0 %v4511
    %7486 = vmatprep.subr.bf16.mxu0 %v4492
    %7487 = vmatpush1.bf16.msra.mxu0 %v4491
    %7488 = vmatprep.subr.bf16.mxu0 %v4792
    %7489 = vmatpush2.bf16.msra.mxu0 %v4791
    %7490 = vmatprep.subr.bf16.mxu0 %v4772
    %7491 = vmatpush2.bf16.msra.mxu0 %v4771
    %7492 = vmatprep.subr.bf16.mxu0 %v4752
    %7493 = vmatpush2.bf16.msra.mxu0 %v4751
    %7494 = vmatprep.subr.bf16.mxu0 %v4732
    %7495 = vmatpush2.bf16.msra.mxu0 %v4731
    %7496 = vmatprep.subr.bf16.mxu0 %v4712
    %7497 = vmatpush2.bf16.msra.mxu0 %v4711
    %7498 = vmatprep.subr.bf16.mxu0 %v4692
    %7499 = vmatpush2.bf16.msra.mxu0 %v4691
    %7500 = vmatprep.subr.bf16.mxu0 %v4672
    %7501 = vmatpush2.bf16.msra.mxu0 %v4671
    %7502 = vmatprep.subr.bf16.mxu0 %v4652
    %7503 = vmatpush2.bf16.msra.mxu0 %v4651
    %7504 = vmatprep.mubr.bf16.mxu0 %v125
    %7505 = vmatmul.mubr.bf16.gmra.mxu0 %v124
    %v7506 = vpop.f32.mrf.mxu0
    %v7507 = vadd.f32 %v7466, %v7506
    %v7508 = vpop.f32.mrf.mxu0
    %v7509 = vadd.f32 %v7468, %v7508
    %v7510 = vpop.f32.mrf.mxu0
    %v7511 = vpop.f32.mrf.mxu0
    %7512 = vdwg.mxu0
    %7513 = vmatprep.subr.bf16.mxu0 %v4952
    %7514 = vmatpush1.bf16.msra.mxu0 %v4951
    %7515 = vmatprep.subr.bf16.mxu0 %v4932
    %7516 = vmatpush1.bf16.msra.mxu0 %v4931
    %7517 = vmatprep.subr.bf16.mxu0 %v4912
    %7518 = vmatpush1.bf16.msra.mxu0 %v4911
    %7519 = vmatprep.subr.bf16.mxu0 %v4892
    %7520 = vmatpush1.bf16.msra.mxu0 %v4891
    %7521 = vmatprep.subr.bf16.mxu0 %v4872
    %7522 = vmatpush1.bf16.msra.mxu0 %v4871
    %7523 = vmatprep.subr.bf16.mxu0 %v4852
    %7524 = vmatpush1.bf16.msra.mxu0 %v4851
    %7525 = vmatprep.subr.bf16.mxu0 %v4832
    %7526 = vmatpush1.bf16.msra.mxu0 %v4831
    %7527 = vmatprep.subr.bf16.mxu0 %v4812
    %7528 = vmatpush1.bf16.msra.mxu0 %v4811
    %7529 = vmatprep.subr.bf16.mxu0 %v5112
    %7530 = vmatpush2.bf16.msra.mxu0 %v5111
    %7531 = vmatprep.subr.bf16.mxu0 %v5092
    %7532 = vmatpush2.bf16.msra.mxu0 %v5091
    %7533 = vmatprep.subr.bf16.mxu0 %v5072
    %7534 = vmatpush2.bf16.msra.mxu0 %v5071
    %7535 = vmatprep.subr.bf16.mxu0 %v5052
    %7536 = vmatpush2.bf16.msra.mxu0 %v5051
    %7537 = vmatprep.subr.bf16.mxu0 %v5032
    %7538 = vmatpush2.bf16.msra.mxu0 %v5031
    %7539 = vmatprep.subr.bf16.mxu0 %v5012
    %7540 = vmatpush2.bf16.msra.mxu0 %v5011
    %7541 = vmatprep.subr.bf16.mxu0 %v4992
    %7542 = vmatpush2.bf16.msra.mxu0 %v4991
    %7543 = vmatprep.subr.bf16.mxu0 %v4972
    %7544 = vmatpush2.bf16.msra.mxu0 %v4971
    %7545 = vmatprep.mubr.bf16.mxu0 %v127
    %7546 = vmatmul.mubr.bf16.gmra.mxu0 %v126
    %v7547 = vpop.f32.mrf.mxu0
    %v7548 = vadd.f32 %v7507, %v7547
    %v7549 = vpop.f32.mrf.mxu0
    %v7550 = vadd.f32 %v7509, %v7549
    %v7551 = vpop.f32.mrf.mxu0
    %v7552 = vpop.f32.mrf.mxu0
    %7553 = vdwg.mxu0
    %7554 = vmatprep.subr.bf16.mxu0 0
    %7555 = vmatpush1.bf16.msra.mxu0 0
    %7556 = vmatprep.subr.bf16.mxu0 0
    %7557 = vmatpush1.bf16.msra.mxu0 0
    %7558 = vmatprep.subr.bf16.mxu0 0
    %7559 = vmatpush1.bf16.msra.mxu0 0
    %7560 = vmatprep.subr.bf16.mxu0 0
    %7561 = vmatpush1.bf16.msra.mxu0 0
    %7562 = vmatprep.subr.bf16.mxu0 0
    %7563 = vmatpush1.bf16.msra.mxu0 0
    %7564 = vmatprep.subr.bf16.mxu0 0
    %7565 = vmatpush1.bf16.msra.mxu0 0
    %7566 = vmatprep.subr.bf16.mxu0 0
    %7567 = vmatpush1.bf16.msra.mxu0 0
    %7568 = vmatprep.subr.bf16.mxu0 %v5132
    %7569 = vmatpush1.bf16.msra.mxu0 %v5131
    %7570 = vmatprep.subr.bf16.mxu0 0
    %7571 = vmatpush2.bf16.msra.mxu0 0
    %7572 = vmatprep.subr.bf16.mxu0 0
    %7573 = vmatpush2.bf16.msra.mxu0 0
    %7574 = vmatprep.subr.bf16.mxu0 0
    %7575 = vmatpush2.bf16.msra.mxu0 0
    %7576 = vmatprep.subr.bf16.mxu0 0
    %7577 = vmatpush2.bf16.msra.mxu0 0
    %7578 = vmatprep.subr.bf16.mxu0 0
    %7579 = vmatpush2.bf16.msra.mxu0 0
    %7580 = vmatprep.subr.bf16.mxu0 0
    %7581 = vmatpush2.bf16.msra.mxu0 0
    %7582 = vmatprep.subr.bf16.mxu0 0
    %7583 = vmatpush2.bf16.msra.mxu0 0
    %7584 = vmatprep.subr.bf16.mxu0 0
    %7585 = vmatpush2.bf16.msra.mxu0 0
    %7586 = vmatprep.mubr.bf16.mxu0 0
    %7587 = vmatmul.mubr.bf16.gmra.mxu0 %v6117
    %v7588 = vpop.f32.mrf.mxu0
    %v7589 = vadd.f32 %v7548, %v7588
    %v7590 = vpop.f32.mrf.mxu0
    %v7591 = vadd.f32 %v7550, %v7590
    %v7592 = vpop.f32.mrf.mxu0
    %v7593 = vpop.f32.mrf.mxu0
    %7594 = vdwg.mxu0
    %7595 = vmatprep.subr.bf16.mxu0 %v4314
    %7596 = vmatpush1.bf16.msra.mxu0 %v4313
    %7597 = vmatprep.subr.bf16.mxu0 %v4294
    %7598 = vmatpush1.bf16.msra.mxu0 %v4293
    %7599 = vmatprep.subr.bf16.mxu0 %v4274
    %7600 = vmatpush1.bf16.msra.mxu0 %v4273
    %7601 = vmatprep.subr.bf16.mxu0 %v4254
    %7602 = vmatpush1.bf16.msra.mxu0 %v4253
    %7603 = vmatprep.subr.bf16.mxu0 %v4234
    %7604 = vmatpush1.bf16.msra.mxu0 %v4233
    %7605 = vmatprep.subr.bf16.mxu0 %v4214
    %7606 = vmatpush1.bf16.msra.mxu0 %v4213
    %7607 = vmatprep.subr.bf16.mxu0 %v4194
    %7608 = vmatpush1.bf16.msra.mxu0 %v4193
    %7609 = vmatprep.subr.bf16.mxu0 %v4174
    %7610 = vmatpush1.bf16.msra.mxu0 %v4173
    %7611 = vmatprep.subr.bf16.mxu0 %v4474
    %7612 = vmatpush2.bf16.msra.mxu0 %v4473
    %7613 = vmatprep.subr.bf16.mxu0 %v4454
    %7614 = vmatpush2.bf16.msra.mxu0 %v4453
    %7615 = vmatprep.subr.bf16.mxu0 %v4434
    %7616 = vmatpush2.bf16.msra.mxu0 %v4433
    %7617 = vmatprep.subr.bf16.mxu0 %v4414
    %7618 = vmatpush2.bf16.msra.mxu0 %v4413
    %7619 = vmatprep.subr.bf16.mxu0 %v4394
    %7620 = vmatpush2.bf16.msra.mxu0 %v4393
    %7621 = vmatprep.subr.bf16.mxu0 %v4374
    %7622 = vmatpush2.bf16.msra.mxu0 %v4373
    %7623 = vmatprep.subr.bf16.mxu0 %v4354
    %7624 = vmatpush2.bf16.msra.mxu0 %v4353
    %7625 = vmatprep.subr.bf16.mxu0 %v4334
    %7626 = vmatpush2.bf16.msra.mxu0 %v4333
    %7627 = vmatprep.mubr.bf16.mxu0 %v123
    %7628 = vmatmul.mubr.bf16.gmra.mxu0 %v122
    %v7629 = vpop.f32.mrf.mxu0
    %v7630 = vadd.f32 %v1190, %v7629
    %v7631 = vpop.f32.mrf.mxu0
    %v7632 = vadd.f32 %v1194, %v7631
    %v7633 = vpop.f32.mrf.mxu0
    %v7634 = vpop.f32.mrf.mxu0
    %7635 = vdwg.mxu0
    %7636 = vmatprep.subr.bf16.mxu0 %v4634
    %7637 = vmatpush1.bf16.msra.mxu0 %v4633
    %7638 = vmatprep.subr.bf16.mxu0 %v4614
    %7639 = vmatpush1.bf16.msra.mxu0 %v4613
    %7640 = vmatprep.subr.bf16.mxu0 %v4594
    %7641 = vmatpush1.bf16.msra.mxu0 %v4593
    %7642 = vmatprep.subr.bf16.mxu0 %v4574
    %7643 = vmatpush1.bf16.msra.mxu0 %v4573
    %7644 = vmatprep.subr.bf16.mxu0 %v4554
    %7645 = vmatpush1.bf16.msra.mxu0 %v4553
    %7646 = vmatprep.subr.bf16.mxu0 %v4534
    %7647 = vmatpush1.bf16.msra.mxu0 %v4533
    %7648 = vmatprep.subr.bf16.mxu0 %v4514
    %7649 = vmatpush1.bf16.msra.mxu0 %v4513
    %7650 = vmatprep.subr.bf16.mxu0 %v4494
    %7651 = vmatpush1.bf16.msra.mxu0 %v4493
    %7652 = vmatprep.subr.bf16.mxu0 %v4794
    %7653 = vmatpush2.bf16.msra.mxu0 %v4793
    %7654 = vmatprep.subr.bf16.mxu0 %v4774
    %7655 = vmatpush2.bf16.msra.mxu0 %v4773
    %7656 = vmatprep.subr.bf16.mxu0 %v4754
    %7657 = vmatpush2.bf16.msra.mxu0 %v4753
    %7658 = vmatprep.subr.bf16.mxu0 %v4734
    %7659 = vmatpush2.bf16.msra.mxu0 %v4733
    %7660 = vmatprep.subr.bf16.mxu0 %v4714
    %7661 = vmatpush2.bf16.msra.mxu0 %v4713
    %7662 = vmatprep.subr.bf16.mxu0 %v4694
    %7663 = vmatpush2.bf16.msra.mxu0 %v4693
    %7664 = vmatprep.subr.bf16.mxu0 %v4674
    %7665 = vmatpush2.bf16.msra.mxu0 %v4673
    %7666 = vmatprep.subr.bf16.mxu0 %v4654
    %7667 = vmatpush2.bf16.msra.mxu0 %v4653
    %7668 = vmatprep.mubr.bf16.mxu0 %v125
    %7669 = vmatmul.mubr.bf16.gmra.mxu0 %v124
    %v7670 = vpop.f32.mrf.mxu0
    %v7671 = vadd.f32 %v7630, %v7670
    %v7672 = vpop.f32.mrf.mxu0
    %v7673 = vadd.f32 %v7632, %v7672
    %v7674 = vpop.f32.mrf.mxu0
    %v7675 = vpop.f32.mrf.mxu0
    %7676 = vdwg.mxu0
    %7677 = vmatprep.subr.bf16.mxu0 %v4954
    %7678 = vmatpush1.bf16.msra.mxu0 %v4953
    %7679 = vmatprep.subr.bf16.mxu0 %v4934
    %7680 = vmatpush1.bf16.msra.mxu0 %v4933
    %7681 = vmatprep.subr.bf16.mxu0 %v4914
    %7682 = vmatpush1.bf16.msra.mxu0 %v4913
    %7683 = vmatprep.subr.bf16.mxu0 %v4894
    %7684 = vmatpush1.bf16.msra.mxu0 %v4893
    %7685 = vmatprep.subr.bf16.mxu0 %v4874
    %7686 = vmatpush1.bf16.msra.mxu0 %v4873
    %7687 = vmatprep.subr.bf16.mxu0 %v4854
    %7688 = vmatpush1.bf16.msra.mxu0 %v4853
    %7689 = vmatprep.subr.bf16.mxu0 %v4834
    %7690 = vmatpush1.bf16.msra.mxu0 %v4833
    %7691 = vmatprep.subr.bf16.mxu0 %v4814
    %7692 = vmatpush1.bf16.msra.mxu0 %v4813
    %7693 = vmatprep.subr.bf16.mxu0 %v5114
    %7694 = vmatpush2.bf16.msra.mxu0 %v5113
    %7695 = vmatprep.subr.bf16.mxu0 %v5094
    %7696 = vmatpush2.bf16.msra.mxu0 %v5093
    %7697 = vmatprep.subr.bf16.mxu0 %v5074
    %7698 = vmatpush2.bf16.msra.mxu0 %v5073
    %7699 = vmatprep.subr.bf16.mxu0 %v5054
    %7700 = vmatpush2.bf16.msra.mxu0 %v5053
    %7701 = vmatprep.subr.bf16.mxu0 %v5034
    %7702 = vmatpush2.bf16.msra.mxu0 %v5033
    %7703 = vmatprep.subr.bf16.mxu0 %v5014
    %7704 = vmatpush2.bf16.msra.mxu0 %v5013
    %7705 = vmatprep.subr.bf16.mxu0 %v4994
    %7706 = vmatpush2.bf16.msra.mxu0 %v4993
    %7707 = vmatprep.subr.bf16.mxu0 %v4974
    %7708 = vmatpush2.bf16.msra.mxu0 %v4973
    %7709 = vmatprep.mubr.bf16.mxu0 %v127
    %7710 = vmatmul.mubr.bf16.gmra.mxu0 %v126
    %v7711 = vpop.f32.mrf.mxu0
    %v7712 = vadd.f32 %v7671, %v7711
    %v7713 = vpop.f32.mrf.mxu0
    %v7714 = vadd.f32 %v7673, %v7713
    %v7715 = vpop.f32.mrf.mxu0
    %v7716 = vpop.f32.mrf.mxu0
    %7717 = vdwg.mxu0
    %7718 = vmatprep.subr.bf16.mxu0 0
    %7719 = vmatpush1.bf16.msra.mxu0 0
    %7720 = vmatprep.subr.bf16.mxu0 0
    %7721 = vmatpush1.bf16.msra.mxu0 0
    %7722 = vmatprep.subr.bf16.mxu0 0
    %7723 = vmatpush1.bf16.msra.mxu0 0
    %7724 = vmatprep.subr.bf16.mxu0 0
    %7725 = vmatpush1.bf16.msra.mxu0 0
    %7726 = vmatprep.subr.bf16.mxu0 0
    %7727 = vmatpush1.bf16.msra.mxu0 0
    %7728 = vmatprep.subr.bf16.mxu0 0
    %7729 = vmatpush1.bf16.msra.mxu0 0
    %7730 = vmatprep.subr.bf16.mxu0 0
    %7731 = vmatpush1.bf16.msra.mxu0 0
    %7732 = vmatprep.subr.bf16.mxu0 %v5134
    %7733 = vmatpush1.bf16.msra.mxu0 %v5133
    %7734 = vmatprep.subr.bf16.mxu0 0
    %7735 = vmatpush2.bf16.msra.mxu0 0
    %7736 = vmatprep.subr.bf16.mxu0 0
    %7737 = vmatpush2.bf16.msra.mxu0 0
    %7738 = vmatprep.subr.bf16.mxu0 0
    %7739 = vmatpush2.bf16.msra.mxu0 0
    %7740 = vmatprep.subr.bf16.mxu0 0
    %7741 = vmatpush2.bf16.msra.mxu0 0
    %7742 = vmatprep.subr.bf16.mxu0 0
    %7743 = vmatpush2.bf16.msra.mxu0 0
    %7744 = vmatprep.subr.bf16.mxu0 0
    %7745 = vmatpush2.bf16.msra.mxu0 0
    %7746 = vmatprep.subr.bf16.mxu0 0
    %7747 = vmatpush2.bf16.msra.mxu0 0
    %7748 = vmatprep.subr.bf16.mxu0 0
    %7749 = vmatpush2.bf16.msra.mxu0 0
    %7750 = vmatprep.mubr.bf16.mxu0 0
    %7751 = vmatmul.mubr.bf16.gmra.mxu0 %v6117
    %v7752 = vpop.f32.mrf.mxu0
    %v7753 = vadd.f32 %v7712, %v7752
    %v7754 = vpop.f32.mrf.mxu0
    %v7755 = vadd.f32 %v7714, %v7754
    %v7756 = vpop.f32.mrf.mxu0
    %v7757 = vpop.f32.mrf.mxu0
    %7758 = vdwg.mxu0
    %v7759 = vmax.f32 %v6277, 0.0
    %v7760 = vmax.f32 %v6279, 0.0
    %v7761 = vmax.f32 %v6441, 0.0
    %v7762 = vmax.f32 %v6443, 0.0
    %v7763 = vmax.f32 %v6605, 0.0
    %v7764 = vmax.f32 %v6607, 0.0
    %v7765 = vmax.f32 %v6769, 0.0
    %v7766 = vmax.f32 %v6771, 0.0
    %v7767 = vmax.f32 %v6933, 0.0
    %v7768 = vmax.f32 %v6935, 0.0
    %v7769 = vmax.f32 %v7097, 0.0
    %v7770 = vmax.f32 %v7099, 0.0
    %v7771 = vmax.f32 %v7261, 0.0
    %v7772 = vmax.f32 %v7263, 0.0
    %v7773 = vmax.f32 %v7425, 0.0
    %v7774 = vmax.f32 %v7427, 0.0
    %v7775 = vmax.f32 %v7589, 0.0
    %v7776 = vmax.f32 %v7591, 0.0
    %v7777 = vmax.f32 %v7753, 0.0
    %v7778 = vmax.f32 %v7755, 0.0
    %v7779 = vpack.c.bf16 %v7759, %v7759
    %v7780 = vpack.c.bf16 %v7760, %v7760
    %v7781 = vpack.c.bf16 %v7761, %v7761
    %v7782 = vpack.c.bf16 %v7762, %v7762
    %v7783 = vpack.c.bf16 %v7763, %v7763
    %v7784 = vpack.c.bf16 %v7764, %v7764
    %v7785 = vpack.c.bf16 %v7765, %v7765
    %v7786 = vpack.c.bf16 %v7766, %v7766
    %v7787 = vpack.c.bf16 %v7767, %v7767
    %v7788 = vpack.c.bf16 %v7768, %v7768
    %v7789 = vpack.c.bf16 %v7769, %v7769
    %v7790 = vpack.c.bf16 %v7770, %v7770
    %v7791 = vpack.c.bf16 %v7771, %v7771
    %v7792 = vpack.c.bf16 %v7772, %v7772
    %v7793 = vpack.c.bf16 %v7773, %v7773
    %v7794 = vpack.c.bf16 %v7774, %v7774
    %v7795 = vpack.c.bf16 %v7775, %v7775
    %v7796 = vpack.c.bf16 %v7776, %v7776
    %v7797 = vpack.c.bf16 %v7777, %v7777
    %v7798 = vpack.c.bf16 %v7778, %v7778
    %v7819 = vunpack.c.l.b16 %v7779
    %v7820 = vunpack.c.l.b16 %v7780
    %v7821 = vunpack.c.l.b16 %v7781
    %v7822 = vunpack.c.l.b16 %v7782
    %v7823 = vunpack.c.l.b16 %v7783
    %v7824 = vunpack.c.l.b16 %v7784
    %v7825 = vunpack.c.l.b16 %v7785
    %v7826 = vunpack.c.l.b16 %v7786
    %v7827 = vunpack.c.l.b16 %v7787
    %v7828 = vunpack.c.l.b16 %v7788
    %v7829 = vunpack.c.l.b16 %v7789
    %v7830 = vunpack.c.l.b16 %v7790
    %v7831 = vunpack.c.l.b16 %v7791
    %v7832 = vunpack.c.l.b16 %v7792
    %v7833 = vunpack.c.l.b16 %v7793
    %v7834 = vunpack.c.l.b16 %v7794
    %v7835 = vunpack.c.l.b16 %v7795
    %v7836 = vunpack.c.l.b16 %v7796
    %v7837 = vunpack.c.l.b16 %v7797
    %v7838 = vunpack.c.l.b16 %v7798
    %v7839 = vpack.c.b16 %v7820, %v7819
    %v7840 = vpack.c.b16 %v7822, %v7821
    %v7841 = vpack.c.b16 %v7824, %v7823
    %v7842 = vpack.c.b16 %v7826, %v7825
    %v7843 = vpack.c.b16 %v7828, %v7827
    %v7844 = vpack.c.b16 %v7830, %v7829
    %v7845 = vpack.c.b16 %v7832, %v7831
    %v7846 = vpack.c.b16 %v7834, %v7833
    %v7847 = vpack.c.b16 %v7836, %v7835
    %v7848 = vpack.c.b16 %v7838, %v7837
    %7859 = vst [vmem:[#allocation2] sm:$0xff] %v7839
    %7860 = vst [vmem:[#allocation2 + $0x8] sm:$0xff] %v7840
    %7861 = vst [vmem:[#allocation2 + $0x10] sm:$0xff] %v7841
    %7862 = vst [vmem:[#allocation2 + $0x18] sm:$0xff] %v7842
    %7863 = vst [vmem:[#allocation2 + $0x20] sm:$0xff] %v7843
    %7864 = vst [vmem:[#allocation2 + $0x28] sm:$0xff] %v7844
    %7865 = vst [vmem:[#allocation2 + $0x30] sm:$0xff] %v7845
    %7866 = vst [vmem:[#allocation2 + $0x38] sm:$0xff] %v7846
    %7867 = vst [vmem:[#allocation2 + $0x40] sm:$0xff] %v7847
    %7868 = vst [vmem:[#allocation2 + $0x48] sm:$0xff] %v7848
    %v7869 = vld [vmem:[#allocation2] sm:$0xff]
    %v7870 = vld [vmem:[#allocation2 + $0x8] sm:$0xff]
    %v7871 = vld [vmem:[#allocation2 + $0x10] sm:$0xff]
    %v7872 = vld [vmem:[#allocation2 + $0x18] sm:$0xff]
    %v7873 = vld [vmem:[#allocation2 + $0x20] sm:$0xff]
    %v7874 = vld [vmem:[#allocation2 + $0x28] sm:$0xff]
    %v7875 = vld [vmem:[#allocation2 + $0x30] sm:$0xff]
    %v7876 = vld [vmem:[#allocation2 + $0x38] sm:$0xff]
    %v7877 = vld [vmem:[#allocation2 + $0x40] sm:$0xff]
    %v7878 = vld [vmem:[#allocation2 + $0x48] sm:$0xff]
    %v7879 = vld [vmem:[#allocation9] sm:$0xf]
    %v7880 = vld [vmem:[#allocation9 + $0x4] sm:$0xf]
    %v7881 = vld [vmem:[#allocation9 + $0x8] sm:$0xf]
    %v7882 = vld [vmem:[#allocation9 + $0xc] sm:$0xf]
    %v7883 = vld [vmem:[#allocation9 + $0x10] sm:$0xf]
    %v7884 = vld [vmem:[#allocation9 + $0x14] sm:$0xf]
    %v7885 = vld [vmem:[#allocation9 + $0x18] sm:$0xf]
    %v7886 = vld [vmem:[#allocation9 + $0x1c] sm:$0xf]
    %v7887 = vld [vmem:[#allocation9 + $0x20] sm:$0xf]
    %v7888 = vld [vmem:[#allocation9 + $0x24] sm:$0xf]
    %v7889 = vld [vmem:[#allocation9 + $0x28] sm:$0xf]
    %v7890 = vld [vmem:[#allocation9 + $0x2c] sm:$0xf]
    %v7891 = vld [vmem:[#allocation9 + $0x30] sm:$0xf]
    %v7892 = vld [vmem:[#allocation9 + $0x34] sm:$0xf]
    %v7893 = vld [vmem:[#allocation9 + $0x38] sm:$0xf]
    %v7894 = vld [vmem:[#allocation9 + $0x3c] sm:$0xf]
    %v7895 = vld [vmem:[#allocation9 + $0x40] sm:$0xf]
    %v7896 = vld [vmem:[#allocation9 + $0x44] sm:$0xf]
    %v7897 = vld [vmem:[#allocation9 + $0x48] sm:$0xf]
    %v7898 = vld [vmem:[#allocation9 + $0x4c] sm:$0xf]
    %v7899 = vld [vmem:[#allocation9 + $0x50] sm:$0xf]
    %v7900 = vld [vmem:[#allocation9 + $0x54] sm:$0xf]
    %v7901 = vld [vmem:[#allocation9 + $0x58] sm:$0xf]
    %v7902 = vld [vmem:[#allocation9 + $0x5c] sm:$0xf]
    %v7903 = vld [vmem:[#allocation9 + $0x60] sm:$0xf]
    %v7904 = vld [vmem:[#allocation9 + $0x64] sm:$0xf]
    %v7905 = vld [vmem:[#allocation9 + $0x68] sm:$0xf]
    %v7906 = vld [vmem:[#allocation9 + $0x6c] sm:$0xf]
    %v7907 = vld [vmem:[#allocation9 + $0x70] sm:$0xf]
    %v7908 = vld [vmem:[#allocation9 + $0x74] sm:$0xf]
    %v7909 = vld [vmem:[#allocation9 + $0x78] sm:$0xf]
    %v7910 = vld [vmem:[#allocation9 + $0x7c] sm:$0xf]
    %v7911 = vld [vmem:[#allocation9 + $0x80] sm:$0xf]
    %v7912 = vld [vmem:[#allocation9 + $0x84] sm:$0xf]
    %v7913 = vld [vmem:[#allocation9 + $0x88] sm:$0xf]
    %v7914 = vld [vmem:[#allocation9 + $0x8c] sm:$0xf]
    %v7915 = vld [vmem:[#allocation9 + $0x90] sm:$0xf]
    %v7916 = vld [vmem:[#allocation9 + $0x94] sm:$0xf]
    %v7917 = vld [vmem:[#allocation9 + $0x98] sm:$0xf]
    %v7918 = vld [vmem:[#allocation9 + $0x9c] sm:$0xf]
    %v7919 = vld [vmem:[#allocation9 + $0xa0] sm:$0xf]
    %v7920 = vld [vmem:[#allocation9 + $0xa4] sm:$0xf]
    %v7921 = vld [vmem:[#allocation9 + $0xa8] sm:$0xf]
    %v7922 = vld [vmem:[#allocation9 + $0xac] sm:$0xf]
    %v7923 = vld [vmem:[#allocation9 + $0xb0] sm:$0xf]
    %v7924 = vld [vmem:[#allocation9 + $0xb4] sm:$0xf]
    %v7925 = vld [vmem:[#allocation9 + $0xb8] sm:$0xf]
    %v7926 = vld [vmem:[#allocation9 + $0xbc] sm:$0xf]
    %v7927 = vld [vmem:[#allocation9 + $0xc0] sm:$0xf]
    %v7928 = vld [vmem:[#allocation9 + $0xc4] sm:$0xf]
    %v7929 = vld [vmem:[#allocation9 + $0xc8] sm:$0xf]
    %v7930 = vld [vmem:[#allocation9 + $0xcc] sm:$0xf]
    %v7931 = vld [vmem:[#allocation9 + $0xd0] sm:$0xf]
    %v7932 = vld [vmem:[#allocation9 + $0xd4] sm:$0xf]
    %v7933 = vld [vmem:[#allocation9 + $0xd8] sm:$0xf]
    %v7934 = vld [vmem:[#allocation9 + $0xdc] sm:$0xf]
    %v7935 = vld [vmem:[#allocation9 + $0xe0] sm:$0xf]
    %v7936 = vld [vmem:[#allocation9 + $0xe4] sm:$0xf]
    %v7937 = vld [vmem:[#allocation9 + $0xe8] sm:$0xf]
    %v7938 = vld [vmem:[#allocation9 + $0xec] sm:$0xf]
    %v7939 = vld [vmem:[#allocation9 + $0xf0] sm:$0xf]
    %v7940 = vld [vmem:[#allocation9 + $0xf4] sm:$0xf]
    %v7941 = vld [vmem:[#allocation9 + $0xf8] sm:$0xf]
    %v7942 = vld [vmem:[#allocation9 + $0xfc] sm:$0xf]
    %v7943 = vld [vmem:[#allocation9 + $0x100] sm:$0xf]
    %v7944 = vld [vmem:[#allocation9 + $0x104] sm:$0xf]
    %v7945 = vld [vmem:[#allocation9 + $0x108] sm:$0xf]
    %v7946 = vld [vmem:[#allocation9 + $0x10c] sm:$0xf]
    %v7947 = vld [vmem:[#allocation9 + $0x110] sm:$0xf]
    %v7948 = vld [vmem:[#allocation9 + $0x114] sm:$0xf]
    %v7949 = vld [vmem:[#allocation9 + $0x118] sm:$0xf]
    %v7950 = vld [vmem:[#allocation9 + $0x11c] sm:$0xf]
    %v7951 = vld [vmem:[#allocation9 + $0x120] sm:$0xf]
    %v7952 = vld [vmem:[#allocation9 + $0x124] sm:$0xf]
    %v7953 = vld [vmem:[#allocation9 + $0x128] sm:$0xf]
    %v7954 = vld [vmem:[#allocation9 + $0x12c] sm:$0xf]
    %v7955 = vld [vmem:[#allocation9 + $0x130] sm:$0xf]
    %v7956 = vld [vmem:[#allocation9 + $0x134] sm:$0xf]
    %v7957 = vld [vmem:[#allocation9 + $0x138] sm:$0xf]
    %v7958 = vld [vmem:[#allocation9 + $0x13c] sm:$0xf]
    %v7959 = vld [vmem:[#allocation9 + $0x140] sm:$0xf]
    %v7960 = vld [vmem:[#allocation9 + $0x144] sm:$0xf]
    %v7961 = vld [vmem:[#allocation9 + $0x148] sm:$0xf]
    %v7962 = vld [vmem:[#allocation9 + $0x14c] sm:$0xf]
    %v7963 = vld [vmem:[#allocation9 + $0x150] sm:$0xf]
    %v7964 = vld [vmem:[#allocation9 + $0x154] sm:$0xf]
    %v7965 = vld [vmem:[#allocation9 + $0x158] sm:$0xf]
    %v7966 = vld [vmem:[#allocation9 + $0x15c] sm:$0xf]
    %v7967 = vld [vmem:[#allocation9 + $0x160] sm:$0xf]
    %v7968 = vld [vmem:[#allocation9 + $0x164] sm:$0xf]
    %v7969 = vld [vmem:[#allocation9 + $0x168] sm:$0xf]
    %v7970 = vld [vmem:[#allocation9 + $0x16c] sm:$0xf]
    %v7971 = vld [vmem:[#allocation9 + $0x170] sm:$0xf]
    %v7972 = vld [vmem:[#allocation9 + $0x174] sm:$0xf]
    %v7973 = vld [vmem:[#allocation9 + $0x178] sm:$0xf]
    %v7974 = vld [vmem:[#allocation9 + $0x17c] sm:$0xf]
    %v7975 = vld [vmem:[#allocation9 + $0x180] sm:$0xf]
    %v7976 = vld [vmem:[#allocation9 + $0x184] sm:$0xf]
    %v7977 = vld [vmem:[#allocation9 + $0x188] sm:$0xf]
    %v7978 = vld [vmem:[#allocation9 + $0x18c] sm:$0xf]
    %v7979 = vld [vmem:[#allocation9 + $0x190] sm:$0xf]
    %v7980 = vld [vmem:[#allocation9 + $0x194] sm:$0xf]
    %v7981 = vld [vmem:[#allocation9 + $0x198] sm:$0xf]
    %v7982 = vld [vmem:[#allocation9 + $0x19c] sm:$0xf]
    %v7983 = vld [vmem:[#allocation9 + $0x1a0] sm:$0xf]
    %v7984 = vld [vmem:[#allocation9 + $0x1a4] sm:$0xf]
    %v7985 = vld [vmem:[#allocation9 + $0x1a8] sm:$0xf]
    %v7986 = vld [vmem:[#allocation9 + $0x1ac] sm:$0xf]
    %v7987 = vld [vmem:[#allocation9 + $0x1b0] sm:$0xf]
    %v7988 = vld [vmem:[#allocation9 + $0x1b4] sm:$0xf]
    %v7989 = vld [vmem:[#allocation9 + $0x1b8] sm:$0xf]
    %v7990 = vld [vmem:[#allocation9 + $0x1bc] sm:$0xf]
    %v7991 = vld [vmem:[#allocation9 + $0x1c0] sm:$0xf]
    %v7992 = vld [vmem:[#allocation9 + $0x1c4] sm:$0xf]
    %v7993 = vld [vmem:[#allocation9 + $0x1c8] sm:$0xf]
    %v7994 = vld [vmem:[#allocation9 + $0x1cc] sm:$0xf]
    %v7995 = vld [vmem:[#allocation9 + $0x1d0] sm:$0xf]
    %v7996 = vld [vmem:[#allocation9 + $0x1d4] sm:$0xf]
    %v7997 = vld [vmem:[#allocation9 + $0x1d8] sm:$0xf]
    %v7998 = vld [vmem:[#allocation9 + $0x1dc] sm:$0xf]
    %v7999 = vld [vmem:[#allocation9 + $0x1e0] sm:$0xf]
    %v8000 = vld [vmem:[#allocation9 + $0x1e4] sm:$0xf]
    %v8001 = vld [vmem:[#allocation9 + $0x1e8] sm:$0xf]
    %v8002 = vld [vmem:[#allocation9 + $0x1ec] sm:$0xf]
    %v8003 = vld [vmem:[#allocation9 + $0x1f0] sm:$0xf]
    %v8004 = vld [vmem:[#allocation9 + $0x1f4] sm:$0xf]
    %v8005 = vld [vmem:[#allocation9 + $0x1f8] sm:$0xf]
    %v8006 = vld [vmem:[#allocation9 + $0x1fc] sm:$0xf]
    %v8007 = vld [vmem:[#allocation9 + $0x200] sm:$0xf]
    %v8008 = vld [vmem:[#allocation9 + $0x204] sm:$0xf]
    %v8009 = vld [vmem:[#allocation9 + $0x208] sm:$0xf]
    %v8010 = vld [vmem:[#allocation9 + $0x20c] sm:$0xf]
    %v8011 = vld [vmem:[#allocation9 + $0x210] sm:$0xf]
    %v8012 = vld [vmem:[#allocation9 + $0x214] sm:$0xf]
    %v8013 = vld [vmem:[#allocation9 + $0x218] sm:$0xf]
    %v8014 = vld [vmem:[#allocation9 + $0x21c] sm:$0xf]
    %v8015 = vld [vmem:[#allocation9 + $0x220] sm:$0xf]
    %v8016 = vld [vmem:[#allocation9 + $0x224] sm:$0xf]
    %v8017 = vld [vmem:[#allocation9 + $0x228] sm:$0xf]
    %v8018 = vld [vmem:[#allocation9 + $0x22c] sm:$0xf]
    %v8019 = vld [vmem:[#allocation9 + $0x230] sm:$0xf]
    %v8020 = vld [vmem:[#allocation9 + $0x234] sm:$0xf]
    %v8021 = vld [vmem:[#allocation9 + $0x238] sm:$0xf]
    %v8022 = vld [vmem:[#allocation9 + $0x23c] sm:$0xf]
    %v8023 = vld [vmem:[#allocation9 + $0x240] sm:$0xf]
    %v8024 = vld [vmem:[#allocation9 + $0x244] sm:$0xf]
    %v8025 = vld [vmem:[#allocation9 + $0x248] sm:$0xf]
    %v8026 = vld [vmem:[#allocation9 + $0x24c] sm:$0xf]
    %v8027 = vld [vmem:[#allocation9 + $0x250] sm:$0xf]
    %v8028 = vld [vmem:[#allocation9 + $0x254] sm:$0xf]
    %v8029 = vld [vmem:[#allocation9 + $0x258] sm:$0xf]
    %v8030 = vld [vmem:[#allocation9 + $0x25c] sm:$0xf]
    %v8031 = vld [vmem:[#allocation9 + $0x260] sm:$0xf]
    %v8032 = vld [vmem:[#allocation9 + $0x264] sm:$0xf]
    %v8033 = vld [vmem:[#allocation9 + $0x268] sm:$0xf]
    %v8034 = vld [vmem:[#allocation9 + $0x26c] sm:$0xf]
    %v8035 = vld [vmem:[#allocation9 + $0x270] sm:$0xf]
    %v8036 = vld [vmem:[#allocation9 + $0x274] sm:$0xf]
    %v8037 = vld [vmem:[#allocation9 + $0x278] sm:$0xf]
    %v8038 = vld [vmem:[#allocation9 + $0x27c] sm:$0xf]
    %v8039 = vld [vmem:[#allocation9 + $0x280] sm:$0xf]
    %v8040 = vld [vmem:[#allocation9 + $0x284] sm:$0xf]
    %v8041 = vld [vmem:[#allocation9 + $0x288] sm:$0xf]
    %v8042 = vld [vmem:[#allocation9 + $0x28c] sm:$0xf]
    %v8043 = vld [vmem:[#allocation9 + $0x290] sm:$0xf]
    %v8044 = vld [vmem:[#allocation9 + $0x294] sm:$0xf]
    %v8045 = vld [vmem:[#allocation9 + $0x298] sm:$0xf]
    %v8046 = vld [vmem:[#allocation9 + $0x29c] sm:$0xf]
    %v8047 = vld [vmem:[#allocation9 + $0x2a0] sm:$0xf]
    %v8048 = vld [vmem:[#allocation9 + $0x2a4] sm:$0xf]
    %v8049 = vld [vmem:[#allocation9 + $0x2a8] sm:$0xf]
    %v8050 = vld [vmem:[#allocation9 + $0x2ac] sm:$0xf]
    %v8051 = vld [vmem:[#allocation9 + $0x2b0] sm:$0xf]
    %v8052 = vld [vmem:[#allocation9 + $0x2b4] sm:$0xf]
    %v8053 = vld [vmem:[#allocation9 + $0x2b8] sm:$0xf]
    %v8054 = vld [vmem:[#allocation9 + $0x2bc] sm:$0xf]
    %v8055 = vld [vmem:[#allocation9 + $0x2c0] sm:$0xf]
    %v8056 = vld [vmem:[#allocation9 + $0x2c4] sm:$0xf]
    %v8057 = vld [vmem:[#allocation9 + $0x2c8] sm:$0xf]
    %v8058 = vld [vmem:[#allocation9 + $0x2cc] sm:$0xf]
    %v8059 = vld [vmem:[#allocation9 + $0x2d0] sm:$0xf]
    %v8060 = vld [vmem:[#allocation9 + $0x2d4] sm:$0xf]
    %v8061 = vld [vmem:[#allocation9 + $0x2d8] sm:$0xf]
    %v8062 = vld [vmem:[#allocation9 + $0x2dc] sm:$0xf]
    %v8063 = vld [vmem:[#allocation9 + $0x2e0] sm:$0xf]
    %v8064 = vld [vmem:[#allocation9 + $0x2e4] sm:$0xf]
    %v8065 = vld [vmem:[#allocation9 + $0x2e8] sm:$0xf]
    %v8066 = vld [vmem:[#allocation9 + $0x2ec] sm:$0xf]
    %v8067 = vld [vmem:[#allocation9 + $0x2f0] sm:$0xf]
    %v8068 = vld [vmem:[#allocation9 + $0x2f4] sm:$0xf]
    %v8069 = vld [vmem:[#allocation9 + $0x2f8] sm:$0xf]
    %v8070 = vld [vmem:[#allocation9 + $0x2fc] sm:$0xf]
    %v8071 = vld [vmem:[#allocation9 + $0x300] sm:$0xf]
    %v8072 = vld [vmem:[#allocation9 + $0x304] sm:$0xf]
    %v8073 = vld [vmem:[#allocation9 + $0x308] sm:$0xf]
    %v8074 = vld [vmem:[#allocation9 + $0x30c] sm:$0xf]
    %v8075 = vld [vmem:[#allocation9 + $0x310] sm:$0xf]
    %v8076 = vld [vmem:[#allocation9 + $0x314] sm:$0xf]
    %v8077 = vld [vmem:[#allocation9 + $0x318] sm:$0xf]
    %v8078 = vld [vmem:[#allocation9 + $0x31c] sm:$0xf]
    %v8079 = vld [vmem:[#allocation9 + $0x320] sm:$0xf]
    %v8080 = vld [vmem:[#allocation9 + $0x324] sm:$0xf]
    %v8081 = vld [vmem:[#allocation9 + $0x328] sm:$0xf]
    %v8082 = vld [vmem:[#allocation9 + $0x32c] sm:$0xf]
    %v8083 = vld [vmem:[#allocation9 + $0x330] sm:$0xf]
    %v8084 = vld [vmem:[#allocation9 + $0x334] sm:$0xf]
    %v8085 = vld [vmem:[#allocation9 + $0x338] sm:$0xf]
    %v8086 = vld [vmem:[#allocation9 + $0x33c] sm:$0xf]
    %v8087 = vld [vmem:[#allocation9 + $0x340] sm:$0xf]
    %v8088 = vld [vmem:[#allocation9 + $0x344] sm:$0xf]
    %v8089 = vld [vmem:[#allocation9 + $0x348] sm:$0xf]
    %v8090 = vld [vmem:[#allocation9 + $0x34c] sm:$0xf]
    %v8091 = vld [vmem:[#allocation9 + $0x350] sm:$0xf]
    %v8092 = vld [vmem:[#allocation9 + $0x354] sm:$0xf]
    %v8093 = vld [vmem:[#allocation9 + $0x358] sm:$0xf]
    %v8094 = vld [vmem:[#allocation9 + $0x35c] sm:$0xf]
    %v8095 = vld [vmem:[#allocation9 + $0x360] sm:$0xf]
    %v8096 = vld [vmem:[#allocation9 + $0x364] sm:$0xf]
    %v8097 = vld [vmem:[#allocation9 + $0x368] sm:$0xf]
    %v8098 = vld [vmem:[#allocation9 + $0x36c] sm:$0xf]
    %v8099 = vld [vmem:[#allocation9 + $0x370] sm:$0xf]
    %v8100 = vld [vmem:[#allocation9 + $0x374] sm:$0xf]
    %v8101 = vld [vmem:[#allocation9 + $0x378] sm:$0xf]
    %v8102 = vld [vmem:[#allocation9 + $0x37c] sm:$0xf]
    %v8103 = vld [vmem:[#allocation9 + $0x380] sm:$0xf]
    %v8104 = vld [vmem:[#allocation9 + $0x384] sm:$0xf]
    %v8105 = vld [vmem:[#allocation9 + $0x388] sm:$0xf]
    %v8106 = vld [vmem:[#allocation9 + $0x38c] sm:$0xf]
    %v8107 = vld [vmem:[#allocation9 + $0x390] sm:$0xf]
    %v8108 = vld [vmem:[#allocation9 + $0x394] sm:$0xf]
    %v8109 = vld [vmem:[#allocation9 + $0x398] sm:$0xf]
    %v8110 = vld [vmem:[#allocation9 + $0x39c] sm:$0xf]
    %v8111 = vld [vmem:[#allocation9 + $0x3a0] sm:$0xf]
    %v8112 = vld [vmem:[#allocation9 + $0x3a4] sm:$0xf]
    %v8113 = vld [vmem:[#allocation9 + $0x3a8] sm:$0xf]
    %v8114 = vld [vmem:[#allocation9 + $0x3ac] sm:$0xf]
    %v8115 = vld [vmem:[#allocation9 + $0x3b0] sm:$0xf]
    %v8116 = vld [vmem:[#allocation9 + $0x3b4] sm:$0xf]
    %v8117 = vld [vmem:[#allocation9 + $0x3b8] sm:$0xf]
    %v8118 = vld [vmem:[#allocation9 + $0x3bc] sm:$0xf]
    %v8119 = vld [vmem:[#allocation9 + $0x3c0] sm:$0xf]
    %v8120 = vld [vmem:[#allocation9 + $0x3c4] sm:$0xf]
    %v8121 = vld [vmem:[#allocation9 + $0x3c8] sm:$0xf]
    %v8122 = vld [vmem:[#allocation9 + $0x3cc] sm:$0xf]
    %v8123 = vld [vmem:[#allocation9 + $0x3d0] sm:$0xf]
    %v8124 = vld [vmem:[#allocation9 + $0x3d4] sm:$0xf]
    %v8125 = vld [vmem:[#allocation9 + $0x3d8] sm:$0xf]
    %v8126 = vld [vmem:[#allocation9 + $0x3dc] sm:$0xf]
    %v8127 = vld [vmem:[#allocation9 + $0x3e0] sm:$0xf]
    %v8128 = vld [vmem:[#allocation9 + $0x3e4] sm:$0xf]
    %v8129 = vld [vmem:[#allocation9 + $0x3e8] sm:$0xf]
    %v8130 = vld [vmem:[#allocation9 + $0x3ec] sm:$0xf]
    %v8131 = vld [vmem:[#allocation9 + $0x3f0] sm:$0xf]
    %v8132 = vld [vmem:[#allocation9 + $0x3f4] sm:$0xf]
    %v8133 = vld [vmem:[#allocation9 + $0x3f8] sm:$0xf]
    %v8134 = vld [vmem:[#allocation9 + $0x3fc] sm:$0xf]
    %v8135 = vld [vmem:[#allocation9 + $0x400] sm:$0xf]
    %v8136 = vld [vmem:[#allocation9 + $0x404] sm:$0xf]
    %v8137 = vld [vmem:[#allocation9 + $0x408] sm:$0xf]
    %v8138 = vld [vmem:[#allocation9 + $0x40c] sm:$0xf]
    %v8139 = vld [vmem:[#allocation9 + $0x410] sm:$0xf]
    %v8140 = vld [vmem:[#allocation9 + $0x414] sm:$0xf]
    %v8141 = vld [vmem:[#allocation9 + $0x418] sm:$0xf]
    %v8142 = vld [vmem:[#allocation9 + $0x41c] sm:$0xf]
    %v8143 = vld [vmem:[#allocation9 + $0x420] sm:$0xf]
    %v8144 = vld [vmem:[#allocation9 + $0x424] sm:$0xf]
    %v8145 = vld [vmem:[#allocation9 + $0x428] sm:$0xf]
    %v8146 = vld [vmem:[#allocation9 + $0x42c] sm:$0xf]
    %v8147 = vld [vmem:[#allocation9 + $0x430] sm:$0xf]
    %v8148 = vld [vmem:[#allocation9 + $0x434] sm:$0xf]
    %v8149 = vld [vmem:[#allocation9 + $0x438] sm:$0xf]
    %v8150 = vld [vmem:[#allocation9 + $0x43c] sm:$0xf]
    %v8151 = vld [vmem:[#allocation9 + $0x440] sm:$0xf]
    %v8152 = vld [vmem:[#allocation9 + $0x444] sm:$0xf]
    %v8153 = vld [vmem:[#allocation9 + $0x448] sm:$0xf]
    %v8154 = vld [vmem:[#allocation9 + $0x44c] sm:$0xf]
    %v8155 = vld [vmem:[#allocation9 + $0x450] sm:$0xf]
    %v8156 = vld [vmem:[#allocation9 + $0x454] sm:$0xf]
    %v8157 = vld [vmem:[#allocation9 + $0x458] sm:$0xf]
    %v8158 = vld [vmem:[#allocation9 + $0x45c] sm:$0xf]
    %v8159 = vld [vmem:[#allocation9 + $0x460] sm:$0xf]
    %v8160 = vld [vmem:[#allocation9 + $0x464] sm:$0xf]
    %v8161 = vld [vmem:[#allocation9 + $0x468] sm:$0xf]
    %v8162 = vld [vmem:[#allocation9 + $0x46c] sm:$0xf]
    %v8163 = vld [vmem:[#allocation9 + $0x470] sm:$0xf]
    %v8164 = vld [vmem:[#allocation9 + $0x474] sm:$0xf]
    %v8165 = vld [vmem:[#allocation9 + $0x478] sm:$0xf]
    %v8166 = vld [vmem:[#allocation9 + $0x47c] sm:$0xf]
    %v8167 = vld [vmem:[#allocation9 + $0x480] sm:$0xf]
    %v8168 = vld [vmem:[#allocation9 + $0x484] sm:$0xf]
    %v8169 = vld [vmem:[#allocation9 + $0x488] sm:$0xf]
    %v8170 = vld [vmem:[#allocation9 + $0x48c] sm:$0xf]
    %v8171 = vld [vmem:[#allocation9 + $0x490] sm:$0xf]
    %v8172 = vld [vmem:[#allocation9 + $0x494] sm:$0xf]
    %v8173 = vld [vmem:[#allocation9 + $0x498] sm:$0xf]
    %v8174 = vld [vmem:[#allocation9 + $0x49c] sm:$0xf]
    %v8175 = vld [vmem:[#allocation9 + $0x4a0] sm:$0xf]
    %v8176 = vld [vmem:[#allocation9 + $0x4a4] sm:$0xf]
    %v8177 = vld [vmem:[#allocation9 + $0x4a8] sm:$0xf]
    %v8178 = vld [vmem:[#allocation9 + $0x4ac] sm:$0xf]
    %v8179 = vld [vmem:[#allocation9 + $0x4b0] sm:$0xf]
    %v8180 = vld [vmem:[#allocation9 + $0x4b4] sm:$0xf]
    %v8181 = vld [vmem:[#allocation9 + $0x4b8] sm:$0xf]
    %v8182 = vld [vmem:[#allocation9 + $0x4bc] sm:$0xf]
    %v8183 = vld [vmem:[#allocation9 + $0x4c0] sm:$0xf]
    %v8184 = vld [vmem:[#allocation9 + $0x4c4] sm:$0xf]
    %v8185 = vld [vmem:[#allocation9 + $0x4c8] sm:$0xf]
    %v8186 = vld [vmem:[#allocation9 + $0x4cc] sm:$0xf]
    %v8187 = vld [vmem:[#allocation9 + $0x4d0] sm:$0xf]
    %v8188 = vld [vmem:[#allocation9 + $0x4d4] sm:$0xf]
    %v8189 = vld [vmem:[#allocation9 + $0x4d8] sm:$0xf]
    %v8190 = vld [vmem:[#allocation9 + $0x4dc] sm:$0xf]
    %v8191 = vld [vmem:[#allocation9 + $0x4e0] sm:$0xf]
    %v8192 = vld [vmem:[#allocation9 + $0x4e4] sm:$0xf]
    %v8193 = vld [vmem:[#allocation9 + $0x4e8] sm:$0xf]
    %v8194 = vld [vmem:[#allocation9 + $0x4ec] sm:$0xf]
    %v8195 = vld [vmem:[#allocation9 + $0x4f0] sm:$0xf]
    %v8196 = vld [vmem:[#allocation9 + $0x4f4] sm:$0xf]
    %v8197 = vld [vmem:[#allocation9 + $0x4f8] sm:$0xf]
    %v8198 = vld [vmem:[#allocation9 + $0x4fc] sm:$0xf]
    %v8199 = vld [vmem:[#allocation11] sm:$0x1]
    %v8201 = vlaneseq
    %v8202 = vshrl.u32 %v8201, 7
    %v8203 = vsub.s32 0, %v8202
    %v8204 = vrot.slane %v8199, %v8203
    %v8216 = vunpack.c.l.b16 %v7869
    %v8217 = vunpack.c.h.b16 %v7869
    %v8218 = vunpack.c.l.b16 %v7870
    %v8219 = vunpack.c.h.b16 %v7870
    %v8220 = vunpack.c.l.b16 %v7871
    %v8221 = vunpack.c.h.b16 %v7871
    %v8222 = vunpack.c.l.b16 %v7872
    %v8223 = vunpack.c.h.b16 %v7872
    %v8224 = vunpack.c.l.b16 %v7873
    %v8225 = vunpack.c.h.b16 %v7873
    %v8226 = vunpack.c.l.b16 %v7874
    %v8227 = vunpack.c.h.b16 %v7874
    %v8228 = vunpack.c.l.b16 %v7875
    %v8229 = vunpack.c.h.b16 %v7875
    %v8230 = vunpack.c.l.b16 %v7876
    %v8231 = vunpack.c.h.b16 %v7876
    %v8232 = vunpack.c.l.b16 %v7877
    %v8233 = vunpack.c.h.b16 %v7877
    %v8234 = vunpack.c.l.b16 %v7878
    %v8235 = vunpack.c.h.b16 %v7878
    %v8236 = vpack.c.b16 %v8216, %v8216
    %v8237 = vpack.c.b16 %v8217, %v8217
    %v8238 = vpack.c.b16 %v8218, %v8218
    %v8239 = vpack.c.b16 %v8219, %v8219
    %v8240 = vpack.c.b16 %v8220, %v8220
    %v8241 = vpack.c.b16 %v8221, %v8221
    %v8242 = vpack.c.b16 %v8222, %v8222
    %v8243 = vpack.c.b16 %v8223, %v8223
    %v8244 = vpack.c.b16 %v8224, %v8224
    %v8245 = vpack.c.b16 %v8225, %v8225
    %v8246 = vpack.c.b16 %v8226, %v8226
    %v8247 = vpack.c.b16 %v8227, %v8227
    %v8248 = vpack.c.b16 %v8228, %v8228
    %v8249 = vpack.c.b16 %v8229, %v8229
    %v8250 = vpack.c.b16 %v8230, %v8230
    %v8251 = vpack.c.b16 %v8231, %v8231
    %v8252 = vpack.c.b16 %v8232, %v8232
    %v8253 = vpack.c.b16 %v8233, %v8233
    %v8254 = vpack.c.b16 %v8234, %v8234
    %v8255 = vpack.c.b16 %v8235, %v8235
    %v8596 = vunpack.c.l.b16 %v7879
    %v8597 = vunpack.c.l.b16 %v7880
    %v8598 = vunpack.c.l.b16 %v7881
    %v8599 = vunpack.c.l.b16 %v7882
    %v8600 = vunpack.c.l.b16 %v7883
    %v8601 = vunpack.c.l.b16 %v7884
    %v8602 = vunpack.c.l.b16 %v7885
    %v8603 = vunpack.c.l.b16 %v7886
    %v8604 = vunpack.c.l.b16 %v7887
    %v8605 = vunpack.c.l.b16 %v7888
    %v8606 = vunpack.c.l.b16 %v7889
    %v8607 = vunpack.c.l.b16 %v7890
    %v8608 = vunpack.c.l.b16 %v7891
    %v8609 = vunpack.c.l.b16 %v7892
    %v8610 = vunpack.c.l.b16 %v7893
    %v8611 = vunpack.c.l.b16 %v7894
    %v8612 = vunpack.c.l.b16 %v7895
    %v8613 = vunpack.c.l.b16 %v7896
    %v8614 = vunpack.c.l.b16 %v7897
    %v8615 = vunpack.c.l.b16 %v7898
    %v8616 = vunpack.c.l.b16 %v7899
    %v8617 = vunpack.c.l.b16 %v7900
    %v8618 = vunpack.c.l.b16 %v7901
    %v8619 = vunpack.c.l.b16 %v7902
    %v8620 = vunpack.c.l.b16 %v7903
    %v8621 = vunpack.c.l.b16 %v7904
    %v8622 = vunpack.c.l.b16 %v7905
    %v8623 = vunpack.c.l.b16 %v7906
    %v8624 = vunpack.c.l.b16 %v7907
    %v8625 = vunpack.c.l.b16 %v7908
    %v8626 = vunpack.c.l.b16 %v7909
    %v8627 = vunpack.c.l.b16 %v7910
    %v8628 = vunpack.c.l.b16 %v7911
    %v8629 = vunpack.c.l.b16 %v7912
    %v8630 = vunpack.c.l.b16 %v7913
    %v8631 = vunpack.c.l.b16 %v7914
    %v8632 = vunpack.c.l.b16 %v7915
    %v8633 = vunpack.c.l.b16 %v7916
    %v8634 = vunpack.c.l.b16 %v7917
    %v8635 = vunpack.c.l.b16 %v7918
    %v8636 = vunpack.c.l.b16 %v7919
    %v8637 = vunpack.c.l.b16 %v7920
    %v8638 = vunpack.c.l.b16 %v7921
    %v8639 = vunpack.c.l.b16 %v7922
    %v8640 = vunpack.c.l.b16 %v7923
    %v8641 = vunpack.c.l.b16 %v7924
    %v8642 = vunpack.c.l.b16 %v7925
    %v8643 = vunpack.c.l.b16 %v7926
    %v8644 = vunpack.c.l.b16 %v7927
    %v8645 = vunpack.c.l.b16 %v7928
    %v8646 = vunpack.c.l.b16 %v7929
    %v8647 = vunpack.c.l.b16 %v7930
    %v8648 = vunpack.c.l.b16 %v7931
    %v8649 = vunpack.c.l.b16 %v7932
    %v8650 = vunpack.c.l.b16 %v7933
    %v8651 = vunpack.c.l.b16 %v7934
    %v8652 = vunpack.c.l.b16 %v7935
    %v8653 = vunpack.c.l.b16 %v7936
    %v8654 = vunpack.c.l.b16 %v7937
    %v8655 = vunpack.c.l.b16 %v7938
    %v8656 = vunpack.c.l.b16 %v7939
    %v8657 = vunpack.c.l.b16 %v7940
    %v8658 = vunpack.c.l.b16 %v7941
    %v8659 = vunpack.c.l.b16 %v7942
    %v8660 = vunpack.c.l.b16 %v7943
    %v8661 = vunpack.c.l.b16 %v7944
    %v8662 = vunpack.c.l.b16 %v7945
    %v8663 = vunpack.c.l.b16 %v7946
    %v8664 = vunpack.c.l.b16 %v7947
    %v8665 = vunpack.c.l.b16 %v7948
    %v8666 = vunpack.c.l.b16 %v7949
    %v8667 = vunpack.c.l.b16 %v7950
    %v8668 = vunpack.c.l.b16 %v7951
    %v8669 = vunpack.c.l.b16 %v7952
    %v8670 = vunpack.c.l.b16 %v7953
    %v8671 = vunpack.c.l.b16 %v7954
    %v8672 = vunpack.c.l.b16 %v7955
    %v8673 = vunpack.c.l.b16 %v7956
    %v8674 = vunpack.c.l.b16 %v7957
    %v8675 = vunpack.c.l.b16 %v7958
    %v8676 = vunpack.c.l.b16 %v7959
    %v8677 = vunpack.c.l.b16 %v7960
    %v8678 = vunpack.c.l.b16 %v7961
    %v8679 = vunpack.c.l.b16 %v7962
    %v8680 = vunpack.c.l.b16 %v7963
    %v8681 = vunpack.c.l.b16 %v7964
    %v8682 = vunpack.c.l.b16 %v7965
    %v8683 = vunpack.c.l.b16 %v7966
    %v8684 = vunpack.c.l.b16 %v7967
    %v8685 = vunpack.c.l.b16 %v7968
    %v8686 = vunpack.c.l.b16 %v7969
    %v8687 = vunpack.c.l.b16 %v7970
    %v8688 = vunpack.c.l.b16 %v7971
    %v8689 = vunpack.c.l.b16 %v7972
    %v8690 = vunpack.c.l.b16 %v7973
    %v8691 = vunpack.c.l.b16 %v7974
    %v8692 = vunpack.c.l.b16 %v7975
    %v8693 = vunpack.c.l.b16 %v7976
    %v8694 = vunpack.c.l.b16 %v7977
    %v8695 = vunpack.c.l.b16 %v7978
    %v8696 = vunpack.c.l.b16 %v7979
    %v8697 = vunpack.c.l.b16 %v7980
    %v8698 = vunpack.c.l.b16 %v7981
    %v8699 = vunpack.c.l.b16 %v7982
    %v8700 = vunpack.c.l.b16 %v7983
    %v8701 = vunpack.c.l.b16 %v7984
    %v8702 = vunpack.c.l.b16 %v7985
    %v8703 = vunpack.c.l.b16 %v7986
    %v8704 = vunpack.c.l.b16 %v7987
    %v8705 = vunpack.c.l.b16 %v7988
    %v8706 = vunpack.c.l.b16 %v7989
    %v8707 = vunpack.c.l.b16 %v7990
    %v8708 = vunpack.c.l.b16 %v7991
    %v8709 = vunpack.c.l.b16 %v7992
    %v8710 = vunpack.c.l.b16 %v7993
    %v8711 = vunpack.c.l.b16 %v7994
    %v8712 = vunpack.c.l.b16 %v7995
    %v8713 = vunpack.c.l.b16 %v7996
    %v8714 = vunpack.c.l.b16 %v7997
    %v8715 = vunpack.c.l.b16 %v7998
    %v8716 = vunpack.c.l.b16 %v7999
    %v8717 = vunpack.c.l.b16 %v8000
    %v8718 = vunpack.c.l.b16 %v8001
    %v8719 = vunpack.c.l.b16 %v8002
    %v8720 = vunpack.c.l.b16 %v8003
    %v8721 = vunpack.c.l.b16 %v8004
    %v8722 = vunpack.c.l.b16 %v8005
    %v8723 = vunpack.c.l.b16 %v8006
    %v8724 = vunpack.c.l.b16 %v8007
    %v8725 = vunpack.c.l.b16 %v8008
    %v8726 = vunpack.c.l.b16 %v8009
    %v8727 = vunpack.c.l.b16 %v8010
    %v8728 = vunpack.c.l.b16 %v8011
    %v8729 = vunpack.c.l.b16 %v8012
    %v8730 = vunpack.c.l.b16 %v8013
    %v8731 = vunpack.c.l.b16 %v8014
    %v8732 = vunpack.c.l.b16 %v8015
    %v8733 = vunpack.c.l.b16 %v8016
    %v8734 = vunpack.c.l.b16 %v8017
    %v8735 = vunpack.c.l.b16 %v8018
    %v8736 = vunpack.c.l.b16 %v8019
    %v8737 = vunpack.c.l.b16 %v8020
    %v8738 = vunpack.c.l.b16 %v8021
    %v8739 = vunpack.c.l.b16 %v8022
    %v8740 = vunpack.c.l.b16 %v8023
    %v8741 = vunpack.c.l.b16 %v8024
    %v8742 = vunpack.c.l.b16 %v8025
    %v8743 = vunpack.c.l.b16 %v8026
    %v8744 = vunpack.c.l.b16 %v8027
    %v8745 = vunpack.c.l.b16 %v8028
    %v8746 = vunpack.c.l.b16 %v8029
    %v8747 = vunpack.c.l.b16 %v8030
    %v8748 = vunpack.c.l.b16 %v8031
    %v8749 = vunpack.c.l.b16 %v8032
    %v8750 = vunpack.c.l.b16 %v8033
    %v8751 = vunpack.c.l.b16 %v8034
    %v8752 = vunpack.c.l.b16 %v8035
    %v8753 = vunpack.c.l.b16 %v8036
    %v8754 = vunpack.c.l.b16 %v8037
    %v8755 = vunpack.c.l.b16 %v8038
    %v8756 = vunpack.c.l.b16 %v8039
    %v8757 = vunpack.c.l.b16 %v8040
    %v8758 = vunpack.c.l.b16 %v8041
    %v8759 = vunpack.c.l.b16 %v8042
    %v8760 = vunpack.c.l.b16 %v8043
    %v8761 = vunpack.c.l.b16 %v8044
    %v8762 = vunpack.c.l.b16 %v8045
    %v8763 = vunpack.c.l.b16 %v8046
    %v8764 = vunpack.c.l.b16 %v8047
    %v8765 = vunpack.c.l.b16 %v8048
    %v8766 = vunpack.c.l.b16 %v8049
    %v8767 = vunpack.c.l.b16 %v8050
    %v8768 = vunpack.c.l.b16 %v8051
    %v8769 = vunpack.c.l.b16 %v8052
    %v8770 = vunpack.c.l.b16 %v8053
    %v8771 = vunpack.c.l.b16 %v8054
    %v8772 = vunpack.c.l.b16 %v8055
    %v8773 = vunpack.c.l.b16 %v8056
    %v8774 = vunpack.c.l.b16 %v8057
    %v8775 = vunpack.c.l.b16 %v8058
    %v8776 = vunpack.c.l.b16 %v8059
    %v8777 = vunpack.c.l.b16 %v8060
    %v8778 = vunpack.c.l.b16 %v8061
    %v8779 = vunpack.c.l.b16 %v8062
    %v8780 = vunpack.c.l.b16 %v8063
    %v8781 = vunpack.c.l.b16 %v8064
    %v8782 = vunpack.c.l.b16 %v8065
    %v8783 = vunpack.c.l.b16 %v8066
    %v8784 = vunpack.c.l.b16 %v8067
    %v8785 = vunpack.c.l.b16 %v8068
    %v8786 = vunpack.c.l.b16 %v8069
    %v8787 = vunpack.c.l.b16 %v8070
    %v8788 = vunpack.c.l.b16 %v8071
    %v8789 = vunpack.c.l.b16 %v8072
    %v8790 = vunpack.c.l.b16 %v8073
    %v8791 = vunpack.c.l.b16 %v8074
    %v8792 = vunpack.c.l.b16 %v8075
    %v8793 = vunpack.c.l.b16 %v8076
    %v8794 = vunpack.c.l.b16 %v8077
    %v8795 = vunpack.c.l.b16 %v8078
    %v8796 = vunpack.c.l.b16 %v8079
    %v8797 = vunpack.c.l.b16 %v8080
    %v8798 = vunpack.c.l.b16 %v8081
    %v8799 = vunpack.c.l.b16 %v8082
    %v8800 = vunpack.c.l.b16 %v8083
    %v8801 = vunpack.c.l.b16 %v8084
    %v8802 = vunpack.c.l.b16 %v8085
    %v8803 = vunpack.c.l.b16 %v8086
    %v8804 = vunpack.c.l.b16 %v8087
    %v8805 = vunpack.c.l.b16 %v8088
    %v8806 = vunpack.c.l.b16 %v8089
    %v8807 = vunpack.c.l.b16 %v8090
    %v8808 = vunpack.c.l.b16 %v8091
    %v8809 = vunpack.c.l.b16 %v8092
    %v8810 = vunpack.c.l.b16 %v8093
    %v8811 = vunpack.c.l.b16 %v8094
    %v8812 = vunpack.c.l.b16 %v8095
    %v8813 = vunpack.c.l.b16 %v8096
    %v8814 = vunpack.c.l.b16 %v8097
    %v8815 = vunpack.c.l.b16 %v8098
    %v8816 = vunpack.c.l.b16 %v8099
    %v8817 = vunpack.c.l.b16 %v8100
    %v8818 = vunpack.c.l.b16 %v8101
    %v8819 = vunpack.c.l.b16 %v8102
    %v8820 = vunpack.c.l.b16 %v8103
    %v8821 = vunpack.c.l.b16 %v8104
    %v8822 = vunpack.c.l.b16 %v8105
    %v8823 = vunpack.c.l.b16 %v8106
    %v8824 = vunpack.c.l.b16 %v8107
    %v8825 = vunpack.c.l.b16 %v8108
    %v8826 = vunpack.c.l.b16 %v8109
    %v8827 = vunpack.c.l.b16 %v8110
    %v8828 = vunpack.c.l.b16 %v8111
    %v8829 = vunpack.c.l.b16 %v8112
    %v8830 = vunpack.c.l.b16 %v8113
    %v8831 = vunpack.c.l.b16 %v8114
    %v8832 = vunpack.c.l.b16 %v8115
    %v8833 = vunpack.c.l.b16 %v8116
    %v8834 = vunpack.c.l.b16 %v8117
    %v8835 = vunpack.c.l.b16 %v8118
    %v8836 = vunpack.c.l.b16 %v8119
    %v8837 = vunpack.c.l.b16 %v8120
    %v8838 = vunpack.c.l.b16 %v8121
    %v8839 = vunpack.c.l.b16 %v8122
    %v8840 = vunpack.c.l.b16 %v8123
    %v8841 = vunpack.c.l.b16 %v8124
    %v8842 = vunpack.c.l.b16 %v8125
    %v8843 = vunpack.c.l.b16 %v8126
    %v8844 = vunpack.c.l.b16 %v8127
    %v8845 = vunpack.c.l.b16 %v8128
    %v8846 = vunpack.c.l.b16 %v8129
    %v8847 = vunpack.c.l.b16 %v8130
    %v8848 = vunpack.c.l.b16 %v8131
    %v8849 = vunpack.c.l.b16 %v8132
    %v8850 = vunpack.c.l.b16 %v8133
    %v8851 = vunpack.c.l.b16 %v8134
    %v8852 = vunpack.c.l.b16 %v8135
    %v8853 = vunpack.c.l.b16 %v8136
    %v8854 = vunpack.c.l.b16 %v8137
    %v8855 = vunpack.c.l.b16 %v8138
    %v8856 = vunpack.c.l.b16 %v8139
    %v8857 = vunpack.c.l.b16 %v8140
    %v8858 = vunpack.c.l.b16 %v8141
    %v8859 = vunpack.c.l.b16 %v8142
    %v8860 = vunpack.c.l.b16 %v8143
    %v8861 = vunpack.c.l.b16 %v8144
    %v8862 = vunpack.c.l.b16 %v8145
    %v8863 = vunpack.c.l.b16 %v8146
    %v8864 = vunpack.c.l.b16 %v8147
    %v8865 = vunpack.c.l.b16 %v8148
    %v8866 = vunpack.c.l.b16 %v8149
    %v8867 = vunpack.c.l.b16 %v8150
    %v8868 = vunpack.c.l.b16 %v8151
    %v8869 = vunpack.c.l.b16 %v8152
    %v8870 = vunpack.c.l.b16 %v8153
    %v8871 = vunpack.c.l.b16 %v8154
    %v8872 = vunpack.c.l.b16 %v8155
    %v8873 = vunpack.c.l.b16 %v8156
    %v8874 = vunpack.c.l.b16 %v8157
    %v8875 = vunpack.c.l.b16 %v8158
    %v8876 = vunpack.c.l.b16 %v8159
    %v8877 = vunpack.c.l.b16 %v8160
    %v8878 = vunpack.c.l.b16 %v8161
    %v8879 = vunpack.c.l.b16 %v8162
    %v8880 = vunpack.c.l.b16 %v8163
    %v8881 = vunpack.c.l.b16 %v8164
    %v8882 = vunpack.c.l.b16 %v8165
    %v8883 = vunpack.c.l.b16 %v8166
    %v8884 = vunpack.c.l.b16 %v8167
    %v8885 = vunpack.c.l.b16 %v8168
    %v8886 = vunpack.c.l.b16 %v8169
    %v8887 = vunpack.c.l.b16 %v8170
    %v8888 = vunpack.c.l.b16 %v8171
    %v8889 = vunpack.c.l.b16 %v8172
    %v8890 = vunpack.c.l.b16 %v8173
    %v8891 = vunpack.c.l.b16 %v8174
    %v8892 = vunpack.c.l.b16 %v8175
    %v8893 = vunpack.c.l.b16 %v8176
    %v8894 = vunpack.c.l.b16 %v8177
    %v8895 = vunpack.c.l.b16 %v8178
    %v8896 = vunpack.c.l.b16 %v8179
    %v8897 = vunpack.c.l.b16 %v8180
    %v8898 = vunpack.c.l.b16 %v8181
    %v8899 = vunpack.c.l.b16 %v8182
    %v8900 = vunpack.c.l.b16 %v8183
    %v8901 = vunpack.c.l.b16 %v8184
    %v8902 = vunpack.c.l.b16 %v8185
    %v8903 = vunpack.c.l.b16 %v8186
    %v8904 = vunpack.c.l.b16 %v8187
    %v8905 = vunpack.c.l.b16 %v8188
    %v8906 = vunpack.c.l.b16 %v8189
    %v8907 = vunpack.c.l.b16 %v8190
    %v8908 = vunpack.c.l.b16 %v8191
    %v8909 = vunpack.c.l.b16 %v8192
    %v8910 = vunpack.c.l.b16 %v8193
    %v8911 = vunpack.c.l.b16 %v8194
    %v8912 = vunpack.c.l.b16 %v8195
    %v8913 = vunpack.c.l.b16 %v8196
    %v8914 = vunpack.c.l.b16 %v8197
    %v8915 = vunpack.c.l.b16 %v8198
    %v8916 = vpack.c.b16 %v8597, %v8596
    %v8917 = vpack.c.b16 %v8599, %v8598
    %v8918 = vpack.c.b16 %v8601, %v8600
    %v8919 = vpack.c.b16 %v8603, %v8602
    %v8920 = vpack.c.b16 %v8605, %v8604
    %v8921 = vpack.c.b16 %v8607, %v8606
    %v8922 = vpack.c.b16 %v8609, %v8608
    %v8923 = vpack.c.b16 %v8611, %v8610
    %v8924 = vpack.c.b16 %v8613, %v8612
    %v8925 = vpack.c.b16 %v8615, %v8614
    %v8926 = vpack.c.b16 %v8617, %v8616
    %v8927 = vpack.c.b16 %v8619, %v8618
    %v8928 = vpack.c.b16 %v8621, %v8620
    %v8929 = vpack.c.b16 %v8623, %v8622
    %v8930 = vpack.c.b16 %v8625, %v8624
    %v8931 = vpack.c.b16 %v8627, %v8626
    %v8932 = vpack.c.b16 %v8629, %v8628
    %v8933 = vpack.c.b16 %v8631, %v8630
    %v8934 = vpack.c.b16 %v8633, %v8632
    %v8935 = vpack.c.b16 %v8635, %v8634
    %v8936 = vpack.c.b16 %v8637, %v8636
    %v8937 = vpack.c.b16 %v8639, %v8638
    %v8938 = vpack.c.b16 %v8641, %v8640
    %v8939 = vpack.c.b16 %v8643, %v8642
    %v8940 = vpack.c.b16 %v8645, %v8644
    %v8941 = vpack.c.b16 %v8647, %v8646
    %v8942 = vpack.c.b16 %v8649, %v8648
    %v8943 = vpack.c.b16 %v8651, %v8650
    %v8944 = vpack.c.b16 %v8653, %v8652
    %v8945 = vpack.c.b16 %v8655, %v8654
    %v8946 = vpack.c.b16 %v8657, %v8656
    %v8947 = vpack.c.b16 %v8659, %v8658
    %v8948 = vpack.c.b16 %v8661, %v8660
    %v8949 = vpack.c.b16 %v8663, %v8662
    %v8950 = vpack.c.b16 %v8665, %v8664
    %v8951 = vpack.c.b16 %v8667, %v8666
    %v8952 = vpack.c.b16 %v8669, %v8668
    %v8953 = vpack.c.b16 %v8671, %v8670
    %v8954 = vpack.c.b16 %v8673, %v8672
    %v8955 = vpack.c.b16 %v8675, %v8674
    %v8956 = vpack.c.b16 %v8677, %v8676
    %v8957 = vpack.c.b16 %v8679, %v8678
    %v8958 = vpack.c.b16 %v8681, %v8680
    %v8959 = vpack.c.b16 %v8683, %v8682
    %v8960 = vpack.c.b16 %v8685, %v8684
    %v8961 = vpack.c.b16 %v8687, %v8686
    %v8962 = vpack.c.b16 %v8689, %v8688
    %v8963 = vpack.c.b16 %v8691, %v8690
    %v8964 = vpack.c.b16 %v8693, %v8692
    %v8965 = vpack.c.b16 %v8695, %v8694
    %v8966 = vpack.c.b16 %v8697, %v8696
    %v8967 = vpack.c.b16 %v8699, %v8698
    %v8968 = vpack.c.b16 %v8701, %v8700
    %v8969 = vpack.c.b16 %v8703, %v8702
    %v8970 = vpack.c.b16 %v8705, %v8704
    %v8971 = vpack.c.b16 %v8707, %v8706
    %v8972 = vpack.c.b16 %v8709, %v8708
    %v8973 = vpack.c.b16 %v8711, %v8710
    %v8974 = vpack.c.b16 %v8713, %v8712
    %v8975 = vpack.c.b16 %v8715, %v8714
    %v8976 = vpack.c.b16 %v8717, %v8716
    %v8977 = vpack.c.b16 %v8719, %v8718
    %v8978 = vpack.c.b16 %v8721, %v8720
    %v8979 = vpack.c.b16 %v8723, %v8722
    %v8980 = vpack.c.b16 %v8725, %v8724
    %v8981 = vpack.c.b16 %v8727, %v8726
    %v8982 = vpack.c.b16 %v8729, %v8728
    %v8983 = vpack.c.b16 %v8731, %v8730
    %v8984 = vpack.c.b16 %v8733, %v8732
    %v8985 = vpack.c.b16 %v8735, %v8734
    %v8986 = vpack.c.b16 %v8737, %v8736
    %v8987 = vpack.c.b16 %v8739, %v8738
    %v8988 = vpack.c.b16 %v8741, %v8740
    %v8989 = vpack.c.b16 %v8743, %v8742
    %v8990 = vpack.c.b16 %v8745, %v8744
    %v8991 = vpack.c.b16 %v8747, %v8746
    %v8992 = vpack.c.b16 %v8749, %v8748
    %v8993 = vpack.c.b16 %v8751, %v8750
    %v8994 = vpack.c.b16 %v8753, %v8752
    %v8995 = vpack.c.b16 %v8755, %v8754
    %v8996 = vpack.c.b16 %v8757, %v8756
    %v8997 = vpack.c.b16 %v8759, %v8758
    %v8998 = vpack.c.b16 %v8761, %v8760
    %v8999 = vpack.c.b16 %v8763, %v8762
    %v9000 = vpack.c.b16 %v8765, %v8764
    %v9001 = vpack.c.b16 %v8767, %v8766
    %v9002 = vpack.c.b16 %v8769, %v8768
    %v9003 = vpack.c.b16 %v8771, %v8770
    %v9004 = vpack.c.b16 %v8773, %v8772
    %v9005 = vpack.c.b16 %v8775, %v8774
    %v9006 = vpack.c.b16 %v8777, %v8776
    %v9007 = vpack.c.b16 %v8779, %v8778
    %v9008 = vpack.c.b16 %v8781, %v8780
    %v9009 = vpack.c.b16 %v8783, %v8782
    %v9010 = vpack.c.b16 %v8785, %v8784
    %v9011 = vpack.c.b16 %v8787, %v8786
    %v9012 = vpack.c.b16 %v8789, %v8788
    %v9013 = vpack.c.b16 %v8791, %v8790
    %v9014 = vpack.c.b16 %v8793, %v8792
    %v9015 = vpack.c.b16 %v8795, %v8794
    %v9016 = vpack.c.b16 %v8797, %v8796
    %v9017 = vpack.c.b16 %v8799, %v8798
    %v9018 = vpack.c.b16 %v8801, %v8800
    %v9019 = vpack.c.b16 %v8803, %v8802
    %v9020 = vpack.c.b16 %v8805, %v8804
    %v9021 = vpack.c.b16 %v8807, %v8806
    %v9022 = vpack.c.b16 %v8809, %v8808
    %v9023 = vpack.c.b16 %v8811, %v8810
    %v9024 = vpack.c.b16 %v8813, %v8812
    %v9025 = vpack.c.b16 %v8815, %v8814
    %v9026 = vpack.c.b16 %v8817, %v8816
    %v9027 = vpack.c.b16 %v8819, %v8818
    %v9028 = vpack.c.b16 %v8821, %v8820
    %v9029 = vpack.c.b16 %v8823, %v8822
    %v9030 = vpack.c.b16 %v8825, %v8824
    %v9031 = vpack.c.b16 %v8827, %v8826
    %v9032 = vpack.c.b16 %v8829, %v8828
    %v9033 = vpack.c.b16 %v8831, %v8830
    %v9034 = vpack.c.b16 %v8833, %v8832
    %v9035 = vpack.c.b16 %v8835, %v8834
    %v9036 = vpack.c.b16 %v8837, %v8836
    %v9037 = vpack.c.b16 %v8839, %v8838
    %v9038 = vpack.c.b16 %v8841, %v8840
    %v9039 = vpack.c.b16 %v8843, %v8842
    %v9040 = vpack.c.b16 %v8845, %v8844
    %v9041 = vpack.c.b16 %v8847, %v8846
    %v9042 = vpack.c.b16 %v8849, %v8848
    %v9043 = vpack.c.b16 %v8851, %v8850
    %v9044 = vpack.c.b16 %v8853, %v8852
    %v9045 = vpack.c.b16 %v8855, %v8854
    %v9046 = vpack.c.b16 %v8857, %v8856
    %v9047 = vpack.c.b16 %v8859, %v8858
    %v9048 = vpack.c.b16 %v8861, %v8860
    %v9049 = vpack.c.b16 %v8863, %v8862
    %v9050 = vpack.c.b16 %v8865, %v8864
    %v9051 = vpack.c.b16 %v8867, %v8866
    %v9052 = vpack.c.b16 %v8869, %v8868
    %v9053 = vpack.c.b16 %v8871, %v8870
    %v9054 = vpack.c.b16 %v8873, %v8872
    %v9055 = vpack.c.b16 %v8875, %v8874
    %v9056 = vpack.c.b16 %v8877, %v8876
    %v9057 = vpack.c.b16 %v8879, %v8878
    %v9058 = vpack.c.b16 %v8881, %v8880
    %v9059 = vpack.c.b16 %v8883, %v8882
    %v9060 = vpack.c.b16 %v8885, %v8884
    %v9061 = vpack.c.b16 %v8887, %v8886
    %v9062 = vpack.c.b16 %v8889, %v8888
    %v9063 = vpack.c.b16 %v8891, %v8890
    %v9064 = vpack.c.b16 %v8893, %v8892
    %v9065 = vpack.c.b16 %v8895, %v8894
    %v9066 = vpack.c.b16 %v8897, %v8896
    %v9067 = vpack.c.b16 %v8899, %v8898
    %v9068 = vpack.c.b16 %v8901, %v8900
    %v9069 = vpack.c.b16 %v8903, %v8902
    %v9070 = vpack.c.b16 %v8905, %v8904
    %v9071 = vpack.c.b16 %v8907, %v8906
    %v9072 = vpack.c.b16 %v8909, %v8908
    %v9073 = vpack.c.b16 %v8911, %v8910
    %v9074 = vpack.c.b16 %v8913, %v8912
    %v9075 = vpack.c.b16 %v8915, %v8914
    %9236 = vmatprep.subr.bf16.mxu0 0
    %9237 = vmatpush1.bf16.msra.mxu0 %v8923
    %9238 = vmatprep.subr.bf16.mxu0 0
    %9239 = vmatpush1.bf16.msra.mxu0 %v8922
    %9240 = vmatprep.subr.bf16.mxu0 0
    %9241 = vmatpush1.bf16.msra.mxu0 %v8921
    %9242 = vmatprep.subr.bf16.mxu0 0
    %9243 = vmatpush1.bf16.msra.mxu0 %v8920
    %9244 = vmatprep.subr.bf16.mxu0 0
    %9245 = vmatpush1.bf16.msra.mxu0 %v8919
    %9246 = vmatprep.subr.bf16.mxu0 0
    %9247 = vmatpush1.bf16.msra.mxu0 %v8918
    %9248 = vmatprep.subr.bf16.mxu0 0
    %9249 = vmatpush1.bf16.msra.mxu0 %v8917
    %9250 = vmatprep.subr.bf16.mxu0 0
    %9251 = vmatpush1.bf16.msra.mxu0 %v8916
    %9252 = vmatprep.subr.bf16.mxu0 0
    %9253 = vmatpush2.bf16.msra.mxu0 %v8931
    %9254 = vmatprep.subr.bf16.mxu0 0
    %9255 = vmatpush2.bf16.msra.mxu0 %v8930
    %9256 = vmatprep.subr.bf16.mxu0 0
    %9257 = vmatpush2.bf16.msra.mxu0 %v8929
    %9258 = vmatprep.subr.bf16.mxu0 0
    %9259 = vmatpush2.bf16.msra.mxu0 %v8928
    %9260 = vmatprep.subr.bf16.mxu0 0
    %9261 = vmatpush2.bf16.msra.mxu0 %v8927
    %9262 = vmatprep.subr.bf16.mxu0 0
    %9263 = vmatpush2.bf16.msra.mxu0 %v8926
    %9264 = vmatprep.subr.bf16.mxu0 0
    %9265 = vmatpush2.bf16.msra.mxu0 %v8925
    %9266 = vmatprep.subr.bf16.mxu0 0
    %9267 = vmatpush2.bf16.msra.mxu0 %v8924
    %9268 = vmatprep.mubr.bf16.mxu0 %v8237
    %9269 = vmatmul.mubr.bf16.gmra.mxu0 %v8236
    %v9270 = vpop.f32.mrf.mxu0
    %v9271 = vadd.f32 %v8204, %v9270
    %v9272 = vpop.f32.mrf.mxu0
    %v9273 = vpop.f32.mrf.mxu0
    %v9274 = vpop.f32.mrf.mxu0
    %9275 = vdwg.mxu0
    %9276 = vmatprep.subr.bf16.mxu0 0
    %9277 = vmatpush1.bf16.msra.mxu0 %v8939
    %9278 = vmatprep.subr.bf16.mxu0 0
    %9279 = vmatpush1.bf16.msra.mxu0 %v8938
    %9280 = vmatprep.subr.bf16.mxu0 0
    %9281 = vmatpush1.bf16.msra.mxu0 %v8937
    %9282 = vmatprep.subr.bf16.mxu0 0
    %9283 = vmatpush1.bf16.msra.mxu0 %v8936
    %9284 = vmatprep.subr.bf16.mxu0 0
    %9285 = vmatpush1.bf16.msra.mxu0 %v8935
    %9286 = vmatprep.subr.bf16.mxu0 0
    %9287 = vmatpush1.bf16.msra.mxu0 %v8934
    %9288 = vmatprep.subr.bf16.mxu0 0
    %9289 = vmatpush1.bf16.msra.mxu0 %v8933
    %9290 = vmatprep.subr.bf16.mxu0 0
    %9291 = vmatpush1.bf16.msra.mxu0 %v8932
    %9292 = vmatprep.subr.bf16.mxu0 0
    %9293 = vmatpush2.bf16.msra.mxu0 %v8947
    %9294 = vmatprep.subr.bf16.mxu0 0
    %9295 = vmatpush2.bf16.msra.mxu0 %v8946
    %9296 = vmatprep.subr.bf16.mxu0 0
    %9297 = vmatpush2.bf16.msra.mxu0 %v8945
    %9298 = vmatprep.subr.bf16.mxu0 0
    %9299 = vmatpush2.bf16.msra.mxu0 %v8944
    %9300 = vmatprep.subr.bf16.mxu0 0
    %9301 = vmatpush2.bf16.msra.mxu0 %v8943
    %9302 = vmatprep.subr.bf16.mxu0 0
    %9303 = vmatpush2.bf16.msra.mxu0 %v8942
    %9304 = vmatprep.subr.bf16.mxu0 0
    %9305 = vmatpush2.bf16.msra.mxu0 %v8941
    %9306 = vmatprep.subr.bf16.mxu0 0
    %9307 = vmatpush2.bf16.msra.mxu0 %v8940
    %9308 = vmatprep.mubr.bf16.mxu0 %v8239
    %9309 = vmatmul.mubr.bf16.gmra.mxu0 %v8238
    %v9310 = vpop.f32.mrf.mxu0
    %v9311 = vadd.f32 %v9271, %v9310
    %v9312 = vpop.f32.mrf.mxu0
    %v9313 = vpop.f32.mrf.mxu0
    %v9314 = vpop.f32.mrf.mxu0
    %9315 = vdwg.mxu0
    %9316 = vmatprep.subr.bf16.mxu0 0
    %9317 = vmatpush1.bf16.msra.mxu0 %v8955
    %9318 = vmatprep.subr.bf16.mxu0 0
    %9319 = vmatpush1.bf16.msra.mxu0 %v8954
    %9320 = vmatprep.subr.bf16.mxu0 0
    %9321 = vmatpush1.bf16.msra.mxu0 %v8953
    %9322 = vmatprep.subr.bf16.mxu0 0
    %9323 = vmatpush1.bf16.msra.mxu0 %v8952
    %9324 = vmatprep.subr.bf16.mxu0 0
    %9325 = vmatpush1.bf16.msra.mxu0 %v8951
    %9326 = vmatprep.subr.bf16.mxu0 0
    %9327 = vmatpush1.bf16.msra.mxu0 %v8950
    %9328 = vmatprep.subr.bf16.mxu0 0
    %9329 = vmatpush1.bf16.msra.mxu0 %v8949
    %9330 = vmatprep.subr.bf16.mxu0 0
    %9331 = vmatpush1.bf16.msra.mxu0 %v8948
    %9332 = vmatprep.subr.bf16.mxu0 0
    %9333 = vmatpush2.bf16.msra.mxu0 %v8963
    %9334 = vmatprep.subr.bf16.mxu0 0
    %9335 = vmatpush2.bf16.msra.mxu0 %v8962
    %9336 = vmatprep.subr.bf16.mxu0 0
    %9337 = vmatpush2.bf16.msra.mxu0 %v8961
    %9338 = vmatprep.subr.bf16.mxu0 0
    %9339 = vmatpush2.bf16.msra.mxu0 %v8960
    %9340 = vmatprep.subr.bf16.mxu0 0
    %9341 = vmatpush2.bf16.msra.mxu0 %v8959
    %9342 = vmatprep.subr.bf16.mxu0 0
    %9343 = vmatpush2.bf16.msra.mxu0 %v8958
    %9344 = vmatprep.subr.bf16.mxu0 0
    %9345 = vmatpush2.bf16.msra.mxu0 %v8957
    %9346 = vmatprep.subr.bf16.mxu0 0
    %9347 = vmatpush2.bf16.msra.mxu0 %v8956
    %9348 = vmatprep.mubr.bf16.mxu0 %v8241
    %9349 = vmatmul.mubr.bf16.gmra.mxu0 %v8240
    %v9350 = vpop.f32.mrf.mxu0
    %v9351 = vadd.f32 %v9311, %v9350
    %v9352 = vpop.f32.mrf.mxu0
    %v9353 = vpop.f32.mrf.mxu0
    %v9354 = vpop.f32.mrf.mxu0
    %9355 = vdwg.mxu0
    %9356 = vmatprep.subr.bf16.mxu0 0
    %9357 = vmatpush1.bf16.msra.mxu0 %v8971
    %9358 = vmatprep.subr.bf16.mxu0 0
    %9359 = vmatpush1.bf16.msra.mxu0 %v8970
    %9360 = vmatprep.subr.bf16.mxu0 0
    %9361 = vmatpush1.bf16.msra.mxu0 %v8969
    %9362 = vmatprep.subr.bf16.mxu0 0
    %9363 = vmatpush1.bf16.msra.mxu0 %v8968
    %9364 = vmatprep.subr.bf16.mxu0 0
    %9365 = vmatpush1.bf16.msra.mxu0 %v8967
    %9366 = vmatprep.subr.bf16.mxu0 0
    %9367 = vmatpush1.bf16.msra.mxu0 %v8966
    %9368 = vmatprep.subr.bf16.mxu0 0
    %9369 = vmatpush1.bf16.msra.mxu0 %v8965
    %9370 = vmatprep.subr.bf16.mxu0 0
    %9371 = vmatpush1.bf16.msra.mxu0 %v8964
    %9372 = vmatprep.subr.bf16.mxu0 0
    %9373 = vmatpush2.bf16.msra.mxu0 %v8979
    %9374 = vmatprep.subr.bf16.mxu0 0
    %9375 = vmatpush2.bf16.msra.mxu0 %v8978
    %9376 = vmatprep.subr.bf16.mxu0 0
    %9377 = vmatpush2.bf16.msra.mxu0 %v8977
    %9378 = vmatprep.subr.bf16.mxu0 0
    %9379 = vmatpush2.bf16.msra.mxu0 %v8976
    %9380 = vmatprep.subr.bf16.mxu0 0
    %9381 = vmatpush2.bf16.msra.mxu0 %v8975
    %9382 = vmatprep.subr.bf16.mxu0 0
    %9383 = vmatpush2.bf16.msra.mxu0 %v8974
    %9384 = vmatprep.subr.bf16.mxu0 0
    %9385 = vmatpush2.bf16.msra.mxu0 %v8973
    %9386 = vmatprep.subr.bf16.mxu0 0
    %9387 = vmatpush2.bf16.msra.mxu0 %v8972
    %9388 = vmatprep.mubr.bf16.mxu0 %v8243
    %9389 = vmatmul.mubr.bf16.gmra.mxu0 %v8242
    %v9390 = vpop.f32.mrf.mxu0
    %v9391 = vadd.f32 %v9351, %v9390
    %v9392 = vpop.f32.mrf.mxu0
    %v9393 = vpop.f32.mrf.mxu0
    %v9394 = vpop.f32.mrf.mxu0
    %9395 = vdwg.mxu0
    %9396 = vmatprep.subr.bf16.mxu0 0
    %9397 = vmatpush1.bf16.msra.mxu0 %v8987
    %9398 = vmatprep.subr.bf16.mxu0 0
    %9399 = vmatpush1.bf16.msra.mxu0 %v8986
    %9400 = vmatprep.subr.bf16.mxu0 0
    %9401 = vmatpush1.bf16.msra.mxu0 %v8985
    %9402 = vmatprep.subr.bf16.mxu0 0
    %9403 = vmatpush1.bf16.msra.mxu0 %v8984
    %9404 = vmatprep.subr.bf16.mxu0 0
    %9405 = vmatpush1.bf16.msra.mxu0 %v8983
    %9406 = vmatprep.subr.bf16.mxu0 0
    %9407 = vmatpush1.bf16.msra.mxu0 %v8982
    %9408 = vmatprep.subr.bf16.mxu0 0
    %9409 = vmatpush1.bf16.msra.mxu0 %v8981
    %9410 = vmatprep.subr.bf16.mxu0 0
    %9411 = vmatpush1.bf16.msra.mxu0 %v8980
    %9412 = vmatprep.subr.bf16.mxu0 0
    %9413 = vmatpush2.bf16.msra.mxu0 %v8995
    %9414 = vmatprep.subr.bf16.mxu0 0
    %9415 = vmatpush2.bf16.msra.mxu0 %v8994
    %9416 = vmatprep.subr.bf16.mxu0 0
    %9417 = vmatpush2.bf16.msra.mxu0 %v8993
    %9418 = vmatprep.subr.bf16.mxu0 0
    %9419 = vmatpush2.bf16.msra.mxu0 %v8992
    %9420 = vmatprep.subr.bf16.mxu0 0
    %9421 = vmatpush2.bf16.msra.mxu0 %v8991
    %9422 = vmatprep.subr.bf16.mxu0 0
    %9423 = vmatpush2.bf16.msra.mxu0 %v8990
    %9424 = vmatprep.subr.bf16.mxu0 0
    %9425 = vmatpush2.bf16.msra.mxu0 %v8989
    %9426 = vmatprep.subr.bf16.mxu0 0
    %9427 = vmatpush2.bf16.msra.mxu0 %v8988
    %9428 = vmatprep.mubr.bf16.mxu0 %v8245
    %9429 = vmatmul.mubr.bf16.gmra.mxu0 %v8244
    %v9430 = vpop.f32.mrf.mxu0
    %v9431 = vadd.f32 %v9391, %v9430
    %v9432 = vpop.f32.mrf.mxu0
    %v9433 = vpop.f32.mrf.mxu0
    %v9434 = vpop.f32.mrf.mxu0
    %9435 = vdwg.mxu0
    %9436 = vmatprep.subr.bf16.mxu0 0
    %9437 = vmatpush1.bf16.msra.mxu0 %v9003
    %9438 = vmatprep.subr.bf16.mxu0 0
    %9439 = vmatpush1.bf16.msra.mxu0 %v9002
    %9440 = vmatprep.subr.bf16.mxu0 0
    %9441 = vmatpush1.bf16.msra.mxu0 %v9001
    %9442 = vmatprep.subr.bf16.mxu0 0
    %9443 = vmatpush1.bf16.msra.mxu0 %v9000
    %9444 = vmatprep.subr.bf16.mxu0 0
    %9445 = vmatpush1.bf16.msra.mxu0 %v8999
    %9446 = vmatprep.subr.bf16.mxu0 0
    %9447 = vmatpush1.bf16.msra.mxu0 %v8998
    %9448 = vmatprep.subr.bf16.mxu0 0
    %9449 = vmatpush1.bf16.msra.mxu0 %v8997
    %9450 = vmatprep.subr.bf16.mxu0 0
    %9451 = vmatpush1.bf16.msra.mxu0 %v8996
    %9452 = vmatprep.subr.bf16.mxu0 0
    %9453 = vmatpush2.bf16.msra.mxu0 %v9011
    %9454 = vmatprep.subr.bf16.mxu0 0
    %9455 = vmatpush2.bf16.msra.mxu0 %v9010
    %9456 = vmatprep.subr.bf16.mxu0 0
    %9457 = vmatpush2.bf16.msra.mxu0 %v9009
    %9458 = vmatprep.subr.bf16.mxu0 0
    %9459 = vmatpush2.bf16.msra.mxu0 %v9008
    %9460 = vmatprep.subr.bf16.mxu0 0
    %9461 = vmatpush2.bf16.msra.mxu0 %v9007
    %9462 = vmatprep.subr.bf16.mxu0 0
    %9463 = vmatpush2.bf16.msra.mxu0 %v9006
    %9464 = vmatprep.subr.bf16.mxu0 0
    %9465 = vmatpush2.bf16.msra.mxu0 %v9005
    %9466 = vmatprep.subr.bf16.mxu0 0
    %9467 = vmatpush2.bf16.msra.mxu0 %v9004
    %9468 = vmatprep.mubr.bf16.mxu0 %v8247
    %9469 = vmatmul.mubr.bf16.gmra.mxu0 %v8246
    %v9470 = vpop.f32.mrf.mxu0
    %v9471 = vadd.f32 %v9431, %v9470
    %v9472 = vpop.f32.mrf.mxu0
    %v9473 = vpop.f32.mrf.mxu0
    %v9474 = vpop.f32.mrf.mxu0
    %9475 = vdwg.mxu0
    %9476 = vmatprep.subr.bf16.mxu0 0
    %9477 = vmatpush1.bf16.msra.mxu0 %v9019
    %9478 = vmatprep.subr.bf16.mxu0 0
    %9479 = vmatpush1.bf16.msra.mxu0 %v9018
    %9480 = vmatprep.subr.bf16.mxu0 0
    %9481 = vmatpush1.bf16.msra.mxu0 %v9017
    %9482 = vmatprep.subr.bf16.mxu0 0
    %9483 = vmatpush1.bf16.msra.mxu0 %v9016
    %9484 = vmatprep.subr.bf16.mxu0 0
    %9485 = vmatpush1.bf16.msra.mxu0 %v9015
    %9486 = vmatprep.subr.bf16.mxu0 0
    %9487 = vmatpush1.bf16.msra.mxu0 %v9014
    %9488 = vmatprep.subr.bf16.mxu0 0
    %9489 = vmatpush1.bf16.msra.mxu0 %v9013
    %9490 = vmatprep.subr.bf16.mxu0 0
    %9491 = vmatpush1.bf16.msra.mxu0 %v9012
    %9492 = vmatprep.subr.bf16.mxu0 0
    %9493 = vmatpush2.bf16.msra.mxu0 %v9027
    %9494 = vmatprep.subr.bf16.mxu0 0
    %9495 = vmatpush2.bf16.msra.mxu0 %v9026
    %9496 = vmatprep.subr.bf16.mxu0 0
    %9497 = vmatpush2.bf16.msra.mxu0 %v9025
    %9498 = vmatprep.subr.bf16.mxu0 0
    %9499 = vmatpush2.bf16.msra.mxu0 %v9024
    %9500 = vmatprep.subr.bf16.mxu0 0
    %9501 = vmatpush2.bf16.msra.mxu0 %v9023
    %9502 = vmatprep.subr.bf16.mxu0 0
    %9503 = vmatpush2.bf16.msra.mxu0 %v9022
    %9504 = vmatprep.subr.bf16.mxu0 0
    %9505 = vmatpush2.bf16.msra.mxu0 %v9021
    %9506 = vmatprep.subr.bf16.mxu0 0
    %9507 = vmatpush2.bf16.msra.mxu0 %v9020
    %9508 = vmatprep.mubr.bf16.mxu0 %v8249
    %9509 = vmatmul.mubr.bf16.gmra.mxu0 %v8248
    %v9510 = vpop.f32.mrf.mxu0
    %v9511 = vadd.f32 %v9471, %v9510
    %v9512 = vpop.f32.mrf.mxu0
    %v9513 = vpop.f32.mrf.mxu0
    %v9514 = vpop.f32.mrf.mxu0
    %9515 = vdwg.mxu0
    %9516 = vmatprep.subr.bf16.mxu0 0
    %9517 = vmatpush1.bf16.msra.mxu0 %v9035
    %9518 = vmatprep.subr.bf16.mxu0 0
    %9519 = vmatpush1.bf16.msra.mxu0 %v9034
    %9520 = vmatprep.subr.bf16.mxu0 0
    %9521 = vmatpush1.bf16.msra.mxu0 %v9033
    %9522 = vmatprep.subr.bf16.mxu0 0
    %9523 = vmatpush1.bf16.msra.mxu0 %v9032
    %9524 = vmatprep.subr.bf16.mxu0 0
    %9525 = vmatpush1.bf16.msra.mxu0 %v9031
    %9526 = vmatprep.subr.bf16.mxu0 0
    %9527 = vmatpush1.bf16.msra.mxu0 %v9030
    %9528 = vmatprep.subr.bf16.mxu0 0
    %9529 = vmatpush1.bf16.msra.mxu0 %v9029
    %9530 = vmatprep.subr.bf16.mxu0 0
    %9531 = vmatpush1.bf16.msra.mxu0 %v9028
    %9532 = vmatprep.subr.bf16.mxu0 0
    %9533 = vmatpush2.bf16.msra.mxu0 %v9043
    %9534 = vmatprep.subr.bf16.mxu0 0
    %9535 = vmatpush2.bf16.msra.mxu0 %v9042
    %9536 = vmatprep.subr.bf16.mxu0 0
    %9537 = vmatpush2.bf16.msra.mxu0 %v9041
    %9538 = vmatprep.subr.bf16.mxu0 0
    %9539 = vmatpush2.bf16.msra.mxu0 %v9040
    %9540 = vmatprep.subr.bf16.mxu0 0
    %9541 = vmatpush2.bf16.msra.mxu0 %v9039
    %9542 = vmatprep.subr.bf16.mxu0 0
    %9543 = vmatpush2.bf16.msra.mxu0 %v9038
    %9544 = vmatprep.subr.bf16.mxu0 0
    %9545 = vmatpush2.bf16.msra.mxu0 %v9037
    %9546 = vmatprep.subr.bf16.mxu0 0
    %9547 = vmatpush2.bf16.msra.mxu0 %v9036
    %9548 = vmatprep.mubr.bf16.mxu0 %v8251
    %9549 = vmatmul.mubr.bf16.gmra.mxu0 %v8250
    %v9550 = vpop.f32.mrf.mxu0
    %v9551 = vadd.f32 %v9511, %v9550
    %v9552 = vpop.f32.mrf.mxu0
    %v9553 = vpop.f32.mrf.mxu0
    %v9554 = vpop.f32.mrf.mxu0
    %9555 = vdwg.mxu0
    %9556 = vmatprep.subr.bf16.mxu0 0
    %9557 = vmatpush1.bf16.msra.mxu0 %v9051
    %9558 = vmatprep.subr.bf16.mxu0 0
    %9559 = vmatpush1.bf16.msra.mxu0 %v9050
    %9560 = vmatprep.subr.bf16.mxu0 0
    %9561 = vmatpush1.bf16.msra.mxu0 %v9049
    %9562 = vmatprep.subr.bf16.mxu0 0
    %9563 = vmatpush1.bf16.msra.mxu0 %v9048
    %9564 = vmatprep.subr.bf16.mxu0 0
    %9565 = vmatpush1.bf16.msra.mxu0 %v9047
    %9566 = vmatprep.subr.bf16.mxu0 0
    %9567 = vmatpush1.bf16.msra.mxu0 %v9046
    %9568 = vmatprep.subr.bf16.mxu0 0
    %9569 = vmatpush1.bf16.msra.mxu0 %v9045
    %9570 = vmatprep.subr.bf16.mxu0 0
    %9571 = vmatpush1.bf16.msra.mxu0 %v9044
    %9572 = vmatprep.subr.bf16.mxu0 0
    %9573 = vmatpush2.bf16.msra.mxu0 %v9059
    %9574 = vmatprep.subr.bf16.mxu0 0
    %9575 = vmatpush2.bf16.msra.mxu0 %v9058
    %9576 = vmatprep.subr.bf16.mxu0 0
    %9577 = vmatpush2.bf16.msra.mxu0 %v9057
    %9578 = vmatprep.subr.bf16.mxu0 0
    %9579 = vmatpush2.bf16.msra.mxu0 %v9056
    %9580 = vmatprep.subr.bf16.mxu0 0
    %9581 = vmatpush2.bf16.msra.mxu0 %v9055
    %9582 = vmatprep.subr.bf16.mxu0 0
    %9583 = vmatpush2.bf16.msra.mxu0 %v9054
    %9584 = vmatprep.subr.bf16.mxu0 0
    %9585 = vmatpush2.bf16.msra.mxu0 %v9053
    %9586 = vmatprep.subr.bf16.mxu0 0
    %9587 = vmatpush2.bf16.msra.mxu0 %v9052
    %9588 = vmatprep.mubr.bf16.mxu0 %v8253
    %9589 = vmatmul.mubr.bf16.gmra.mxu0 %v8252
    %v9590 = vpop.f32.mrf.mxu0
    %v9591 = vadd.f32 %v9551, %v9590
    %v9592 = vpop.f32.mrf.mxu0
    %v9593 = vpop.f32.mrf.mxu0
    %v9594 = vpop.f32.mrf.mxu0
    %9595 = vdwg.mxu0
    %9596 = vmatprep.subr.bf16.mxu0 0
    %9597 = vmatpush1.bf16.msra.mxu0 %v9067
    %9598 = vmatprep.subr.bf16.mxu0 0
    %9599 = vmatpush1.bf16.msra.mxu0 %v9066
    %9600 = vmatprep.subr.bf16.mxu0 0
    %9601 = vmatpush1.bf16.msra.mxu0 %v9065
    %9602 = vmatprep.subr.bf16.mxu0 0
    %9603 = vmatpush1.bf16.msra.mxu0 %v9064
    %9604 = vmatprep.subr.bf16.mxu0 0
    %9605 = vmatpush1.bf16.msra.mxu0 %v9063
    %9606 = vmatprep.subr.bf16.mxu0 0
    %9607 = vmatpush1.bf16.msra.mxu0 %v9062
    %9608 = vmatprep.subr.bf16.mxu0 0
    %9609 = vmatpush1.bf16.msra.mxu0 %v9061
    %9610 = vmatprep.subr.bf16.mxu0 0
    %9611 = vmatpush1.bf16.msra.mxu0 %v9060
    %9612 = vmatprep.subr.bf16.mxu0 0
    %9613 = vmatpush2.bf16.msra.mxu0 %v9075
    %9614 = vmatprep.subr.bf16.mxu0 0
    %9615 = vmatpush2.bf16.msra.mxu0 %v9074
    %9616 = vmatprep.subr.bf16.mxu0 0
    %9617 = vmatpush2.bf16.msra.mxu0 %v9073
    %9618 = vmatprep.subr.bf16.mxu0 0
    %9619 = vmatpush2.bf16.msra.mxu0 %v9072
    %9620 = vmatprep.subr.bf16.mxu0 0
    %9621 = vmatpush2.bf16.msra.mxu0 %v9071
    %9622 = vmatprep.subr.bf16.mxu0 0
    %9623 = vmatpush2.bf16.msra.mxu0 %v9070
    %9624 = vmatprep.subr.bf16.mxu0 0
    %9625 = vmatpush2.bf16.msra.mxu0 %v9069
    %9626 = vmatprep.subr.bf16.mxu0 0
    %9627 = vmatpush2.bf16.msra.mxu0 %v9068
    %9628 = vmatprep.mubr.bf16.mxu0 %v8255
    %9629 = vmatmul.mubr.bf16.gmra.mxu0 %v8254
    %v9630 = vpop.f32.mrf.mxu0
    %v9631 = vadd.f32 %v9591, %v9630
    %v9632 = vpop.f32.mrf.mxu0
    %v9633 = vpop.f32.mrf.mxu0
    %v9634 = vpop.f32.mrf.mxu0
    %9635 = vdwg.mxu0
    %v9636 = vpack.c.bf16 %v9631, %v9631
    %v9637 = vld [vmem:[#allocation12] sm:$0xf]
    %v9638 = vld [vmem:[#allocation12 + $0x4] sm:$0xf]
    %v9639 = vld [vmem:[#allocation12 + $0x8] sm:$0xf]
    %v9640 = vld [vmem:[#allocation12 + $0xc] sm:$0xf]
    %v9641 = vld [vmem:[#allocation12 + $0x10] sm:$0xf]
    %v9642 = vld [vmem:[#allocation12 + $0x14] sm:$0xf]
    %v9643 = vld [vmem:[#allocation12 + $0x18] sm:$0xf]
    %v9644 = vld [vmem:[#allocation12 + $0x1c] sm:$0xf]
    %v9645 = vld [vmem:[#allocation12 + $0x20] sm:$0xf]
    %v9646 = vld [vmem:[#allocation12 + $0x24] sm:$0xf]
    %v9647 = vld [vmem:[#allocation12 + $0x28] sm:$0xf]
    %v9648 = vld [vmem:[#allocation12 + $0x2c] sm:$0xf]
    %v9649 = vld [vmem:[#allocation12 + $0x30] sm:$0xf]
    %v9650 = vld [vmem:[#allocation12 + $0x34] sm:$0xf]
    %v9651 = vld [vmem:[#allocation12 + $0x38] sm:$0xf]
    %v9652 = vld [vmem:[#allocation12 + $0x3c] sm:$0xf]
    %v9653 = vld [vmem:[#allocation14] sm:$0x1]
    %v9655 = vlaneseq
    %v9656 = vshrl.u32 %v9655, 7
    %v9657 = vsub.s32 0, %v9656
    %v9658 = vrot.slane %v9653, %v9657
    %v9676 = vunpack.c.l.b16 %v9637
    %v9677 = vunpack.c.l.b16 %v9638
    %v9678 = vunpack.c.l.b16 %v9639
    %v9679 = vunpack.c.l.b16 %v9640
    %v9680 = vunpack.c.l.b16 %v9641
    %v9681 = vunpack.c.l.b16 %v9642
    %v9682 = vunpack.c.l.b16 %v9643
    %v9683 = vunpack.c.l.b16 %v9644
    %v9684 = vunpack.c.l.b16 %v9645
    %v9685 = vunpack.c.l.b16 %v9646
    %v9686 = vunpack.c.l.b16 %v9647
    %v9687 = vunpack.c.l.b16 %v9648
    %v9688 = vunpack.c.l.b16 %v9649
    %v9689 = vunpack.c.l.b16 %v9650
    %v9690 = vunpack.c.l.b16 %v9651
    %v9691 = vunpack.c.l.b16 %v9652
    %v9692 = vpack.c.b16 %v9677, %v9676
    %v9693 = vpack.c.b16 %v9679, %v9678
    %v9694 = vpack.c.b16 %v9681, %v9680
    %v9695 = vpack.c.b16 %v9683, %v9682
    %v9696 = vpack.c.b16 %v9685, %v9684
    %v9697 = vpack.c.b16 %v9687, %v9686
    %v9698 = vpack.c.b16 %v9689, %v9688
    %v9699 = vpack.c.b16 %v9691, %v9690
    %9708 = vmatprep.subr.bf16.mxu0 0
    %9709 = vmatpush1.bf16.msra.mxu0 %v9699
    %9710 = vmatprep.subr.bf16.mxu0 0
    %9711 = vmatpush1.bf16.msra.mxu0 %v9698
    %9712 = vmatprep.subr.bf16.mxu0 0
    %9713 = vmatpush1.bf16.msra.mxu0 %v9697
    %9714 = vmatprep.subr.bf16.mxu0 0
    %9715 = vmatpush1.bf16.msra.mxu0 %v9696
    %9716 = vmatprep.subr.bf16.mxu0 0
    %9717 = vmatpush1.bf16.msra.mxu0 %v9695
    %9718 = vmatprep.subr.bf16.mxu0 0
    %9719 = vmatpush1.bf16.msra.mxu0 %v9694
    %9720 = vmatprep.subr.bf16.mxu0 0
    %9721 = vmatpush1.bf16.msra.mxu0 %v9693
    %9722 = vmatprep.subr.bf16.mxu0 0
    %9723 = vmatpush1.bf16.msra.mxu0 %v9692
    %9724 = vmatprep.subr.bf16.mxu0 0
    %9725 = vmatpush2.bf16.msra.mxu0 0
    %9726 = vmatprep.subr.bf16.mxu0 0
    %9727 = vmatpush2.bf16.msra.mxu0 0
    %9728 = vmatprep.subr.bf16.mxu0 0
    %9729 = vmatpush2.bf16.msra.mxu0 0
    %9730 = vmatprep.subr.bf16.mxu0 0
    %9731 = vmatpush2.bf16.msra.mxu0 0
    %9732 = vmatprep.subr.bf16.mxu0 0
    %9733 = vmatpush2.bf16.msra.mxu0 0
    %9734 = vmatprep.subr.bf16.mxu0 0
    %9735 = vmatpush2.bf16.msra.mxu0 0
    %9736 = vmatprep.subr.bf16.mxu0 0
    %9737 = vmatpush2.bf16.msra.mxu0 0
    %9738 = vmatprep.subr.bf16.mxu0 0
    %9739 = vmatpush2.bf16.msra.mxu0 0
    %9740 = vmatprep.mubr.bf16.mxu0 0
    %9741 = vmatmul.mubr.bf16.gmra.mxu0 %v9636
    %v9742 = vpop.f32.mrf.mxu0
    %v9743 = vadd.f32 %v9658, %v9742
    %v9744 = vpop.f32.mrf.mxu0
    %v9745 = vpop.f32.mrf.mxu0
    %v9746 = vpop.f32.mrf.mxu0
    %9747 = vdwg.mxu0
    %9748 = vst [vmem:[#allocation15] sm:$0xff] %v9743
    // Predicated region
    $region58: #{tpu_custom_call.1} parent=1 // pred_check
      _
    $region59: #{tpu_custom_call.1} parent=1 // pred_check_branch
      %9750 = sbr.rel (0) target = $region61
    $region60: #{tpu_custom_call.1} parent=1 // pred_region
      %s9752 = ssub.s32 128, 128
      %9753 = vsyncadd [#allocation5], %s9752
      %s9755 = sshll.u32 [#allocation15], 4
      %s9756 = int_to_ptr.vmem [resolvable:$true] %s9755
      %9758 = dma.vmem_to_hbm [thread:$0]  %s9756, 128, %s7, [#allocation5]
    $region61: #{tpu_custom_call.1} parent=1 // pred_fallthru
      _
    // Predicated region
    $region62: #{tpu_custom_call.1} parent=1 // pred_check
      _
    $region63: #{tpu_custom_call.1} parent=1 // pred_check_branch
      %9760 = sbr.rel (0) target = $region65
    $region64: #{tpu_custom_call.1} parent=1 // pred_region
      %9761 = dma.done [#allocation5], 128
    $region65: #{tpu_custom_call.1} parent=1 // pred_fallthru
      _
    %9762 = vsyncpa [#allocation4], 1
    %9763 = vsyncpa [#allocation7], 1
    %9764 = vsyncpa [#allocation10], 1
    %9765 = vsyncpa [#allocation13], 1
    %9766 = vsyncpa [#allocation5], 1

</llo_original>
